<compile_context>
chip_gen: v5e
topology: v5e:2x2
jax: 0.10.0
libtpu: 0.0.40
codegen_flags: <defaults>
</compile_context>

<pallas_src>
import functools

import jax
import jax.numpy as jnp
from jax.experimental import pallas as pl
from jax.experimental.pallas import tpu as pltpu


# ----------------------------------------------------------------------------
# In-kernel helpers (trace-time Python; all operands are VMEM values, f32)
# ----------------------------------------------------------------------------
def _layernorm(x, g, b):
    # PyTorch LayerNorm, eps=1e-5; x: (N, D), g/b: (1, D).
    mean = jnp.mean(x, axis=-1, keepdims=True)
    var = jnp.mean((x - mean) ** 2, axis=-1, keepdims=True)
    return (x - mean) * jax.lax.rsqrt(var + 1e-5) * g + b


def _attention(q, k, v, *, batch, t_q, t_k, n_heads, mask):
    # q: (batch*t_q, D), k/v: (batch*t_k, D). Heads batched into ONE einsum
    # (batch dim = heads); small static Python loop over batch rows only for the
    # score/context step (B is tiny); returns the concatenated (batch*t_q, D)
    # context so the output projection is a single (N,D)@(D,D) matmul outside.
    D = q.shape[-1]
    hd = D // n_heads
    scale = 1.0 / float(hd) ** 0.5
    outs = []
    for b in range(batch):
        qb = q[b * t_q:(b + 1) * t_q].reshape(t_q, n_heads, hd).transpose(1, 0, 2)
        kb = k[b * t_k:(b + 1) * t_k].reshape(t_k, n_heads, hd).transpose(1, 0, 2)
        vb = v[b * t_k:(b + 1) * t_k].reshape(t_k, n_heads, hd).transpose(1, 0, 2)
        s = jnp.einsum("hqd,hkd->hqk", qb, kb,
                       preferred_element_type=jnp.float32) * scale
        if mask is not None:
            s = jnp.where(mask, s, -1e30)            # finite mask, no -inf hazard
        s = s - jnp.max(s, axis=-1, keepdims=True)
        p = jnp.exp(s)
        p = p * pl.reciprocal(jnp.sum(p, axis=-1, keepdims=True), approx=True)
        ctx = jnp.einsum("hqk,hkd->hqd", p, vb,
                         preferred_element_type=jnp.float32)      # (H, t_q, hd)
        outs.append(ctx.transpose(1, 0, 2).reshape(t_q, D))
    return jnp.concatenate(outs, axis=0)             # (batch*t_q, D)


# ----------------------------------------------------------------------------
# One fused kernel: 3 decoder blocks + final LN + (lane-padded) logits linear
# ----------------------------------------------------------------------------
def _decoder_fused_kernel(x_ref, enc_ref, w_dd_ref, w_ff1_ref, w_ff2_ref,
                          vec_ref, b1_ref, fin_ref, ow_ref, ob_ref, o_ref,
                          *, n_blocks, n_head, num_heads, batch, t_dec, t_enc):
    x = x_ref[...]          # (B*T, D)
    enc = enc_ref[...]      # (B*S, D)

    # Causal mask built once, reused by every block's self-attention.
    row = jax.lax.broadcasted_iota(jnp.int32, (t_dec, t_dec), 0)
    col = jax.lax.broadcasted_iota(jnp.int32, (t_dec, t_dec), 1)
    causal = col <= row

    for blk in range(n_blocks):
        vec = vec_ref[blk]                      # (15, D) bias / LN slab (value)
        ln1_g, ln1_b = vec[0:1], vec[1:2]
        sa_bq, sa_bk, sa_bv, sa_bo = vec[2:3], vec[3:4], vec[4:5], vec[5:6]
        ln2_g, ln2_b = vec[6:7], vec[7:8]
        ca_bq, ca_bk, ca_bv, ca_bo = vec[8:9], vec[9:10], vec[10:11], vec[11:12]
        ln3_g, ln3_b = vec[12:13], vec[13:14]
        ff_b2 = vec[14:15]
        b1 = b1_ref[blk]                        # (1, 4D)

        # ---- causal self-attention (pre-norm); residual folded into epilogue.
        h = _layernorm(x, ln1_g, ln1_b)
        q = jnp.dot(h, w_dd_ref[blk, 0], preferred_element_type=jnp.float32) + sa_bq
        k = jnp.dot(h, w_dd_ref[blk, 1], preferred_element_type=jnp.float32) + sa_bk
        v = jnp.dot(h, w_dd_ref[blk, 2], preferred_element_type=jnp.float32) + sa_bv
        ctx = _attention(q, k, v, batch=batch, t_q=t_dec, t_k=t_dec,
                         n_heads=n_head, mask=causal)
        x = x + jnp.dot(ctx, w_dd_ref[blk, 3],
                        preferred_element_type=jnp.float32) + sa_bo

        # ---- cross-attention (K/V from encoder memory).
        h = _layernorm(x, ln2_g, ln2_b)
        q = jnp.dot(h, w_dd_ref[blk, 4], preferred_element_type=jnp.float32) + ca_bq
        k = jnp.dot(enc, w_dd_ref[blk, 5], preferred_element_type=jnp.float32) + ca_bk
        v = jnp.dot(enc, w_dd_ref[blk, 6], preferred_element_type=jnp.float32) + ca_bv
        ctx = _attention(q, k, v, batch=batch, t_q=t_dec, t_k=t_enc,
                         n_heads=num_heads, mask=None)
        x = x + jnp.dot(ctx, w_dd_ref[blk, 7],
                        preferred_element_type=jnp.float32) + ca_bo

        # ---- FFN; 4D-wide hidden never leaves VMEM/vregs, residual in epilogue.
        h = _layernorm(x, ln3_g, ln3_b)
        hid = jnp.maximum(
            jnp.dot(h, w_ff1_ref[blk], preferred_element_type=jnp.float32) + b1, 0.0)
        x = x + jnp.dot(hid, w_ff2_ref[blk],
                        preferred_element_type=jnp.float32) + ff_b2

    # ---- final LN + logits projection (lane-dense: out_w padded to 128 cols).
    fin = fin_ref[...]                          # (2, D): [ln_g; ln_b]
    x = _layernorm(x, fin[0:1], fin[1:2])
    logits = jnp.dot(x, ow_ref[...], preferred_element_type=jnp.float32) + ob_ref[...]
    o_ref[...] = logits.astype(o_ref.dtype)     # (B*T, 128) unmasked full-lane store


# ----------------------------------------------------------------------------
# Parameter packing: ~64 tensors -> 8 coalesced slabs (few DMAs, leading-axis
# slicing inside the kernel; no lane extraction).
# ----------------------------------------------------------------------------
def pack_params(params):
    w_dd, w_ff1, w_ff2, vec, b1 = [], [], [], [], []
    for blk in params["blocks"]:
        w_dd.append(jnp.stack([blk["sa_wq"], blk["sa_wk"], blk["sa_wv"], blk["sa_wo"],
                               blk["ca_wq"], blk["ca_wk"], blk["ca_wv"], blk["ca_wo"]]))
        w_ff1.append(blk["ff_w1"])
        w_ff2.append(blk["ff_w2"])
        vec.append(jnp.stack([blk["ln1_g"], blk["ln1_b"],
                              blk["sa_bq"], blk["sa_bk"], blk["sa_bv"], blk["sa_bo"],
                              blk["ln2_g"], blk["ln2_b"],
                              blk["ca_bq"], blk["ca_bk"], blk["ca_bv"], blk["ca_bo"],
                              blk["ln3_g"], blk["ln3_b"], blk["ff_b2"]]))
        b1.append(blk["ff_b1"][None, :])

    D, C = params["out_w"].shape
    c_pad = pl.cdiv(C, 128) * 128
    out_w_pad = jnp.zeros((D, c_pad), jnp.float32).at[:, :C].set(params["out_w"])
    out_b_pad = jnp.zeros((1, c_pad), jnp.float32).at[0, :C].set(params["out_b"])

    return {
        "tok_table": params["tok_table"],
        "pos_table": params["pos_table"],
        "w_dd": jnp.stack(w_dd),          # (3, 8, D, D)
        "w_ff1": jnp.stack(w_ff1),        # (3, D, 4D)
        "w_ff2": jnp.stack(w_ff2),        # (3, 4D, D)
        "vec": jnp.stack(vec),            # (3, 15, D)
        "b1": jnp.stack(b1),              # (3, 1, 4D)
        "fin": jnp.stack([params["ln_g"], params["ln_b"]]),   # (2, D)
        "out_w": out_w_pad,               # (D, 128)
        "out_b": out_b_pad,               # (1, 128)
    }


# ----------------------------------------------------------------------------
# Wrapper: single pallas_call (plus one tiny XLA embedding gather)
# ----------------------------------------------------------------------------
@functools.partial(jax.jit, static_argnames=("n_head", "num_heads", "num_classes"))
def decoder_forward(txt, enc_emb, packed, *, n_head, num_heads, num_classes):
    B, T = txt.shape
    S = enc_emb.shape[1]
    D = packed["tok_table"].shape[1]
    c_pad = packed["out_w"].shape[1]
    n_blocks = packed["w_dd"].shape[0]
    assert D % n_head == 0 and D % num_heads == 0

    # Token + positional embedding: one tiny XLA gather/add feeding the kernel
    # (data-dependent gather has no clean single-launch Pallas form at this size).
    x0 = jnp.take(packed["tok_table"], txt, axis=0) + packed["pos_table"][:T][None]
    x0 = x0.reshape(B * T, D).astype(jnp.float32)
    enc = enc_emb.reshape(B * S, D).astype(jnp.float32)

    kern = functools.partial(_decoder_fused_kernel,
                             n_blocks=n_blocks, n_head=n_head, num_heads=num_heads,
                             batch=B, t_dec=T, t_enc=S)

    # No grid: one program, every operand resident whole-array in VMEM
    # (no per-step pipelining overhead, no double-buffered weight copies).
    logits_pad = pl.pallas_call(
        kern,
        out_shape=jax.ShapeDtypeStruct((B * T, c_pad), jnp.float32),
    )(x0, enc, packed["w_dd"], packed["w_ff1"], packed["w_ff2"],
      packed["vec"], packed["b1"], packed["fin"], packed["out_w"], packed["out_b"])

    return logits_pad.reshape(B, T, c_pad)[..., :num_classes]


# ----------------------------------------------------------------------------
# Deterministic parameter construction (standard per-layer layout; packed later)
# ----------------------------------------------------------------------------
def init_params(key, num_classes, d_model, block_size):
    def nrm(k, shape, scale=0.02):
        return scale * jax.random.normal(k, shape, dtype=jnp.float32)

    keys = iter(jax.random.split(key, 256))
    D = d_model
    hidden = 4 * d_model
    params = {
        "tok_table": nrm(next(keys), (num_classes, D), 1.0),
        "pos_table": nrm(next(keys), (block_size, D), 1.0),
        "ln_g": jnp.ones((D,), jnp.float32),
        "ln_b": jnp.zeros((D,), jnp.float32),
        "out_w": nrm(next(keys), (D, num_classes)),
        "out_b": jnp.zeros((num_classes,), jnp.float32),
        "blocks": [],
    }
    for _ in range(3):
        blk = {
            "ln1_g": jnp.ones((D,), jnp.float32), "ln1_b": jnp.zeros((D,), jnp.float32),
            "sa_wq": nrm(next(keys), (D, D)), "sa_bq": jnp.zeros((D,), jnp.float32),
            "sa_wk": nrm(next(keys), (D, D)), "sa_bk": jnp.zeros((D,), jnp.float32),
            "sa_wv": nrm(next(keys), (D, D)), "sa_bv": jnp.zeros((D,), jnp.float32),
            "sa_wo": nrm(next(keys), (D, D)), "sa_bo": jnp.zeros((D,), jnp.float32),
            "ln2_g": jnp.ones((D,), jnp.float32), "ln2_b": jnp.zeros((D,), jnp.float32),
            "ca_wq": nrm(next(keys), (D, D)), "ca_bq": jnp.zeros((D,), jnp.float32),
            "ca_wk": nrm(next(keys), (D, D)), "ca_bk": jnp.zeros((D,), jnp.float32),
            "ca_wv": nrm(next(keys), (D, D)), "ca_bv": jnp.zeros((D,), jnp.float32),
            "ca_wo": nrm(next(keys), (D, D)), "ca_bo": jnp.zeros((D,), jnp.float32),
            "ln3_g": jnp.ones((D,), jnp.float32), "ln3_b": jnp.zeros((D,), jnp.float32),
            "ff_w1": nrm(next(keys), (D, hidden)), "ff_b1": jnp.zeros((hidden,), jnp.float32),
            "ff_w2": nrm(next(keys), (hidden, D)), "ff_b2": jnp.zeros((D,), jnp.float32),
        }
        params["blocks"].append(blk)
    return params


# ----------------------------------------------------------------------------
if __name__ == "__main__":
    num_classes = 16
    d_model = 32
    block_size = 8
    n_head = 4
    num_heads = 4
    B, T = 2, 8          # decoder sequence length == block_size
    T_enc = 8            # encoder sequence length

    key = jax.random.PRNGKey(0)
    k_tok, k_enc, k_par = jax.random.split(key, 3)

    txt = jax.random.randint(k_tok, (B, T), 0, num_classes, dtype=jnp.int32)
    enc_emb = jax.random.normal(k_enc, (B, T_enc, d_model), dtype=jnp.float32)
    params = init_params(k_par, num_classes, d_model, block_size)
    packed = pack_params(params)

    logits = decoder_forward(txt, enc_emb, packed,
                             n_head=n_head, num_heads=num_heads,
                             num_classes=num_classes)
    logits = jax.block_until_ready(logits)

    assert logits.shape == (B, T, num_classes)
    assert bool(jnp.all(jnp.isfinite(logits)))
    print("KERNEL_OK")
</pallas_src>

<mosaic_0001>
module attributes {stable_mosaic.version = 11 : i64} {
  func.func @_decoder_fused_kernel(%arg0: memref<16x32xf32, #tpu.memory_space<vmem>>, %arg1: memref<16x32xf32, #tpu.memory_space<vmem>>, %arg2: memref<3x8x32x32xf32, #tpu.memory_space<vmem>>, %arg3: memref<3x32x128xf32, #tpu.memory_space<vmem>>, %arg4: memref<3x128x32xf32, #tpu.memory_space<vmem>>, %arg5: memref<3x15x32xf32, #tpu.memory_space<vmem>>, %arg6: memref<3x1x128xf32, #tpu.memory_space<vmem>>, %arg7: memref<2x32xf32, #tpu.memory_space<vmem>>, %arg8: memref<32x128xf32, #tpu.memory_space<vmem>>, %arg9: memref<1x128xf32, #tpu.memory_space<vmem>>, %arg10: memref<16x128xf32, #tpu.memory_space<vmem>>) attributes {dimension_semantics = [], scalar_prefetch = 0 : i64, scratch_operands = 0 : i64, tpu.core_type = #tpu.core_type<tc>} {
    %c0 = arith.constant 0 : index
    %c0_0 = arith.constant 0 : index
    %0 = vector.load %arg0[%c0, %c0_0] : memref<16x32xf32, #tpu.memory_space<vmem>>, vector<16x32xf32>
    %c0_1 = arith.constant 0 : index
    %c0_2 = arith.constant 0 : index
    %1 = vector.load %arg1[%c0_1, %c0_2] : memref<16x32xf32, #tpu.memory_space<vmem>>, vector<16x32xf32>
    %2 = tpu.iota {dimensions = array<i32: 0>} : vector<8x8xi32>
    %3 = tpu.iota {dimensions = array<i32: 1>} : vector<8x8xi32>
    %4 = arith.cmpi sle, %3, %2 : vector<8x8xi32>
    %c0_3 = arith.constant 0 : index
    %c0_4 = arith.constant 0 : index
    %c0_5 = arith.constant 0 : index
    %5 = vector.load %arg5[%c0_3, %c0_4, %c0_5] : memref<3x15x32xf32, #tpu.memory_space<vmem>>, vector<1x15x32xf32>
    %6 = vector.shape_cast %5 : vector<1x15x32xf32> to vector<15x32xf32>
    %7 = vector.extract_strided_slice %6 {offsets = [0, 0], sizes = [1, 32], strides = [1, 1]} : vector<15x32xf32> to vector<1x32xf32>
    %8 = vector.extract_strided_slice %6 {offsets = [1, 0], sizes = [1, 32], strides = [1, 1]} : vector<15x32xf32> to vector<1x32xf32>
    %9 = vector.extract_strided_slice %6 {offsets = [2, 0], sizes = [1, 32], strides = [1, 1]} : vector<15x32xf32> to vector<1x32xf32>
    %10 = vector.extract_strided_slice %6 {offsets = [3, 0], sizes = [1, 32], strides = [1, 1]} : vector<15x32xf32> to vector<1x32xf32>
    %11 = vector.extract_strided_slice %6 {offsets = [4, 0], sizes = [1, 32], strides = [1, 1]} : vector<15x32xf32> to vector<1x32xf32>
    %12 = vector.extract_strided_slice %6 {offsets = [5, 0], sizes = [1, 32], strides = [1, 1]} : vector<15x32xf32> to vector<1x32xf32>
    %13 = vector.extract_strided_slice %6 {offsets = [6, 0], sizes = [1, 32], strides = [1, 1]} : vector<15x32xf32> to vector<1x32xf32>
    %14 = vector.extract_strided_slice %6 {offsets = [7, 0], sizes = [1, 32], strides = [1, 1]} : vector<15x32xf32> to vector<1x32xf32>
    %15 = vector.extract_strided_slice %6 {offsets = [8, 0], sizes = [1, 32], strides = [1, 1]} : vector<15x32xf32> to vector<1x32xf32>
    %16 = vector.extract_strided_slice %6 {offsets = [9, 0], sizes = [1, 32], strides = [1, 1]} : vector<15x32xf32> to vector<1x32xf32>
    %17 = vector.extract_strided_slice %6 {offsets = [10, 0], sizes = [1, 32], strides = [1, 1]} : vector<15x32xf32> to vector<1x32xf32>
    %18 = vector.extract_strided_slice %6 {offsets = [11, 0], sizes = [1, 32], strides = [1, 1]} : vector<15x32xf32> to vector<1x32xf32>
    %19 = vector.extract_strided_slice %6 {offsets = [12, 0], sizes = [1, 32], strides = [1, 1]} : vector<15x32xf32> to vector<1x32xf32>
    %20 = vector.extract_strided_slice %6 {offsets = [13, 0], sizes = [1, 32], strides = [1, 1]} : vector<15x32xf32> to vector<1x32xf32>
    %21 = vector.extract_strided_slice %6 {offsets = [14, 0], sizes = [1, 32], strides = [1, 1]} : vector<15x32xf32> to vector<1x32xf32>
    %c0_6 = arith.constant 0 : index
    %c0_7 = arith.constant 0 : index
    %c0_8 = arith.constant 0 : index
    %22 = vector.load %arg6[%c0_6, %c0_7, %c0_8] : memref<3x1x128xf32, #tpu.memory_space<vmem>>, vector<1x1x128xf32>
    %23 = vector.shape_cast %22 : vector<1x1x128xf32> to vector<1x128xf32>
    %cst = arith.constant dense<0.000000e+00> : vector<16xf32>
    %24 = vector.multi_reduction <add>, %0, %cst [1] : vector<16x32xf32> to vector<16xf32>
    %25 = vector.shape_cast %24 : vector<16xf32> to vector<16x1xf32>
    %cst_9 = arith.constant 3.200000e+01 : f32
    %26 = vector.broadcast %cst_9 : f32 to vector<16x1xf32>
    %27 = arith.divf %25, %26 : vector<16x1xf32>
    %28 = vector.broadcast %27 : vector<16x1xf32> to vector<16x32xf32>
    %29 = arith.subf %0, %28 : vector<16x32xf32>
    %30 = arith.mulf %29, %29 : vector<16x32xf32>
    %cst_10 = arith.constant dense<0.000000e+00> : vector<16xf32>
    %31 = vector.multi_reduction <add>, %30, %cst_10 [1] : vector<16x32xf32> to vector<16xf32>
    %32 = vector.shape_cast %31 : vector<16xf32> to vector<16x1xf32>
    %cst_11 = arith.constant 3.200000e+01 : f32
    %33 = vector.broadcast %cst_11 : f32 to vector<16x1xf32>
    %34 = arith.divf %32, %33 : vector<16x1xf32>
    %35 = vector.broadcast %27 : vector<16x1xf32> to vector<16x32xf32>
    %36 = arith.subf %0, %35 : vector<16x32xf32>
    %cst_12 = arith.constant 9.99999974E-6 : f32
    %37 = vector.broadcast %cst_12 : f32 to vector<16x1xf32>
    %38 = arith.addf %34, %37 : vector<16x1xf32>
    %39 = math.rsqrt %38 : vector<16x1xf32>
    %40 = vector.broadcast %39 : vector<16x1xf32> to vector<16x32xf32>
    %41 = arith.mulf %36, %40 : vector<16x32xf32>
    %42 = vector.broadcast %7 : vector<1x32xf32> to vector<16x32xf32>
    %43 = arith.mulf %41, %42 : vector<16x32xf32>
    %44 = vector.broadcast %8 : vector<1x32xf32> to vector<16x32xf32>
    %45 = arith.addf %43, %44 : vector<16x32xf32>
    %c0_13 = arith.constant 0 : index
    %c0_14 = arith.constant 0 : index
    %c0_15 = arith.constant 0 : index
    %c0_16 = arith.constant 0 : index
    %46 = vector.load %arg2[%c0_13, %c0_14, %c0_15, %c0_16] : memref<3x8x32x32xf32, #tpu.memory_space<vmem>>, vector<1x1x32x32xf32>
    %47 = vector.shape_cast %46 : vector<1x1x32x32xf32> to vector<32x32xf32>
    %cst_17 = arith.constant dense<0.000000e+00> : vector<16x32xf32>
    %48 = tpu.matmul %45, %47, %cst_17 {dimension_numbers = #tpu.dot_dimension_numbers<[1], [0], [0], [1], [0, 0, 1, 1], [], []>} : vector<16x32xf32>, vector<32x32xf32>, vector<16x32xf32> -> vector<16x32xf32>
    %49 = vector.broadcast %9 : vector<1x32xf32> to vector<16x32xf32>
    %50 = arith.addf %48, %49 : vector<16x32xf32>
    %c0_18 = arith.constant 0 : index
    %c1 = arith.constant 1 : index
    %c0_19 = arith.constant 0 : index
    %c0_20 = arith.constant 0 : index
    %51 = vector.load %arg2[%c0_18, %c1, %c0_19, %c0_20] : memref<3x8x32x32xf32, #tpu.memory_space<vmem>>, vector<1x1x32x32xf32>
    %52 = vector.shape_cast %51 : vector<1x1x32x32xf32> to vector<32x32xf32>
    %cst_21 = arith.constant dense<0.000000e+00> : vector<16x32xf32>
    %53 = tpu.matmul %45, %52, %cst_21 {dimension_numbers = #tpu.dot_dimension_numbers<[1], [0], [0], [1], [0, 0, 1, 1], [], []>} : vector<16x32xf32>, vector<32x32xf32>, vector<16x32xf32> -> vector<16x32xf32>
    %54 = vector.broadcast %10 : vector<1x32xf32> to vector<16x32xf32>
    %55 = arith.addf %53, %54 : vector<16x32xf32>
    %c0_22 = arith.constant 0 : index
    %c2 = arith.constant 2 : index
    %c0_23 = arith.constant 0 : index
    %c0_24 = arith.constant 0 : index
    %56 = vector.load %arg2[%c0_22, %c2, %c0_23, %c0_24] : memref<3x8x32x32xf32, #tpu.memory_space<vmem>>, vector<1x1x32x32xf32>
    %57 = vector.shape_cast %56 : vector<1x1x32x32xf32> to vector<32x32xf32>
    %cst_25 = arith.constant dense<0.000000e+00> : vector<16x32xf32>
    %58 = tpu.matmul %45, %57, %cst_25 {dimension_numbers = #tpu.dot_dimension_numbers<[1], [0], [0], [1], [0, 0, 1, 1], [], []>} : vector<16x32xf32>, vector<32x32xf32>, vector<16x32xf32> -> vector<16x32xf32>
    %59 = vector.broadcast %11 : vector<1x32xf32> to vector<16x32xf32>
    %60 = arith.addf %58, %59 : vector<16x32xf32>
    %61 = vector.extract_strided_slice %50 {offsets = [0, 0], sizes = [8, 32], strides = [1, 1]} : vector<16x32xf32> to vector<8x32xf32>
    %62 = vector.shape_cast %61 : vector<8x32xf32> to vector<8x4x8xf32>
    %63 = tpu.transpose %62, [1, 0, 2] : vector<8x4x8xf32> -> vector<4x8x8xf32>
    %64 = vector.extract_strided_slice %55 {offsets = [0, 0], sizes = [8, 32], strides = [1, 1]} : vector<16x32xf32> to vector<8x32xf32>
    %65 = vector.shape_cast %64 : vector<8x32xf32> to vector<8x4x8xf32>
    %66 = tpu.transpose %65, [1, 0, 2] : vector<8x4x8xf32> -> vector<4x8x8xf32>
    %67 = vector.extract_strided_slice %60 {offsets = [0, 0], sizes = [8, 32], strides = [1, 1]} : vector<16x32xf32> to vector<8x32xf32>
    %68 = vector.shape_cast %67 : vector<8x32xf32> to vector<8x4x8xf32>
    %69 = tpu.transpose %68, [1, 0, 2] : vector<8x4x8xf32> -> vector<4x8x8xf32>
    "tpu.trace_start"() <{level = 10 : i32, message = "hqd,hkd->hqk"}> : () -> ()
    %cst_26 = arith.constant dense<0.000000e+00> : vector<4x8x8xf32>
    %70 = tpu.matmul %63, %66, %cst_26 {dimension_numbers = #tpu.dot_dimension_numbers<[2], [2], [1], [1], [0, 0, 0, 1, 1, 1], [0], [0]>} : vector<4x8x8xf32>, vector<4x8x8xf32>, vector<4x8x8xf32> -> vector<4x8x8xf32>
    "tpu.trace_stop"() : () -> ()
    %cst_27 = arith.constant 0.353553385 : f32
    %71 = vector.broadcast %cst_27 : f32 to vector<4x8x8xf32>
    %72 = arith.mulf %70, %71 : vector<4x8x8xf32>
    %cst_28 = arith.constant -1.000000e+30 : f32
    %73 = vector.shape_cast %4 : vector<8x8xi1> to vector<1x8x8xi1>
    %74 = vector.broadcast %73 : vector<1x8x8xi1> to vector<4x8x8xi1>
    %75 = vector.broadcast %cst_28 : f32 to vector<4x8x8xf32>
    %76 = arith.select %74, %72, %75 : vector<4x8x8xi1>, vector<4x8x8xf32>
    %cst_29 = arith.constant dense<0xFF800000> : vector<4x8xf32>
    %77 = vector.multi_reduction <maximumf>, %76, %cst_29 [2] : vector<4x8x8xf32> to vector<4x8xf32>
    %78 = vector.shape_cast %77 : vector<4x8xf32> to vector<4x8x1xf32>
    %79 = vector.broadcast %78 : vector<4x8x1xf32> to vector<4x8x8xf32>
    %80 = arith.subf %76, %79 : vector<4x8x8xf32>
    %81 = math.exp %80 : vector<4x8x8xf32>
    %cst_30 = arith.constant dense<0.000000e+00> : vector<4x8xf32>
    %82 = vector.multi_reduction <add>, %81, %cst_30 [2] : vector<4x8x8xf32> to vector<4x8xf32>
    %83 = vector.shape_cast %82 : vector<4x8xf32> to vector<4x8x1xf32>
    %84 = tpu.reciprocal %83 {approx = true} : vector<4x8x1xf32> -> vector<4x8x1xf32>
    %85 = vector.broadcast %84 : vector<4x8x1xf32> to vector<4x8x8xf32>
    %86 = arith.mulf %81, %85 : vector<4x8x8xf32>
    "tpu.trace_start"() <{level = 10 : i32, message = "hqk,hkd->hqd"}> : () -> ()
    %cst_31 = arith.constant dense<0.000000e+00> : vector<4x8x8xf32>
    %87 = tpu.matmul %86, %69, %cst_31 {dimension_numbers = #tpu.dot_dimension_numbers<[2], [1], [1], [2], [0, 0, 0, 1, 1, 2], [0], [0]>} : vector<4x8x8xf32>, vector<4x8x8xf32>, vector<4x8x8xf32> -> vector<4x8x8xf32>
    "tpu.trace_stop"() : () -> ()
    %88 = tpu.transpose %87, [1, 0, 2] : vector<4x8x8xf32> -> vector<8x4x8xf32>
    %89 = vector.shape_cast %88 : vector<8x4x8xf32> to vector<8x32xf32>
    %90 = vector.extract_strided_slice %50 {offsets = [8, 0], sizes = [8, 32], strides = [1, 1]} : vector<16x32xf32> to vector<8x32xf32>
    %91 = vector.shape_cast %90 : vector<8x32xf32> to vector<8x4x8xf32>
    %92 = tpu.transpose %91, [1, 0, 2] : vector<8x4x8xf32> -> vector<4x8x8xf32>
    %93 = vector.extract_strided_slice %55 {offsets = [8, 0], sizes = [8, 32], strides = [1, 1]} : vector<16x32xf32> to vector<8x32xf32>
    %94 = vector.shape_cast %93 : vector<8x32xf32> to vector<8x4x8xf32>
    %95 = tpu.transpose %94, [1, 0, 2] : vector<8x4x8xf32> -> vector<4x8x8xf32>
    %96 = vector.extract_strided_slice %60 {offsets = [8, 0], sizes = [8, 32], strides = [1, 1]} : vector<16x32xf32> to vector<8x32xf32>
    %97 = vector.shape_cast %96 : vector<8x32xf32> to vector<8x4x8xf32>
    %98 = tpu.transpose %97, [1, 0, 2] : vector<8x4x8xf32> -> vector<4x8x8xf32>
    "tpu.trace_start"() <{level = 10 : i32, message = "hqd,hkd->hqk"}> : () -> ()
    %cst_32 = arith.constant dense<0.000000e+00> : vector<4x8x8xf32>
    %99 = tpu.matmul %92, %95, %cst_32 {dimension_numbers = #tpu.dot_dimension_numbers<[2], [2], [1], [1], [0, 0, 0, 1, 1, 1], [0], [0]>} : vector<4x8x8xf32>, vector<4x8x8xf32>, vector<4x8x8xf32> -> vector<4x8x8xf32>
    "tpu.trace_stop"() : () -> ()
    %cst_33 = arith.constant 0.353553385 : f32
    %100 = vector.broadcast %cst_33 : f32 to vector<4x8x8xf32>
    %101 = arith.mulf %99, %100 : vector<4x8x8xf32>
    %cst_34 = arith.constant -1.000000e+30 : f32
    %102 = vector.shape_cast %4 : vector<8x8xi1> to vector<1x8x8xi1>
    %103 = vector.broadcast %102 : vector<1x8x8xi1> to vector<4x8x8xi1>
    %104 = vector.broadcast %cst_34 : f32 to vector<4x8x8xf32>
    %105 = arith.select %103, %101, %104 : vector<4x8x8xi1>, vector<4x8x8xf32>
    %cst_35 = arith.constant dense<0xFF800000> : vector<4x8xf32>
    %106 = vector.multi_reduction <maximumf>, %105, %cst_35 [2] : vector<4x8x8xf32> to vector<4x8xf32>
    %107 = vector.shape_cast %106 : vector<4x8xf32> to vector<4x8x1xf32>
    %108 = vector.broadcast %107 : vector<4x8x1xf32> to vector<4x8x8xf32>
    %109 = arith.subf %105, %108 : vector<4x8x8xf32>
    %110 = math.exp %109 : vector<4x8x8xf32>
    %cst_36 = arith.constant dense<0.000000e+00> : vector<4x8xf32>
    %111 = vector.multi_reduction <add>, %110, %cst_36 [2] : vector<4x8x8xf32> to vector<4x8xf32>
    %112 = vector.shape_cast %111 : vector<4x8xf32> to vector<4x8x1xf32>
    %113 = tpu.reciprocal %112 {approx = true} : vector<4x8x1xf32> -> vector<4x8x1xf32>
    %114 = vector.broadcast %113 : vector<4x8x1xf32> to vector<4x8x8xf32>
    %115 = arith.mulf %110, %114 : vector<4x8x8xf32>
    "tpu.trace_start"() <{level = 10 : i32, message = "hqk,hkd->hqd"}> : () -> ()
    %cst_37 = arith.constant dense<0.000000e+00> : vector<4x8x8xf32>
    %116 = tpu.matmul %115, %98, %cst_37 {dimension_numbers = #tpu.dot_dimension_numbers<[2], [1], [1], [2], [0, 0, 0, 1, 1, 2], [0], [0]>} : vector<4x8x8xf32>, vector<4x8x8xf32>, vector<4x8x8xf32> -> vector<4x8x8xf32>
    "tpu.trace_stop"() : () -> ()
    %117 = tpu.transpose %116, [1, 0, 2] : vector<4x8x8xf32> -> vector<8x4x8xf32>
    %118 = vector.shape_cast %117 : vector<8x4x8xf32> to vector<8x32xf32>
    %119 = tpu.concatenate %89, %118 in 0 : vector<8x32xf32>, vector<8x32xf32> -> vector<16x32xf32>
    %c0_38 = arith.constant 0 : index
    %c3 = arith.constant 3 : index
    %c0_39 = arith.constant 0 : index
    %c0_40 = arith.constant 0 : index
    %120 = vector.load %arg2[%c0_38, %c3, %c0_39, %c0_40] : memref<3x8x32x32xf32, #tpu.memory_space<vmem>>, vector<1x1x32x32xf32>
    %121 = vector.shape_cast %120 : vector<1x1x32x32xf32> to vector<32x32xf32>
    %cst_41 = arith.constant dense<0.000000e+00> : vector<16x32xf32>
    %122 = tpu.matmul %119, %121, %cst_41 {dimension_numbers = #tpu.dot_dimension_numbers<[1], [0], [0], [1], [0, 0, 1, 1], [], []>} : vector<16x32xf32>, vector<32x32xf32>, vector<16x32xf32> -> vector<16x32xf32>
    %123 = arith.addf %0, %122 : vector<16x32xf32>
    %124 = vector.broadcast %12 : vector<1x32xf32> to vector<16x32xf32>
    %125 = arith.addf %123, %124 : vector<16x32xf32>
    %cst_42 = arith.constant dense<0.000000e+00> : vector<16xf32>
    %126 = vector.multi_reduction <add>, %125, %cst_42 [1] : vector<16x32xf32> to vector<16xf32>
    %127 = vector.shape_cast %126 : vector<16xf32> to vector<16x1xf32>
    %cst_43 = arith.constant 3.200000e+01 : f32
    %128 = vector.broadcast %cst_43 : f32 to vector<16x1xf32>
    %129 = arith.divf %127, %128 : vector<16x1xf32>
    %130 = vector.broadcast %129 : vector<16x1xf32> to vector<16x32xf32>
    %131 = arith.subf %125, %130 : vector<16x32xf32>
    %132 = arith.mulf %131, %131 : vector<16x32xf32>
    %cst_44 = arith.constant dense<0.000000e+00> : vector<16xf32>
    %133 = vector.multi_reduction <add>, %132, %cst_44 [1] : vector<16x32xf32> to vector<16xf32>
    %134 = vector.shape_cast %133 : vector<16xf32> to vector<16x1xf32>
    %cst_45 = arith.constant 3.200000e+01 : f32
    %135 = vector.broadcast %cst_45 : f32 to vector<16x1xf32>
    %136 = arith.divf %134, %135 : vector<16x1xf32>
    %137 = vector.broadcast %129 : vector<16x1xf32> to vector<16x32xf32>
    %138 = arith.subf %125, %137 : vector<16x32xf32>
    %cst_46 = arith.constant 9.99999974E-6 : f32
    %139 = vector.broadcast %cst_46 : f32 to vector<16x1xf32>
    %140 = arith.addf %136, %139 : vector<16x1xf32>
    %141 = math.rsqrt %140 : vector<16x1xf32>
    %142 = vector.broadcast %141 : vector<16x1xf32> to vector<16x32xf32>
    %143 = arith.mulf %138, %142 : vector<16x32xf32>
    %144 = vector.broadcast %13 : vector<1x32xf32> to vector<16x32xf32>
    %145 = arith.mulf %143, %144 : vector<16x32xf32>
    %146 = vector.broadcast %14 : vector<1x32xf32> to vector<16x32xf32>
    %147 = arith.addf %145, %146 : vector<16x32xf32>
    %c0_47 = arith.constant 0 : index
    %c4 = arith.constant 4 : index
    %c0_48 = arith.constant 0 : index
    %c0_49 = arith.constant 0 : index
    %148 = vector.load %arg2[%c0_47, %c4, %c0_48, %c0_49] : memref<3x8x32x32xf32, #tpu.memory_space<vmem>>, vector<1x1x32x32xf32>
    %149 = vector.shape_cast %148 : vector<1x1x32x32xf32> to vector<32x32xf32>
    %cst_50 = arith.constant dense<0.000000e+00> : vector<16x32xf32>
    %150 = tpu.matmul %147, %149, %cst_50 {dimension_numbers = #tpu.dot_dimension_numbers<[1], [0], [0], [1], [0, 0, 1, 1], [], []>} : vector<16x32xf32>, vector<32x32xf32>, vector<16x32xf32> -> vector<16x32xf32>
    %151 = vector.broadcast %15 : vector<1x32xf32> to vector<16x32xf32>
    %152 = arith.addf %150, %151 : vector<16x32xf32>
    %c0_51 = arith.constant 0 : index
    %c5 = arith.constant 5 : index
    %c0_52 = arith.constant 0 : index
    %c0_53 = arith.constant 0 : index
    %153 = vector.load %arg2[%c0_51, %c5, %c0_52, %c0_53] : memref<3x8x32x32xf32, #tpu.memory_space<vmem>>, vector<1x1x32x32xf32>
    %154 = vector.shape_cast %153 : vector<1x1x32x32xf32> to vector<32x32xf32>
    %cst_54 = arith.constant dense<0.000000e+00> : vector<16x32xf32>
    %155 = tpu.matmul %1, %154, %cst_54 {dimension_numbers = #tpu.dot_dimension_numbers<[1], [0], [0], [1], [0, 0, 1, 1], [], []>} : vector<16x32xf32>, vector<32x32xf32>, vector<16x32xf32> -> vector<16x32xf32>
    %156 = vector.broadcast %16 : vector<1x32xf32> to vector<16x32xf32>
    %157 = arith.addf %155, %156 : vector<16x32xf32>
    %c0_55 = arith.constant 0 : index
    %c6 = arith.constant 6 : index
    %c0_56 = arith.constant 0 : index
    %c0_57 = arith.constant 0 : index
    %158 = vector.load %arg2[%c0_55, %c6, %c0_56, %c0_57] : memref<3x8x32x32xf32, #tpu.memory_space<vmem>>, vector<1x1x32x32xf32>
    %159 = vector.shape_cast %158 : vector<1x1x32x32xf32> to vector<32x32xf32>
    %cst_58 = arith.constant dense<0.000000e+00> : vector<16x32xf32>
    %160 = tpu.matmul %1, %159, %cst_58 {dimension_numbers = #tpu.dot_dimension_numbers<[1], [0], [0], [1], [0, 0, 1, 1], [], []>} : vector<16x32xf32>, vector<32x32xf32>, vector<16x32xf32> -> vector<16x32xf32>
    %161 = vector.broadcast %17 : vector<1x32xf32> to vector<16x32xf32>
    %162 = arith.addf %160, %161 : vector<16x32xf32>
    %163 = vector.extract_strided_slice %152 {offsets = [0, 0], sizes = [8, 32], strides = [1, 1]} : vector<16x32xf32> to vector<8x32xf32>
    %164 = vector.shape_cast %163 : vector<8x32xf32> to vector<8x4x8xf32>
    %165 = tpu.transpose %164, [1, 0, 2] : vector<8x4x8xf32> -> vector<4x8x8xf32>
    %166 = vector.extract_strided_slice %157 {offsets = [0, 0], sizes = [8, 32], strides = [1, 1]} : vector<16x32xf32> to vector<8x32xf32>
    %167 = vector.shape_cast %166 : vector<8x32xf32> to vector<8x4x8xf32>
    %168 = tpu.transpose %167, [1, 0, 2] : vector<8x4x8xf32> -> vector<4x8x8xf32>
    %169 = vector.extract_strided_slice %162 {offsets = [0, 0], sizes = [8, 32], strides = [1, 1]} : vector<16x32xf32> to vector<8x32xf32>
    %170 = vector.shape_cast %169 : vector<8x32xf32> to vector<8x4x8xf32>
    %171 = tpu.transpose %170, [1, 0, 2] : vector<8x4x8xf32> -> vector<4x8x8xf32>
    "tpu.trace_start"() <{level = 10 : i32, message = "hqd,hkd->hqk"}> : () -> ()
    %cst_59 = arith.constant dense<0.000000e+00> : vector<4x8x8xf32>
    %172 = tpu.matmul %165, %168, %cst_59 {dimension_numbers = #tpu.dot_dimension_numbers<[2], [2], [1], [1], [0, 0, 0, 1, 1, 1], [0], [0]>} : vector<4x8x8xf32>, vector<4x8x8xf32>, vector<4x8x8xf32> -> vector<4x8x8xf32>
    "tpu.trace_stop"() : () -> ()
    %cst_60 = arith.constant 0.353553385 : f32
    %173 = vector.broadcast %cst_60 : f32 to vector<4x8x8xf32>
    %174 = arith.mulf %172, %173 : vector<4x8x8xf32>
    %cst_61 = arith.constant dense<0xFF800000> : vector<4x8xf32>
    %175 = vector.multi_reduction <maximumf>, %174, %cst_61 [2] : vector<4x8x8xf32> to vector<4x8xf32>
    %176 = vector.shape_cast %175 : vector<4x8xf32> to vector<4x8x1xf32>
    %177 = vector.broadcast %176 : vector<4x8x1xf32> to vector<4x8x8xf32>
    %178 = arith.subf %174, %177 : vector<4x8x8xf32>
    %179 = math.exp %178 : vector<4x8x8xf32>
    %cst_62 = arith.constant dense<0.000000e+00> : vector<4x8xf32>
    %180 = vector.multi_reduction <add>, %179, %cst_62 [2] : vector<4x8x8xf32> to vector<4x8xf32>
    %181 = vector.shape_cast %180 : vector<4x8xf32> to vector<4x8x1xf32>
    %182 = tpu.reciprocal %181 {approx = true} : vector<4x8x1xf32> -> vector<4x8x1xf32>
    %183 = vector.broadcast %182 : vector<4x8x1xf32> to vector<4x8x8xf32>
    %184 = arith.mulf %179, %183 : vector<4x8x8xf32>
    "tpu.trace_start"() <{level = 10 : i32, message = "hqk,hkd->hqd"}> : () -> ()
    %cst_63 = arith.constant dense<0.000000e+00> : vector<4x8x8xf32>
    %185 = tpu.matmul %184, %171, %cst_63 {dimension_numbers = #tpu.dot_dimension_numbers<[2], [1], [1], [2], [0, 0, 0, 1, 1, 2], [0], [0]>} : vector<4x8x8xf32>, vector<4x8x8xf32>, vector<4x8x8xf32> -> vector<4x8x8xf32>
    "tpu.trace_stop"() : () -> ()
    %186 = tpu.transpose %185, [1, 0, 2] : vector<4x8x8xf32> -> vector<8x4x8xf32>
    %187 = vector.shape_cast %186 : vector<8x4x8xf32> to vector<8x32xf32>
    %188 = vector.extract_strided_slice %152 {offsets = [8, 0], sizes = [8, 32], strides = [1, 1]} : vector<16x32xf32> to vector<8x32xf32>
    %189 = vector.shape_cast %188 : vector<8x32xf32> to vector<8x4x8xf32>
    %190 = tpu.transpose %189, [1, 0, 2] : vector<8x4x8xf32> -> vector<4x8x8xf32>
    %191 = vector.extract_strided_slice %157 {offsets = [8, 0], sizes = [8, 32], strides = [1, 1]} : vector<16x32xf32> to vector<8x32xf32>
    %192 = vector.shape_cast %191 : vector<8x32xf32> to vector<8x4x8xf32>
    %193 = tpu.transpose %192, [1, 0, 2] : vector<8x4x8xf32> -> vector<4x8x8xf32>
    %194 = vector.extract_strided_slice %162 {offsets = [8, 0], sizes = [8, 32], strides = [1, 1]} : vector<16x32xf32> to vector<8x32xf32>
    %195 = vector.shape_cast %194 : vector<8x32xf32> to vector<8x4x8xf32>
    %196 = tpu.transpose %195, [1, 0, 2] : vector<8x4x8xf32> -> vector<4x8x8xf32>
    "tpu.trace_start"() <{level = 10 : i32, message = "hqd,hkd->hqk"}> : () -> ()
    %cst_64 = arith.constant dense<0.000000e+00> : vector<4x8x8xf32>
    %197 = tpu.matmul %190, %193, %cst_64 {dimension_numbers = #tpu.dot_dimension_numbers<[2], [2], [1], [1], [0, 0, 0, 1, 1, 1], [0], [0]>} : vector<4x8x8xf32>, vector<4x8x8xf32>, vector<4x8x8xf32> -> vector<4x8x8xf32>
    "tpu.trace_stop"() : () -> ()
    %cst_65 = arith.constant 0.353553385 : f32
    %198 = vector.broadcast %cst_65 : f32 to vector<4x8x8xf32>
    %199 = arith.mulf %197, %198 : vector<4x8x8xf32>
    %cst_66 = arith.constant dense<0xFF800000> : vector<4x8xf32>
    %200 = vector.multi_reduction <maximumf>, %199, %cst_66 [2] : vector<4x8x8xf32> to vector<4x8xf32>
    %201 = vector.shape_cast %200 : vector<4x8xf32> to vector<4x8x1xf32>
    %202 = vector.broadcast %201 : vector<4x8x1xf32> to vector<4x8x8xf32>
    %203 = arith.subf %199, %202 : vector<4x8x8xf32>
    %204 = math.exp %203 : vector<4x8x8xf32>
    %cst_67 = arith.constant dense<0.000000e+00> : vector<4x8xf32>
    %205 = vector.multi_reduction <add>, %204, %cst_67 [2] : vector<4x8x8xf32> to vector<4x8xf32>
    %206 = vector.shape_cast %205 : vector<4x8xf32> to vector<4x8x1xf32>
    %207 = tpu.reciprocal %206 {approx = true} : vector<4x8x1xf32> -> vector<4x8x1xf32>
    %208 = vector.broadcast %207 : vector<4x8x1xf32> to vector<4x8x8xf32>
    %209 = arith.mulf %204, %208 : vector<4x8x8xf32>
    "tpu.trace_start"() <{level = 10 : i32, message = "hqk,hkd->hqd"}> : () -> ()
    %cst_68 = arith.constant dense<0.000000e+00> : vector<4x8x8xf32>
    %210 = tpu.matmul %209, %196, %cst_68 {dimension_numbers = #tpu.dot_dimension_numbers<[2], [1], [1], [2], [0, 0, 0, 1, 1, 2], [0], [0]>} : vector<4x8x8xf32>, vector<4x8x8xf32>, vector<4x8x8xf32> -> vector<4x8x8xf32>
    "tpu.trace_stop"() : () -> ()
    %211 = tpu.transpose %210, [1, 0, 2] : vector<4x8x8xf32> -> vector<8x4x8xf32>
    %212 = vector.shape_cast %211 : vector<8x4x8xf32> to vector<8x32xf32>
    %213 = tpu.concatenate %187, %212 in 0 : vector<8x32xf32>, vector<8x32xf32> -> vector<16x32xf32>
    %c0_69 = arith.constant 0 : index
    %c7 = arith.constant 7 : index
    %c0_70 = arith.constant 0 : index
    %c0_71 = arith.constant 0 : index
    %214 = vector.load %arg2[%c0_69, %c7, %c0_70, %c0_71] : memref<3x8x32x32xf32, #tpu.memory_space<vmem>>, vector<1x1x32x32xf32>
    %215 = vector.shape_cast %214 : vector<1x1x32x32xf32> to vector<32x32xf32>
    %cst_72 = arith.constant dense<0.000000e+00> : vector<16x32xf32>
    %216 = tpu.matmul %213, %215, %cst_72 {dimension_numbers = #tpu.dot_dimension_numbers<[1], [0], [0], [1], [0, 0, 1, 1], [], []>} : vector<16x32xf32>, vector<32x32xf32>, vector<16x32xf32> -> vector<16x32xf32>
    %217 = arith.addf %125, %216 : vector<16x32xf32>
    %218 = vector.broadcast %18 : vector<1x32xf32> to vector<16x32xf32>
    %219 = arith.addf %217, %218 : vector<16x32xf32>
    %cst_73 = arith.constant dense<0.000000e+00> : vector<16xf32>
    %220 = vector.multi_reduction <add>, %219, %cst_73 [1] : vector<16x32xf32> to vector<16xf32>
    %221 = vector.shape_cast %220 : vector<16xf32> to vector<16x1xf32>
    %cst_74 = arith.constant 3.200000e+01 : f32
    %222 = vector.broadcast %cst_74 : f32 to vector<16x1xf32>
    %223 = arith.divf %221, %222 : vector<16x1xf32>
    %224 = vector.broadcast %223 : vector<16x1xf32> to vector<16x32xf32>
    %225 = arith.subf %219, %224 : vector<16x32xf32>
    %226 = arith.mulf %225, %225 : vector<16x32xf32>
    %cst_75 = arith.constant dense<0.000000e+00> : vector<16xf32>
    %227 = vector.multi_reduction <add>, %226, %cst_75 [1] : vector<16x32xf32> to vector<16xf32>
    %228 = vector.shape_cast %227 : vector<16xf32> to vector<16x1xf32>
    %cst_76 = arith.constant 3.200000e+01 : f32
    %229 = vector.broadcast %cst_76 : f32 to vector<16x1xf32>
    %230 = arith.divf %228, %229 : vector<16x1xf32>
    %231 = vector.broadcast %223 : vector<16x1xf32> to vector<16x32xf32>
    %232 = arith.subf %219, %231 : vector<16x32xf32>
    %cst_77 = arith.constant 9.99999974E-6 : f32
    %233 = vector.broadcast %cst_77 : f32 to vector<16x1xf32>
    %234 = arith.addf %230, %233 : vector<16x1xf32>
    %235 = math.rsqrt %234 : vector<16x1xf32>
    %236 = vector.broadcast %235 : vector<16x1xf32> to vector<16x32xf32>
    %237 = arith.mulf %232, %236 : vector<16x32xf32>
    %238 = vector.broadcast %19 : vector<1x32xf32> to vector<16x32xf32>
    %239 = arith.mulf %237, %238 : vector<16x32xf32>
    %240 = vector.broadcast %20 : vector<1x32xf32> to vector<16x32xf32>
    %241 = arith.addf %239, %240 : vector<16x32xf32>
    %c0_78 = arith.constant 0 : index
    %c0_79 = arith.constant 0 : index
    %c0_80 = arith.constant 0 : index
    %242 = vector.load %arg3[%c0_78, %c0_79, %c0_80] : memref<3x32x128xf32, #tpu.memory_space<vmem>>, vector<1x32x128xf32>
    %243 = vector.shape_cast %242 : vector<1x32x128xf32> to vector<32x128xf32>
    %cst_81 = arith.constant dense<0.000000e+00> : vector<16x128xf32>
    %244 = tpu.matmul %241, %243, %cst_81 {dimension_numbers = #tpu.dot_dimension_numbers<[1], [0], [0], [1], [0, 0, 1, 1], [], []>} : vector<16x32xf32>, vector<32x128xf32>, vector<16x128xf32> -> vector<16x128xf32>
    %245 = vector.broadcast %23 : vector<1x128xf32> to vector<16x128xf32>
    %246 = arith.addf %244, %245 : vector<16x128xf32>
    %cst_82 = arith.constant 0.000000e+00 : f32
    %247 = vector.broadcast %cst_82 : f32 to vector<16x128xf32>
    %248 = arith.maximumf %246, %247 : vector<16x128xf32>
    %c0_83 = arith.constant 0 : index
    %c0_84 = arith.constant 0 : index
    %c0_85 = arith.constant 0 : index
    %249 = vector.load %arg4[%c0_83, %c0_84, %c0_85] : memref<3x128x32xf32, #tpu.memory_space<vmem>>, vector<1x128x32xf32>
    %250 = vector.shape_cast %249 : vector<1x128x32xf32> to vector<128x32xf32>
    %cst_86 = arith.constant dense<0.000000e+00> : vector<16x32xf32>
    %251 = tpu.matmul %248, %250, %cst_86 {dimension_numbers = #tpu.dot_dimension_numbers<[1], [0], [0], [1], [0, 0, 1, 1], [], []>} : vector<16x128xf32>, vector<128x32xf32>, vector<16x32xf32> -> vector<16x32xf32>
    %252 = arith.addf %219, %251 : vector<16x32xf32>
    %253 = vector.broadcast %21 : vector<1x32xf32> to vector<16x32xf32>
    %254 = arith.addf %252, %253 : vector<16x32xf32>
    %c1_87 = arith.constant 1 : index
    %c0_88 = arith.constant 0 : index
    %c0_89 = arith.constant 0 : index
    %255 = vector.load %arg5[%c1_87, %c0_88, %c0_89] : memref<3x15x32xf32, #tpu.memory_space<vmem>>, vector<1x15x32xf32>
    %256 = vector.shape_cast %255 : vector<1x15x32xf32> to vector<15x32xf32>
    %257 = vector.extract_strided_slice %256 {offsets = [0, 0], sizes = [1, 32], strides = [1, 1]} : vector<15x32xf32> to vector<1x32xf32>
    %258 = vector.extract_strided_slice %256 {offsets = [1, 0], sizes = [1, 32], strides = [1, 1]} : vector<15x32xf32> to vector<1x32xf32>
    %259 = vector.extract_strided_slice %256 {offsets = [2, 0], sizes = [1, 32], strides = [1, 1]} : vector<15x32xf32> to vector<1x32xf32>
    %260 = vector.extract_strided_slice %256 {offsets = [3, 0], sizes = [1, 32], strides = [1, 1]} : vector<15x32xf32> to vector<1x32xf32>
    %261 = vector.extract_strided_slice %256 {offsets = [4, 0], sizes = [1, 32], strides = [1, 1]} : vector<15x32xf32> to vector<1x32xf32>
    %262 = vector.extract_strided_slice %256 {offsets = [5, 0], sizes = [1, 32], strides = [1, 1]} : vector<15x32xf32> to vector<1x32xf32>
    %263 = vector.extract_strided_slice %256 {offsets = [6, 0], sizes = [1, 32], strides = [1, 1]} : vector<15x32xf32> to vector<1x32xf32>
    %264 = vector.extract_strided_slice %256 {offsets = [7, 0], sizes = [1, 32], strides = [1, 1]} : vector<15x32xf32> to vector<1x32xf32>
    %265 = vector.extract_strided_slice %256 {offsets = [8, 0], sizes = [1, 32], strides = [1, 1]} : vector<15x32xf32> to vector<1x32xf32>
    %266 = vector.extract_strided_slice %256 {offsets = [9, 0], sizes = [1, 32], strides = [1, 1]} : vector<15x32xf32> to vector<1x32xf32>
    %267 = vector.extract_strided_slice %256 {offsets = [10, 0], sizes = [1, 32], strides = [1, 1]} : vector<15x32xf32> to vector<1x32xf32>
    %268 = vector.extract_strided_slice %256 {offsets = [11, 0], sizes = [1, 32], strides = [1, 1]} : vector<15x32xf32> to vector<1x32xf32>
    %269 = vector.extract_strided_slice %256 {offsets = [12, 0], sizes = [1, 32], strides = [1, 1]} : vector<15x32xf32> to vector<1x32xf32>
    %270 = vector.extract_strided_slice %256 {offsets = [13, 0], sizes = [1, 32], strides = [1, 1]} : vector<15x32xf32> to vector<1x32xf32>
    %271 = vector.extract_strided_slice %256 {offsets = [14, 0], sizes = [1, 32], strides = [1, 1]} : vector<15x32xf32> to vector<1x32xf32>
    %c1_90 = arith.constant 1 : index
    %c0_91 = arith.constant 0 : index
    %c0_92 = arith.constant 0 : index
    %272 = vector.load %arg6[%c1_90, %c0_91, %c0_92] : memref<3x1x128xf32, #tpu.memory_space<vmem>>, vector<1x1x128xf32>
    %273 = vector.shape_cast %272 : vector<1x1x128xf32> to vector<1x128xf32>
    %cst_93 = arith.constant dense<0.000000e+00> : vector<16xf32>
    %274 = vector.multi_reduction <add>, %254, %cst_93 [1] : vector<16x32xf32> to vector<16xf32>
    %275 = vector.shape_cast %274 : vector<16xf32> to vector<16x1xf32>
    %cst_94 = arith.constant 3.200000e+01 : f32
    %276 = vector.broadcast %cst_94 : f32 to vector<16x1xf32>
    %277 = arith.divf %275, %276 : vector<16x1xf32>
    %278 = vector.broadcast %277 : vector<16x1xf32> to vector<16x32xf32>
    %279 = arith.subf %254, %278 : vector<16x32xf32>
    %280 = arith.mulf %279, %279 : vector<16x32xf32>
    %cst_95 = arith.constant dense<0.000000e+00> : vector<16xf32>
    %281 = vector.multi_reduction <add>, %280, %cst_95 [1] : vector<16x32xf32> to vector<16xf32>
    %282 = vector.shape_cast %281 : vector<16xf32> to vector<16x1xf32>
    %cst_96 = arith.constant 3.200000e+01 : f32
    %283 = vector.broadcast %cst_96 : f32 to vector<16x1xf32>
    %284 = arith.divf %282, %283 : vector<16x1xf32>
    %285 = vector.broadcast %277 : vector<16x1xf32> to vector<16x32xf32>
    %286 = arith.subf %254, %285 : vector<16x32xf32>
    %cst_97 = arith.constant 9.99999974E-6 : f32
    %287 = vector.broadcast %cst_97 : f32 to vector<16x1xf32>
    %288 = arith.addf %284, %287 : vector<16x1xf32>
    %289 = math.rsqrt %288 : vector<16x1xf32>
    %290 = vector.broadcast %289 : vector<16x1xf32> to vector<16x32xf32>
    %291 = arith.mulf %286, %290 : vector<16x32xf32>
    %292 = vector.broadcast %257 : vector<1x32xf32> to vector<16x32xf32>
    %293 = arith.mulf %291, %292 : vector<16x32xf32>
    %294 = vector.broadcast %258 : vector<1x32xf32> to vector<16x32xf32>
    %295 = arith.addf %293, %294 : vector<16x32xf32>
    %c1_98 = arith.constant 1 : index
    %c0_99 = arith.constant 0 : index
    %c0_100 = arith.constant 0 : index
    %c0_101 = arith.constant 0 : index
    %296 = vector.load %arg2[%c1_98, %c0_99, %c0_100, %c0_101] : memref<3x8x32x32xf32, #tpu.memory_space<vmem>>, vector<1x1x32x32xf32>
    %297 = vector.shape_cast %296 : vector<1x1x32x32xf32> to vector<32x32xf32>
    %cst_102 = arith.constant dense<0.000000e+00> : vector<16x32xf32>
    %298 = tpu.matmul %295, %297, %cst_102 {dimension_numbers = #tpu.dot_dimension_numbers<[1], [0], [0], [1], [0, 0, 1, 1], [], []>} : vector<16x32xf32>, vector<32x32xf32>, vector<16x32xf32> -> vector<16x32xf32>
    %299 = vector.broadcast %259 : vector<1x32xf32> to vector<16x32xf32>
    %300 = arith.addf %298, %299 : vector<16x32xf32>
    %c1_103 = arith.constant 1 : index
    %c1_104 = arith.constant 1 : index
    %c0_105 = arith.constant 0 : index
    %c0_106 = arith.constant 0 : index
    %301 = vector.load %arg2[%c1_103, %c1_104, %c0_105, %c0_106] : memref<3x8x32x32xf32, #tpu.memory_space<vmem>>, vector<1x1x32x32xf32>
    %302 = vector.shape_cast %301 : vector<1x1x32x32xf32> to vector<32x32xf32>
    %cst_107 = arith.constant dense<0.000000e+00> : vector<16x32xf32>
    %303 = tpu.matmul %295, %302, %cst_107 {dimension_numbers = #tpu.dot_dimension_numbers<[1], [0], [0], [1], [0, 0, 1, 1], [], []>} : vector<16x32xf32>, vector<32x32xf32>, vector<16x32xf32> -> vector<16x32xf32>
    %304 = vector.broadcast %260 : vector<1x32xf32> to vector<16x32xf32>
    %305 = arith.addf %303, %304 : vector<16x32xf32>
    %c1_108 = arith.constant 1 : index
    %c2_109 = arith.constant 2 : index
    %c0_110 = arith.constant 0 : index
    %c0_111 = arith.constant 0 : index
    %306 = vector.load %arg2[%c1_108, %c2_109, %c0_110, %c0_111] : memref<3x8x32x32xf32, #tpu.memory_space<vmem>>, vector<1x1x32x32xf32>
    %307 = vector.shape_cast %306 : vector<1x1x32x32xf32> to vector<32x32xf32>
    %cst_112 = arith.constant dense<0.000000e+00> : vector<16x32xf32>
    %308 = tpu.matmul %295, %307, %cst_112 {dimension_numbers = #tpu.dot_dimension_numbers<[1], [0], [0], [1], [0, 0, 1, 1], [], []>} : vector<16x32xf32>, vector<32x32xf32>, vector<16x32xf32> -> vector<16x32xf32>
    %309 = vector.broadcast %261 : vector<1x32xf32> to vector<16x32xf32>
    %310 = arith.addf %308, %309 : vector<16x32xf32>
    %311 = vector.extract_strided_slice %300 {offsets = [0, 0], sizes = [8, 32], strides = [1, 1]} : vector<16x32xf32> to vector<8x32xf32>
    %312 = vector.shape_cast %311 : vector<8x32xf32> to vector<8x4x8xf32>
    %313 = tpu.transpose %312, [1, 0, 2] : vector<8x4x8xf32> -> vector<4x8x8xf32>
    %314 = vector.extract_strided_slice %305 {offsets = [0, 0], sizes = [8, 32], strides = [1, 1]} : vector<16x32xf32> to vector<8x32xf32>
    %315 = vector.shape_cast %314 : vector<8x32xf32> to vector<8x4x8xf32>
    %316 = tpu.transpose %315, [1, 0, 2] : vector<8x4x8xf32> -> vector<4x8x8xf32>
    %317 = vector.extract_strided_slice %310 {offsets = [0, 0], sizes = [8, 32], strides = [1, 1]} : vector<16x32xf32> to vector<8x32xf32>
    %318 = vector.shape_cast %317 : vector<8x32xf32> to vector<8x4x8xf32>
    %319 = tpu.transpose %318, [1, 0, 2] : vector<8x4x8xf32> -> vector<4x8x8xf32>
    "tpu.trace_start"() <{level = 10 : i32, message = "hqd,hkd->hqk"}> : () -> ()
    %cst_113 = arith.constant dense<0.000000e+00> : vector<4x8x8xf32>
    %320 = tpu.matmul %313, %316, %cst_113 {dimension_numbers = #tpu.dot_dimension_numbers<[2], [2], [1], [1], [0, 0, 0, 1, 1, 1], [0], [0]>} : vector<4x8x8xf32>, vector<4x8x8xf32>, vector<4x8x8xf32> -> vector<4x8x8xf32>
    "tpu.trace_stop"() : () -> ()
    %cst_114 = arith.constant 0.353553385 : f32
    %321 = vector.broadcast %cst_114 : f32 to vector<4x8x8xf32>
    %322 = arith.mulf %320, %321 : vector<4x8x8xf32>
    %cst_115 = arith.constant -1.000000e+30 : f32
    %323 = vector.shape_cast %4 : vector<8x8xi1> to vector<1x8x8xi1>
    %324 = vector.broadcast %323 : vector<1x8x8xi1> to vector<4x8x8xi1>
    %325 = vector.broadcast %cst_115 : f32 to vector<4x8x8xf32>
    %326 = arith.select %324, %322, %325 : vector<4x8x8xi1>, vector<4x8x8xf32>
    %cst_116 = arith.constant dense<0xFF800000> : vector<4x8xf32>
    %327 = vector.multi_reduction <maximumf>, %326, %cst_116 [2] : vector<4x8x8xf32> to vector<4x8xf32>
    %328 = vector.shape_cast %327 : vector<4x8xf32> to vector<4x8x1xf32>
    %329 = vector.broadcast %328 : vector<4x8x1xf32> to vector<4x8x8xf32>
    %330 = arith.subf %326, %329 : vector<4x8x8xf32>
    %331 = math.exp %330 : vector<4x8x8xf32>
    %cst_117 = arith.constant dense<0.000000e+00> : vector<4x8xf32>
    %332 = vector.multi_reduction <add>, %331, %cst_117 [2] : vector<4x8x8xf32> to vector<4x8xf32>
    %333 = vector.shape_cast %332 : vector<4x8xf32> to vector<4x8x1xf32>
    %334 = tpu.reciprocal %333 {approx = true} : vector<4x8x1xf32> -> vector<4x8x1xf32>
    %335 = vector.broadcast %334 : vector<4x8x1xf32> to vector<4x8x8xf32>
    %336 = arith.mulf %331, %335 : vector<4x8x8xf32>
    "tpu.trace_start"() <{level = 10 : i32, message = "hqk,hkd->hqd"}> : () -> ()
    %cst_118 = arith.constant dense<0.000000e+00> : vector<4x8x8xf32>
    %337 = tpu.matmul %336, %319, %cst_118 {dimension_numbers = #tpu.dot_dimension_numbers<[2], [1], [1], [2], [0, 0, 0, 1, 1, 2], [0], [0]>} : vector<4x8x8xf32>, vector<4x8x8xf32>, vector<4x8x8xf32> -> vector<4x8x8xf32>
    "tpu.trace_stop"() : () -> ()
    %338 = tpu.transpose %337, [1, 0, 2] : vector<4x8x8xf32> -> vector<8x4x8xf32>
    %339 = vector.shape_cast %338 : vector<8x4x8xf32> to vector<8x32xf32>
    %340 = vector.extract_strided_slice %300 {offsets = [8, 0], sizes = [8, 32], strides = [1, 1]} : vector<16x32xf32> to vector<8x32xf32>
    %341 = vector.shape_cast %340 : vector<8x32xf32> to vector<8x4x8xf32>
    %342 = tpu.transpose %341, [1, 0, 2] : vector<8x4x8xf32> -> vector<4x8x8xf32>
    %343 = vector.extract_strided_slice %305 {offsets = [8, 0], sizes = [8, 32], strides = [1, 1]} : vector<16x32xf32> to vector<8x32xf32>
    %344 = vector.shape_cast %343 : vector<8x32xf32> to vector<8x4x8xf32>
    %345 = tpu.transpose %344, [1, 0, 2] : vector<8x4x8xf32> -> vector<4x8x8xf32>
    %346 = vector.extract_strided_slice %310 {offsets = [8, 0], sizes = [8, 32], strides = [1, 1]} : vector<16x32xf32> to vector<8x32xf32>
    %347 = vector.shape_cast %346 : vector<8x32xf32> to vector<8x4x8xf32>
    %348 = tpu.transpose %347, [1, 0, 2] : vector<8x4x8xf32> -> vector<4x8x8xf32>
    "tpu.trace_start"() <{level = 10 : i32, message = "hqd,hkd->hqk"}> : () -> ()
    %cst_119 = arith.constant dense<0.000000e+00> : vector<4x8x8xf32>
    %349 = tpu.matmul %342, %345, %cst_119 {dimension_numbers = #tpu.dot_dimension_numbers<[2], [2], [1], [1], [0, 0, 0, 1, 1, 1], [0], [0]>} : vector<4x8x8xf32>, vector<4x8x8xf32>, vector<4x8x8xf32> -> vector<4x8x8xf32>
    "tpu.trace_stop"() : () -> ()
    %cst_120 = arith.constant 0.353553385 : f32
    %350 = vector.broadcast %cst_120 : f32 to vector<4x8x8xf32>
    %351 = arith.mulf %349, %350 : vector<4x8x8xf32>
    %cst_121 = arith.constant -1.000000e+30 : f32
    %352 = vector.shape_cast %4 : vector<8x8xi1> to vector<1x8x8xi1>
    %353 = vector.broadcast %352 : vector<1x8x8xi1> to vector<4x8x8xi1>
    %354 = vector.broadcast %cst_121 : f32 to vector<4x8x8xf32>
    %355 = arith.select %353, %351, %354 : vector<4x8x8xi1>, vector<4x8x8xf32>
    %cst_122 = arith.constant dense<0xFF800000> : vector<4x8xf32>
    %356 = vector.multi_reduction <maximumf>, %355, %cst_122 [2] : vector<4x8x8xf32> to vector<4x8xf32>
    %357 = vector.shape_cast %356 : vector<4x8xf32> to vector<4x8x1xf32>
    %358 = vector.broadcast %357 : vector<4x8x1xf32> to vector<4x8x8xf32>
    %359 = arith.subf %355, %358 : vector<4x8x8xf32>
    %360 = math.exp %359 : vector<4x8x8xf32>
    %cst_123 = arith.constant dense<0.000000e+00> : vector<4x8xf32>
    %361 = vector.multi_reduction <add>, %360, %cst_123 [2] : vector<4x8x8xf32> to vector<4x8xf32>
    %362 = vector.shape_cast %361 : vector<4x8xf32> to vector<4x8x1xf32>
    %363 = tpu.reciprocal %362 {approx = true} : vector<4x8x1xf32> -> vector<4x8x1xf32>
    %364 = vector.broadcast %363 : vector<4x8x1xf32> to vector<4x8x8xf32>
    %365 = arith.mulf %360, %364 : vector<4x8x8xf32>
    "tpu.trace_start"() <{level = 10 : i32, message = "hqk,hkd->hqd"}> : () -> ()
    %cst_124 = arith.constant dense<0.000000e+00> : vector<4x8x8xf32>
    %366 = tpu.matmul %365, %348, %cst_124 {dimension_numbers = #tpu.dot_dimension_numbers<[2], [1], [1], [2], [0, 0, 0, 1, 1, 2], [0], [0]>} : vector<4x8x8xf32>, vector<4x8x8xf32>, vector<4x8x8xf32> -> vector<4x8x8xf32>
    "tpu.trace_stop"() : () -> ()
    %367 = tpu.transpose %366, [1, 0, 2] : vector<4x8x8xf32> -> vector<8x4x8xf32>
    %368 = vector.shape_cast %367 : vector<8x4x8xf32> to vector<8x32xf32>
    %369 = tpu.concatenate %339, %368 in 0 : vector<8x32xf32>, vector<8x32xf32> -> vector<16x32xf32>
    %c1_125 = arith.constant 1 : index
    %c3_126 = arith.constant 3 : index
    %c0_127 = arith.constant 0 : index
    %c0_128 = arith.constant 0 : index
    %370 = vector.load %arg2[%c1_125, %c3_126, %c0_127, %c0_128] : memref<3x8x32x32xf32, #tpu.memory_space<vmem>>, vector<1x1x32x32xf32>
    %371 = vector.shape_cast %370 : vector<1x1x32x32xf32> to vector<32x32xf32>
    %cst_129 = arith.constant dense<0.000000e+00> : vector<16x32xf32>
    %372 = tpu.matmul %369, %371, %cst_129 {dimension_numbers = #tpu.dot_dimension_numbers<[1], [0], [0], [1], [0, 0, 1, 1], [], []>} : vector<16x32xf32>, vector<32x32xf32>, vector<16x32xf32> -> vector<16x32xf32>
    %373 = arith.addf %254, %372 : vector<16x32xf32>
    %374 = vector.broadcast %262 : vector<1x32xf32> to vector<16x32xf32>
    %375 = arith.addf %373, %374 : vector<16x32xf32>
    %cst_130 = arith.constant dense<0.000000e+00> : vector<16xf32>
    %376 = vector.multi_reduction <add>, %375, %cst_130 [1] : vector<16x32xf32> to vector<16xf32>
    %377 = vector.shape_cast %376 : vector<16xf32> to vector<16x1xf32>
    %cst_131 = arith.constant 3.200000e+01 : f32
    %378 = vector.broadcast %cst_131 : f32 to vector<16x1xf32>
    %379 = arith.divf %377, %378 : vector<16x1xf32>
    %380 = vector.broadcast %379 : vector<16x1xf32> to vector<16x32xf32>
    %381 = arith.subf %375, %380 : vector<16x32xf32>
    %382 = arith.mulf %381, %381 : vector<16x32xf32>
    %cst_132 = arith.constant dense<0.000000e+00> : vector<16xf32>
    %383 = vector.multi_reduction <add>, %382, %cst_132 [1] : vector<16x32xf32> to vector<16xf32>
    %384 = vector.shape_cast %383 : vector<16xf32> to vector<16x1xf32>
    %cst_133 = arith.constant 3.200000e+01 : f32
    %385 = vector.broadcast %cst_133 : f32 to vector<16x1xf32>
    %386 = arith.divf %384, %385 : vector<16x1xf32>
    %387 = vector.broadcast %379 : vector<16x1xf32> to vector<16x32xf32>
    %388 = arith.subf %375, %387 : vector<16x32xf32>
    %cst_134 = arith.constant 9.99999974E-6 : f32
    %389 = vector.broadcast %cst_134 : f32 to vector<16x1xf32>
    %390 = arith.addf %386, %389 : vector<16x1xf32>
    %391 = math.rsqrt %390 : vector<16x1xf32>
    %392 = vector.broadcast %391 : vector<16x1xf32> to vector<16x32xf32>
    %393 = arith.mulf %388, %392 : vector<16x32xf32>
    %394 = vector.broadcast %263 : vector<1x32xf32> to vector<16x32xf32>
    %395 = arith.mulf %393, %394 : vector<16x32xf32>
    %396 = vector.broadcast %264 : vector<1x32xf32> to vector<16x32xf32>
    %397 = arith.addf %395, %396 : vector<16x32xf32>
    %c1_135 = arith.constant 1 : index
    %c4_136 = arith.constant 4 : index
    %c0_137 = arith.constant 0 : index
    %c0_138 = arith.constant 0 : index
    %398 = vector.load %arg2[%c1_135, %c4_136, %c0_137, %c0_138] : memref<3x8x32x32xf32, #tpu.memory_space<vmem>>, vector<1x1x32x32xf32>
    %399 = vector.shape_cast %398 : vector<1x1x32x32xf32> to vector<32x32xf32>
    %cst_139 = arith.constant dense<0.000000e+00> : vector<16x32xf32>
    %400 = tpu.matmul %397, %399, %cst_139 {dimension_numbers = #tpu.dot_dimension_numbers<[1], [0], [0], [1], [0, 0, 1, 1], [], []>} : vector<16x32xf32>, vector<32x32xf32>, vector<16x32xf32> -> vector<16x32xf32>
    %401 = vector.broadcast %265 : vector<1x32xf32> to vector<16x32xf32>
    %402 = arith.addf %400, %401 : vector<16x32xf32>
    %c1_140 = arith.constant 1 : index
    %c5_141 = arith.constant 5 : index
    %c0_142 = arith.constant 0 : index
    %c0_143 = arith.constant 0 : index
    %403 = vector.load %arg2[%c1_140, %c5_141, %c0_142, %c0_143] : memref<3x8x32x32xf32, #tpu.memory_space<vmem>>, vector<1x1x32x32xf32>
    %404 = vector.shape_cast %403 : vector<1x1x32x32xf32> to vector<32x32xf32>
    %cst_144 = arith.constant dense<0.000000e+00> : vector<16x32xf32>
    %405 = tpu.matmul %1, %404, %cst_144 {dimension_numbers = #tpu.dot_dimension_numbers<[1], [0], [0], [1], [0, 0, 1, 1], [], []>} : vector<16x32xf32>, vector<32x32xf32>, vector<16x32xf32> -> vector<16x32xf32>
    %406 = vector.broadcast %266 : vector<1x32xf32> to vector<16x32xf32>
    %407 = arith.addf %405, %406 : vector<16x32xf32>
    %c1_145 = arith.constant 1 : index
    %c6_146 = arith.constant 6 : index
    %c0_147 = arith.constant 0 : index
    %c0_148 = arith.constant 0 : index
    %408 = vector.load %arg2[%c1_145, %c6_146, %c0_147, %c0_148] : memref<3x8x32x32xf32, #tpu.memory_space<vmem>>, vector<1x1x32x32xf32>
    %409 = vector.shape_cast %408 : vector<1x1x32x32xf32> to vector<32x32xf32>
    %cst_149 = arith.constant dense<0.000000e+00> : vector<16x32xf32>
    %410 = tpu.matmul %1, %409, %cst_149 {dimension_numbers = #tpu.dot_dimension_numbers<[1], [0], [0], [1], [0, 0, 1, 1], [], []>} : vector<16x32xf32>, vector<32x32xf32>, vector<16x32xf32> -> vector<16x32xf32>
    %411 = vector.broadcast %267 : vector<1x32xf32> to vector<16x32xf32>
    %412 = arith.addf %410, %411 : vector<16x32xf32>
    %413 = vector.extract_strided_slice %402 {offsets = [0, 0], sizes = [8, 32], strides = [1, 1]} : vector<16x32xf32> to vector<8x32xf32>
    %414 = vector.shape_cast %413 : vector<8x32xf32> to vector<8x4x8xf32>
    %415 = tpu.transpose %414, [1, 0, 2] : vector<8x4x8xf32> -> vector<4x8x8xf32>
    %416 = vector.extract_strided_slice %407 {offsets = [0, 0], sizes = [8, 32], strides = [1, 1]} : vector<16x32xf32> to vector<8x32xf32>
    %417 = vector.shape_cast %416 : vector<8x32xf32> to vector<8x4x8xf32>
    %418 = tpu.transpose %417, [1, 0, 2] : vector<8x4x8xf32> -> vector<4x8x8xf32>
    %419 = vector.extract_strided_slice %412 {offsets = [0, 0], sizes = [8, 32], strides = [1, 1]} : vector<16x32xf32> to vector<8x32xf32>
    %420 = vector.shape_cast %419 : vector<8x32xf32> to vector<8x4x8xf32>
    %421 = tpu.transpose %420, [1, 0, 2] : vector<8x4x8xf32> -> vector<4x8x8xf32>
    "tpu.trace_start"() <{level = 10 : i32, message = "hqd,hkd->hqk"}> : () -> ()
    %cst_150 = arith.constant dense<0.000000e+00> : vector<4x8x8xf32>
    %422 = tpu.matmul %415, %418, %cst_150 {dimension_numbers = #tpu.dot_dimension_numbers<[2], [2], [1], [1], [0, 0, 0, 1, 1, 1], [0], [0]>} : vector<4x8x8xf32>, vector<4x8x8xf32>, vector<4x8x8xf32> -> vector<4x8x8xf32>
    "tpu.trace_stop"() : () -> ()
    %cst_151 = arith.constant 0.353553385 : f32
    %423 = vector.broadcast %cst_151 : f32 to vector<4x8x8xf32>
    %424 = arith.mulf %422, %423 : vector<4x8x8xf32>
    %cst_152 = arith.constant dense<0xFF800000> : vector<4x8xf32>
    %425 = vector.multi_reduction <maximumf>, %424, %cst_152 [2] : vector<4x8x8xf32> to vector<4x8xf32>
    %426 = vector.shape_cast %425 : vector<4x8xf32> to vector<4x8x1xf32>
    %427 = vector.broadcast %426 : vector<4x8x1xf32> to vector<4x8x8xf32>
    %428 = arith.subf %424, %427 : vector<4x8x8xf32>
    %429 = math.exp %428 : vector<4x8x8xf32>
    %cst_153 = arith.constant dense<0.000000e+00> : vector<4x8xf32>
    %430 = vector.multi_reduction <add>, %429, %cst_153 [2] : vector<4x8x8xf32> to vector<4x8xf32>
    %431 = vector.shape_cast %430 : vector<4x8xf32> to vector<4x8x1xf32>
    %432 = tpu.reciprocal %431 {approx = true} : vector<4x8x1xf32> -> vector<4x8x1xf32>
    %433 = vector.broadcast %432 : vector<4x8x1xf32> to vector<4x8x8xf32>
    %434 = arith.mulf %429, %433 : vector<4x8x8xf32>
    "tpu.trace_start"() <{level = 10 : i32, message = "hqk,hkd->hqd"}> : () -> ()
    %cst_154 = arith.constant dense<0.000000e+00> : vector<4x8x8xf32>
    %435 = tpu.matmul %434, %421, %cst_154 {dimension_numbers = #tpu.dot_dimension_numbers<[2], [1], [1], [2], [0, 0, 0, 1, 1, 2], [0], [0]>} : vector<4x8x8xf32>, vector<4x8x8xf32>, vector<4x8x8xf32> -> vector<4x8x8xf32>
    "tpu.trace_stop"() : () -> ()
    %436 = tpu.transpose %435, [1, 0, 2] : vector<4x8x8xf32> -> vector<8x4x8xf32>
    %437 = vector.shape_cast %436 : vector<8x4x8xf32> to vector<8x32xf32>
    %438 = vector.extract_strided_slice %402 {offsets = [8, 0], sizes = [8, 32], strides = [1, 1]} : vector<16x32xf32> to vector<8x32xf32>
    %439 = vector.shape_cast %438 : vector<8x32xf32> to vector<8x4x8xf32>
    %440 = tpu.transpose %439, [1, 0, 2] : vector<8x4x8xf32> -> vector<4x8x8xf32>
    %441 = vector.extract_strided_slice %407 {offsets = [8, 0], sizes = [8, 32], strides = [1, 1]} : vector<16x32xf32> to vector<8x32xf32>
    %442 = vector.shape_cast %441 : vector<8x32xf32> to vector<8x4x8xf32>
    %443 = tpu.transpose %442, [1, 0, 2] : vector<8x4x8xf32> -> vector<4x8x8xf32>
    %444 = vector.extract_strided_slice %412 {offsets = [8, 0], sizes = [8, 32], strides = [1, 1]} : vector<16x32xf32> to vector<8x32xf32>
    %445 = vector.shape_cast %444 : vector<8x32xf32> to vector<8x4x8xf32>
    %446 = tpu.transpose %445, [1, 0, 2] : vector<8x4x8xf32> -> vector<4x8x8xf32>
    "tpu.trace_start"() <{level = 10 : i32, message = "hqd,hkd->hqk"}> : () -> ()
    %cst_155 = arith.constant dense<0.000000e+00> : vector<4x8x8xf32>
    %447 = tpu.matmul %440, %443, %cst_155 {dimension_numbers = #tpu.dot_dimension_numbers<[2], [2], [1], [1], [0, 0, 0, 1, 1, 1], [0], [0]>} : vector<4x8x8xf32>, vector<4x8x8xf32>, vector<4x8x8xf32> -> vector<4x8x8xf32>
    "tpu.trace_stop"() : () -> ()
    %cst_156 = arith.constant 0.353553385 : f32
    %448 = vector.broadcast %cst_156 : f32 to vector<4x8x8xf32>
    %449 = arith.mulf %447, %448 : vector<4x8x8xf32>
    %cst_157 = arith.constant dense<0xFF800000> : vector<4x8xf32>
    %450 = vector.multi_reduction <maximumf>, %449, %cst_157 [2] : vector<4x8x8xf32> to vector<4x8xf32>
    %451 = vector.shape_cast %450 : vector<4x8xf32> to vector<4x8x1xf32>
    %452 = vector.broadcast %451 : vector<4x8x1xf32> to vector<4x8x8xf32>
    %453 = arith.subf %449, %452 : vector<4x8x8xf32>
    %454 = math.exp %453 : vector<4x8x8xf32>
    %cst_158 = arith.constant dense<0.000000e+00> : vector<4x8xf32>
    %455 = vector.multi_reduction <add>, %454, %cst_158 [2] : vector<4x8x8xf32> to vector<4x8xf32>
    %456 = vector.shape_cast %455 : vector<4x8xf32> to vector<4x8x1xf32>
    %457 = tpu.reciprocal %456 {approx = true} : vector<4x8x1xf32> -> vector<4x8x1xf32>
    %458 = vector.broadcast %457 : vector<4x8x1xf32> to vector<4x8x8xf32>
    %459 = arith.mulf %454, %458 : vector<4x8x8xf32>
    "tpu.trace_start"() <{level = 10 : i32, message = "hqk,hkd->hqd"}> : () -> ()
    %cst_159 = arith.constant dense<0.000000e+00> : vector<4x8x8xf32>
    %460 = tpu.matmul %459, %446, %cst_159 {dimension_numbers = #tpu.dot_dimension_numbers<[2], [1], [1], [2], [0, 0, 0, 1, 1, 2], [0], [0]>} : vector<4x8x8xf32>, vector<4x8x8xf32>, vector<4x8x8xf32> -> vector<4x8x8xf32>
    "tpu.trace_stop"() : () -> ()
    %461 = tpu.transpose %460, [1, 0, 2] : vector<4x8x8xf32> -> vector<8x4x8xf32>
    %462 = vector.shape_cast %461 : vector<8x4x8xf32> to vector<8x32xf32>
    %463 = tpu.concatenate %437, %462 in 0 : vector<8x32xf32>, vector<8x32xf32> -> vector<16x32xf32>
    %c1_160 = arith.constant 1 : index
    %c7_161 = arith.constant 7 : index
    %c0_162 = arith.constant 0 : index
    %c0_163 = arith.constant 0 : index
    %464 = vector.load %arg2[%c1_160, %c7_161, %c0_162, %c0_163] : memref<3x8x32x32xf32, #tpu.memory_space<vmem>>, vector<1x1x32x32xf32>
    %465 = vector.shape_cast %464 : vector<1x1x32x32xf32> to vector<32x32xf32>
    %cst_164 = arith.constant dense<0.000000e+00> : vector<16x32xf32>
    %466 = tpu.matmul %463, %465, %cst_164 {dimension_numbers = #tpu.dot_dimension_numbers<[1], [0], [0], [1], [0, 0, 1, 1], [], []>} : vector<16x32xf32>, vector<32x32xf32>, vector<16x32xf32> -> vector<16x32xf32>
    %467 = arith.addf %375, %466 : vector<16x32xf32>
    %468 = vector.broadcast %268 : vector<1x32xf32> to vector<16x32xf32>
    %469 = arith.addf %467, %468 : vector<16x32xf32>
    %cst_165 = arith.constant dense<0.000000e+00> : vector<16xf32>
    %470 = vector.multi_reduction <add>, %469, %cst_165 [1] : vector<16x32xf32> to vector<16xf32>
    %471 = vector.shape_cast %470 : vector<16xf32> to vector<16x1xf32>
    %cst_166 = arith.constant 3.200000e+01 : f32
    %472 = vector.broadcast %cst_166 : f32 to vector<16x1xf32>
    %473 = arith.divf %471, %472 : vector<16x1xf32>
    %474 = vector.broadcast %473 : vector<16x1xf32> to vector<16x32xf32>
    %475 = arith.subf %469, %474 : vector<16x32xf32>
    %476 = arith.mulf %475, %475 : vector<16x32xf32>
    %cst_167 = arith.constant dense<0.000000e+00> : vector<16xf32>
    %477 = vector.multi_reduction <add>, %476, %cst_167 [1] : vector<16x32xf32> to vector<16xf32>
    %478 = vector.shape_cast %477 : vector<16xf32> to vector<16x1xf32>
    %cst_168 = arith.constant 3.200000e+01 : f32
    %479 = vector.broadcast %cst_168 : f32 to vector<16x1xf32>
    %480 = arith.divf %478, %479 : vector<16x1xf32>
    %481 = vector.broadcast %473 : vector<16x1xf32> to vector<16x32xf32>
    %482 = arith.subf %469, %481 : vector<16x32xf32>
    %cst_169 = arith.constant 9.99999974E-6 : f32
    %483 = vector.broadcast %cst_169 : f32 to vector<16x1xf32>
    %484 = arith.addf %480, %483 : vector<16x1xf32>
    %485 = math.rsqrt %484 : vector<16x1xf32>
    %486 = vector.broadcast %485 : vector<16x1xf32> to vector<16x32xf32>
    %487 = arith.mulf %482, %486 : vector<16x32xf32>
    %488 = vector.broadcast %269 : vector<1x32xf32> to vector<16x32xf32>
    %489 = arith.mulf %487, %488 : vector<16x32xf32>
    %490 = vector.broadcast %270 : vector<1x32xf32> to vector<16x32xf32>
    %491 = arith.addf %489, %490 : vector<16x32xf32>
    %c1_170 = arith.constant 1 : index
    %c0_171 = arith.constant 0 : index
    %c0_172 = arith.constant 0 : index
    %492 = vector.load %arg3[%c1_170, %c0_171, %c0_172] : memref<3x32x128xf32, #tpu.memory_space<vmem>>, vector<1x32x128xf32>
    %493 = vector.shape_cast %492 : vector<1x32x128xf32> to vector<32x128xf32>
    %cst_173 = arith.constant dense<0.000000e+00> : vector<16x128xf32>
    %494 = tpu.matmul %491, %493, %cst_173 {dimension_numbers = #tpu.dot_dimension_numbers<[1], [0], [0], [1], [0, 0, 1, 1], [], []>} : vector<16x32xf32>, vector<32x128xf32>, vector<16x128xf32> -> vector<16x128xf32>
    %495 = vector.broadcast %273 : vector<1x128xf32> to vector<16x128xf32>
    %496 = arith.addf %494, %495 : vector<16x128xf32>
    %cst_174 = arith.constant 0.000000e+00 : f32
    %497 = vector.broadcast %cst_174 : f32 to vector<16x128xf32>
    %498 = arith.maximumf %496, %497 : vector<16x128xf32>
    %c1_175 = arith.constant 1 : index
    %c0_176 = arith.constant 0 : index
    %c0_177 = arith.constant 0 : index
    %499 = vector.load %arg4[%c1_175, %c0_176, %c0_177] : memref<3x128x32xf32, #tpu.memory_space<vmem>>, vector<1x128x32xf32>
    %500 = vector.shape_cast %499 : vector<1x128x32xf32> to vector<128x32xf32>
    %cst_178 = arith.constant dense<0.000000e+00> : vector<16x32xf32>
    %501 = tpu.matmul %498, %500, %cst_178 {dimension_numbers = #tpu.dot_dimension_numbers<[1], [0], [0], [1], [0, 0, 1, 1], [], []>} : vector<16x128xf32>, vector<128x32xf32>, vector<16x32xf32> -> vector<16x32xf32>
    %502 = arith.addf %469, %501 : vector<16x32xf32>
    %503 = vector.broadcast %271 : vector<1x32xf32> to vector<16x32xf32>
    %504 = arith.addf %502, %503 : vector<16x32xf32>
    %c2_179 = arith.constant 2 : index
    %c0_180 = arith.constant 0 : index
    %c0_181 = arith.constant 0 : index
    %505 = vector.load %arg5[%c2_179, %c0_180, %c0_181] : memref<3x15x32xf32, #tpu.memory_space<vmem>>, vector<1x15x32xf32>
    %506 = vector.shape_cast %505 : vector<1x15x32xf32> to vector<15x32xf32>
    %507 = vector.extract_strided_slice %506 {offsets = [0, 0], sizes = [1, 32], strides = [1, 1]} : vector<15x32xf32> to vector<1x32xf32>
    %508 = vector.extract_strided_slice %506 {offsets = [1, 0], sizes = [1, 32], strides = [1, 1]} : vector<15x32xf32> to vector<1x32xf32>
    %509 = vector.extract_strided_slice %506 {offsets = [2, 0], sizes = [1, 32], strides = [1, 1]} : vector<15x32xf32> to vector<1x32xf32>
    %510 = vector.extract_strided_slice %506 {offsets = [3, 0], sizes = [1, 32], strides = [1, 1]} : vector<15x32xf32> to vector<1x32xf32>
    %511 = vector.extract_strided_slice %506 {offsets = [4, 0], sizes = [1, 32], strides = [1, 1]} : vector<15x32xf32> to vector<1x32xf32>
    %512 = vector.extract_strided_slice %506 {offsets = [5, 0], sizes = [1, 32], strides = [1, 1]} : vector<15x32xf32> to vector<1x32xf32>
    %513 = vector.extract_strided_slice %506 {offsets = [6, 0], sizes = [1, 32], strides = [1, 1]} : vector<15x32xf32> to vector<1x32xf32>
    %514 = vector.extract_strided_slice %506 {offsets = [7, 0], sizes = [1, 32], strides = [1, 1]} : vector<15x32xf32> to vector<1x32xf32>
    %515 = vector.extract_strided_slice %506 {offsets = [8, 0], sizes = [1, 32], strides = [1, 1]} : vector<15x32xf32> to vector<1x32xf32>
    %516 = vector.extract_strided_slice %506 {offsets = [9, 0], sizes = [1, 32], strides = [1, 1]} : vector<15x32xf32> to vector<1x32xf32>
    %517 = vector.extract_strided_slice %506 {offsets = [10, 0], sizes = [1, 32], strides = [1, 1]} : vector<15x32xf32> to vector<1x32xf32>
    %518 = vector.extract_strided_slice %506 {offsets = [11, 0], sizes = [1, 32], strides = [1, 1]} : vector<15x32xf32> to vector<1x32xf32>
    %519 = vector.extract_strided_slice %506 {offsets = [12, 0], sizes = [1, 32], strides = [1, 1]} : vector<15x32xf32> to vector<1x32xf32>
    %520 = vector.extract_strided_slice %506 {offsets = [13, 0], sizes = [1, 32], strides = [1, 1]} : vector<15x32xf32> to vector<1x32xf32>
    %521 = vector.extract_strided_slice %506 {offsets = [14, 0], sizes = [1, 32], strides = [1, 1]} : vector<15x32xf32> to vector<1x32xf32>
    %c2_182 = arith.constant 2 : index
    %c0_183 = arith.constant 0 : index
    %c0_184 = arith.constant 0 : index
    %522 = vector.load %arg6[%c2_182, %c0_183, %c0_184] : memref<3x1x128xf32, #tpu.memory_space<vmem>>, vector<1x1x128xf32>
    %523 = vector.shape_cast %522 : vector<1x1x128xf32> to vector<1x128xf32>
    %cst_185 = arith.constant dense<0.000000e+00> : vector<16xf32>
    %524 = vector.multi_reduction <add>, %504, %cst_185 [1] : vector<16x32xf32> to vector<16xf32>
    %525 = vector.shape_cast %524 : vector<16xf32> to vector<16x1xf32>
    %cst_186 = arith.constant 3.200000e+01 : f32
    %526 = vector.broadcast %cst_186 : f32 to vector<16x1xf32>
    %527 = arith.divf %525, %526 : vector<16x1xf32>
    %528 = vector.broadcast %527 : vector<16x1xf32> to vector<16x32xf32>
    %529 = arith.subf %504, %528 : vector<16x32xf32>
    %530 = arith.mulf %529, %529 : vector<16x32xf32>
    %cst_187 = arith.constant dense<0.000000e+00> : vector<16xf32>
    %531 = vector.multi_reduction <add>, %530, %cst_187 [1] : vector<16x32xf32> to vector<16xf32>
    %532 = vector.shape_cast %531 : vector<16xf32> to vector<16x1xf32>
    %cst_188 = arith.constant 3.200000e+01 : f32
    %533 = vector.broadcast %cst_188 : f32 to vector<16x1xf32>
    %534 = arith.divf %532, %533 : vector<16x1xf32>
    %535 = vector.broadcast %527 : vector<16x1xf32> to vector<16x32xf32>
    %536 = arith.subf %504, %535 : vector<16x32xf32>
    %cst_189 = arith.constant 9.99999974E-6 : f32
    %537 = vector.broadcast %cst_189 : f32 to vector<16x1xf32>
    %538 = arith.addf %534, %537 : vector<16x1xf32>
    %539 = math.rsqrt %538 : vector<16x1xf32>
    %540 = vector.broadcast %539 : vector<16x1xf32> to vector<16x32xf32>
    %541 = arith.mulf %536, %540 : vector<16x32xf32>
    %542 = vector.broadcast %507 : vector<1x32xf32> to vector<16x32xf32>
    %543 = arith.mulf %541, %542 : vector<16x32xf32>
    %544 = vector.broadcast %508 : vector<1x32xf32> to vector<16x32xf32>
    %545 = arith.addf %543, %544 : vector<16x32xf32>
    %c2_190 = arith.constant 2 : index
    %c0_191 = arith.constant 0 : index
    %c0_192 = arith.constant 0 : index
    %c0_193 = arith.constant 0 : index
    %546 = vector.load %arg2[%c2_190, %c0_191, %c0_192, %c0_193] : memref<3x8x32x32xf32, #tpu.memory_space<vmem>>, vector<1x1x32x32xf32>
    %547 = vector.shape_cast %546 : vector<1x1x32x32xf32> to vector<32x32xf32>
    %cst_194 = arith.constant dense<0.000000e+00> : vector<16x32xf32>
    %548 = tpu.matmul %545, %547, %cst_194 {dimension_numbers = #tpu.dot_dimension_numbers<[1], [0], [0], [1], [0, 0, 1, 1], [], []>} : vector<16x32xf32>, vector<32x32xf32>, vector<16x32xf32> -> vector<16x32xf32>
    %549 = vector.broadcast %509 : vector<1x32xf32> to vector<16x32xf32>
    %550 = arith.addf %548, %549 : vector<16x32xf32>
    %c2_195 = arith.constant 2 : index
    %c1_196 = arith.constant 1 : index
    %c0_197 = arith.constant 0 : index
    %c0_198 = arith.constant 0 : index
    %551 = vector.load %arg2[%c2_195, %c1_196, %c0_197, %c0_198] : memref<3x8x32x32xf32, #tpu.memory_space<vmem>>, vector<1x1x32x32xf32>
    %552 = vector.shape_cast %551 : vector<1x1x32x32xf32> to vector<32x32xf32>
    %cst_199 = arith.constant dense<0.000000e+00> : vector<16x32xf32>
    %553 = tpu.matmul %545, %552, %cst_199 {dimension_numbers = #tpu.dot_dimension_numbers<[1], [0], [0], [1], [0, 0, 1, 1], [], []>} : vector<16x32xf32>, vector<32x32xf32>, vector<16x32xf32> -> vector<16x32xf32>
    %554 = vector.broadcast %510 : vector<1x32xf32> to vector<16x32xf32>
    %555 = arith.addf %553, %554 : vector<16x32xf32>
    %c2_200 = arith.constant 2 : index
    %c2_201 = arith.constant 2 : index
    %c0_202 = arith.constant 0 : index
    %c0_203 = arith.constant 0 : index
    %556 = vector.load %arg2[%c2_200, %c2_201, %c0_202, %c0_203] : memref<3x8x32x32xf32, #tpu.memory_space<vmem>>, vector<1x1x32x32xf32>
    %557 = vector.shape_cast %556 : vector<1x1x32x32xf32> to vector<32x32xf32>
    %cst_204 = arith.constant dense<0.000000e+00> : vector<16x32xf32>
    %558 = tpu.matmul %545, %557, %cst_204 {dimension_numbers = #tpu.dot_dimension_numbers<[1], [0], [0], [1], [0, 0, 1, 1], [], []>} : vector<16x32xf32>, vector<32x32xf32>, vector<16x32xf32> -> vector<16x32xf32>
    %559 = vector.broadcast %511 : vector<1x32xf32> to vector<16x32xf32>
    %560 = arith.addf %558, %559 : vector<16x32xf32>
    %561 = vector.extract_strided_slice %550 {offsets = [0, 0], sizes = [8, 32], strides = [1, 1]} : vector<16x32xf32> to vector<8x32xf32>
    %562 = vector.shape_cast %561 : vector<8x32xf32> to vector<8x4x8xf32>
    %563 = tpu.transpose %562, [1, 0, 2] : vector<8x4x8xf32> -> vector<4x8x8xf32>
    %564 = vector.extract_strided_slice %555 {offsets = [0, 0], sizes = [8, 32], strides = [1, 1]} : vector<16x32xf32> to vector<8x32xf32>
    %565 = vector.shape_cast %564 : vector<8x32xf32> to vector<8x4x8xf32>
    %566 = tpu.transpose %565, [1, 0, 2] : vector<8x4x8xf32> -> vector<4x8x8xf32>
    %567 = vector.extract_strided_slice %560 {offsets = [0, 0], sizes = [8, 32], strides = [1, 1]} : vector<16x32xf32> to vector<8x32xf32>
    %568 = vector.shape_cast %567 : vector<8x32xf32> to vector<8x4x8xf32>
    %569 = tpu.transpose %568, [1, 0, 2] : vector<8x4x8xf32> -> vector<4x8x8xf32>
    "tpu.trace_start"() <{level = 10 : i32, message = "hqd,hkd->hqk"}> : () -> ()
    %cst_205 = arith.constant dense<0.000000e+00> : vector<4x8x8xf32>
    %570 = tpu.matmul %563, %566, %cst_205 {dimension_numbers = #tpu.dot_dimension_numbers<[2], [2], [1], [1], [0, 0, 0, 1, 1, 1], [0], [0]>} : vector<4x8x8xf32>, vector<4x8x8xf32>, vector<4x8x8xf32> -> vector<4x8x8xf32>
    "tpu.trace_stop"() : () -> ()
    %cst_206 = arith.constant 0.353553385 : f32
    %571 = vector.broadcast %cst_206 : f32 to vector<4x8x8xf32>
    %572 = arith.mulf %570, %571 : vector<4x8x8xf32>
    %cst_207 = arith.constant -1.000000e+30 : f32
    %573 = vector.shape_cast %4 : vector<8x8xi1> to vector<1x8x8xi1>
    %574 = vector.broadcast %573 : vector<1x8x8xi1> to vector<4x8x8xi1>
    %575 = vector.broadcast %cst_207 : f32 to vector<4x8x8xf32>
    %576 = arith.select %574, %572, %575 : vector<4x8x8xi1>, vector<4x8x8xf32>
    %cst_208 = arith.constant dense<0xFF800000> : vector<4x8xf32>
    %577 = vector.multi_reduction <maximumf>, %576, %cst_208 [2] : vector<4x8x8xf32> to vector<4x8xf32>
    %578 = vector.shape_cast %577 : vector<4x8xf32> to vector<4x8x1xf32>
    %579 = vector.broadcast %578 : vector<4x8x1xf32> to vector<4x8x8xf32>
    %580 = arith.subf %576, %579 : vector<4x8x8xf32>
    %581 = math.exp %580 : vector<4x8x8xf32>
    %cst_209 = arith.constant dense<0.000000e+00> : vector<4x8xf32>
    %582 = vector.multi_reduction <add>, %581, %cst_209 [2] : vector<4x8x8xf32> to vector<4x8xf32>
    %583 = vector.shape_cast %582 : vector<4x8xf32> to vector<4x8x1xf32>
    %584 = tpu.reciprocal %583 {approx = true} : vector<4x8x1xf32> -> vector<4x8x1xf32>
    %585 = vector.broadcast %584 : vector<4x8x1xf32> to vector<4x8x8xf32>
    %586 = arith.mulf %581, %585 : vector<4x8x8xf32>
    "tpu.trace_start"() <{level = 10 : i32, message = "hqk,hkd->hqd"}> : () -> ()
    %cst_210 = arith.constant dense<0.000000e+00> : vector<4x8x8xf32>
    %587 = tpu.matmul %586, %569, %cst_210 {dimension_numbers = #tpu.dot_dimension_numbers<[2], [1], [1], [2], [0, 0, 0, 1, 1, 2], [0], [0]>} : vector<4x8x8xf32>, vector<4x8x8xf32>, vector<4x8x8xf32> -> vector<4x8x8xf32>
    "tpu.trace_stop"() : () -> ()
    %588 = tpu.transpose %587, [1, 0, 2] : vector<4x8x8xf32> -> vector<8x4x8xf32>
    %589 = vector.shape_cast %588 : vector<8x4x8xf32> to vector<8x32xf32>
    %590 = vector.extract_strided_slice %550 {offsets = [8, 0], sizes = [8, 32], strides = [1, 1]} : vector<16x32xf32> to vector<8x32xf32>
    %591 = vector.shape_cast %590 : vector<8x32xf32> to vector<8x4x8xf32>
    %592 = tpu.transpose %591, [1, 0, 2] : vector<8x4x8xf32> -> vector<4x8x8xf32>
    %593 = vector.extract_strided_slice %555 {offsets = [8, 0], sizes = [8, 32], strides = [1, 1]} : vector<16x32xf32> to vector<8x32xf32>
    %594 = vector.shape_cast %593 : vector<8x32xf32> to vector<8x4x8xf32>
    %595 = tpu.transpose %594, [1, 0, 2] : vector<8x4x8xf32> -> vector<4x8x8xf32>
    %596 = vector.extract_strided_slice %560 {offsets = [8, 0], sizes = [8, 32], strides = [1, 1]} : vector<16x32xf32> to vector<8x32xf32>
    %597 = vector.shape_cast %596 : vector<8x32xf32> to vector<8x4x8xf32>
    %598 = tpu.transpose %597, [1, 0, 2] : vector<8x4x8xf32> -> vector<4x8x8xf32>
    "tpu.trace_start"() <{level = 10 : i32, message = "hqd,hkd->hqk"}> : () -> ()
    %cst_211 = arith.constant dense<0.000000e+00> : vector<4x8x8xf32>
    %599 = tpu.matmul %592, %595, %cst_211 {dimension_numbers = #tpu.dot_dimension_numbers<[2], [2], [1], [1], [0, 0, 0, 1, 1, 1], [0], [0]>} : vector<4x8x8xf32>, vector<4x8x8xf32>, vector<4x8x8xf32> -> vector<4x8x8xf32>
    "tpu.trace_stop"() : () -> ()
    %cst_212 = arith.constant 0.353553385 : f32
    %600 = vector.broadcast %cst_212 : f32 to vector<4x8x8xf32>
    %601 = arith.mulf %599, %600 : vector<4x8x8xf32>
    %cst_213 = arith.constant -1.000000e+30 : f32
    %602 = vector.shape_cast %4 : vector<8x8xi1> to vector<1x8x8xi1>
    %603 = vector.broadcast %602 : vector<1x8x8xi1> to vector<4x8x8xi1>
    %604 = vector.broadcast %cst_213 : f32 to vector<4x8x8xf32>
    %605 = arith.select %603, %601, %604 : vector<4x8x8xi1>, vector<4x8x8xf32>
    %cst_214 = arith.constant dense<0xFF800000> : vector<4x8xf32>
    %606 = vector.multi_reduction <maximumf>, %605, %cst_214 [2] : vector<4x8x8xf32> to vector<4x8xf32>
    %607 = vector.shape_cast %606 : vector<4x8xf32> to vector<4x8x1xf32>
    %608 = vector.broadcast %607 : vector<4x8x1xf32> to vector<4x8x8xf32>
    %609 = arith.subf %605, %608 : vector<4x8x8xf32>
    %610 = math.exp %609 : vector<4x8x8xf32>
    %cst_215 = arith.constant dense<0.000000e+00> : vector<4x8xf32>
    %611 = vector.multi_reduction <add>, %610, %cst_215 [2] : vector<4x8x8xf32> to vector<4x8xf32>
    %612 = vector.shape_cast %611 : vector<4x8xf32> to vector<4x8x1xf32>
    %613 = tpu.reciprocal %612 {approx = true} : vector<4x8x1xf32> -> vector<4x8x1xf32>
    %614 = vector.broadcast %613 : vector<4x8x1xf32> to vector<4x8x8xf32>
    %615 = arith.mulf %610, %614 : vector<4x8x8xf32>
    "tpu.trace_start"() <{level = 10 : i32, message = "hqk,hkd->hqd"}> : () -> ()
    %cst_216 = arith.constant dense<0.000000e+00> : vector<4x8x8xf32>
    %616 = tpu.matmul %615, %598, %cst_216 {dimension_numbers = #tpu.dot_dimension_numbers<[2], [1], [1], [2], [0, 0, 0, 1, 1, 2], [0], [0]>} : vector<4x8x8xf32>, vector<4x8x8xf32>, vector<4x8x8xf32> -> vector<4x8x8xf32>
    "tpu.trace_stop"() : () -> ()
    %617 = tpu.transpose %616, [1, 0, 2] : vector<4x8x8xf32> -> vector<8x4x8xf32>
    %618 = vector.shape_cast %617 : vector<8x4x8xf32> to vector<8x32xf32>
    %619 = tpu.concatenate %589, %618 in 0 : vector<8x32xf32>, vector<8x32xf32> -> vector<16x32xf32>
    %c2_217 = arith.constant 2 : index
    %c3_218 = arith.constant 3 : index
    %c0_219 = arith.constant 0 : index
    %c0_220 = arith.constant 0 : index
    %620 = vector.load %arg2[%c2_217, %c3_218, %c0_219, %c0_220] : memref<3x8x32x32xf32, #tpu.memory_space<vmem>>, vector<1x1x32x32xf32>
    %621 = vector.shape_cast %620 : vector<1x1x32x32xf32> to vector<32x32xf32>
    %cst_221 = arith.constant dense<0.000000e+00> : vector<16x32xf32>
    %622 = tpu.matmul %619, %621, %cst_221 {dimension_numbers = #tpu.dot_dimension_numbers<[1], [0], [0], [1], [0, 0, 1, 1], [], []>} : vector<16x32xf32>, vector<32x32xf32>, vector<16x32xf32> -> vector<16x32xf32>
    %623 = arith.addf %504, %622 : vector<16x32xf32>
    %624 = vector.broadcast %512 : vector<1x32xf32> to vector<16x32xf32>
    %625 = arith.addf %623, %624 : vector<16x32xf32>
    %cst_222 = arith.constant dense<0.000000e+00> : vector<16xf32>
    %626 = vector.multi_reduction <add>, %625, %cst_222 [1] : vector<16x32xf32> to vector<16xf32>
    %627 = vector.shape_cast %626 : vector<16xf32> to vector<16x1xf32>
    %cst_223 = arith.constant 3.200000e+01 : f32
    %628 = vector.broadcast %cst_223 : f32 to vector<16x1xf32>
    %629 = arith.divf %627, %628 : vector<16x1xf32>
    %630 = vector.broadcast %629 : vector<16x1xf32> to vector<16x32xf32>
    %631 = arith.subf %625, %630 : vector<16x32xf32>
    %632 = arith.mulf %631, %631 : vector<16x32xf32>
    %cst_224 = arith.constant dense<0.000000e+00> : vector<16xf32>
    %633 = vector.multi_reduction <add>, %632, %cst_224 [1] : vector<16x32xf32> to vector<16xf32>
    %634 = vector.shape_cast %633 : vector<16xf32> to vector<16x1xf32>
    %cst_225 = arith.constant 3.200000e+01 : f32
    %635 = vector.broadcast %cst_225 : f32 to vector<16x1xf32>
    %636 = arith.divf %634, %635 : vector<16x1xf32>
    %637 = vector.broadcast %629 : vector<16x1xf32> to vector<16x32xf32>
    %638 = arith.subf %625, %637 : vector<16x32xf32>
    %cst_226 = arith.constant 9.99999974E-6 : f32
    %639 = vector.broadcast %cst_226 : f32 to vector<16x1xf32>
    %640 = arith.addf %636, %639 : vector<16x1xf32>
    %641 = math.rsqrt %640 : vector<16x1xf32>
    %642 = vector.broadcast %641 : vector<16x1xf32> to vector<16x32xf32>
    %643 = arith.mulf %638, %642 : vector<16x32xf32>
    %644 = vector.broadcast %513 : vector<1x32xf32> to vector<16x32xf32>
    %645 = arith.mulf %643, %644 : vector<16x32xf32>
    %646 = vector.broadcast %514 : vector<1x32xf32> to vector<16x32xf32>
    %647 = arith.addf %645, %646 : vector<16x32xf32>
    %c2_227 = arith.constant 2 : index
    %c4_228 = arith.constant 4 : index
    %c0_229 = arith.constant 0 : index
    %c0_230 = arith.constant 0 : index
    %648 = vector.load %arg2[%c2_227, %c4_228, %c0_229, %c0_230] : memref<3x8x32x32xf32, #tpu.memory_space<vmem>>, vector<1x1x32x32xf32>
    %649 = vector.shape_cast %648 : vector<1x1x32x32xf32> to vector<32x32xf32>
    %cst_231 = arith.constant dense<0.000000e+00> : vector<16x32xf32>
    %650 = tpu.matmul %647, %649, %cst_231 {dimension_numbers = #tpu.dot_dimension_numbers<[1], [0], [0], [1], [0, 0, 1, 1], [], []>} : vector<16x32xf32>, vector<32x32xf32>, vector<16x32xf32> -> vector<16x32xf32>
    %651 = vector.broadcast %515 : vector<1x32xf32> to vector<16x32xf32>
    %652 = arith.addf %650, %651 : vector<16x32xf32>
    %c2_232 = arith.constant 2 : index
    %c5_233 = arith.constant 5 : index
    %c0_234 = arith.constant 0 : index
    %c0_235 = arith.constant 0 : index
    %653 = vector.load %arg2[%c2_232, %c5_233, %c0_234, %c0_235] : memref<3x8x32x32xf32, #tpu.memory_space<vmem>>, vector<1x1x32x32xf32>
    %654 = vector.shape_cast %653 : vector<1x1x32x32xf32> to vector<32x32xf32>
    %cst_236 = arith.constant dense<0.000000e+00> : vector<16x32xf32>
    %655 = tpu.matmul %1, %654, %cst_236 {dimension_numbers = #tpu.dot_dimension_numbers<[1], [0], [0], [1], [0, 0, 1, 1], [], []>} : vector<16x32xf32>, vector<32x32xf32>, vector<16x32xf32> -> vector<16x32xf32>
    %656 = vector.broadcast %516 : vector<1x32xf32> to vector<16x32xf32>
    %657 = arith.addf %655, %656 : vector<16x32xf32>
    %c2_237 = arith.constant 2 : index
    %c6_238 = arith.constant 6 : index
    %c0_239 = arith.constant 0 : index
    %c0_240 = arith.constant 0 : index
    %658 = vector.load %arg2[%c2_237, %c6_238, %c0_239, %c0_240] : memref<3x8x32x32xf32, #tpu.memory_space<vmem>>, vector<1x1x32x32xf32>
    %659 = vector.shape_cast %658 : vector<1x1x32x32xf32> to vector<32x32xf32>
    %cst_241 = arith.constant dense<0.000000e+00> : vector<16x32xf32>
    %660 = tpu.matmul %1, %659, %cst_241 {dimension_numbers = #tpu.dot_dimension_numbers<[1], [0], [0], [1], [0, 0, 1, 1], [], []>} : vector<16x32xf32>, vector<32x32xf32>, vector<16x32xf32> -> vector<16x32xf32>
    %661 = vector.broadcast %517 : vector<1x32xf32> to vector<16x32xf32>
    %662 = arith.addf %660, %661 : vector<16x32xf32>
    %663 = vector.extract_strided_slice %652 {offsets = [0, 0], sizes = [8, 32], strides = [1, 1]} : vector<16x32xf32> to vector<8x32xf32>
    %664 = vector.shape_cast %663 : vector<8x32xf32> to vector<8x4x8xf32>
    %665 = tpu.transpose %664, [1, 0, 2] : vector<8x4x8xf32> -> vector<4x8x8xf32>
    %666 = vector.extract_strided_slice %657 {offsets = [0, 0], sizes = [8, 32], strides = [1, 1]} : vector<16x32xf32> to vector<8x32xf32>
    %667 = vector.shape_cast %666 : vector<8x32xf32> to vector<8x4x8xf32>
    %668 = tpu.transpose %667, [1, 0, 2] : vector<8x4x8xf32> -> vector<4x8x8xf32>
    %669 = vector.extract_strided_slice %662 {offsets = [0, 0], sizes = [8, 32], strides = [1, 1]} : vector<16x32xf32> to vector<8x32xf32>
    %670 = vector.shape_cast %669 : vector<8x32xf32> to vector<8x4x8xf32>
    %671 = tpu.transpose %670, [1, 0, 2] : vector<8x4x8xf32> -> vector<4x8x8xf32>
    "tpu.trace_start"() <{level = 10 : i32, message = "hqd,hkd->hqk"}> : () -> ()
    %cst_242 = arith.constant dense<0.000000e+00> : vector<4x8x8xf32>
    %672 = tpu.matmul %665, %668, %cst_242 {dimension_numbers = #tpu.dot_dimension_numbers<[2], [2], [1], [1], [0, 0, 0, 1, 1, 1], [0], [0]>} : vector<4x8x8xf32>, vector<4x8x8xf32>, vector<4x8x8xf32> -> vector<4x8x8xf32>
    "tpu.trace_stop"() : () -> ()
    %cst_243 = arith.constant 0.353553385 : f32
    %673 = vector.broadcast %cst_243 : f32 to vector<4x8x8xf32>
    %674 = arith.mulf %672, %673 : vector<4x8x8xf32>
    %cst_244 = arith.constant dense<0xFF800000> : vector<4x8xf32>
    %675 = vector.multi_reduction <maximumf>, %674, %cst_244 [2] : vector<4x8x8xf32> to vector<4x8xf32>
    %676 = vector.shape_cast %675 : vector<4x8xf32> to vector<4x8x1xf32>
    %677 = vector.broadcast %676 : vector<4x8x1xf32> to vector<4x8x8xf32>
    %678 = arith.subf %674, %677 : vector<4x8x8xf32>
    %679 = math.exp %678 : vector<4x8x8xf32>
    %cst_245 = arith.constant dense<0.000000e+00> : vector<4x8xf32>
    %680 = vector.multi_reduction <add>, %679, %cst_245 [2] : vector<4x8x8xf32> to vector<4x8xf32>
    %681 = vector.shape_cast %680 : vector<4x8xf32> to vector<4x8x1xf32>
    %682 = tpu.reciprocal %681 {approx = true} : vector<4x8x1xf32> -> vector<4x8x1xf32>
    %683 = vector.broadcast %682 : vector<4x8x1xf32> to vector<4x8x8xf32>
    %684 = arith.mulf %679, %683 : vector<4x8x8xf32>
    "tpu.trace_start"() <{level = 10 : i32, message = "hqk,hkd->hqd"}> : () -> ()
    %cst_246 = arith.constant dense<0.000000e+00> : vector<4x8x8xf32>
    %685 = tpu.matmul %684, %671, %cst_246 {dimension_numbers = #tpu.dot_dimension_numbers<[2], [1], [1], [2], [0, 0, 0, 1, 1, 2], [0], [0]>} : vector<4x8x8xf32>, vector<4x8x8xf32>, vector<4x8x8xf32> -> vector<4x8x8xf32>
    "tpu.trace_stop"() : () -> ()
    %686 = tpu.transpose %685, [1, 0, 2] : vector<4x8x8xf32> -> vector<8x4x8xf32>
    %687 = vector.shape_cast %686 : vector<8x4x8xf32> to vector<8x32xf32>
    %688 = vector.extract_strided_slice %652 {offsets = [8, 0], sizes = [8, 32], strides = [1, 1]} : vector<16x32xf32> to vector<8x32xf32>
    %689 = vector.shape_cast %688 : vector<8x32xf32> to vector<8x4x8xf32>
    %690 = tpu.transpose %689, [1, 0, 2] : vector<8x4x8xf32> -> vector<4x8x8xf32>
    %691 = vector.extract_strided_slice %657 {offsets = [8, 0], sizes = [8, 32], strides = [1, 1]} : vector<16x32xf32> to vector<8x32xf32>
    %692 = vector.shape_cast %691 : vector<8x32xf32> to vector<8x4x8xf32>
    %693 = tpu.transpose %692, [1, 0, 2] : vector<8x4x8xf32> -> vector<4x8x8xf32>
    %694 = vector.extract_strided_slice %662 {offsets = [8, 0], sizes = [8, 32], strides = [1, 1]} : vector<16x32xf32> to vector<8x32xf32>
    %695 = vector.shape_cast %694 : vector<8x32xf32> to vector<8x4x8xf32>
    %696 = tpu.transpose %695, [1, 0, 2] : vector<8x4x8xf32> -> vector<4x8x8xf32>
    "tpu.trace_start"() <{level = 10 : i32, message = "hqd,hkd->hqk"}> : () -> ()
    %cst_247 = arith.constant dense<0.000000e+00> : vector<4x8x8xf32>
    %697 = tpu.matmul %690, %693, %cst_247 {dimension_numbers = #tpu.dot_dimension_numbers<[2], [2], [1], [1], [0, 0, 0, 1, 1, 1], [0], [0]>} : vector<4x8x8xf32>, vector<4x8x8xf32>, vector<4x8x8xf32> -> vector<4x8x8xf32>
    "tpu.trace_stop"() : () -> ()
    %cst_248 = arith.constant 0.353553385 : f32
    %698 = vector.broadcast %cst_248 : f32 to vector<4x8x8xf32>
    %699 = arith.mulf %697, %698 : vector<4x8x8xf32>
    %cst_249 = arith.constant dense<0xFF800000> : vector<4x8xf32>
    %700 = vector.multi_reduction <maximumf>, %699, %cst_249 [2] : vector<4x8x8xf32> to vector<4x8xf32>
    %701 = vector.shape_cast %700 : vector<4x8xf32> to vector<4x8x1xf32>
    %702 = vector.broadcast %701 : vector<4x8x1xf32> to vector<4x8x8xf32>
    %703 = arith.subf %699, %702 : vector<4x8x8xf32>
    %704 = math.exp %703 : vector<4x8x8xf32>
    %cst_250 = arith.constant dense<0.000000e+00> : vector<4x8xf32>
    %705 = vector.multi_reduction <add>, %704, %cst_250 [2] : vector<4x8x8xf32> to vector<4x8xf32>
    %706 = vector.shape_cast %705 : vector<4x8xf32> to vector<4x8x1xf32>
    %707 = tpu.reciprocal %706 {approx = true} : vector<4x8x1xf32> -> vector<4x8x1xf32>
    %708 = vector.broadcast %707 : vector<4x8x1xf32> to vector<4x8x8xf32>
    %709 = arith.mulf %704, %708 : vector<4x8x8xf32>
    "tpu.trace_start"() <{level = 10 : i32, message = "hqk,hkd->hqd"}> : () -> ()
    %cst_251 = arith.constant dense<0.000000e+00> : vector<4x8x8xf32>
    %710 = tpu.matmul %709, %696, %cst_251 {dimension_numbers = #tpu.dot_dimension_numbers<[2], [1], [1], [2], [0, 0, 0, 1, 1, 2], [0], [0]>} : vector<4x8x8xf32>, vector<4x8x8xf32>, vector<4x8x8xf32> -> vector<4x8x8xf32>
    "tpu.trace_stop"() : () -> ()
    %711 = tpu.transpose %710, [1, 0, 2] : vector<4x8x8xf32> -> vector<8x4x8xf32>
    %712 = vector.shape_cast %711 : vector<8x4x8xf32> to vector<8x32xf32>
    %713 = tpu.concatenate %687, %712 in 0 : vector<8x32xf32>, vector<8x32xf32> -> vector<16x32xf32>
    %c2_252 = arith.constant 2 : index
    %c7_253 = arith.constant 7 : index
    %c0_254 = arith.constant 0 : index
    %c0_255 = arith.constant 0 : index
    %714 = vector.load %arg2[%c2_252, %c7_253, %c0_254, %c0_255] : memref<3x8x32x32xf32, #tpu.memory_space<vmem>>, vector<1x1x32x32xf32>
    %715 = vector.shape_cast %714 : vector<1x1x32x32xf32> to vector<32x32xf32>
    %cst_256 = arith.constant dense<0.000000e+00> : vector<16x32xf32>
    %716 = tpu.matmul %713, %715, %cst_256 {dimension_numbers = #tpu.dot_dimension_numbers<[1], [0], [0], [1], [0, 0, 1, 1], [], []>} : vector<16x32xf32>, vector<32x32xf32>, vector<16x32xf32> -> vector<16x32xf32>
    %717 = arith.addf %625, %716 : vector<16x32xf32>
    %718 = vector.broadcast %518 : vector<1x32xf32> to vector<16x32xf32>
    %719 = arith.addf %717, %718 : vector<16x32xf32>
    %cst_257 = arith.constant dense<0.000000e+00> : vector<16xf32>
    %720 = vector.multi_reduction <add>, %719, %cst_257 [1] : vector<16x32xf32> to vector<16xf32>
    %721 = vector.shape_cast %720 : vector<16xf32> to vector<16x1xf32>
    %cst_258 = arith.constant 3.200000e+01 : f32
    %722 = vector.broadcast %cst_258 : f32 to vector<16x1xf32>
    %723 = arith.divf %721, %722 : vector<16x1xf32>
    %724 = vector.broadcast %723 : vector<16x1xf32> to vector<16x32xf32>
    %725 = arith.subf %719, %724 : vector<16x32xf32>
    %726 = arith.mulf %725, %725 : vector<16x32xf32>
    %cst_259 = arith.constant dense<0.000000e+00> : vector<16xf32>
    %727 = vector.multi_reduction <add>, %726, %cst_259 [1] : vector<16x32xf32> to vector<16xf32>
    %728 = vector.shape_cast %727 : vector<16xf32> to vector<16x1xf32>
    %cst_260 = arith.constant 3.200000e+01 : f32
    %729 = vector.broadcast %cst_260 : f32 to vector<16x1xf32>
    %730 = arith.divf %728, %729 : vector<16x1xf32>
    %731 = vector.broadcast %723 : vector<16x1xf32> to vector<16x32xf32>
    %732 = arith.subf %719, %731 : vector<16x32xf32>
    %cst_261 = arith.constant 9.99999974E-6 : f32
    %733 = vector.broadcast %cst_261 : f32 to vector<16x1xf32>
    %734 = arith.addf %730, %733 : vector<16x1xf32>
    %735 = math.rsqrt %734 : vector<16x1xf32>
    %736 = vector.broadcast %735 : vector<16x1xf32> to vector<16x32xf32>
    %737 = arith.mulf %732, %736 : vector<16x32xf32>
    %738 = vector.broadcast %519 : vector<1x32xf32> to vector<16x32xf32>
    %739 = arith.mulf %737, %738 : vector<16x32xf32>
    %740 = vector.broadcast %520 : vector<1x32xf32> to vector<16x32xf32>
    %741 = arith.addf %739, %740 : vector<16x32xf32>
    %c2_262 = arith.constant 2 : index
    %c0_263 = arith.constant 0 : index
    %c0_264 = arith.constant 0 : index
    %742 = vector.load %arg3[%c2_262, %c0_263, %c0_264] : memref<3x32x128xf32, #tpu.memory_space<vmem>>, vector<1x32x128xf32>
    %743 = vector.shape_cast %742 : vector<1x32x128xf32> to vector<32x128xf32>
    %cst_265 = arith.constant dense<0.000000e+00> : vector<16x128xf32>
    %744 = tpu.matmul %741, %743, %cst_265 {dimension_numbers = #tpu.dot_dimension_numbers<[1], [0], [0], [1], [0, 0, 1, 1], [], []>} : vector<16x32xf32>, vector<32x128xf32>, vector<16x128xf32> -> vector<16x128xf32>
    %745 = vector.broadcast %523 : vector<1x128xf32> to vector<16x128xf32>
    %746 = arith.addf %744, %745 : vector<16x128xf32>
    %cst_266 = arith.constant 0.000000e+00 : f32
    %747 = vector.broadcast %cst_266 : f32 to vector<16x128xf32>
    %748 = arith.maximumf %746, %747 : vector<16x128xf32>
    %c2_267 = arith.constant 2 : index
    %c0_268 = arith.constant 0 : index
    %c0_269 = arith.constant 0 : index
    %749 = vector.load %arg4[%c2_267, %c0_268, %c0_269] : memref<3x128x32xf32, #tpu.memory_space<vmem>>, vector<1x128x32xf32>
    %750 = vector.shape_cast %749 : vector<1x128x32xf32> to vector<128x32xf32>
    %cst_270 = arith.constant dense<0.000000e+00> : vector<16x32xf32>
    %751 = tpu.matmul %748, %750, %cst_270 {dimension_numbers = #tpu.dot_dimension_numbers<[1], [0], [0], [1], [0, 0, 1, 1], [], []>} : vector<16x128xf32>, vector<128x32xf32>, vector<16x32xf32> -> vector<16x32xf32>
    %752 = arith.addf %719, %751 : vector<16x32xf32>
    %753 = vector.broadcast %521 : vector<1x32xf32> to vector<16x32xf32>
    %754 = arith.addf %752, %753 : vector<16x32xf32>
    %c0_271 = arith.constant 0 : index
    %c0_272 = arith.constant 0 : index
    %755 = vector.load %arg7[%c0_271, %c0_272] : memref<2x32xf32, #tpu.memory_space<vmem>>, vector<2x32xf32>
    %756 = vector.extract_strided_slice %755 {offsets = [0, 0], sizes = [1, 32], strides = [1, 1]} : vector<2x32xf32> to vector<1x32xf32>
    %757 = vector.extract_strided_slice %755 {offsets = [1, 0], sizes = [1, 32], strides = [1, 1]} : vector<2x32xf32> to vector<1x32xf32>
    %cst_273 = arith.constant dense<0.000000e+00> : vector<16xf32>
    %758 = vector.multi_reduction <add>, %754, %cst_273 [1] : vector<16x32xf32> to vector<16xf32>
    %759 = vector.shape_cast %758 : vector<16xf32> to vector<16x1xf32>
    %cst_274 = arith.constant 3.200000e+01 : f32
    %760 = vector.broadcast %cst_274 : f32 to vector<16x1xf32>
    %761 = arith.divf %759, %760 : vector<16x1xf32>
    %762 = vector.broadcast %761 : vector<16x1xf32> to vector<16x32xf32>
    %763 = arith.subf %754, %762 : vector<16x32xf32>
    %764 = arith.mulf %763, %763 : vector<16x32xf32>
    %cst_275 = arith.constant dense<0.000000e+00> : vector<16xf32>
    %765 = vector.multi_reduction <add>, %764, %cst_275 [1] : vector<16x32xf32> to vector<16xf32>
    %766 = vector.shape_cast %765 : vector<16xf32> to vector<16x1xf32>
    %cst_276 = arith.constant 3.200000e+01 : f32
    %767 = vector.broadcast %cst_276 : f32 to vector<16x1xf32>
    %768 = arith.divf %766, %767 : vector<16x1xf32>
    %769 = vector.broadcast %761 : vector<16x1xf32> to vector<16x32xf32>
    %770 = arith.subf %754, %769 : vector<16x32xf32>
    %cst_277 = arith.constant 9.99999974E-6 : f32
    %771 = vector.broadcast %cst_277 : f32 to vector<16x1xf32>
    %772 = arith.addf %768, %771 : vector<16x1xf32>
    %773 = math.rsqrt %772 : vector<16x1xf32>
    %774 = vector.broadcast %773 : vector<16x1xf32> to vector<16x32xf32>
    %775 = arith.mulf %770, %774 : vector<16x32xf32>
    %776 = vector.broadcast %756 : vector<1x32xf32> to vector<16x32xf32>
    %777 = arith.mulf %775, %776 : vector<16x32xf32>
    %778 = vector.broadcast %757 : vector<1x32xf32> to vector<16x32xf32>
    %779 = arith.addf %777, %778 : vector<16x32xf32>
    %c0_278 = arith.constant 0 : index
    %c0_279 = arith.constant 0 : index
    %780 = vector.load %arg8[%c0_278, %c0_279] : memref<32x128xf32, #tpu.memory_space<vmem>>, vector<32x128xf32>
    %cst_280 = arith.constant dense<0.000000e+00> : vector<16x128xf32>
    %781 = tpu.matmul %779, %780, %cst_280 {dimension_numbers = #tpu.dot_dimension_numbers<[1], [0], [0], [1], [0, 0, 1, 1], [], []>} : vector<16x32xf32>, vector<32x128xf32>, vector<16x128xf32> -> vector<16x128xf32>
    %c0_281 = arith.constant 0 : index
    %c0_282 = arith.constant 0 : index
    %782 = vector.load %arg9[%c0_281, %c0_282] : memref<1x128xf32, #tpu.memory_space<vmem>>, vector<1x128xf32>
    %783 = vector.broadcast %782 : vector<1x128xf32> to vector<16x128xf32>
    %784 = arith.addf %781, %783 : vector<16x128xf32>
    %c0_283 = arith.constant 0 : index
    %c0_284 = arith.constant 0 : index
    %785 = vector.load %arg10[%c0_283, %c0_284] : memref<16x128xf32, #tpu.memory_space<vmem>>, vector<16x128xf32>
    tpu.vector_store %arg10[%c0_283, %c0_284], %784 {strides = array<i32>} : memref<16x128xf32, #tpu.memory_space<vmem>>, vector<16x128xf32>,
    return
  }
}

</mosaic_0001>

<llo_original>
// kernel: decoder_forward.1
$region0: #{decoder_forward.1}
  #allocation0 [shape = 'u32[]', space=smem, size = 0x4, offset = 0x4, fixed_abs, tag = 'smem constant byte address 0x4 - core index']
  #allocation1 [shape = 'u32[72,128]{1,0:T(1,128)}', space=vmem, size = 0x9000, scoped, tag = 'internal scratch']
  %s0 = inlined_call_operand.vmem [shape: f32[16,32], index: 0, kind: input, shape index: {}]
  %s1 = inlined_call_operand.vmem [shape: f32[16,32], index: 1, kind: input, shape index: {}]
  %s2 = inlined_call_operand.hbm [shape: f32[3,8,32,32], index: 2, kind: input, shape index: {}]
  %s3 = inlined_call_operand.vmem [shape: f32[3,32,128], index: 3, kind: input, shape index: {}]
  %s4 = inlined_call_operand.vmem [shape: f32[3,128,32], index: 4, kind: input, shape index: {}]
  %s5 = inlined_call_operand.vmem [shape: f32[3,15,32], index: 5, kind: input, shape index: {}]
  %s6 = inlined_call_operand.vmem [shape: f32[3,1,128], index: 6, kind: input, shape index: {}]
  %s7 = inlined_call_operand.vmem [shape: f32[2,32], index: 7, kind: input, shape index: {}]
  %s8 = inlined_call_operand.vmem [shape: f32[32,128], index: 8, kind: input, shape index: {}]
  %s9 = inlined_call_operand.vmem [shape: f32[1,128], index: 9, kind: input, shape index: {}]
  %s10 = inlined_call_operand.hbm [shape: f32[16,128], index: 10, kind: output, shape index: {}]
  %s11 = sld [smem:[#allocation0]]
  $region54: #{decoder_forward.1} parent=0
    _
  %s13 = ssub.s32 1, %s11
  %s14 = scalar_select 0, %s13, %s11
  $region1: #{decoder_forward.1} parent=0
    #allocation2 [shape = 'u8[393216]{0}', space=vmem, size = 0x60000, scoped, tag = 'input window, operand 2, single buffered']
    #allocation3 [shape = 's32[1]{0}', space=sflag, size = 0x4, scoped, tag = 'scoped memory for decoder_forward.1']
    #allocation4 [shape = 's32[1]{0}', space=sflag, size = 0x4, scoped, tag = 'scoped memory for decoder_forward.1']
    #allocation5 [shape = 'u8[8192]{0}', space=vmem, size = 0x2000, scoped, tag = 'output window, operand 0, single buffered']
    %15 = vsyncpa [#allocation3], 0
    %16 = vsyncpa [#allocation4], 0
    // Predicated region
    $region2: #{decoder_forward.1} parent=1 // pred_check
      _
    $region3: #{decoder_forward.1} parent=1 // pred_check_branch
      %18 = sbr.rel (0) target = $region5
    $region4: #{decoder_forward.1} parent=1 // pred_region
      _
    $region5: #{decoder_forward.1} parent=1 // pred_fallthru
      _
    // Predicated region
    $region6: #{decoder_forward.1} parent=1 // pred_check
      _
    $region7: #{decoder_forward.1} parent=1 // pred_check_branch
      %20 = sbr.rel (0) target = $region9
    $region8: #{decoder_forward.1} parent=1 // pred_region
      _
    $region9: #{decoder_forward.1} parent=1 // pred_fallthru
      _
    // Predicated region
    $region10: #{decoder_forward.1} parent=1 // pred_check
      _
    $region11: #{decoder_forward.1} parent=1 // pred_check_branch
      %22 = sbr.rel (0) target = $region13
    $region12: #{decoder_forward.1} parent=1 // pred_region
      %24 = vsyncadd [#allocation3], 0
      %s25 = sshll.u32 %s2, 4
      %s26 = int_to_ptr.hbm [resolvable:$true] %s25
      %s27 = sshll.u32 [#allocation2], 4
      %s28 = int_to_ptr.vmem [resolvable:$true] %s27
      %33 = dma.hbm_to_vmem [thread:$0]  %s26, 12288, %s28, [#allocation3], 128, 128, 8
    $region13: #{decoder_forward.1} parent=1 // pred_fallthru
      _
    // Predicated region
    $region14: #{decoder_forward.1} parent=1 // pred_check
      _
    $region15: #{decoder_forward.1} parent=1 // pred_check_branch
      %35 = sbr.rel (0) target = $region17
    $region16: #{decoder_forward.1} parent=1 // pred_region
      _
    $region17: #{decoder_forward.1} parent=1 // pred_fallthru
      _
    // Predicated region
    $region18: #{decoder_forward.1} parent=1 // pred_check
      _
    $region19: #{decoder_forward.1} parent=1 // pred_check_branch
      %37 = sbr.rel (0) target = $region21
    $region20: #{decoder_forward.1} parent=1 // pred_region
      _
    $region21: #{decoder_forward.1} parent=1 // pred_fallthru
      _
    // Predicated region
    $region22: #{decoder_forward.1} parent=1 // pred_check
      _
    $region23: #{decoder_forward.1} parent=1 // pred_check_branch
      %39 = sbr.rel (0) target = $region25
    $region24: #{decoder_forward.1} parent=1 // pred_region
      _
    $region25: #{decoder_forward.1} parent=1 // pred_fallthru
      _
    // Predicated region
    $region26: #{decoder_forward.1} parent=1 // pred_check
      _
    $region27: #{decoder_forward.1} parent=1 // pred_check_branch
      %41 = sbr.rel (0) target = $region29
    $region28: #{decoder_forward.1} parent=1 // pred_region
      _
    $region29: #{decoder_forward.1} parent=1 // pred_fallthru
      _
    // Predicated region
    $region30: #{decoder_forward.1} parent=1 // pred_check
      _
    $region31: #{decoder_forward.1} parent=1 // pred_check_branch
      %43 = sbr.rel (0) target = $region33
    $region32: #{decoder_forward.1} parent=1 // pred_region
      _
    $region33: #{decoder_forward.1} parent=1 // pred_fallthru
      _
    // Predicated region
    $region34: #{decoder_forward.1} parent=1 // pred_check
      _
    $region35: #{decoder_forward.1} parent=1 // pred_check_branch
      %45 = sbr.rel (0) target = $region37
    $region36: #{decoder_forward.1} parent=1 // pred_region
      _
    $region37: #{decoder_forward.1} parent=1 // pred_fallthru
      _
    // Predicated region
    $region38: #{decoder_forward.1} parent=1 // pred_check
      _
    $region39: #{decoder_forward.1} parent=1 // pred_check_branch
      %47 = sbr.rel (0) target = $region41
    $region40: #{decoder_forward.1} parent=1 // pred_region
      _
    $region41: #{decoder_forward.1} parent=1 // pred_fallthru
      _
    // Predicated region
    $region42: #{decoder_forward.1} parent=1 // pred_check
      _
    $region43: #{decoder_forward.1} parent=1 // pred_check_branch
      %49 = sbr.rel (0) target = $region45
    $region44: #{decoder_forward.1} parent=1 // pred_region
      %51 = dma.done [#allocation3], 12288
    $region45: #{decoder_forward.1} parent=1 // pred_fallthru
      _
    %v52 = vld [vmem:[%s0] sm:$0xff]
    %v53 = vld [vmem:[%s0 + $0x8] sm:$0xff]
    %v54 = vld [vmem:[%s1] sm:$0xff]
    %v55 = vld [vmem:[%s1 + $0x8] sm:$0xff]
    %v56 = vlaneseq
    %v57 = vshrl.u32 %v56, 7
    %v58 = vlaneseq
    %v59 = vand.u32 %v58, 127
    %vm60 = vcmp.le.s32.totalorder %v59, %v57
    %v61 = vld [vmem:[%s5] sm:$0xff]
    %v62 = vld [vmem:[%s5 + $0x8] sm:$0x7f]
    %v63 = vld [vmem:[%s6] sm:$0x1]
    %vm64 = vcmask 261120
    %v65 = vsel %vm64, %v52, 0.0
    %66 = vadd.xlane.f32.xlu0 %v65
    %v67 = vpop.xlane.xlu0 %66
    %v68 = vsel %vm64, %v53, 0.0
    %69 = vadd.xlane.f32.xlu0 %v68
    %v70 = vpop.xlane.xlu0 %69
    %v71 = vrcp.pop 32.0
    %v72 = vmul.f32 32.0, %v71
    %v73 = vsub.f32 1.0, %v72
    %v74 = vmul.f32 %v71, %v73
    %v75 = vadd.f32 %v71, %v74
    %vm76 = vweird.f32 %v71
    %v77 = vsel %vm76, %v71, %v75
    %v78 = vmul.f32 %v67, %v77
    %v79 = vmul.f32 %v70, %v77
    %v80 = vsub.f32 %v52, %v78
    %v81 = vsub.f32 %v53, %v79
    %v82 = vmul.f32 %v80, %v80
    %v83 = vmul.f32 %v81, %v81
    %v84 = vsel %vm64, %v82, 0.0
    %85 = vadd.xlane.f32.xlu0 %v84
    %v86 = vpop.xlane.xlu0 %85
    %v87 = vsel %vm64, %v83, 0.0
    %88 = vadd.xlane.f32.xlu0 %v87
    %v89 = vpop.xlane.xlu0 %88
    %v90 = vmul.f32 %v86, %v77
    %v91 = vmul.f32 %v89, %v77
    %v92 = vadd.f32 %v90, 1e-05
    %v93 = vadd.f32 %v91, 1e-05
    %v94 = vrsqrt.pop %v92
    %v95 = vmul.f32 %v94, %v92
    %v96 = vmul.f32 %v95, %v94
    %v97 = vmul.f32 0.5, %v96
    %v98 = vsub.f32 1.5, %v97
    %v99 = vmul.f32 %v94, %v98
    %vm100 = vweird.f32 %v92
    %vm101 = vweird.f32 %v94
    %vm102 = vmor %vm100, %vm101
    %v103 = vsel %vm102, %v94, %v99
    %v104 = vrsqrt.pop %v93
    %v105 = vmul.f32 %v104, %v93
    %v106 = vmul.f32 %v105, %v104
    %v107 = vmul.f32 0.5, %v106
    %v108 = vsub.f32 1.5, %v107
    %v109 = vmul.f32 %v104, %v108
    %vm110 = vweird.f32 %v93
    %vm111 = vweird.f32 %v104
    %vm112 = vmor %vm110, %vm111
    %v113 = vsel %vm112, %v104, %v109
    %v114 = vmul.f32 %v80, %v103
    %v115 = vmul.f32 %v81, %v113
    %v116 = vperm.slane %v61, 0
    %v117 = vmul.f32 %v114, %v116
    %v118 = vmul.f32 %v115, %v116
    %v119 = vperm.slane %v61, 1
    %v120 = vadd.f32 %v117, %v119
    %v121 = vadd.f32 %v118, %v119
    %v122 = vld [vmem:[#allocation2] sm:$0xff]
    %v123 = vld [vmem:[#allocation2 + $0x8] sm:$0xff]
    %v124 = vld [vmem:[#allocation2 + $0x10] sm:$0xff]
    %v125 = vld [vmem:[#allocation2 + $0x18] sm:$0xff]
    %v126 = vperm.slane %v61, 2
    %v128 = vsel %vm64, %v120, 0
    %v131 = vsel %vm64, %v121, 0
    %133 = vmatpush.msra.mxu0 0.0
    %134 = vmatpush.msra.mxu0 0.0
    %135 = vmatpush.msra.mxu0 0.0
    %136 = vmatpush.msra.mxu0 0.0
    %137 = vmatpush.msra.mxu0 0.0
    %138 = vmatpush.msra.mxu0 0.0
    %139 = vmatpush.msra.mxu0 0.0
    %140 = vmatpush.msra.mxu0 0.0
    %141 = vmatpush.msra.mxu0 0.0
    %142 = vmatpush.msra.mxu0 0.0
    %143 = vmatpush.msra.mxu0 0.0
    %144 = vmatpush.msra.mxu0 0.0
    %145 = vmatpush.msra.mxu0 %v125
    %146 = vmatpush.msra.mxu0 %v124
    %147 = vmatpush.msra.mxu0 %v123
    %148 = vmatpush.msra.mxu0 %v122
    %149 = vmatmul.f32.gmra.mxu0 %v128
    %v150 = vpop.f32.mrf.mxu0
    %v151 = vadd.f32 %v126, %v150
    %152 = vmatmul.f32.gmra.mxu0 %v131
    %v153 = vpop.f32.mrf.mxu0
    %v154 = vadd.f32 %v126, %v153
    %155 = vdwg.mxu0
    %s156 = scalar_lea.vmem [#allocation2], 32
    %v157 = vld [vmem:[%s156] sm:$0xff]
    %v158 = vld [vmem:[%s156 + $0x8] sm:$0xff]
    %v159 = vld [vmem:[%s156 + $0x10] sm:$0xff]
    %v160 = vld [vmem:[%s156 + $0x18] sm:$0xff]
    %v161 = vperm.slane %v61, 3
    %162 = vmatpush.msra.mxu0 0.0
    %163 = vmatpush.msra.mxu0 0.0
    %164 = vmatpush.msra.mxu0 0.0
    %165 = vmatpush.msra.mxu0 0.0
    %166 = vmatpush.msra.mxu0 0.0
    %167 = vmatpush.msra.mxu0 0.0
    %168 = vmatpush.msra.mxu0 0.0
    %169 = vmatpush.msra.mxu0 0.0
    %170 = vmatpush.msra.mxu0 0.0
    %171 = vmatpush.msra.mxu0 0.0
    %172 = vmatpush.msra.mxu0 0.0
    %173 = vmatpush.msra.mxu0 0.0
    %174 = vmatpush.msra.mxu0 %v160
    %175 = vmatpush.msra.mxu0 %v159
    %176 = vmatpush.msra.mxu0 %v158
    %177 = vmatpush.msra.mxu0 %v157
    %178 = vmatmul.f32.gmra.mxu0 %v128
    %v179 = vpop.f32.mrf.mxu0
    %v180 = vadd.f32 %v161, %v179
    %181 = vmatmul.f32.gmra.mxu0 %v131
    %v182 = vpop.f32.mrf.mxu0
    %v183 = vadd.f32 %v161, %v182
    %184 = vdwg.mxu0
    %s185 = scalar_lea.vmem [#allocation2], 64
    %v186 = vld [vmem:[%s185] sm:$0xff]
    %v187 = vld [vmem:[%s185 + $0x8] sm:$0xff]
    %v188 = vld [vmem:[%s185 + $0x10] sm:$0xff]
    %v189 = vld [vmem:[%s185 + $0x18] sm:$0xff]
    %v190 = vperm.slane %v61, 4
    %191 = vmatpush.msra.mxu0 0.0
    %192 = vmatpush.msra.mxu0 0.0
    %193 = vmatpush.msra.mxu0 0.0
    %194 = vmatpush.msra.mxu0 0.0
    %195 = vmatpush.msra.mxu0 0.0
    %196 = vmatpush.msra.mxu0 0.0
    %197 = vmatpush.msra.mxu0 0.0
    %198 = vmatpush.msra.mxu0 0.0
    %199 = vmatpush.msra.mxu0 0.0
    %200 = vmatpush.msra.mxu0 0.0
    %201 = vmatpush.msra.mxu0 0.0
    %202 = vmatpush.msra.mxu0 0.0
    %203 = vmatpush.msra.mxu0 %v189
    %204 = vmatpush.msra.mxu0 %v188
    %205 = vmatpush.msra.mxu0 %v187
    %206 = vmatpush.msra.mxu0 %v186
    %207 = vmatmul.f32.gmra.mxu0 %v128
    %v208 = vpop.f32.mrf.mxu0
    %v209 = vadd.f32 %v190, %v208
    %210 = vmatmul.f32.gmra.mxu0 %v131
    %v211 = vpop.f32.mrf.mxu0
    %v212 = vadd.f32 %v190, %v211
    %213 = vdwg.mxu0
    %215 = vrot.lane.b32.xlu0 %v151, 120
    %v216 = vpop.permute.xlu0 %215
    %218 = vrot.lane.b32.xlu0 %v151, 112
    %v219 = vpop.permute.xlu0 %218
    %221 = vrot.lane.b32.xlu0 %v151, 104
    %v222 = vpop.permute.xlu0 %221
    %v224 = vrot.slane %v219, 4
    %vm225 = vcmask 1047556
    %v226 = vsel %vm225, %v224, %v151
    %v227 = vrot.slane %v151, 4
    %v228 = vsel %vm225, %v219, %v227
    %v230 = vunpack.c.l.s4 1983009808
    %v231 = vunpack.c.0.s8 %v230
    %v232 = vperm.slane %v226, %v231
    %v234 = vunpack.c.l.s4 1983009808
    %v235 = vunpack.c.0.s8 %v234
    %v236 = vperm.slane %v228, %v235
    %v237 = vrot.slane %v222, 4
    %v238 = vsel %vm225, %v237, %v216
    %v239 = vrot.slane %v216, 4
    %v240 = vsel %vm225, %v222, %v239
    %v242 = vunpack.c.l.s4 1983009808
    %v243 = vunpack.c.0.s8 %v242
    %v244 = vperm.slane %v238, %v243
    %v246 = vunpack.c.l.s4 1983009808
    %v247 = vunpack.c.0.s8 %v246
    %v248 = vperm.slane %v240, %v247
    %v249 = vrot.slane %v244, 4
    %v250 = vsel %vm225, %v249, %v232
    %v251 = vrot.slane %v232, 4
    %v252 = vsel %vm225, %v244, %v251
    %v254 = vunpack.c.l.s4 1934713408
    %v255 = vunpack.c.0.s8 %v254
    %v256 = vperm.slane %v250, %v255
    %v258 = vunpack.c.l.s4 1934713408
    %v259 = vunpack.c.0.s8 %v258
    %v260 = vperm.slane %v252, %v259
    %v261 = vrot.slane %v248, 4
    %v262 = vsel %vm225, %v261, %v236
    %v263 = vrot.slane %v236, 4
    %v264 = vsel %vm225, %v248, %v263
    %v266 = vunpack.c.l.s4 1934713408
    %v267 = vunpack.c.0.s8 %v266
    %v268 = vperm.slane %v262, %v267
    %v270 = vunpack.c.l.s4 1934713408
    %v271 = vunpack.c.0.s8 %v270
    %v272 = vperm.slane %v264, %v271
    %v273 = vrot.slane %v256, 4
    %v274 = vsel %vm225, 0.0, %v273
    %v275 = vrot.slane %v260, 4
    %v276 = vsel %vm225, 0.0, %v275
    %v277 = vrot.slane %v268, 4
    %v278 = vsel %vm225, 0.0, %v277
    %v279 = vrot.slane %v272, 4
    %v280 = vsel %vm225, 0.0, %v279
    %v281 = vsel %vm225, %v275, %v256
    %v283 = vunpack.c.l.s4 1983009808
    %v284 = vunpack.c.0.s8 %v283
    %v285 = vperm.slane %v281, %v284
    %v286 = vrot.slane %v276, 4
    %v287 = vsel %vm225, %v286, %v274
    %v289 = vunpack.c.l.s4 1983009808
    %v290 = vunpack.c.0.s8 %v289
    %v291 = vperm.slane %v287, %v290
    %v292 = vsel %vm225, %v279, %v268
    %v294 = vunpack.c.l.s4 1983009808
    %v295 = vunpack.c.0.s8 %v294
    %v296 = vperm.slane %v292, %v295
    %v297 = vrot.slane %v280, 4
    %v298 = vsel %vm225, %v297, %v278
    %v300 = vunpack.c.l.s4 1983009808
    %v301 = vunpack.c.0.s8 %v300
    %v302 = vperm.slane %v298, %v301
    %v303 = vrot.slane %v291, 4
    %v304 = vsel %vm225, %v303, %v285
    %v305 = vrot.slane %v285, 4
    %v306 = vsel %vm225, %v291, %v305
    %v308 = vunpack.c.l.s4 1934713408
    %v309 = vunpack.c.0.s8 %v308
    %v310 = vperm.slane %v304, %v309
    %v312 = vunpack.c.l.s4 1934713408
    %v313 = vunpack.c.0.s8 %v312
    %v314 = vperm.slane %v306, %v313
    %v315 = vrot.slane %v302, 4
    %v316 = vsel %vm225, %v315, %v296
    %v317 = vrot.slane %v296, 4
    %v318 = vsel %vm225, %v302, %v317
    %v320 = vunpack.c.l.s4 1934713408
    %v321 = vunpack.c.0.s8 %v320
    %v322 = vperm.slane %v316, %v321
    %v324 = vunpack.c.l.s4 1934713408
    %v325 = vunpack.c.0.s8 %v324
    %v326 = vperm.slane %v318, %v325
    %v327 = vrot.slane %v322, 4
    %v328 = vsel %vm225, %v327, %v310
    %v329 = vrot.slane %v310, 4
    %v330 = vsel %vm225, %v322, %v329
    %v331 = vrot.slane %v326, 4
    %v332 = vsel %vm225, %v331, %v314
    %v333 = vrot.slane %v314, 4
    %v334 = vsel %vm225, %v326, %v333
    %336 = vrot.lane.b32.xlu0 %v180, 120
    %v337 = vpop.permute.xlu0 %336
    %339 = vrot.lane.b32.xlu0 %v180, 112
    %v340 = vpop.permute.xlu0 %339
    %342 = vrot.lane.b32.xlu0 %v180, 104
    %v343 = vpop.permute.xlu0 %342
    %v345 = vrot.slane %v340, 4
    %v346 = vsel %vm225, %v345, %v180
    %v347 = vrot.slane %v180, 4
    %v348 = vsel %vm225, %v340, %v347
    %v350 = vunpack.c.l.s4 1983009808
    %v351 = vunpack.c.0.s8 %v350
    %v352 = vperm.slane %v346, %v351
    %v354 = vunpack.c.l.s4 1983009808
    %v355 = vunpack.c.0.s8 %v354
    %v356 = vperm.slane %v348, %v355
    %v357 = vrot.slane %v343, 4
    %v358 = vsel %vm225, %v357, %v337
    %v359 = vrot.slane %v337, 4
    %v360 = vsel %vm225, %v343, %v359
    %v362 = vunpack.c.l.s4 1983009808
    %v363 = vunpack.c.0.s8 %v362
    %v364 = vperm.slane %v358, %v363
    %v366 = vunpack.c.l.s4 1983009808
    %v367 = vunpack.c.0.s8 %v366
    %v368 = vperm.slane %v360, %v367
    %v369 = vrot.slane %v364, 4
    %v370 = vsel %vm225, %v369, %v352
    %v371 = vrot.slane %v352, 4
    %v372 = vsel %vm225, %v364, %v371
    %v374 = vunpack.c.l.s4 1934713408
    %v375 = vunpack.c.0.s8 %v374
    %v376 = vperm.slane %v370, %v375
    %v378 = vunpack.c.l.s4 1934713408
    %v379 = vunpack.c.0.s8 %v378
    %v380 = vperm.slane %v372, %v379
    %v381 = vrot.slane %v368, 4
    %v382 = vsel %vm225, %v381, %v356
    %v383 = vrot.slane %v356, 4
    %v384 = vsel %vm225, %v368, %v383
    %v386 = vunpack.c.l.s4 1934713408
    %v387 = vunpack.c.0.s8 %v386
    %v388 = vperm.slane %v382, %v387
    %v390 = vunpack.c.l.s4 1934713408
    %v391 = vunpack.c.0.s8 %v390
    %v392 = vperm.slane %v384, %v391
    %v393 = vrot.slane %v376, 4
    %v394 = vsel %vm225, 0.0, %v393
    %v395 = vrot.slane %v380, 4
    %v396 = vsel %vm225, 0.0, %v395
    %v397 = vrot.slane %v388, 4
    %v398 = vsel %vm225, 0.0, %v397
    %v399 = vrot.slane %v392, 4
    %v400 = vsel %vm225, 0.0, %v399
    %v401 = vsel %vm225, %v395, %v376
    %v403 = vunpack.c.l.s4 1983009808
    %v404 = vunpack.c.0.s8 %v403
    %v405 = vperm.slane %v401, %v404
    %v406 = vrot.slane %v396, 4
    %v407 = vsel %vm225, %v406, %v394
    %v409 = vunpack.c.l.s4 1983009808
    %v410 = vunpack.c.0.s8 %v409
    %v411 = vperm.slane %v407, %v410
    %v412 = vsel %vm225, %v399, %v388
    %v414 = vunpack.c.l.s4 1983009808
    %v415 = vunpack.c.0.s8 %v414
    %v416 = vperm.slane %v412, %v415
    %v417 = vrot.slane %v400, 4
    %v418 = vsel %vm225, %v417, %v398
    %v420 = vunpack.c.l.s4 1983009808
    %v421 = vunpack.c.0.s8 %v420
    %v422 = vperm.slane %v418, %v421
    %v423 = vrot.slane %v411, 4
    %v424 = vsel %vm225, %v423, %v405
    %v425 = vrot.slane %v405, 4
    %v426 = vsel %vm225, %v411, %v425
    %v428 = vunpack.c.l.s4 1934713408
    %v429 = vunpack.c.0.s8 %v428
    %v430 = vperm.slane %v424, %v429
    %v432 = vunpack.c.l.s4 1934713408
    %v433 = vunpack.c.0.s8 %v432
    %v434 = vperm.slane %v426, %v433
    %v435 = vrot.slane %v422, 4
    %v436 = vsel %vm225, %v435, %v416
    %v437 = vrot.slane %v416, 4
    %v438 = vsel %vm225, %v422, %v437
    %v440 = vunpack.c.l.s4 1934713408
    %v441 = vunpack.c.0.s8 %v440
    %v442 = vperm.slane %v436, %v441
    %v444 = vunpack.c.l.s4 1934713408
    %v445 = vunpack.c.0.s8 %v444
    %v446 = vperm.slane %v438, %v445
    %v447 = vrot.slane %v442, 4
    %v448 = vsel %vm225, %v447, %v430
    %v449 = vrot.slane %v430, 4
    %v450 = vsel %vm225, %v442, %v449
    %v451 = vrot.slane %v446, 4
    %v452 = vsel %vm225, %v451, %v434
    %v453 = vrot.slane %v434, 4
    %v454 = vsel %vm225, %v446, %v453
    %456 = vrot.lane.b32.xlu0 %v209, 120
    %v457 = vpop.permute.xlu0 %456
    %459 = vrot.lane.b32.xlu0 %v209, 112
    %v460 = vpop.permute.xlu0 %459
    %462 = vrot.lane.b32.xlu0 %v209, 104
    %v463 = vpop.permute.xlu0 %462
    %v465 = vrot.slane %v460, 4
    %v466 = vsel %vm225, %v465, %v209
    %v467 = vrot.slane %v209, 4
    %v468 = vsel %vm225, %v460, %v467
    %v470 = vunpack.c.l.s4 1983009808
    %v471 = vunpack.c.0.s8 %v470
    %v472 = vperm.slane %v466, %v471
    %v474 = vunpack.c.l.s4 1983009808
    %v475 = vunpack.c.0.s8 %v474
    %v476 = vperm.slane %v468, %v475
    %v477 = vrot.slane %v463, 4
    %v478 = vsel %vm225, %v477, %v457
    %v479 = vrot.slane %v457, 4
    %v480 = vsel %vm225, %v463, %v479
    %v482 = vunpack.c.l.s4 1983009808
    %v483 = vunpack.c.0.s8 %v482
    %v484 = vperm.slane %v478, %v483
    %v486 = vunpack.c.l.s4 1983009808
    %v487 = vunpack.c.0.s8 %v486
    %v488 = vperm.slane %v480, %v487
    %v489 = vrot.slane %v484, 4
    %v490 = vsel %vm225, %v489, %v472
    %v491 = vrot.slane %v472, 4
    %v492 = vsel %vm225, %v484, %v491
    %v494 = vunpack.c.l.s4 1934713408
    %v495 = vunpack.c.0.s8 %v494
    %v496 = vperm.slane %v490, %v495
    %v498 = vunpack.c.l.s4 1934713408
    %v499 = vunpack.c.0.s8 %v498
    %v500 = vperm.slane %v492, %v499
    %v501 = vrot.slane %v488, 4
    %v502 = vsel %vm225, %v501, %v476
    %v503 = vrot.slane %v476, 4
    %v504 = vsel %vm225, %v488, %v503
    %v506 = vunpack.c.l.s4 1934713408
    %v507 = vunpack.c.0.s8 %v506
    %v508 = vperm.slane %v502, %v507
    %v510 = vunpack.c.l.s4 1934713408
    %v511 = vunpack.c.0.s8 %v510
    %v512 = vperm.slane %v504, %v511
    %v513 = vrot.slane %v496, 4
    %v514 = vsel %vm225, 0.0, %v513
    %v515 = vrot.slane %v500, 4
    %v516 = vsel %vm225, 0.0, %v515
    %v517 = vrot.slane %v508, 4
    %v518 = vsel %vm225, 0.0, %v517
    %v519 = vrot.slane %v512, 4
    %v520 = vsel %vm225, 0.0, %v519
    %v521 = vsel %vm225, %v515, %v496
    %v523 = vunpack.c.l.s4 1983009808
    %v524 = vunpack.c.0.s8 %v523
    %v525 = vperm.slane %v521, %v524
    %v526 = vrot.slane %v516, 4
    %v527 = vsel %vm225, %v526, %v514
    %v529 = vunpack.c.l.s4 1983009808
    %v530 = vunpack.c.0.s8 %v529
    %v531 = vperm.slane %v527, %v530
    %v532 = vsel %vm225, %v519, %v508
    %v534 = vunpack.c.l.s4 1983009808
    %v535 = vunpack.c.0.s8 %v534
    %v536 = vperm.slane %v532, %v535
    %v537 = vrot.slane %v520, 4
    %v538 = vsel %vm225, %v537, %v518
    %v540 = vunpack.c.l.s4 1983009808
    %v541 = vunpack.c.0.s8 %v540
    %v542 = vperm.slane %v538, %v541
    %v543 = vrot.slane %v531, 4
    %v544 = vsel %vm225, %v543, %v525
    %v545 = vrot.slane %v525, 4
    %v546 = vsel %vm225, %v531, %v545
    %v548 = vunpack.c.l.s4 1934713408
    %v549 = vunpack.c.0.s8 %v548
    %v550 = vperm.slane %v544, %v549
    %v552 = vunpack.c.l.s4 1934713408
    %v553 = vunpack.c.0.s8 %v552
    %v554 = vperm.slane %v546, %v553
    %v555 = vrot.slane %v542, 4
    %v556 = vsel %vm225, %v555, %v536
    %v557 = vrot.slane %v536, 4
    %v558 = vsel %vm225, %v542, %v557
    %v560 = vunpack.c.l.s4 1934713408
    %v561 = vunpack.c.0.s8 %v560
    %v562 = vperm.slane %v556, %v561
    %v564 = vunpack.c.l.s4 1934713408
    %v565 = vunpack.c.0.s8 %v564
    %v566 = vperm.slane %v558, %v565
    %v567 = vrot.slane %v562, 4
    %v568 = vsel %vm225, %v567, %v550
    %v569 = vrot.slane %v550, 4
    %v570 = vsel %vm225, %v562, %v569
    %v571 = vrot.slane %v566, 4
    %v572 = vsel %vm225, %v571, %v554
    %v573 = vrot.slane %v554, 4
    %v574 = vsel %vm225, %v566, %v573
    %vm575 = vcmask 64512
    %v577 = vsel %vm575, %v328, 0
    %v580 = vsel %vm575, %v448, 0
    %582 = vmatpush.xpose.msra.mxu0 0.0
    %583 = vmatpush.xpose.msra.mxu0 0.0
    %584 = vmatpush.xpose.msra.mxu0 0.0
    %585 = vmatpush.xpose.msra.mxu0 0.0
    %586 = vmatpush.xpose.msra.mxu0 0.0
    %587 = vmatpush.xpose.msra.mxu0 0.0
    %588 = vmatpush.xpose.msra.mxu0 0.0
    %589 = vmatpush.xpose.msra.mxu0 0.0
    %590 = vmatpush.xpose.msra.mxu0 0.0
    %591 = vmatpush.xpose.msra.mxu0 0.0
    %592 = vmatpush.xpose.msra.mxu0 0.0
    %593 = vmatpush.xpose.msra.mxu0 0.0
    %594 = vmatpush.xpose.msra.mxu0 0.0
    %595 = vmatpush.xpose.msra.mxu0 0.0
    %596 = vmatpush.xpose.msra.mxu0 0.0
    %597 = vmatpush.xpose.msra.mxu0 %v580
    %598 = vmatmul.f32.gmra.mxu0 %v577
    %v599 = vpop.f32.mrf.mxu0
    %v600 = vadd.f32 0.0, %v599
    %601 = vdwg.mxu0
    %v603 = vsel %vm575, %v330, 0
    %v606 = vsel %vm575, %v450, 0
    %608 = vmatpush.xpose.msra.mxu0 0.0
    %609 = vmatpush.xpose.msra.mxu0 0.0
    %610 = vmatpush.xpose.msra.mxu0 0.0
    %611 = vmatpush.xpose.msra.mxu0 0.0
    %612 = vmatpush.xpose.msra.mxu0 0.0
    %613 = vmatpush.xpose.msra.mxu0 0.0
    %614 = vmatpush.xpose.msra.mxu0 0.0
    %615 = vmatpush.xpose.msra.mxu0 0.0
    %616 = vmatpush.xpose.msra.mxu0 0.0
    %617 = vmatpush.xpose.msra.mxu0 0.0
    %618 = vmatpush.xpose.msra.mxu0 0.0
    %619 = vmatpush.xpose.msra.mxu0 0.0
    %620 = vmatpush.xpose.msra.mxu0 0.0
    %621 = vmatpush.xpose.msra.mxu0 0.0
    %622 = vmatpush.xpose.msra.mxu0 0.0
    %623 = vmatpush.xpose.msra.mxu0 %v606
    %624 = vmatmul.f32.gmra.mxu0 %v603
    %v625 = vpop.f32.mrf.mxu0
    %v626 = vadd.f32 0.0, %v625
    %627 = vdwg.mxu0
    %v629 = vsel %vm575, %v332, 0
    %v632 = vsel %vm575, %v452, 0
    %634 = vmatpush.xpose.msra.mxu0 0.0
    %635 = vmatpush.xpose.msra.mxu0 0.0
    %636 = vmatpush.xpose.msra.mxu0 0.0
    %637 = vmatpush.xpose.msra.mxu0 0.0
    %638 = vmatpush.xpose.msra.mxu0 0.0
    %639 = vmatpush.xpose.msra.mxu0 0.0
    %640 = vmatpush.xpose.msra.mxu0 0.0
    %641 = vmatpush.xpose.msra.mxu0 0.0
    %642 = vmatpush.xpose.msra.mxu0 0.0
    %643 = vmatpush.xpose.msra.mxu0 0.0
    %644 = vmatpush.xpose.msra.mxu0 0.0
    %645 = vmatpush.xpose.msra.mxu0 0.0
    %646 = vmatpush.xpose.msra.mxu0 0.0
    %647 = vmatpush.xpose.msra.mxu0 0.0
    %648 = vmatpush.xpose.msra.mxu0 0.0
    %649 = vmatpush.xpose.msra.mxu0 %v632
    %650 = vmatmul.f32.gmra.mxu0 %v629
    %v651 = vpop.f32.mrf.mxu0
    %v652 = vadd.f32 0.0, %v651
    %653 = vdwg.mxu0
    %v655 = vsel %vm575, %v334, 0
    %v658 = vsel %vm575, %v454, 0
    %660 = vmatpush.xpose.msra.mxu0 0.0
    %661 = vmatpush.xpose.msra.mxu0 0.0
    %662 = vmatpush.xpose.msra.mxu0 0.0
    %663 = vmatpush.xpose.msra.mxu0 0.0
    %664 = vmatpush.xpose.msra.mxu0 0.0
    %665 = vmatpush.xpose.msra.mxu0 0.0
    %666 = vmatpush.xpose.msra.mxu0 0.0
    %667 = vmatpush.xpose.msra.mxu0 0.0
    %668 = vmatpush.xpose.msra.mxu0 0.0
    %669 = vmatpush.xpose.msra.mxu0 0.0
    %670 = vmatpush.xpose.msra.mxu0 0.0
    %671 = vmatpush.xpose.msra.mxu0 0.0
    %672 = vmatpush.xpose.msra.mxu0 0.0
    %673 = vmatpush.xpose.msra.mxu0 0.0
    %674 = vmatpush.xpose.msra.mxu0 0.0
    %675 = vmatpush.xpose.msra.mxu0 %v658
    %676 = vmatmul.f32.gmra.mxu0 %v655
    %v677 = vpop.f32.mrf.mxu0
    %v678 = vadd.f32 0.0, %v677
    %679 = vdwg.mxu0
    %v680 = vmul.f32 %v600, 0.35355338
    %v681 = vmul.f32 %v626, 0.35355338
    %v682 = vmul.f32 %v652, 0.35355338
    %v683 = vmul.f32 %v678, 0.35355338
    %v684 = vsel %vm60, 1, 0
    %vm685 = vcmp.eq.s32.totalorder %v684, 1
    %v686 = vsel %vm685, %v680, -1e+30
    %v687 = vsel %vm685, %v681, -1e+30
    %v688 = vsel %vm685, %v682, -1e+30
    %v689 = vsel %vm685, %v683, -1e+30
    %v690 = vsel %vm575, %v686, -inf
    %691 = vmax.xlane.f32.xlu0 %v690
    %v692 = vpop.xlane.xlu0 %691
    %v693 = vsel %vm575, %v687, -inf
    %694 = vmax.xlane.f32.xlu0 %v693
    %v695 = vpop.xlane.xlu0 %694
    %v696 = vsel %vm575, %v688, -inf
    %697 = vmax.xlane.f32.xlu0 %v696
    %v698 = vpop.xlane.xlu0 %697
    %v699 = vsel %vm575, %v689, -inf
    %700 = vmax.xlane.f32.xlu0 %v699
    %v701 = vpop.xlane.xlu0 %700
    %v702 = vsub.f32 %v686, %v692
    %v703 = vsub.f32 %v687, %v695
    %v704 = vsub.f32 %v688, %v698
    %v705 = vsub.f32 %v689, %v701
    %v706 = vmul.f32 %v702, 1.442695
    %v707 = vpow.pop %v706
    %v708 = vmul.f32 %v703, 1.442695
    %v709 = vpow.pop %v708
    %v710 = vmul.f32 %v704, 1.442695
    %v711 = vpow.pop %v710
    %v712 = vmul.f32 %v705, 1.442695
    %v713 = vpow.pop %v712
    %v714 = vsel %vm575, %v707, 0.0
    %715 = vadd.xlane.f32.xlu0 %v714
    %v716 = vpop.xlane.xlu0 %715
    %v717 = vsel %vm575, %v709, 0.0
    %718 = vadd.xlane.f32.xlu0 %v717
    %v719 = vpop.xlane.xlu0 %718
    %v720 = vsel %vm575, %v711, 0.0
    %721 = vadd.xlane.f32.xlu0 %v720
    %v722 = vpop.xlane.xlu0 %721
    %v723 = vsel %vm575, %v713, 0.0
    %724 = vadd.xlane.f32.xlu0 %v723
    %v725 = vpop.xlane.xlu0 %724
    %v726 = vrcp.pop %v716
    %v727 = vrcp.pop %v719
    %v728 = vrcp.pop %v722
    %v729 = vrcp.pop %v725
    %v730 = vmul.f32 %v707, %v726
    %v731 = vmul.f32 %v709, %v727
    %v732 = vmul.f32 %v711, %v728
    %v733 = vmul.f32 %v713, %v729
    %v735 = vsel %vm575, %v730, 0
    %737 = vmatpush.msra.mxu0 0.0
    %738 = vmatpush.msra.mxu0 0.0
    %739 = vmatpush.msra.mxu0 0.0
    %740 = vmatpush.msra.mxu0 0.0
    %741 = vmatpush.msra.mxu0 0.0
    %742 = vmatpush.msra.mxu0 0.0
    %743 = vmatpush.msra.mxu0 0.0
    %744 = vmatpush.msra.mxu0 0.0
    %745 = vmatpush.msra.mxu0 0.0
    %746 = vmatpush.msra.mxu0 0.0
    %747 = vmatpush.msra.mxu0 0.0
    %748 = vmatpush.msra.mxu0 0.0
    %749 = vmatpush.msra.mxu0 0.0
    %750 = vmatpush.msra.mxu0 0.0
    %751 = vmatpush.msra.mxu0 0.0
    %752 = vmatpush.msra.mxu0 %v568
    %753 = vmatmul.f32.gmra.mxu0 %v735
    %v754 = vpop.f32.mrf.mxu0
    %v755 = vadd.f32 0.0, %v754
    %756 = vdwg.mxu0
    %v758 = vsel %vm575, %v731, 0
    %760 = vmatpush.msra.mxu0 0.0
    %761 = vmatpush.msra.mxu0 0.0
    %762 = vmatpush.msra.mxu0 0.0
    %763 = vmatpush.msra.mxu0 0.0
    %764 = vmatpush.msra.mxu0 0.0
    %765 = vmatpush.msra.mxu0 0.0
    %766 = vmatpush.msra.mxu0 0.0
    %767 = vmatpush.msra.mxu0 0.0
    %768 = vmatpush.msra.mxu0 0.0
    %769 = vmatpush.msra.mxu0 0.0
    %770 = vmatpush.msra.mxu0 0.0
    %771 = vmatpush.msra.mxu0 0.0
    %772 = vmatpush.msra.mxu0 0.0
    %773 = vmatpush.msra.mxu0 0.0
    %774 = vmatpush.msra.mxu0 0.0
    %775 = vmatpush.msra.mxu0 %v570
    %776 = vmatmul.f32.gmra.mxu0 %v758
    %v777 = vpop.f32.mrf.mxu0
    %v778 = vadd.f32 0.0, %v777
    %779 = vdwg.mxu0
    %v781 = vsel %vm575, %v732, 0
    %783 = vmatpush.msra.mxu0 0.0
    %784 = vmatpush.msra.mxu0 0.0
    %785 = vmatpush.msra.mxu0 0.0
    %786 = vmatpush.msra.mxu0 0.0
    %787 = vmatpush.msra.mxu0 0.0
    %788 = vmatpush.msra.mxu0 0.0
    %789 = vmatpush.msra.mxu0 0.0
    %790 = vmatpush.msra.mxu0 0.0
    %791 = vmatpush.msra.mxu0 0.0
    %792 = vmatpush.msra.mxu0 0.0
    %793 = vmatpush.msra.mxu0 0.0
    %794 = vmatpush.msra.mxu0 0.0
    %795 = vmatpush.msra.mxu0 0.0
    %796 = vmatpush.msra.mxu0 0.0
    %797 = vmatpush.msra.mxu0 0.0
    %798 = vmatpush.msra.mxu0 %v572
    %799 = vmatmul.f32.gmra.mxu0 %v781
    %v800 = vpop.f32.mrf.mxu0
    %v801 = vadd.f32 0.0, %v800
    %802 = vdwg.mxu0
    %v804 = vsel %vm575, %v733, 0
    %806 = vmatpush.msra.mxu0 0.0
    %807 = vmatpush.msra.mxu0 0.0
    %808 = vmatpush.msra.mxu0 0.0
    %809 = vmatpush.msra.mxu0 0.0
    %810 = vmatpush.msra.mxu0 0.0
    %811 = vmatpush.msra.mxu0 0.0
    %812 = vmatpush.msra.mxu0 0.0
    %813 = vmatpush.msra.mxu0 0.0
    %814 = vmatpush.msra.mxu0 0.0
    %815 = vmatpush.msra.mxu0 0.0
    %816 = vmatpush.msra.mxu0 0.0
    %817 = vmatpush.msra.mxu0 0.0
    %818 = vmatpush.msra.mxu0 0.0
    %819 = vmatpush.msra.mxu0 0.0
    %820 = vmatpush.msra.mxu0 0.0
    %821 = vmatpush.msra.mxu0 %v574
    %822 = vmatmul.f32.gmra.mxu0 %v804
    %v823 = vpop.f32.mrf.mxu0
    %v824 = vadd.f32 0.0, %v823
    %825 = vdwg.mxu0
    %v826 = vrot.slane %v801, 4
    %v827 = vsel %vm225, %v826, %v755
    %v828 = vrot.slane %v755, 4
    %v829 = vsel %vm225, %v801, %v828
    %v831 = vunpack.c.l.s4 1983009808
    %v832 = vunpack.c.0.s8 %v831
    %v833 = vperm.slane %v827, %v832
    %v835 = vunpack.c.l.s4 1983009808
    %v836 = vunpack.c.0.s8 %v835
    %v837 = vperm.slane %v829, %v836
    %v838 = vrot.slane %v824, 4
    %v839 = vsel %vm225, %v838, %v778
    %v840 = vrot.slane %v778, 4
    %v841 = vsel %vm225, %v824, %v840
    %v843 = vunpack.c.l.s4 1983009808
    %v844 = vunpack.c.0.s8 %v843
    %v845 = vperm.slane %v839, %v844
    %v847 = vunpack.c.l.s4 1983009808
    %v848 = vunpack.c.0.s8 %v847
    %v849 = vperm.slane %v841, %v848
    %v850 = vrot.slane %v845, 4
    %v851 = vsel %vm225, %v850, %v833
    %v852 = vrot.slane %v833, 4
    %v853 = vsel %vm225, %v845, %v852
    %v855 = vunpack.c.l.s4 1934713408
    %v856 = vunpack.c.0.s8 %v855
    %v857 = vperm.slane %v851, %v856
    %v859 = vunpack.c.l.s4 1934713408
    %v860 = vunpack.c.0.s8 %v859
    %v861 = vperm.slane %v853, %v860
    %v862 = vrot.slane %v849, 4
    %v863 = vsel %vm225, %v862, %v837
    %v864 = vrot.slane %v837, 4
    %v865 = vsel %vm225, %v849, %v864
    %v867 = vunpack.c.l.s4 1934713408
    %v868 = vunpack.c.0.s8 %v867
    %v869 = vperm.slane %v863, %v868
    %v871 = vunpack.c.l.s4 1934713408
    %v872 = vunpack.c.0.s8 %v871
    %v873 = vperm.slane %v865, %v872
    %v874 = vrot.slane %v857, 4
    %v875 = vsel %vm225, 0.0, %v874
    %v876 = vrot.slane %v861, 4
    %v877 = vsel %vm225, 0.0, %v876
    %v878 = vrot.slane %v869, 4
    %v879 = vsel %vm225, 0.0, %v878
    %v880 = vrot.slane %v873, 4
    %v881 = vsel %vm225, 0.0, %v880
    %v882 = vsel %vm225, %v876, %v857
    %v884 = vunpack.c.l.s4 1983009808
    %v885 = vunpack.c.0.s8 %v884
    %v886 = vperm.slane %v882, %v885
    %v887 = vrot.slane %v877, 4
    %v888 = vsel %vm225, %v887, %v875
    %v890 = vunpack.c.l.s4 1983009808
    %v891 = vunpack.c.0.s8 %v890
    %v892 = vperm.slane %v888, %v891
    %v893 = vsel %vm225, %v880, %v869
    %v895 = vunpack.c.l.s4 1983009808
    %v896 = vunpack.c.0.s8 %v895
    %v897 = vperm.slane %v893, %v896
    %v898 = vrot.slane %v881, 4
    %v899 = vsel %vm225, %v898, %v879
    %v901 = vunpack.c.l.s4 1983009808
    %v902 = vunpack.c.0.s8 %v901
    %v903 = vperm.slane %v899, %v902
    %v904 = vrot.slane %v892, 4
    %v905 = vsel %vm225, %v904, %v886
    %v906 = vrot.slane %v886, 4
    %v907 = vsel %vm225, %v892, %v906
    %v909 = vunpack.c.l.s4 1934713408
    %v910 = vunpack.c.0.s8 %v909
    %v911 = vperm.slane %v905, %v910
    %v913 = vunpack.c.l.s4 1934713408
    %v914 = vunpack.c.0.s8 %v913
    %v915 = vperm.slane %v907, %v914
    %v916 = vrot.slane %v903, 4
    %v917 = vsel %vm225, %v916, %v897
    %v918 = vrot.slane %v897, 4
    %v919 = vsel %vm225, %v903, %v918
    %v921 = vunpack.c.l.s4 1934713408
    %v922 = vunpack.c.0.s8 %v921
    %v923 = vperm.slane %v917, %v922
    %v925 = vunpack.c.l.s4 1934713408
    %v926 = vunpack.c.0.s8 %v925
    %v927 = vperm.slane %v919, %v926
    %v928 = vrot.slane %v923, 4
    %v929 = vsel %vm225, %v928, %v911
    %v930 = vrot.slane %v911, 4
    %v931 = vsel %vm225, %v923, %v930
    %v932 = vrot.slane %v927, 4
    %v933 = vsel %vm225, %v932, %v915
    %v934 = vrot.slane %v915, 4
    %v935 = vsel %vm225, %v927, %v934
    %937 = vrot.lane.b32.xlu0 %v931, 8
    %v938 = vpop.permute.xlu0 %937
    %941 = vrot.lane.b32.xlu0 %v933, 16
    %v942 = vpop.permute.xlu0 %941
    %945 = vrot.lane.b32.xlu0 %v935, 24
    %v946 = vpop.permute.xlu0 %945
    %v948 = vsel %vm575, %v929, %v938
    %vm949 = vcmask 130048
    %v950 = vsel %vm949, %v948, %v942
    %vm951 = vcmask 195584
    %v952 = vsel %vm951, %v950, %v946
    %954 = vrot.lane.b32.xlu0 %v154, 120
    %v955 = vpop.permute.xlu0 %954
    %957 = vrot.lane.b32.xlu0 %v154, 112
    %v958 = vpop.permute.xlu0 %957
    %960 = vrot.lane.b32.xlu0 %v154, 104
    %v961 = vpop.permute.xlu0 %960
    %v963 = vrot.slane %v958, 4
    %v964 = vsel %vm225, %v963, %v154
    %v965 = vrot.slane %v154, 4
    %v966 = vsel %vm225, %v958, %v965
    %v968 = vunpack.c.l.s4 1983009808
    %v969 = vunpack.c.0.s8 %v968
    %v970 = vperm.slane %v964, %v969
    %v972 = vunpack.c.l.s4 1983009808
    %v973 = vunpack.c.0.s8 %v972
    %v974 = vperm.slane %v966, %v973
    %v975 = vrot.slane %v961, 4
    %v976 = vsel %vm225, %v975, %v955
    %v977 = vrot.slane %v955, 4
    %v978 = vsel %vm225, %v961, %v977
    %v980 = vunpack.c.l.s4 1983009808
    %v981 = vunpack.c.0.s8 %v980
    %v982 = vperm.slane %v976, %v981
    %v984 = vunpack.c.l.s4 1983009808
    %v985 = vunpack.c.0.s8 %v984
    %v986 = vperm.slane %v978, %v985
    %v987 = vrot.slane %v982, 4
    %v988 = vsel %vm225, %v987, %v970
    %v989 = vrot.slane %v970, 4
    %v990 = vsel %vm225, %v982, %v989
    %v992 = vunpack.c.l.s4 1934713408
    %v993 = vunpack.c.0.s8 %v992
    %v994 = vperm.slane %v988, %v993
    %v996 = vunpack.c.l.s4 1934713408
    %v997 = vunpack.c.0.s8 %v996
    %v998 = vperm.slane %v990, %v997
    %v999 = vrot.slane %v986, 4
    %v1000 = vsel %vm225, %v999, %v974
    %v1001 = vrot.slane %v974, 4
    %v1002 = vsel %vm225, %v986, %v1001
    %v1004 = vunpack.c.l.s4 1934713408
    %v1005 = vunpack.c.0.s8 %v1004
    %v1006 = vperm.slane %v1000, %v1005
    %v1008 = vunpack.c.l.s4 1934713408
    %v1009 = vunpack.c.0.s8 %v1008
    %v1010 = vperm.slane %v1002, %v1009
    %v1011 = vrot.slane %v994, 4
    %v1012 = vsel %vm225, 0.0, %v1011
    %v1013 = vrot.slane %v998, 4
    %v1014 = vsel %vm225, 0.0, %v1013
    %v1015 = vrot.slane %v1006, 4
    %v1016 = vsel %vm225, 0.0, %v1015
    %v1017 = vrot.slane %v1010, 4
    %v1018 = vsel %vm225, 0.0, %v1017
    %v1019 = vsel %vm225, %v1013, %v994
    %v1021 = vunpack.c.l.s4 1983009808
    %v1022 = vunpack.c.0.s8 %v1021
    %v1023 = vperm.slane %v1019, %v1022
    %v1024 = vrot.slane %v1014, 4
    %v1025 = vsel %vm225, %v1024, %v1012
    %v1027 = vunpack.c.l.s4 1983009808
    %v1028 = vunpack.c.0.s8 %v1027
    %v1029 = vperm.slane %v1025, %v1028
    %v1030 = vsel %vm225, %v1017, %v1006
    %v1032 = vunpack.c.l.s4 1983009808
    %v1033 = vunpack.c.0.s8 %v1032
    %v1034 = vperm.slane %v1030, %v1033
    %v1035 = vrot.slane %v1018, 4
    %v1036 = vsel %vm225, %v1035, %v1016
    %v1038 = vunpack.c.l.s4 1983009808
    %v1039 = vunpack.c.0.s8 %v1038
    %v1040 = vperm.slane %v1036, %v1039
    %v1041 = vrot.slane %v1029, 4
    %v1042 = vsel %vm225, %v1041, %v1023
    %v1043 = vrot.slane %v1023, 4
    %v1044 = vsel %vm225, %v1029, %v1043
    %v1046 = vunpack.c.l.s4 1934713408
    %v1047 = vunpack.c.0.s8 %v1046
    %v1048 = vperm.slane %v1042, %v1047
    %v1050 = vunpack.c.l.s4 1934713408
    %v1051 = vunpack.c.0.s8 %v1050
    %v1052 = vperm.slane %v1044, %v1051
    %v1053 = vrot.slane %v1040, 4
    %v1054 = vsel %vm225, %v1053, %v1034
    %v1055 = vrot.slane %v1034, 4
    %v1056 = vsel %vm225, %v1040, %v1055
    %v1058 = vunpack.c.l.s4 1934713408
    %v1059 = vunpack.c.0.s8 %v1058
    %v1060 = vperm.slane %v1054, %v1059
    %v1062 = vunpack.c.l.s4 1934713408
    %v1063 = vunpack.c.0.s8 %v1062
    %v1064 = vperm.slane %v1056, %v1063
    %v1065 = vrot.slane %v1060, 4
    %v1066 = vsel %vm225, %v1065, %v1048
    %v1067 = vrot.slane %v1048, 4
    %v1068 = vsel %vm225, %v1060, %v1067
    %v1069 = vrot.slane %v1064, 4
    %v1070 = vsel %vm225, %v1069, %v1052
    %v1071 = vrot.slane %v1052, 4
    %v1072 = vsel %vm225, %v1064, %v1071
    %1074 = vrot.lane.b32.xlu0 %v183, 120
    %v1075 = vpop.permute.xlu0 %1074
    %1077 = vrot.lane.b32.xlu0 %v183, 112
    %v1078 = vpop.permute.xlu0 %1077
    %1080 = vrot.lane.b32.xlu0 %v183, 104
    %v1081 = vpop.permute.xlu0 %1080
    %v1083 = vrot.slane %v1078, 4
    %v1084 = vsel %vm225, %v1083, %v183
    %v1085 = vrot.slane %v183, 4
    %v1086 = vsel %vm225, %v1078, %v1085
    %v1088 = vunpack.c.l.s4 1983009808
    %v1089 = vunpack.c.0.s8 %v1088
    %v1090 = vperm.slane %v1084, %v1089
    %v1092 = vunpack.c.l.s4 1983009808
    %v1093 = vunpack.c.0.s8 %v1092
    %v1094 = vperm.slane %v1086, %v1093
    %v1095 = vrot.slane %v1081, 4
    %v1096 = vsel %vm225, %v1095, %v1075
    %v1097 = vrot.slane %v1075, 4
    %v1098 = vsel %vm225, %v1081, %v1097
    %v1100 = vunpack.c.l.s4 1983009808
    %v1101 = vunpack.c.0.s8 %v1100
    %v1102 = vperm.slane %v1096, %v1101
    %v1104 = vunpack.c.l.s4 1983009808
    %v1105 = vunpack.c.0.s8 %v1104
    %v1106 = vperm.slane %v1098, %v1105
    %v1107 = vrot.slane %v1102, 4
    %v1108 = vsel %vm225, %v1107, %v1090
    %v1109 = vrot.slane %v1090, 4
    %v1110 = vsel %vm225, %v1102, %v1109
    %v1112 = vunpack.c.l.s4 1934713408
    %v1113 = vunpack.c.0.s8 %v1112
    %v1114 = vperm.slane %v1108, %v1113
    %v1116 = vunpack.c.l.s4 1934713408
    %v1117 = vunpack.c.0.s8 %v1116
    %v1118 = vperm.slane %v1110, %v1117
    %v1119 = vrot.slane %v1106, 4
    %v1120 = vsel %vm225, %v1119, %v1094
    %v1121 = vrot.slane %v1094, 4
    %v1122 = vsel %vm225, %v1106, %v1121
    %v1124 = vunpack.c.l.s4 1934713408
    %v1125 = vunpack.c.0.s8 %v1124
    %v1126 = vperm.slane %v1120, %v1125
    %v1128 = vunpack.c.l.s4 1934713408
    %v1129 = vunpack.c.0.s8 %v1128
    %v1130 = vperm.slane %v1122, %v1129
    %v1131 = vrot.slane %v1114, 4
    %v1132 = vsel %vm225, 0.0, %v1131
    %v1133 = vrot.slane %v1118, 4
    %v1134 = vsel %vm225, 0.0, %v1133
    %v1135 = vrot.slane %v1126, 4
    %v1136 = vsel %vm225, 0.0, %v1135
    %v1137 = vrot.slane %v1130, 4
    %v1138 = vsel %vm225, 0.0, %v1137
    %v1139 = vsel %vm225, %v1133, %v1114
    %v1141 = vunpack.c.l.s4 1983009808
    %v1142 = vunpack.c.0.s8 %v1141
    %v1143 = vperm.slane %v1139, %v1142
    %v1144 = vrot.slane %v1134, 4
    %v1145 = vsel %vm225, %v1144, %v1132
    %v1147 = vunpack.c.l.s4 1983009808
    %v1148 = vunpack.c.0.s8 %v1147
    %v1149 = vperm.slane %v1145, %v1148
    %v1150 = vsel %vm225, %v1137, %v1126
    %v1152 = vunpack.c.l.s4 1983009808
    %v1153 = vunpack.c.0.s8 %v1152
    %v1154 = vperm.slane %v1150, %v1153
    %v1155 = vrot.slane %v1138, 4
    %v1156 = vsel %vm225, %v1155, %v1136
    %v1158 = vunpack.c.l.s4 1983009808
    %v1159 = vunpack.c.0.s8 %v1158
    %v1160 = vperm.slane %v1156, %v1159
    %v1161 = vrot.slane %v1149, 4
    %v1162 = vsel %vm225, %v1161, %v1143
    %v1163 = vrot.slane %v1143, 4
    %v1164 = vsel %vm225, %v1149, %v1163
    %v1166 = vunpack.c.l.s4 1934713408
    %v1167 = vunpack.c.0.s8 %v1166
    %v1168 = vperm.slane %v1162, %v1167
    %v1170 = vunpack.c.l.s4 1934713408
    %v1171 = vunpack.c.0.s8 %v1170
    %v1172 = vperm.slane %v1164, %v1171
    %v1173 = vrot.slane %v1160, 4
    %v1174 = vsel %vm225, %v1173, %v1154
    %v1175 = vrot.slane %v1154, 4
    %v1176 = vsel %vm225, %v1160, %v1175
    %v1178 = vunpack.c.l.s4 1934713408
    %v1179 = vunpack.c.0.s8 %v1178
    %v1180 = vperm.slane %v1174, %v1179
    %v1182 = vunpack.c.l.s4 1934713408
    %v1183 = vunpack.c.0.s8 %v1182
    %v1184 = vperm.slane %v1176, %v1183
    %v1185 = vrot.slane %v1180, 4
    %v1186 = vsel %vm225, %v1185, %v1168
    %v1187 = vrot.slane %v1168, 4
    %v1188 = vsel %vm225, %v1180, %v1187
    %v1189 = vrot.slane %v1184, 4
    %v1190 = vsel %vm225, %v1189, %v1172
    %v1191 = vrot.slane %v1172, 4
    %v1192 = vsel %vm225, %v1184, %v1191
    %1194 = vrot.lane.b32.xlu0 %v212, 120
    %v1195 = vpop.permute.xlu0 %1194
    %1197 = vrot.lane.b32.xlu0 %v212, 112
    %v1198 = vpop.permute.xlu0 %1197
    %1200 = vrot.lane.b32.xlu0 %v212, 104
    %v1201 = vpop.permute.xlu0 %1200
    %v1203 = vrot.slane %v1198, 4
    %v1204 = vsel %vm225, %v1203, %v212
    %v1205 = vrot.slane %v212, 4
    %v1206 = vsel %vm225, %v1198, %v1205
    %v1208 = vunpack.c.l.s4 1983009808
    %v1209 = vunpack.c.0.s8 %v1208
    %v1210 = vperm.slane %v1204, %v1209
    %v1212 = vunpack.c.l.s4 1983009808
    %v1213 = vunpack.c.0.s8 %v1212
    %v1214 = vperm.slane %v1206, %v1213
    %v1215 = vrot.slane %v1201, 4
    %v1216 = vsel %vm225, %v1215, %v1195
    %v1217 = vrot.slane %v1195, 4
    %v1218 = vsel %vm225, %v1201, %v1217
    %v1220 = vunpack.c.l.s4 1983009808
    %v1221 = vunpack.c.0.s8 %v1220
    %v1222 = vperm.slane %v1216, %v1221
    %v1224 = vunpack.c.l.s4 1983009808
    %v1225 = vunpack.c.0.s8 %v1224
    %v1226 = vperm.slane %v1218, %v1225
    %v1227 = vrot.slane %v1222, 4
    %v1228 = vsel %vm225, %v1227, %v1210
    %v1229 = vrot.slane %v1210, 4
    %v1230 = vsel %vm225, %v1222, %v1229
    %v1232 = vunpack.c.l.s4 1934713408
    %v1233 = vunpack.c.0.s8 %v1232
    %v1234 = vperm.slane %v1228, %v1233
    %v1236 = vunpack.c.l.s4 1934713408
    %v1237 = vunpack.c.0.s8 %v1236
    %v1238 = vperm.slane %v1230, %v1237
    %v1239 = vrot.slane %v1226, 4
    %v1240 = vsel %vm225, %v1239, %v1214
    %v1241 = vrot.slane %v1214, 4
    %v1242 = vsel %vm225, %v1226, %v1241
    %v1244 = vunpack.c.l.s4 1934713408
    %v1245 = vunpack.c.0.s8 %v1244
    %v1246 = vperm.slane %v1240, %v1245
    %v1248 = vunpack.c.l.s4 1934713408
    %v1249 = vunpack.c.0.s8 %v1248
    %v1250 = vperm.slane %v1242, %v1249
    %v1251 = vrot.slane %v1234, 4
    %v1252 = vsel %vm225, 0.0, %v1251
    %v1253 = vrot.slane %v1238, 4
    %v1254 = vsel %vm225, 0.0, %v1253
    %v1255 = vrot.slane %v1246, 4
    %v1256 = vsel %vm225, 0.0, %v1255
    %v1257 = vrot.slane %v1250, 4
    %v1258 = vsel %vm225, 0.0, %v1257
    %v1259 = vsel %vm225, %v1253, %v1234
    %v1261 = vunpack.c.l.s4 1983009808
    %v1262 = vunpack.c.0.s8 %v1261
    %v1263 = vperm.slane %v1259, %v1262
    %v1264 = vrot.slane %v1254, 4
    %v1265 = vsel %vm225, %v1264, %v1252
    %v1267 = vunpack.c.l.s4 1983009808
    %v1268 = vunpack.c.0.s8 %v1267
    %v1269 = vperm.slane %v1265, %v1268
    %v1270 = vsel %vm225, %v1257, %v1246
    %v1272 = vunpack.c.l.s4 1983009808
    %v1273 = vunpack.c.0.s8 %v1272
    %v1274 = vperm.slane %v1270, %v1273
    %v1275 = vrot.slane %v1258, 4
    %v1276 = vsel %vm225, %v1275, %v1256
    %v1278 = vunpack.c.l.s4 1983009808
    %v1279 = vunpack.c.0.s8 %v1278
    %v1280 = vperm.slane %v1276, %v1279
    %v1281 = vrot.slane %v1269, 4
    %v1282 = vsel %vm225, %v1281, %v1263
    %v1283 = vrot.slane %v1263, 4
    %v1284 = vsel %vm225, %v1269, %v1283
    %v1286 = vunpack.c.l.s4 1934713408
    %v1287 = vunpack.c.0.s8 %v1286
    %v1288 = vperm.slane %v1282, %v1287
    %v1290 = vunpack.c.l.s4 1934713408
    %v1291 = vunpack.c.0.s8 %v1290
    %v1292 = vperm.slane %v1284, %v1291
    %v1293 = vrot.slane %v1280, 4
    %v1294 = vsel %vm225, %v1293, %v1274
    %v1295 = vrot.slane %v1274, 4
    %v1296 = vsel %vm225, %v1280, %v1295
    %v1298 = vunpack.c.l.s4 1934713408
    %v1299 = vunpack.c.0.s8 %v1298
    %v1300 = vperm.slane %v1294, %v1299
    %v1302 = vunpack.c.l.s4 1934713408
    %v1303 = vunpack.c.0.s8 %v1302
    %v1304 = vperm.slane %v1296, %v1303
    %v1305 = vrot.slane %v1300, 4
    %v1306 = vsel %vm225, %v1305, %v1288
    %v1307 = vrot.slane %v1288, 4
    %v1308 = vsel %vm225, %v1300, %v1307
    %v1309 = vrot.slane %v1304, 4
    %v1310 = vsel %vm225, %v1309, %v1292
    %v1311 = vrot.slane %v1292, 4
    %v1312 = vsel %vm225, %v1304, %v1311
    %v1314 = vsel %vm575, %v1066, 0
    %v1317 = vsel %vm575, %v1186, 0
    %1319 = vmatpush.xpose.msra.mxu0 0.0
    %1320 = vmatpush.xpose.msra.mxu0 0.0
    %1321 = vmatpush.xpose.msra.mxu0 0.0
    %1322 = vmatpush.xpose.msra.mxu0 0.0
    %1323 = vmatpush.xpose.msra.mxu0 0.0
    %1324 = vmatpush.xpose.msra.mxu0 0.0
    %1325 = vmatpush.xpose.msra.mxu0 0.0
    %1326 = vmatpush.xpose.msra.mxu0 0.0
    %1327 = vmatpush.xpose.msra.mxu0 0.0
    %1328 = vmatpush.xpose.msra.mxu0 0.0
    %1329 = vmatpush.xpose.msra.mxu0 0.0
    %1330 = vmatpush.xpose.msra.mxu0 0.0
    %1331 = vmatpush.xpose.msra.mxu0 0.0
    %1332 = vmatpush.xpose.msra.mxu0 0.0
    %1333 = vmatpush.xpose.msra.mxu0 0.0
    %1334 = vmatpush.xpose.msra.mxu0 %v1317
    %1335 = vmatmul.f32.gmra.mxu0 %v1314
    %v1336 = vpop.f32.mrf.mxu0
    %v1337 = vadd.f32 0.0, %v1336
    %1338 = vdwg.mxu0
    %v1340 = vsel %vm575, %v1068, 0
    %v1343 = vsel %vm575, %v1188, 0
    %1345 = vmatpush.xpose.msra.mxu0 0.0
    %1346 = vmatpush.xpose.msra.mxu0 0.0
    %1347 = vmatpush.xpose.msra.mxu0 0.0
    %1348 = vmatpush.xpose.msra.mxu0 0.0
    %1349 = vmatpush.xpose.msra.mxu0 0.0
    %1350 = vmatpush.xpose.msra.mxu0 0.0
    %1351 = vmatpush.xpose.msra.mxu0 0.0
    %1352 = vmatpush.xpose.msra.mxu0 0.0
    %1353 = vmatpush.xpose.msra.mxu0 0.0
    %1354 = vmatpush.xpose.msra.mxu0 0.0
    %1355 = vmatpush.xpose.msra.mxu0 0.0
    %1356 = vmatpush.xpose.msra.mxu0 0.0
    %1357 = vmatpush.xpose.msra.mxu0 0.0
    %1358 = vmatpush.xpose.msra.mxu0 0.0
    %1359 = vmatpush.xpose.msra.mxu0 0.0
    %1360 = vmatpush.xpose.msra.mxu0 %v1343
    %1361 = vmatmul.f32.gmra.mxu0 %v1340
    %v1362 = vpop.f32.mrf.mxu0
    %v1363 = vadd.f32 0.0, %v1362
    %1364 = vdwg.mxu0
    %v1366 = vsel %vm575, %v1070, 0
    %v1369 = vsel %vm575, %v1190, 0
    %1371 = vmatpush.xpose.msra.mxu0 0.0
    %1372 = vmatpush.xpose.msra.mxu0 0.0
    %1373 = vmatpush.xpose.msra.mxu0 0.0
    %1374 = vmatpush.xpose.msra.mxu0 0.0
    %1375 = vmatpush.xpose.msra.mxu0 0.0
    %1376 = vmatpush.xpose.msra.mxu0 0.0
    %1377 = vmatpush.xpose.msra.mxu0 0.0
    %1378 = vmatpush.xpose.msra.mxu0 0.0
    %1379 = vmatpush.xpose.msra.mxu0 0.0
    %1380 = vmatpush.xpose.msra.mxu0 0.0
    %1381 = vmatpush.xpose.msra.mxu0 0.0
    %1382 = vmatpush.xpose.msra.mxu0 0.0
    %1383 = vmatpush.xpose.msra.mxu0 0.0
    %1384 = vmatpush.xpose.msra.mxu0 0.0
    %1385 = vmatpush.xpose.msra.mxu0 0.0
    %1386 = vmatpush.xpose.msra.mxu0 %v1369
    %1387 = vmatmul.f32.gmra.mxu0 %v1366
    %v1388 = vpop.f32.mrf.mxu0
    %v1389 = vadd.f32 0.0, %v1388
    %1390 = vdwg.mxu0
    %v1392 = vsel %vm575, %v1072, 0
    %v1395 = vsel %vm575, %v1192, 0
    %1397 = vmatpush.xpose.msra.mxu0 0.0
    %1398 = vmatpush.xpose.msra.mxu0 0.0
    %1399 = vmatpush.xpose.msra.mxu0 0.0
    %1400 = vmatpush.xpose.msra.mxu0 0.0
    %1401 = vmatpush.xpose.msra.mxu0 0.0
    %1402 = vmatpush.xpose.msra.mxu0 0.0
    %1403 = vmatpush.xpose.msra.mxu0 0.0
    %1404 = vmatpush.xpose.msra.mxu0 0.0
    %1405 = vmatpush.xpose.msra.mxu0 0.0
    %1406 = vmatpush.xpose.msra.mxu0 0.0
    %1407 = vmatpush.xpose.msra.mxu0 0.0
    %1408 = vmatpush.xpose.msra.mxu0 0.0
    %1409 = vmatpush.xpose.msra.mxu0 0.0
    %1410 = vmatpush.xpose.msra.mxu0 0.0
    %1411 = vmatpush.xpose.msra.mxu0 0.0
    %1412 = vmatpush.xpose.msra.mxu0 %v1395
    %1413 = vmatmul.f32.gmra.mxu0 %v1392
    %v1414 = vpop.f32.mrf.mxu0
    %v1415 = vadd.f32 0.0, %v1414
    %1416 = vdwg.mxu0
    %v1417 = vmul.f32 %v1337, 0.35355338
    %v1418 = vmul.f32 %v1363, 0.35355338
    %v1419 = vmul.f32 %v1389, 0.35355338
    %v1420 = vmul.f32 %v1415, 0.35355338
    %v1421 = vsel %vm685, %v1417, -1e+30
    %v1422 = vsel %vm685, %v1418, -1e+30
    %v1423 = vsel %vm685, %v1419, -1e+30
    %v1424 = vsel %vm685, %v1420, -1e+30
    %v1425 = vsel %vm575, %v1421, -inf
    %1426 = vmax.xlane.f32.xlu0 %v1425
    %v1427 = vpop.xlane.xlu0 %1426
    %v1428 = vsel %vm575, %v1422, -inf
    %1429 = vmax.xlane.f32.xlu0 %v1428
    %v1430 = vpop.xlane.xlu0 %1429
    %v1431 = vsel %vm575, %v1423, -inf
    %1432 = vmax.xlane.f32.xlu0 %v1431
    %v1433 = vpop.xlane.xlu0 %1432
    %v1434 = vsel %vm575, %v1424, -inf
    %1435 = vmax.xlane.f32.xlu0 %v1434
    %v1436 = vpop.xlane.xlu0 %1435
    %v1437 = vsub.f32 %v1421, %v1427
    %v1438 = vsub.f32 %v1422, %v1430
    %v1439 = vsub.f32 %v1423, %v1433
    %v1440 = vsub.f32 %v1424, %v1436
    %v1441 = vmul.f32 %v1437, 1.442695
    %v1442 = vpow.pop %v1441
    %v1443 = vmul.f32 %v1438, 1.442695
    %v1444 = vpow.pop %v1443
    %v1445 = vmul.f32 %v1439, 1.442695
    %v1446 = vpow.pop %v1445
    %v1447 = vmul.f32 %v1440, 1.442695
    %v1448 = vpow.pop %v1447
    %v1449 = vsel %vm575, %v1442, 0.0
    %1450 = vadd.xlane.f32.xlu0 %v1449
    %v1451 = vpop.xlane.xlu0 %1450
    %v1452 = vsel %vm575, %v1444, 0.0
    %1453 = vadd.xlane.f32.xlu0 %v1452
    %v1454 = vpop.xlane.xlu0 %1453
    %v1455 = vsel %vm575, %v1446, 0.0
    %1456 = vadd.xlane.f32.xlu0 %v1455
    %v1457 = vpop.xlane.xlu0 %1456
    %v1458 = vsel %vm575, %v1448, 0.0
    %1459 = vadd.xlane.f32.xlu0 %v1458
    %v1460 = vpop.xlane.xlu0 %1459
    %v1461 = vrcp.pop %v1451
    %v1462 = vrcp.pop %v1454
    %v1463 = vrcp.pop %v1457
    %v1464 = vrcp.pop %v1460
    %v1465 = vmul.f32 %v1442, %v1461
    %v1466 = vmul.f32 %v1444, %v1462
    %v1467 = vmul.f32 %v1446, %v1463
    %v1468 = vmul.f32 %v1448, %v1464
    %v1470 = vsel %vm575, %v1465, 0
    %1472 = vmatpush.msra.mxu0 0.0
    %1473 = vmatpush.msra.mxu0 0.0
    %1474 = vmatpush.msra.mxu0 0.0
    %1475 = vmatpush.msra.mxu0 0.0
    %1476 = vmatpush.msra.mxu0 0.0
    %1477 = vmatpush.msra.mxu0 0.0
    %1478 = vmatpush.msra.mxu0 0.0
    %1479 = vmatpush.msra.mxu0 0.0
    %1480 = vmatpush.msra.mxu0 0.0
    %1481 = vmatpush.msra.mxu0 0.0
    %1482 = vmatpush.msra.mxu0 0.0
    %1483 = vmatpush.msra.mxu0 0.0
    %1484 = vmatpush.msra.mxu0 0.0
    %1485 = vmatpush.msra.mxu0 0.0
    %1486 = vmatpush.msra.mxu0 0.0
    %1487 = vmatpush.msra.mxu0 %v1306
    %1488 = vmatmul.f32.gmra.mxu0 %v1470
    %v1489 = vpop.f32.mrf.mxu0
    %v1490 = vadd.f32 0.0, %v1489
    %1491 = vdwg.mxu0
    %v1493 = vsel %vm575, %v1466, 0
    %1495 = vmatpush.msra.mxu0 0.0
    %1496 = vmatpush.msra.mxu0 0.0
    %1497 = vmatpush.msra.mxu0 0.0
    %1498 = vmatpush.msra.mxu0 0.0
    %1499 = vmatpush.msra.mxu0 0.0
    %1500 = vmatpush.msra.mxu0 0.0
    %1501 = vmatpush.msra.mxu0 0.0
    %1502 = vmatpush.msra.mxu0 0.0
    %1503 = vmatpush.msra.mxu0 0.0
    %1504 = vmatpush.msra.mxu0 0.0
    %1505 = vmatpush.msra.mxu0 0.0
    %1506 = vmatpush.msra.mxu0 0.0
    %1507 = vmatpush.msra.mxu0 0.0
    %1508 = vmatpush.msra.mxu0 0.0
    %1509 = vmatpush.msra.mxu0 0.0
    %1510 = vmatpush.msra.mxu0 %v1308
    %1511 = vmatmul.f32.gmra.mxu0 %v1493
    %v1512 = vpop.f32.mrf.mxu0
    %v1513 = vadd.f32 0.0, %v1512
    %1514 = vdwg.mxu0
    %v1516 = vsel %vm575, %v1467, 0
    %1518 = vmatpush.msra.mxu0 0.0
    %1519 = vmatpush.msra.mxu0 0.0
    %1520 = vmatpush.msra.mxu0 0.0
    %1521 = vmatpush.msra.mxu0 0.0
    %1522 = vmatpush.msra.mxu0 0.0
    %1523 = vmatpush.msra.mxu0 0.0
    %1524 = vmatpush.msra.mxu0 0.0
    %1525 = vmatpush.msra.mxu0 0.0
    %1526 = vmatpush.msra.mxu0 0.0
    %1527 = vmatpush.msra.mxu0 0.0
    %1528 = vmatpush.msra.mxu0 0.0
    %1529 = vmatpush.msra.mxu0 0.0
    %1530 = vmatpush.msra.mxu0 0.0
    %1531 = vmatpush.msra.mxu0 0.0
    %1532 = vmatpush.msra.mxu0 0.0
    %1533 = vmatpush.msra.mxu0 %v1310
    %1534 = vmatmul.f32.gmra.mxu0 %v1516
    %v1535 = vpop.f32.mrf.mxu0
    %v1536 = vadd.f32 0.0, %v1535
    %1537 = vdwg.mxu0
    %v1539 = vsel %vm575, %v1468, 0
    %1541 = vmatpush.msra.mxu0 0.0
    %1542 = vmatpush.msra.mxu0 0.0
    %1543 = vmatpush.msra.mxu0 0.0
    %1544 = vmatpush.msra.mxu0 0.0
    %1545 = vmatpush.msra.mxu0 0.0
    %1546 = vmatpush.msra.mxu0 0.0
    %1547 = vmatpush.msra.mxu0 0.0
    %1548 = vmatpush.msra.mxu0 0.0
    %1549 = vmatpush.msra.mxu0 0.0
    %1550 = vmatpush.msra.mxu0 0.0
    %1551 = vmatpush.msra.mxu0 0.0
    %1552 = vmatpush.msra.mxu0 0.0
    %1553 = vmatpush.msra.mxu0 0.0
    %1554 = vmatpush.msra.mxu0 0.0
    %1555 = vmatpush.msra.mxu0 0.0
    %1556 = vmatpush.msra.mxu0 %v1312
    %1557 = vmatmul.f32.gmra.mxu0 %v1539
    %v1558 = vpop.f32.mrf.mxu0
    %v1559 = vadd.f32 0.0, %v1558
    %1560 = vdwg.mxu0
    %v1561 = vrot.slane %v1536, 4
    %v1562 = vsel %vm225, %v1561, %v1490
    %v1563 = vrot.slane %v1490, 4
    %v1564 = vsel %vm225, %v1536, %v1563
    %v1566 = vunpack.c.l.s4 1983009808
    %v1567 = vunpack.c.0.s8 %v1566
    %v1568 = vperm.slane %v1562, %v1567
    %v1570 = vunpack.c.l.s4 1983009808
    %v1571 = vunpack.c.0.s8 %v1570
    %v1572 = vperm.slane %v1564, %v1571
    %v1573 = vrot.slane %v1559, 4
    %v1574 = vsel %vm225, %v1573, %v1513
    %v1575 = vrot.slane %v1513, 4
    %v1576 = vsel %vm225, %v1559, %v1575
    %v1578 = vunpack.c.l.s4 1983009808
    %v1579 = vunpack.c.0.s8 %v1578
    %v1580 = vperm.slane %v1574, %v1579
    %v1582 = vunpack.c.l.s4 1983009808
    %v1583 = vunpack.c.0.s8 %v1582
    %v1584 = vperm.slane %v1576, %v1583
    %v1585 = vrot.slane %v1580, 4
    %v1586 = vsel %vm225, %v1585, %v1568
    %v1587 = vrot.slane %v1568, 4
    %v1588 = vsel %vm225, %v1580, %v1587
    %v1590 = vunpack.c.l.s4 1934713408
    %v1591 = vunpack.c.0.s8 %v1590
    %v1592 = vperm.slane %v1586, %v1591
    %v1594 = vunpack.c.l.s4 1934713408
    %v1595 = vunpack.c.0.s8 %v1594
    %v1596 = vperm.slane %v1588, %v1595
    %v1597 = vrot.slane %v1584, 4
    %v1598 = vsel %vm225, %v1597, %v1572
    %v1599 = vrot.slane %v1572, 4
    %v1600 = vsel %vm225, %v1584, %v1599
    %v1602 = vunpack.c.l.s4 1934713408
    %v1603 = vunpack.c.0.s8 %v1602
    %v1604 = vperm.slane %v1598, %v1603
    %v1606 = vunpack.c.l.s4 1934713408
    %v1607 = vunpack.c.0.s8 %v1606
    %v1608 = vperm.slane %v1600, %v1607
    %v1609 = vrot.slane %v1592, 4
    %v1610 = vsel %vm225, 0.0, %v1609
    %v1611 = vrot.slane %v1596, 4
    %v1612 = vsel %vm225, 0.0, %v1611
    %v1613 = vrot.slane %v1604, 4
    %v1614 = vsel %vm225, 0.0, %v1613
    %v1615 = vrot.slane %v1608, 4
    %v1616 = vsel %vm225, 0.0, %v1615
    %v1617 = vsel %vm225, %v1611, %v1592
    %v1619 = vunpack.c.l.s4 1983009808
    %v1620 = vunpack.c.0.s8 %v1619
    %v1621 = vperm.slane %v1617, %v1620
    %v1622 = vrot.slane %v1612, 4
    %v1623 = vsel %vm225, %v1622, %v1610
    %v1625 = vunpack.c.l.s4 1983009808
    %v1626 = vunpack.c.0.s8 %v1625
    %v1627 = vperm.slane %v1623, %v1626
    %v1628 = vsel %vm225, %v1615, %v1604
    %v1630 = vunpack.c.l.s4 1983009808
    %v1631 = vunpack.c.0.s8 %v1630
    %v1632 = vperm.slane %v1628, %v1631
    %v1633 = vrot.slane %v1616, 4
    %v1634 = vsel %vm225, %v1633, %v1614
    %v1636 = vunpack.c.l.s4 1983009808
    %v1637 = vunpack.c.0.s8 %v1636
    %v1638 = vperm.slane %v1634, %v1637
    %v1639 = vrot.slane %v1627, 4
    %v1640 = vsel %vm225, %v1639, %v1621
    %v1641 = vrot.slane %v1621, 4
    %v1642 = vsel %vm225, %v1627, %v1641
    %v1644 = vunpack.c.l.s4 1934713408
    %v1645 = vunpack.c.0.s8 %v1644
    %v1646 = vperm.slane %v1640, %v1645
    %v1648 = vunpack.c.l.s4 1934713408
    %v1649 = vunpack.c.0.s8 %v1648
    %v1650 = vperm.slane %v1642, %v1649
    %v1651 = vrot.slane %v1638, 4
    %v1652 = vsel %vm225, %v1651, %v1632
    %v1653 = vrot.slane %v1632, 4
    %v1654 = vsel %vm225, %v1638, %v1653
    %v1656 = vunpack.c.l.s4 1934713408
    %v1657 = vunpack.c.0.s8 %v1656
    %v1658 = vperm.slane %v1652, %v1657
    %v1660 = vunpack.c.l.s4 1934713408
    %v1661 = vunpack.c.0.s8 %v1660
    %v1662 = vperm.slane %v1654, %v1661
    %v1663 = vrot.slane %v1658, 4
    %v1664 = vsel %vm225, %v1663, %v1646
    %v1665 = vrot.slane %v1646, 4
    %v1666 = vsel %vm225, %v1658, %v1665
    %v1667 = vrot.slane %v1662, 4
    %v1668 = vsel %vm225, %v1667, %v1650
    %v1669 = vrot.slane %v1650, 4
    %v1670 = vsel %vm225, %v1662, %v1669
    %1672 = vrot.lane.b32.xlu0 %v1666, 8
    %v1673 = vpop.permute.xlu0 %1672
    %1676 = vrot.lane.b32.xlu0 %v1668, 16
    %v1677 = vpop.permute.xlu0 %1676
    %1680 = vrot.lane.b32.xlu0 %v1670, 24
    %v1681 = vpop.permute.xlu0 %1680
    %v1683 = vsel %vm575, %v1664, %v1673
    %v1684 = vsel %vm949, %v1683, %v1677
    %v1685 = vsel %vm951, %v1684, %v1681
    %s1686 = scalar_lea.vmem [#allocation2], 96
    %v1687 = vld [vmem:[%s1686] sm:$0xff]
    %v1688 = vld [vmem:[%s1686 + $0x8] sm:$0xff]
    %v1689 = vld [vmem:[%s1686 + $0x10] sm:$0xff]
    %v1690 = vld [vmem:[%s1686 + $0x18] sm:$0xff]
    %v1692 = vsel %vm64, %v952, 0
    %v1695 = vsel %vm64, %v1685, 0
    %1697 = vmatpush.msra.mxu0 0.0
    %1698 = vmatpush.msra.mxu0 0.0
    %1699 = vmatpush.msra.mxu0 0.0
    %1700 = vmatpush.msra.mxu0 0.0
    %1701 = vmatpush.msra.mxu0 0.0
    %1702 = vmatpush.msra.mxu0 0.0
    %1703 = vmatpush.msra.mxu0 0.0
    %1704 = vmatpush.msra.mxu0 0.0
    %1705 = vmatpush.msra.mxu0 0.0
    %1706 = vmatpush.msra.mxu0 0.0
    %1707 = vmatpush.msra.mxu0 0.0
    %1708 = vmatpush.msra.mxu0 0.0
    %1709 = vmatpush.msra.mxu0 %v1690
    %1710 = vmatpush.msra.mxu0 %v1689
    %1711 = vmatpush.msra.mxu0 %v1688
    %1712 = vmatpush.msra.mxu0 %v1687
    %1713 = vmatmul.f32.gmra.mxu0 %v1692
    %v1714 = vpop.f32.mrf.mxu0
    %v1715 = vadd.f32 0.0, %v1714
    %1716 = vmatmul.f32.gmra.mxu0 %v1695
    %v1717 = vpop.f32.mrf.mxu0
    %v1718 = vadd.f32 0.0, %v1717
    %1719 = vdwg.mxu0
    %v1720 = vadd.f32 %v52, %v1715
    %v1721 = vadd.f32 %v53, %v1718
    %v1722 = vperm.slane %v61, 5
    %v1723 = vadd.f32 %v1720, %v1722
    %v1724 = vadd.f32 %v1721, %v1722
    %v1725 = vsel %vm64, %v1723, 0.0
    %1726 = vadd.xlane.f32.xlu0 %v1725
    %v1727 = vpop.xlane.xlu0 %1726
    %v1728 = vsel %vm64, %v1724, 0.0
    %1729 = vadd.xlane.f32.xlu0 %v1728
    %v1730 = vpop.xlane.xlu0 %1729
    %v1731 = vmul.f32 %v1727, %v77
    %v1732 = vmul.f32 %v1730, %v77
    %v1733 = vsub.f32 %v1723, %v1731
    %v1734 = vsub.f32 %v1724, %v1732
    %v1735 = vmul.f32 %v1733, %v1733
    %v1736 = vmul.f32 %v1734, %v1734
    %v1737 = vsel %vm64, %v1735, 0.0
    %1738 = vadd.xlane.f32.xlu0 %v1737
    %v1739 = vpop.xlane.xlu0 %1738
    %v1740 = vsel %vm64, %v1736, 0.0
    %1741 = vadd.xlane.f32.xlu0 %v1740
    %v1742 = vpop.xlane.xlu0 %1741
    %v1743 = vmul.f32 %v1739, %v77
    %v1744 = vmul.f32 %v1742, %v77
    %v1745 = vadd.f32 %v1743, 1e-05
    %v1746 = vadd.f32 %v1744, 1e-05
    %v1747 = vrsqrt.pop %v1745
    %v1748 = vmul.f32 %v1747, %v1745
    %v1749 = vmul.f32 %v1748, %v1747
    %v1750 = vmul.f32 0.5, %v1749
    %v1751 = vsub.f32 1.5, %v1750
    %v1752 = vmul.f32 %v1747, %v1751
    %vm1753 = vweird.f32 %v1745
    %vm1754 = vweird.f32 %v1747
    %vm1755 = vmor %vm1753, %vm1754
    %v1756 = vsel %vm1755, %v1747, %v1752
    %v1757 = vrsqrt.pop %v1746
    %v1758 = vmul.f32 %v1757, %v1746
    %v1759 = vmul.f32 %v1758, %v1757
    %v1760 = vmul.f32 0.5, %v1759
    %v1761 = vsub.f32 1.5, %v1760
    %v1762 = vmul.f32 %v1757, %v1761
    %vm1763 = vweird.f32 %v1746
    %vm1764 = vweird.f32 %v1757
    %vm1765 = vmor %vm1763, %vm1764
    %v1766 = vsel %vm1765, %v1757, %v1762
    %v1767 = vmul.f32 %v1733, %v1756
    %v1768 = vmul.f32 %v1734, %v1766
    %v1769 = vperm.slane %v61, 6
    %v1770 = vmul.f32 %v1767, %v1769
    %v1771 = vmul.f32 %v1768, %v1769
    %v1772 = vperm.slane %v61, 7
    %v1773 = vadd.f32 %v1770, %v1772
    %v1774 = vadd.f32 %v1771, %v1772
    %s1775 = scalar_lea.vmem [#allocation2], 128
    %v1776 = vld [vmem:[%s1775] sm:$0xff]
    %v1777 = vld [vmem:[%s1775 + $0x8] sm:$0xff]
    %v1778 = vld [vmem:[%s1775 + $0x10] sm:$0xff]
    %v1779 = vld [vmem:[%s1775 + $0x18] sm:$0xff]
    %v1780 = vperm.slane %v62, 0
    %v1782 = vsel %vm64, %v1773, 0
    %v1785 = vsel %vm64, %v1774, 0
    %1787 = vmatpush.msra.mxu0 0.0
    %1788 = vmatpush.msra.mxu0 0.0
    %1789 = vmatpush.msra.mxu0 0.0
    %1790 = vmatpush.msra.mxu0 0.0
    %1791 = vmatpush.msra.mxu0 0.0
    %1792 = vmatpush.msra.mxu0 0.0
    %1793 = vmatpush.msra.mxu0 0.0
    %1794 = vmatpush.msra.mxu0 0.0
    %1795 = vmatpush.msra.mxu0 0.0
    %1796 = vmatpush.msra.mxu0 0.0
    %1797 = vmatpush.msra.mxu0 0.0
    %1798 = vmatpush.msra.mxu0 0.0
    %1799 = vmatpush.msra.mxu0 %v1779
    %1800 = vmatpush.msra.mxu0 %v1778
    %1801 = vmatpush.msra.mxu0 %v1777
    %1802 = vmatpush.msra.mxu0 %v1776
    %1803 = vmatmul.f32.gmra.mxu0 %v1782
    %v1804 = vpop.f32.mrf.mxu0
    %v1805 = vadd.f32 %v1780, %v1804
    %1806 = vmatmul.f32.gmra.mxu0 %v1785
    %v1807 = vpop.f32.mrf.mxu0
    %v1808 = vadd.f32 %v1780, %v1807
    %1809 = vdwg.mxu0
    %s1810 = scalar_lea.vmem [#allocation2], 160
    %v1811 = vld [vmem:[%s1810] sm:$0xff]
    %v1812 = vld [vmem:[%s1810 + $0x8] sm:$0xff]
    %v1813 = vld [vmem:[%s1810 + $0x10] sm:$0xff]
    %v1814 = vld [vmem:[%s1810 + $0x18] sm:$0xff]
    %v1815 = vperm.slane %v62, 1
    %v1817 = vsel %vm64, %v54, 0
    %v1820 = vsel %vm64, %v55, 0
    %1822 = vmatpush.msra.mxu0 0.0
    %1823 = vmatpush.msra.mxu0 0.0
    %1824 = vmatpush.msra.mxu0 0.0
    %1825 = vmatpush.msra.mxu0 0.0
    %1826 = vmatpush.msra.mxu0 0.0
    %1827 = vmatpush.msra.mxu0 0.0
    %1828 = vmatpush.msra.mxu0 0.0
    %1829 = vmatpush.msra.mxu0 0.0
    %1830 = vmatpush.msra.mxu0 0.0
    %1831 = vmatpush.msra.mxu0 0.0
    %1832 = vmatpush.msra.mxu0 0.0
    %1833 = vmatpush.msra.mxu0 0.0
    %1834 = vmatpush.msra.mxu0 %v1814
    %1835 = vmatpush.msra.mxu0 %v1813
    %1836 = vmatpush.msra.mxu0 %v1812
    %1837 = vmatpush.msra.mxu0 %v1811
    %1838 = vmatmul.f32.gmra.mxu0 %v1817
    %v1839 = vpop.f32.mrf.mxu0
    %v1840 = vadd.f32 %v1815, %v1839
    %1841 = vmatmul.f32.gmra.mxu0 %v1820
    %v1842 = vpop.f32.mrf.mxu0
    %v1843 = vadd.f32 %v1815, %v1842
    %1844 = vdwg.mxu0
    %s1845 = scalar_lea.vmem [#allocation2], 192
    %v1846 = vld [vmem:[%s1845] sm:$0xff]
    %v1847 = vld [vmem:[%s1845 + $0x8] sm:$0xff]
    %v1848 = vld [vmem:[%s1845 + $0x10] sm:$0xff]
    %v1849 = vld [vmem:[%s1845 + $0x18] sm:$0xff]
    %v1850 = vperm.slane %v62, 2
    %1851 = vmatpush.msra.mxu0 0.0
    %1852 = vmatpush.msra.mxu0 0.0
    %1853 = vmatpush.msra.mxu0 0.0
    %1854 = vmatpush.msra.mxu0 0.0
    %1855 = vmatpush.msra.mxu0 0.0
    %1856 = vmatpush.msra.mxu0 0.0
    %1857 = vmatpush.msra.mxu0 0.0
    %1858 = vmatpush.msra.mxu0 0.0
    %1859 = vmatpush.msra.mxu0 0.0
    %1860 = vmatpush.msra.mxu0 0.0
    %1861 = vmatpush.msra.mxu0 0.0
    %1862 = vmatpush.msra.mxu0 0.0
    %1863 = vmatpush.msra.mxu0 %v1849
    %1864 = vmatpush.msra.mxu0 %v1848
    %1865 = vmatpush.msra.mxu0 %v1847
    %1866 = vmatpush.msra.mxu0 %v1846
    %1867 = vmatmul.f32.gmra.mxu0 %v1817
    %v1868 = vpop.f32.mrf.mxu0
    %v1869 = vadd.f32 %v1850, %v1868
    %1870 = vmatmul.f32.gmra.mxu0 %v1820
    %v1871 = vpop.f32.mrf.mxu0
    %v1872 = vadd.f32 %v1850, %v1871
    %1873 = vdwg.mxu0
    %1875 = vrot.lane.b32.xlu0 %v1805, 120
    %v1876 = vpop.permute.xlu0 %1875
    %1878 = vrot.lane.b32.xlu0 %v1805, 112
    %v1879 = vpop.permute.xlu0 %1878
    %1881 = vrot.lane.b32.xlu0 %v1805, 104
    %v1882 = vpop.permute.xlu0 %1881
    %v1884 = vrot.slane %v1879, 4
    %v1885 = vsel %vm225, %v1884, %v1805
    %v1886 = vrot.slane %v1805, 4
    %v1887 = vsel %vm225, %v1879, %v1886
    %v1889 = vunpack.c.l.s4 1983009808
    %v1890 = vunpack.c.0.s8 %v1889
    %v1891 = vperm.slane %v1885, %v1890
    %v1893 = vunpack.c.l.s4 1983009808
    %v1894 = vunpack.c.0.s8 %v1893
    %v1895 = vperm.slane %v1887, %v1894
    %v1896 = vrot.slane %v1882, 4
    %v1897 = vsel %vm225, %v1896, %v1876
    %v1898 = vrot.slane %v1876, 4
    %v1899 = vsel %vm225, %v1882, %v1898
    %v1901 = vunpack.c.l.s4 1983009808
    %v1902 = vunpack.c.0.s8 %v1901
    %v1903 = vperm.slane %v1897, %v1902
    %v1905 = vunpack.c.l.s4 1983009808
    %v1906 = vunpack.c.0.s8 %v1905
    %v1907 = vperm.slane %v1899, %v1906
    %v1908 = vrot.slane %v1903, 4
    %v1909 = vsel %vm225, %v1908, %v1891
    %v1910 = vrot.slane %v1891, 4
    %v1911 = vsel %vm225, %v1903, %v1910
    %v1913 = vunpack.c.l.s4 1934713408
    %v1914 = vunpack.c.0.s8 %v1913
    %v1915 = vperm.slane %v1909, %v1914
    %v1917 = vunpack.c.l.s4 1934713408
    %v1918 = vunpack.c.0.s8 %v1917
    %v1919 = vperm.slane %v1911, %v1918
    %v1920 = vrot.slane %v1907, 4
    %v1921 = vsel %vm225, %v1920, %v1895
    %v1922 = vrot.slane %v1895, 4
    %v1923 = vsel %vm225, %v1907, %v1922
    %v1925 = vunpack.c.l.s4 1934713408
    %v1926 = vunpack.c.0.s8 %v1925
    %v1927 = vperm.slane %v1921, %v1926
    %v1929 = vunpack.c.l.s4 1934713408
    %v1930 = vunpack.c.0.s8 %v1929
    %v1931 = vperm.slane %v1923, %v1930
    %v1932 = vrot.slane %v1915, 4
    %v1933 = vsel %vm225, 0.0, %v1932
    %v1934 = vrot.slane %v1919, 4
    %v1935 = vsel %vm225, 0.0, %v1934
    %v1936 = vrot.slane %v1927, 4
    %v1937 = vsel %vm225, 0.0, %v1936
    %v1938 = vrot.slane %v1931, 4
    %v1939 = vsel %vm225, 0.0, %v1938
    %v1940 = vsel %vm225, %v1934, %v1915
    %v1942 = vunpack.c.l.s4 1983009808
    %v1943 = vunpack.c.0.s8 %v1942
    %v1944 = vperm.slane %v1940, %v1943
    %v1945 = vrot.slane %v1935, 4
    %v1946 = vsel %vm225, %v1945, %v1933
    %v1948 = vunpack.c.l.s4 1983009808
    %v1949 = vunpack.c.0.s8 %v1948
    %v1950 = vperm.slane %v1946, %v1949
    %v1951 = vsel %vm225, %v1938, %v1927
    %v1953 = vunpack.c.l.s4 1983009808
    %v1954 = vunpack.c.0.s8 %v1953
    %v1955 = vperm.slane %v1951, %v1954
    %v1956 = vrot.slane %v1939, 4
    %v1957 = vsel %vm225, %v1956, %v1937
    %v1959 = vunpack.c.l.s4 1983009808
    %v1960 = vunpack.c.0.s8 %v1959
    %v1961 = vperm.slane %v1957, %v1960
    %v1962 = vrot.slane %v1950, 4
    %v1963 = vsel %vm225, %v1962, %v1944
    %v1964 = vrot.slane %v1944, 4
    %v1965 = vsel %vm225, %v1950, %v1964
    %v1967 = vunpack.c.l.s4 1934713408
    %v1968 = vunpack.c.0.s8 %v1967
    %v1969 = vperm.slane %v1963, %v1968
    %v1971 = vunpack.c.l.s4 1934713408
    %v1972 = vunpack.c.0.s8 %v1971
    %v1973 = vperm.slane %v1965, %v1972
    %v1974 = vrot.slane %v1961, 4
    %v1975 = vsel %vm225, %v1974, %v1955
    %v1976 = vrot.slane %v1955, 4
    %v1977 = vsel %vm225, %v1961, %v1976
    %v1979 = vunpack.c.l.s4 1934713408
    %v1980 = vunpack.c.0.s8 %v1979
    %v1981 = vperm.slane %v1975, %v1980
    %v1983 = vunpack.c.l.s4 1934713408
    %v1984 = vunpack.c.0.s8 %v1983
    %v1985 = vperm.slane %v1977, %v1984
    %v1986 = vrot.slane %v1981, 4
    %v1987 = vsel %vm225, %v1986, %v1969
    %v1988 = vrot.slane %v1969, 4
    %v1989 = vsel %vm225, %v1981, %v1988
    %v1990 = vrot.slane %v1985, 4
    %v1991 = vsel %vm225, %v1990, %v1973
    %v1992 = vrot.slane %v1973, 4
    %v1993 = vsel %vm225, %v1985, %v1992
    %1995 = vrot.lane.b32.xlu0 %v1840, 120
    %v1996 = vpop.permute.xlu0 %1995
    %1998 = vrot.lane.b32.xlu0 %v1840, 112
    %v1999 = vpop.permute.xlu0 %1998
    %2001 = vrot.lane.b32.xlu0 %v1840, 104
    %v2002 = vpop.permute.xlu0 %2001
    %v2004 = vrot.slane %v1999, 4
    %v2005 = vsel %vm225, %v2004, %v1840
    %v2006 = vrot.slane %v1840, 4
    %v2007 = vsel %vm225, %v1999, %v2006
    %v2009 = vunpack.c.l.s4 1983009808
    %v2010 = vunpack.c.0.s8 %v2009
    %v2011 = vperm.slane %v2005, %v2010
    %v2013 = vunpack.c.l.s4 1983009808
    %v2014 = vunpack.c.0.s8 %v2013
    %v2015 = vperm.slane %v2007, %v2014
    %v2016 = vrot.slane %v2002, 4
    %v2017 = vsel %vm225, %v2016, %v1996
    %v2018 = vrot.slane %v1996, 4
    %v2019 = vsel %vm225, %v2002, %v2018
    %v2021 = vunpack.c.l.s4 1983009808
    %v2022 = vunpack.c.0.s8 %v2021
    %v2023 = vperm.slane %v2017, %v2022
    %v2025 = vunpack.c.l.s4 1983009808
    %v2026 = vunpack.c.0.s8 %v2025
    %v2027 = vperm.slane %v2019, %v2026
    %v2028 = vrot.slane %v2023, 4
    %v2029 = vsel %vm225, %v2028, %v2011
    %v2030 = vrot.slane %v2011, 4
    %v2031 = vsel %vm225, %v2023, %v2030
    %v2033 = vunpack.c.l.s4 1934713408
    %v2034 = vunpack.c.0.s8 %v2033
    %v2035 = vperm.slane %v2029, %v2034
    %v2037 = vunpack.c.l.s4 1934713408
    %v2038 = vunpack.c.0.s8 %v2037
    %v2039 = vperm.slane %v2031, %v2038
    %v2040 = vrot.slane %v2027, 4
    %v2041 = vsel %vm225, %v2040, %v2015
    %v2042 = vrot.slane %v2015, 4
    %v2043 = vsel %vm225, %v2027, %v2042
    %v2045 = vunpack.c.l.s4 1934713408
    %v2046 = vunpack.c.0.s8 %v2045
    %v2047 = vperm.slane %v2041, %v2046
    %v2049 = vunpack.c.l.s4 1934713408
    %v2050 = vunpack.c.0.s8 %v2049
    %v2051 = vperm.slane %v2043, %v2050
    %v2052 = vrot.slane %v2035, 4
    %v2053 = vsel %vm225, 0.0, %v2052
    %v2054 = vrot.slane %v2039, 4
    %v2055 = vsel %vm225, 0.0, %v2054
    %v2056 = vrot.slane %v2047, 4
    %v2057 = vsel %vm225, 0.0, %v2056
    %v2058 = vrot.slane %v2051, 4
    %v2059 = vsel %vm225, 0.0, %v2058
    %v2060 = vsel %vm225, %v2054, %v2035
    %v2062 = vunpack.c.l.s4 1983009808
    %v2063 = vunpack.c.0.s8 %v2062
    %v2064 = vperm.slane %v2060, %v2063
    %v2065 = vrot.slane %v2055, 4
    %v2066 = vsel %vm225, %v2065, %v2053
    %v2068 = vunpack.c.l.s4 1983009808
    %v2069 = vunpack.c.0.s8 %v2068
    %v2070 = vperm.slane %v2066, %v2069
    %v2071 = vsel %vm225, %v2058, %v2047
    %v2073 = vunpack.c.l.s4 1983009808
    %v2074 = vunpack.c.0.s8 %v2073
    %v2075 = vperm.slane %v2071, %v2074
    %v2076 = vrot.slane %v2059, 4
    %v2077 = vsel %vm225, %v2076, %v2057
    %v2079 = vunpack.c.l.s4 1983009808
    %v2080 = vunpack.c.0.s8 %v2079
    %v2081 = vperm.slane %v2077, %v2080
    %v2082 = vrot.slane %v2070, 4
    %v2083 = vsel %vm225, %v2082, %v2064
    %v2084 = vrot.slane %v2064, 4
    %v2085 = vsel %vm225, %v2070, %v2084
    %v2087 = vunpack.c.l.s4 1934713408
    %v2088 = vunpack.c.0.s8 %v2087
    %v2089 = vperm.slane %v2083, %v2088
    %v2091 = vunpack.c.l.s4 1934713408
    %v2092 = vunpack.c.0.s8 %v2091
    %v2093 = vperm.slane %v2085, %v2092
    %v2094 = vrot.slane %v2081, 4
    %v2095 = vsel %vm225, %v2094, %v2075
    %v2096 = vrot.slane %v2075, 4
    %v2097 = vsel %vm225, %v2081, %v2096
    %v2099 = vunpack.c.l.s4 1934713408
    %v2100 = vunpack.c.0.s8 %v2099
    %v2101 = vperm.slane %v2095, %v2100
    %v2103 = vunpack.c.l.s4 1934713408
    %v2104 = vunpack.c.0.s8 %v2103
    %v2105 = vperm.slane %v2097, %v2104
    %v2106 = vrot.slane %v2101, 4
    %v2107 = vsel %vm225, %v2106, %v2089
    %v2108 = vrot.slane %v2089, 4
    %v2109 = vsel %vm225, %v2101, %v2108
    %v2110 = vrot.slane %v2105, 4
    %v2111 = vsel %vm225, %v2110, %v2093
    %v2112 = vrot.slane %v2093, 4
    %v2113 = vsel %vm225, %v2105, %v2112
    %2115 = vrot.lane.b32.xlu0 %v1869, 120
    %v2116 = vpop.permute.xlu0 %2115
    %2118 = vrot.lane.b32.xlu0 %v1869, 112
    %v2119 = vpop.permute.xlu0 %2118
    %2121 = vrot.lane.b32.xlu0 %v1869, 104
    %v2122 = vpop.permute.xlu0 %2121
    %v2124 = vrot.slane %v2119, 4
    %v2125 = vsel %vm225, %v2124, %v1869
    %v2126 = vrot.slane %v1869, 4
    %v2127 = vsel %vm225, %v2119, %v2126
    %v2129 = vunpack.c.l.s4 1983009808
    %v2130 = vunpack.c.0.s8 %v2129
    %v2131 = vperm.slane %v2125, %v2130
    %v2133 = vunpack.c.l.s4 1983009808
    %v2134 = vunpack.c.0.s8 %v2133
    %v2135 = vperm.slane %v2127, %v2134
    %v2136 = vrot.slane %v2122, 4
    %v2137 = vsel %vm225, %v2136, %v2116
    %v2138 = vrot.slane %v2116, 4
    %v2139 = vsel %vm225, %v2122, %v2138
    %v2141 = vunpack.c.l.s4 1983009808
    %v2142 = vunpack.c.0.s8 %v2141
    %v2143 = vperm.slane %v2137, %v2142
    %v2145 = vunpack.c.l.s4 1983009808
    %v2146 = vunpack.c.0.s8 %v2145
    %v2147 = vperm.slane %v2139, %v2146
    %v2148 = vrot.slane %v2143, 4
    %v2149 = vsel %vm225, %v2148, %v2131
    %v2150 = vrot.slane %v2131, 4
    %v2151 = vsel %vm225, %v2143, %v2150
    %v2153 = vunpack.c.l.s4 1934713408
    %v2154 = vunpack.c.0.s8 %v2153
    %v2155 = vperm.slane %v2149, %v2154
    %v2157 = vunpack.c.l.s4 1934713408
    %v2158 = vunpack.c.0.s8 %v2157
    %v2159 = vperm.slane %v2151, %v2158
    %v2160 = vrot.slane %v2147, 4
    %v2161 = vsel %vm225, %v2160, %v2135
    %v2162 = vrot.slane %v2135, 4
    %v2163 = vsel %vm225, %v2147, %v2162
    %v2165 = vunpack.c.l.s4 1934713408
    %v2166 = vunpack.c.0.s8 %v2165
    %v2167 = vperm.slane %v2161, %v2166
    %v2169 = vunpack.c.l.s4 1934713408
    %v2170 = vunpack.c.0.s8 %v2169
    %v2171 = vperm.slane %v2163, %v2170
    %v2172 = vrot.slane %v2155, 4
    %v2173 = vsel %vm225, 0.0, %v2172
    %v2174 = vrot.slane %v2159, 4
    %v2175 = vsel %vm225, 0.0, %v2174
    %v2176 = vrot.slane %v2167, 4
    %v2177 = vsel %vm225, 0.0, %v2176
    %v2178 = vrot.slane %v2171, 4
    %v2179 = vsel %vm225, 0.0, %v2178
    %v2180 = vsel %vm225, %v2174, %v2155
    %v2182 = vunpack.c.l.s4 1983009808
    %v2183 = vunpack.c.0.s8 %v2182
    %v2184 = vperm.slane %v2180, %v2183
    %v2185 = vrot.slane %v2175, 4
    %v2186 = vsel %vm225, %v2185, %v2173
    %v2188 = vunpack.c.l.s4 1983009808
    %v2189 = vunpack.c.0.s8 %v2188
    %v2190 = vperm.slane %v2186, %v2189
    %v2191 = vsel %vm225, %v2178, %v2167
    %v2193 = vunpack.c.l.s4 1983009808
    %v2194 = vunpack.c.0.s8 %v2193
    %v2195 = vperm.slane %v2191, %v2194
    %v2196 = vrot.slane %v2179, 4
    %v2197 = vsel %vm225, %v2196, %v2177
    %v2199 = vunpack.c.l.s4 1983009808
    %v2200 = vunpack.c.0.s8 %v2199
    %v2201 = vperm.slane %v2197, %v2200
    %v2202 = vrot.slane %v2190, 4
    %v2203 = vsel %vm225, %v2202, %v2184
    %v2204 = vrot.slane %v2184, 4
    %v2205 = vsel %vm225, %v2190, %v2204
    %v2207 = vunpack.c.l.s4 1934713408
    %v2208 = vunpack.c.0.s8 %v2207
    %v2209 = vperm.slane %v2203, %v2208
    %v2211 = vunpack.c.l.s4 1934713408
    %v2212 = vunpack.c.0.s8 %v2211
    %v2213 = vperm.slane %v2205, %v2212
    %v2214 = vrot.slane %v2201, 4
    %v2215 = vsel %vm225, %v2214, %v2195
    %v2216 = vrot.slane %v2195, 4
    %v2217 = vsel %vm225, %v2201, %v2216
    %v2219 = vunpack.c.l.s4 1934713408
    %v2220 = vunpack.c.0.s8 %v2219
    %v2221 = vperm.slane %v2215, %v2220
    %v2223 = vunpack.c.l.s4 1934713408
    %v2224 = vunpack.c.0.s8 %v2223
    %v2225 = vperm.slane %v2217, %v2224
    %v2226 = vrot.slane %v2221, 4
    %v2227 = vsel %vm225, %v2226, %v2209
    %v2228 = vrot.slane %v2209, 4
    %v2229 = vsel %vm225, %v2221, %v2228
    %v2230 = vrot.slane %v2225, 4
    %v2231 = vsel %vm225, %v2230, %v2213
    %v2232 = vrot.slane %v2213, 4
    %v2233 = vsel %vm225, %v2225, %v2232
    %v2235 = vsel %vm575, %v1987, 0
    %v2238 = vsel %vm575, %v2107, 0
    %2240 = vmatpush.xpose.msra.mxu0 0.0
    %2241 = vmatpush.xpose.msra.mxu0 0.0
    %2242 = vmatpush.xpose.msra.mxu0 0.0
    %2243 = vmatpush.xpose.msra.mxu0 0.0
    %2244 = vmatpush.xpose.msra.mxu0 0.0
    %2245 = vmatpush.xpose.msra.mxu0 0.0
    %2246 = vmatpush.xpose.msra.mxu0 0.0
    %2247 = vmatpush.xpose.msra.mxu0 0.0
    %2248 = vmatpush.xpose.msra.mxu0 0.0
    %2249 = vmatpush.xpose.msra.mxu0 0.0
    %2250 = vmatpush.xpose.msra.mxu0 0.0
    %2251 = vmatpush.xpose.msra.mxu0 0.0
    %2252 = vmatpush.xpose.msra.mxu0 0.0
    %2253 = vmatpush.xpose.msra.mxu0 0.0
    %2254 = vmatpush.xpose.msra.mxu0 0.0
    %2255 = vmatpush.xpose.msra.mxu0 %v2238
    %2256 = vmatmul.f32.gmra.mxu0 %v2235
    %v2257 = vpop.f32.mrf.mxu0
    %v2258 = vadd.f32 0.0, %v2257
    %2259 = vdwg.mxu0
    %v2261 = vsel %vm575, %v1989, 0
    %v2264 = vsel %vm575, %v2109, 0
    %2266 = vmatpush.xpose.msra.mxu0 0.0
    %2267 = vmatpush.xpose.msra.mxu0 0.0
    %2268 = vmatpush.xpose.msra.mxu0 0.0
    %2269 = vmatpush.xpose.msra.mxu0 0.0
    %2270 = vmatpush.xpose.msra.mxu0 0.0
    %2271 = vmatpush.xpose.msra.mxu0 0.0
    %2272 = vmatpush.xpose.msra.mxu0 0.0
    %2273 = vmatpush.xpose.msra.mxu0 0.0
    %2274 = vmatpush.xpose.msra.mxu0 0.0
    %2275 = vmatpush.xpose.msra.mxu0 0.0
    %2276 = vmatpush.xpose.msra.mxu0 0.0
    %2277 = vmatpush.xpose.msra.mxu0 0.0
    %2278 = vmatpush.xpose.msra.mxu0 0.0
    %2279 = vmatpush.xpose.msra.mxu0 0.0
    %2280 = vmatpush.xpose.msra.mxu0 0.0
    %2281 = vmatpush.xpose.msra.mxu0 %v2264
    %2282 = vmatmul.f32.gmra.mxu0 %v2261
    %v2283 = vpop.f32.mrf.mxu0
    %v2284 = vadd.f32 0.0, %v2283
    %2285 = vdwg.mxu0
    %v2287 = vsel %vm575, %v1991, 0
    %v2290 = vsel %vm575, %v2111, 0
    %2292 = vmatpush.xpose.msra.mxu0 0.0
    %2293 = vmatpush.xpose.msra.mxu0 0.0
    %2294 = vmatpush.xpose.msra.mxu0 0.0
    %2295 = vmatpush.xpose.msra.mxu0 0.0
    %2296 = vmatpush.xpose.msra.mxu0 0.0
    %2297 = vmatpush.xpose.msra.mxu0 0.0
    %2298 = vmatpush.xpose.msra.mxu0 0.0
    %2299 = vmatpush.xpose.msra.mxu0 0.0
    %2300 = vmatpush.xpose.msra.mxu0 0.0
    %2301 = vmatpush.xpose.msra.mxu0 0.0
    %2302 = vmatpush.xpose.msra.mxu0 0.0
    %2303 = vmatpush.xpose.msra.mxu0 0.0
    %2304 = vmatpush.xpose.msra.mxu0 0.0
    %2305 = vmatpush.xpose.msra.mxu0 0.0
    %2306 = vmatpush.xpose.msra.mxu0 0.0
    %2307 = vmatpush.xpose.msra.mxu0 %v2290
    %2308 = vmatmul.f32.gmra.mxu0 %v2287
    %v2309 = vpop.f32.mrf.mxu0
    %v2310 = vadd.f32 0.0, %v2309
    %2311 = vdwg.mxu0
    %v2313 = vsel %vm575, %v1993, 0
    %v2316 = vsel %vm575, %v2113, 0
    %2318 = vmatpush.xpose.msra.mxu0 0.0
    %2319 = vmatpush.xpose.msra.mxu0 0.0
    %2320 = vmatpush.xpose.msra.mxu0 0.0
    %2321 = vmatpush.xpose.msra.mxu0 0.0
    %2322 = vmatpush.xpose.msra.mxu0 0.0
    %2323 = vmatpush.xpose.msra.mxu0 0.0
    %2324 = vmatpush.xpose.msra.mxu0 0.0
    %2325 = vmatpush.xpose.msra.mxu0 0.0
    %2326 = vmatpush.xpose.msra.mxu0 0.0
    %2327 = vmatpush.xpose.msra.mxu0 0.0
    %2328 = vmatpush.xpose.msra.mxu0 0.0
    %2329 = vmatpush.xpose.msra.mxu0 0.0
    %2330 = vmatpush.xpose.msra.mxu0 0.0
    %2331 = vmatpush.xpose.msra.mxu0 0.0
    %2332 = vmatpush.xpose.msra.mxu0 0.0
    %2333 = vmatpush.xpose.msra.mxu0 %v2316
    %2334 = vmatmul.f32.gmra.mxu0 %v2313
    %v2335 = vpop.f32.mrf.mxu0
    %v2336 = vadd.f32 0.0, %v2335
    %2337 = vdwg.mxu0
    %v2338 = vmul.f32 %v2258, 0.35355338
    %v2339 = vmul.f32 %v2284, 0.35355338
    %v2340 = vmul.f32 %v2310, 0.35355338
    %v2341 = vmul.f32 %v2336, 0.35355338
    %v2342 = vsel %vm575, %v2338, -inf
    %2343 = vmax.xlane.f32.xlu0 %v2342
    %v2344 = vpop.xlane.xlu0 %2343
    %v2345 = vsel %vm575, %v2339, -inf
    %2346 = vmax.xlane.f32.xlu0 %v2345
    %v2347 = vpop.xlane.xlu0 %2346
    %v2348 = vsel %vm575, %v2340, -inf
    %2349 = vmax.xlane.f32.xlu0 %v2348
    %v2350 = vpop.xlane.xlu0 %2349
    %v2351 = vsel %vm575, %v2341, -inf
    %2352 = vmax.xlane.f32.xlu0 %v2351
    %v2353 = vpop.xlane.xlu0 %2352
    %v2354 = vsub.f32 %v2338, %v2344
    %v2355 = vsub.f32 %v2339, %v2347
    %v2356 = vsub.f32 %v2340, %v2350
    %v2357 = vsub.f32 %v2341, %v2353
    %v2358 = vmul.f32 %v2354, 1.442695
    %v2359 = vpow.pop %v2358
    %v2360 = vmul.f32 %v2355, 1.442695
    %v2361 = vpow.pop %v2360
    %v2362 = vmul.f32 %v2356, 1.442695
    %v2363 = vpow.pop %v2362
    %v2364 = vmul.f32 %v2357, 1.442695
    %v2365 = vpow.pop %v2364
    %v2366 = vsel %vm575, %v2359, 0.0
    %2367 = vadd.xlane.f32.xlu0 %v2366
    %v2368 = vpop.xlane.xlu0 %2367
    %v2369 = vsel %vm575, %v2361, 0.0
    %2370 = vadd.xlane.f32.xlu0 %v2369
    %v2371 = vpop.xlane.xlu0 %2370
    %v2372 = vsel %vm575, %v2363, 0.0
    %2373 = vadd.xlane.f32.xlu0 %v2372
    %v2374 = vpop.xlane.xlu0 %2373
    %v2375 = vsel %vm575, %v2365, 0.0
    %2376 = vadd.xlane.f32.xlu0 %v2375
    %v2377 = vpop.xlane.xlu0 %2376
    %v2378 = vrcp.pop %v2368
    %v2379 = vrcp.pop %v2371
    %v2380 = vrcp.pop %v2374
    %v2381 = vrcp.pop %v2377
    %v2382 = vmul.f32 %v2359, %v2378
    %v2383 = vmul.f32 %v2361, %v2379
    %v2384 = vmul.f32 %v2363, %v2380
    %v2385 = vmul.f32 %v2365, %v2381
    %v2387 = vsel %vm575, %v2382, 0
    %2389 = vmatpush.msra.mxu0 0.0
    %2390 = vmatpush.msra.mxu0 0.0
    %2391 = vmatpush.msra.mxu0 0.0
    %2392 = vmatpush.msra.mxu0 0.0
    %2393 = vmatpush.msra.mxu0 0.0
    %2394 = vmatpush.msra.mxu0 0.0
    %2395 = vmatpush.msra.mxu0 0.0
    %2396 = vmatpush.msra.mxu0 0.0
    %2397 = vmatpush.msra.mxu0 0.0
    %2398 = vmatpush.msra.mxu0 0.0
    %2399 = vmatpush.msra.mxu0 0.0
    %2400 = vmatpush.msra.mxu0 0.0
    %2401 = vmatpush.msra.mxu0 0.0
    %2402 = vmatpush.msra.mxu0 0.0
    %2403 = vmatpush.msra.mxu0 0.0
    %2404 = vmatpush.msra.mxu0 %v2227
    %2405 = vmatmul.f32.gmra.mxu0 %v2387
    %v2406 = vpop.f32.mrf.mxu0
    %v2407 = vadd.f32 0.0, %v2406
    %2408 = vdwg.mxu0
    %v2410 = vsel %vm575, %v2383, 0
    %2412 = vmatpush.msra.mxu0 0.0
    %2413 = vmatpush.msra.mxu0 0.0
    %2414 = vmatpush.msra.mxu0 0.0
    %2415 = vmatpush.msra.mxu0 0.0
    %2416 = vmatpush.msra.mxu0 0.0
    %2417 = vmatpush.msra.mxu0 0.0
    %2418 = vmatpush.msra.mxu0 0.0
    %2419 = vmatpush.msra.mxu0 0.0
    %2420 = vmatpush.msra.mxu0 0.0
    %2421 = vmatpush.msra.mxu0 0.0
    %2422 = vmatpush.msra.mxu0 0.0
    %2423 = vmatpush.msra.mxu0 0.0
    %2424 = vmatpush.msra.mxu0 0.0
    %2425 = vmatpush.msra.mxu0 0.0
    %2426 = vmatpush.msra.mxu0 0.0
    %2427 = vmatpush.msra.mxu0 %v2229
    %2428 = vmatmul.f32.gmra.mxu0 %v2410
    %v2429 = vpop.f32.mrf.mxu0
    %v2430 = vadd.f32 0.0, %v2429
    %2431 = vdwg.mxu0
    %v2433 = vsel %vm575, %v2384, 0
    %2435 = vmatpush.msra.mxu0 0.0
    %2436 = vmatpush.msra.mxu0 0.0
    %2437 = vmatpush.msra.mxu0 0.0
    %2438 = vmatpush.msra.mxu0 0.0
    %2439 = vmatpush.msra.mxu0 0.0
    %2440 = vmatpush.msra.mxu0 0.0
    %2441 = vmatpush.msra.mxu0 0.0
    %2442 = vmatpush.msra.mxu0 0.0
    %2443 = vmatpush.msra.mxu0 0.0
    %2444 = vmatpush.msra.mxu0 0.0
    %2445 = vmatpush.msra.mxu0 0.0
    %2446 = vmatpush.msra.mxu0 0.0
    %2447 = vmatpush.msra.mxu0 0.0
    %2448 = vmatpush.msra.mxu0 0.0
    %2449 = vmatpush.msra.mxu0 0.0
    %2450 = vmatpush.msra.mxu0 %v2231
    %2451 = vmatmul.f32.gmra.mxu0 %v2433
    %v2452 = vpop.f32.mrf.mxu0
    %v2453 = vadd.f32 0.0, %v2452
    %2454 = vdwg.mxu0
    %v2456 = vsel %vm575, %v2385, 0
    %2458 = vmatpush.msra.mxu0 0.0
    %2459 = vmatpush.msra.mxu0 0.0
    %2460 = vmatpush.msra.mxu0 0.0
    %2461 = vmatpush.msra.mxu0 0.0
    %2462 = vmatpush.msra.mxu0 0.0
    %2463 = vmatpush.msra.mxu0 0.0
    %2464 = vmatpush.msra.mxu0 0.0
    %2465 = vmatpush.msra.mxu0 0.0
    %2466 = vmatpush.msra.mxu0 0.0
    %2467 = vmatpush.msra.mxu0 0.0
    %2468 = vmatpush.msra.mxu0 0.0
    %2469 = vmatpush.msra.mxu0 0.0
    %2470 = vmatpush.msra.mxu0 0.0
    %2471 = vmatpush.msra.mxu0 0.0
    %2472 = vmatpush.msra.mxu0 0.0
    %2473 = vmatpush.msra.mxu0 %v2233
    %2474 = vmatmul.f32.gmra.mxu0 %v2456
    %v2475 = vpop.f32.mrf.mxu0
    %v2476 = vadd.f32 0.0, %v2475
    %2477 = vdwg.mxu0
    %v2478 = vrot.slane %v2453, 4
    %v2479 = vsel %vm225, %v2478, %v2407
    %v2480 = vrot.slane %v2407, 4
    %v2481 = vsel %vm225, %v2453, %v2480
    %v2483 = vunpack.c.l.s4 1983009808
    %v2484 = vunpack.c.0.s8 %v2483
    %v2485 = vperm.slane %v2479, %v2484
    %v2487 = vunpack.c.l.s4 1983009808
    %v2488 = vunpack.c.0.s8 %v2487
    %v2489 = vperm.slane %v2481, %v2488
    %v2490 = vrot.slane %v2476, 4
    %v2491 = vsel %vm225, %v2490, %v2430
    %v2492 = vrot.slane %v2430, 4
    %v2493 = vsel %vm225, %v2476, %v2492
    %v2495 = vunpack.c.l.s4 1983009808
    %v2496 = vunpack.c.0.s8 %v2495
    %v2497 = vperm.slane %v2491, %v2496
    %v2499 = vunpack.c.l.s4 1983009808
    %v2500 = vunpack.c.0.s8 %v2499
    %v2501 = vperm.slane %v2493, %v2500
    %v2502 = vrot.slane %v2497, 4
    %v2503 = vsel %vm225, %v2502, %v2485
    %v2504 = vrot.slane %v2485, 4
    %v2505 = vsel %vm225, %v2497, %v2504
    %v2507 = vunpack.c.l.s4 1934713408
    %v2508 = vunpack.c.0.s8 %v2507
    %v2509 = vperm.slane %v2503, %v2508
    %v2511 = vunpack.c.l.s4 1934713408
    %v2512 = vunpack.c.0.s8 %v2511
    %v2513 = vperm.slane %v2505, %v2512
    %v2514 = vrot.slane %v2501, 4
    %v2515 = vsel %vm225, %v2514, %v2489
    %v2516 = vrot.slane %v2489, 4
    %v2517 = vsel %vm225, %v2501, %v2516
    %v2519 = vunpack.c.l.s4 1934713408
    %v2520 = vunpack.c.0.s8 %v2519
    %v2521 = vperm.slane %v2515, %v2520
    %v2523 = vunpack.c.l.s4 1934713408
    %v2524 = vunpack.c.0.s8 %v2523
    %v2525 = vperm.slane %v2517, %v2524
    %v2526 = vrot.slane %v2509, 4
    %v2527 = vsel %vm225, 0.0, %v2526
    %v2528 = vrot.slane %v2513, 4
    %v2529 = vsel %vm225, 0.0, %v2528
    %v2530 = vrot.slane %v2521, 4
    %v2531 = vsel %vm225, 0.0, %v2530
    %v2532 = vrot.slane %v2525, 4
    %v2533 = vsel %vm225, 0.0, %v2532
    %v2534 = vsel %vm225, %v2528, %v2509
    %v2536 = vunpack.c.l.s4 1983009808
    %v2537 = vunpack.c.0.s8 %v2536
    %v2538 = vperm.slane %v2534, %v2537
    %v2539 = vrot.slane %v2529, 4
    %v2540 = vsel %vm225, %v2539, %v2527
    %v2542 = vunpack.c.l.s4 1983009808
    %v2543 = vunpack.c.0.s8 %v2542
    %v2544 = vperm.slane %v2540, %v2543
    %v2545 = vsel %vm225, %v2532, %v2521
    %v2547 = vunpack.c.l.s4 1983009808
    %v2548 = vunpack.c.0.s8 %v2547
    %v2549 = vperm.slane %v2545, %v2548
    %v2550 = vrot.slane %v2533, 4
    %v2551 = vsel %vm225, %v2550, %v2531
    %v2553 = vunpack.c.l.s4 1983009808
    %v2554 = vunpack.c.0.s8 %v2553
    %v2555 = vperm.slane %v2551, %v2554
    %v2556 = vrot.slane %v2544, 4
    %v2557 = vsel %vm225, %v2556, %v2538
    %v2558 = vrot.slane %v2538, 4
    %v2559 = vsel %vm225, %v2544, %v2558
    %v2561 = vunpack.c.l.s4 1934713408
    %v2562 = vunpack.c.0.s8 %v2561
    %v2563 = vperm.slane %v2557, %v2562
    %v2565 = vunpack.c.l.s4 1934713408
    %v2566 = vunpack.c.0.s8 %v2565
    %v2567 = vperm.slane %v2559, %v2566
    %v2568 = vrot.slane %v2555, 4
    %v2569 = vsel %vm225, %v2568, %v2549
    %v2570 = vrot.slane %v2549, 4
    %v2571 = vsel %vm225, %v2555, %v2570
    %v2573 = vunpack.c.l.s4 1934713408
    %v2574 = vunpack.c.0.s8 %v2573
    %v2575 = vperm.slane %v2569, %v2574
    %v2577 = vunpack.c.l.s4 1934713408
    %v2578 = vunpack.c.0.s8 %v2577
    %v2579 = vperm.slane %v2571, %v2578
    %v2580 = vrot.slane %v2575, 4
    %v2581 = vsel %vm225, %v2580, %v2563
    %v2582 = vrot.slane %v2563, 4
    %v2583 = vsel %vm225, %v2575, %v2582
    %v2584 = vrot.slane %v2579, 4
    %v2585 = vsel %vm225, %v2584, %v2567
    %v2586 = vrot.slane %v2567, 4
    %v2587 = vsel %vm225, %v2579, %v2586
    %2589 = vrot.lane.b32.xlu0 %v2583, 8
    %v2590 = vpop.permute.xlu0 %2589
    %2593 = vrot.lane.b32.xlu0 %v2585, 16
    %v2594 = vpop.permute.xlu0 %2593
    %2597 = vrot.lane.b32.xlu0 %v2587, 24
    %v2598 = vpop.permute.xlu0 %2597
    %v2600 = vsel %vm575, %v2581, %v2590
    %v2601 = vsel %vm949, %v2600, %v2594
    %v2602 = vsel %vm951, %v2601, %v2598
    %2604 = vrot.lane.b32.xlu0 %v1808, 120
    %v2605 = vpop.permute.xlu0 %2604
    %2607 = vrot.lane.b32.xlu0 %v1808, 112
    %v2608 = vpop.permute.xlu0 %2607
    %2610 = vrot.lane.b32.xlu0 %v1808, 104
    %v2611 = vpop.permute.xlu0 %2610
    %v2613 = vrot.slane %v2608, 4
    %v2614 = vsel %vm225, %v2613, %v1808
    %v2615 = vrot.slane %v1808, 4
    %v2616 = vsel %vm225, %v2608, %v2615
    %v2618 = vunpack.c.l.s4 1983009808
    %v2619 = vunpack.c.0.s8 %v2618
    %v2620 = vperm.slane %v2614, %v2619
    %v2622 = vunpack.c.l.s4 1983009808
    %v2623 = vunpack.c.0.s8 %v2622
    %v2624 = vperm.slane %v2616, %v2623
    %v2625 = vrot.slane %v2611, 4
    %v2626 = vsel %vm225, %v2625, %v2605
    %v2627 = vrot.slane %v2605, 4
    %v2628 = vsel %vm225, %v2611, %v2627
    %v2630 = vunpack.c.l.s4 1983009808
    %v2631 = vunpack.c.0.s8 %v2630
    %v2632 = vperm.slane %v2626, %v2631
    %v2634 = vunpack.c.l.s4 1983009808
    %v2635 = vunpack.c.0.s8 %v2634
    %v2636 = vperm.slane %v2628, %v2635
    %v2637 = vrot.slane %v2632, 4
    %v2638 = vsel %vm225, %v2637, %v2620
    %v2639 = vrot.slane %v2620, 4
    %v2640 = vsel %vm225, %v2632, %v2639
    %v2642 = vunpack.c.l.s4 1934713408
    %v2643 = vunpack.c.0.s8 %v2642
    %v2644 = vperm.slane %v2638, %v2643
    %v2646 = vunpack.c.l.s4 1934713408
    %v2647 = vunpack.c.0.s8 %v2646
    %v2648 = vperm.slane %v2640, %v2647
    %v2649 = vrot.slane %v2636, 4
    %v2650 = vsel %vm225, %v2649, %v2624
    %v2651 = vrot.slane %v2624, 4
    %v2652 = vsel %vm225, %v2636, %v2651
    %v2654 = vunpack.c.l.s4 1934713408
    %v2655 = vunpack.c.0.s8 %v2654
    %v2656 = vperm.slane %v2650, %v2655
    %v2658 = vunpack.c.l.s4 1934713408
    %v2659 = vunpack.c.0.s8 %v2658
    %v2660 = vperm.slane %v2652, %v2659
    %v2661 = vrot.slane %v2644, 4
    %v2662 = vsel %vm225, 0.0, %v2661
    %v2663 = vrot.slane %v2648, 4
    %v2664 = vsel %vm225, 0.0, %v2663
    %v2665 = vrot.slane %v2656, 4
    %v2666 = vsel %vm225, 0.0, %v2665
    %v2667 = vrot.slane %v2660, 4
    %v2668 = vsel %vm225, 0.0, %v2667
    %v2669 = vsel %vm225, %v2663, %v2644
    %v2671 = vunpack.c.l.s4 1983009808
    %v2672 = vunpack.c.0.s8 %v2671
    %v2673 = vperm.slane %v2669, %v2672
    %v2674 = vrot.slane %v2664, 4
    %v2675 = vsel %vm225, %v2674, %v2662
    %v2677 = vunpack.c.l.s4 1983009808
    %v2678 = vunpack.c.0.s8 %v2677
    %v2679 = vperm.slane %v2675, %v2678
    %v2680 = vsel %vm225, %v2667, %v2656
    %v2682 = vunpack.c.l.s4 1983009808
    %v2683 = vunpack.c.0.s8 %v2682
    %v2684 = vperm.slane %v2680, %v2683
    %v2685 = vrot.slane %v2668, 4
    %v2686 = vsel %vm225, %v2685, %v2666
    %v2688 = vunpack.c.l.s4 1983009808
    %v2689 = vunpack.c.0.s8 %v2688
    %v2690 = vperm.slane %v2686, %v2689
    %v2691 = vrot.slane %v2679, 4
    %v2692 = vsel %vm225, %v2691, %v2673
    %v2693 = vrot.slane %v2673, 4
    %v2694 = vsel %vm225, %v2679, %v2693
    %v2696 = vunpack.c.l.s4 1934713408
    %v2697 = vunpack.c.0.s8 %v2696
    %v2698 = vperm.slane %v2692, %v2697
    %v2700 = vunpack.c.l.s4 1934713408
    %v2701 = vunpack.c.0.s8 %v2700
    %v2702 = vperm.slane %v2694, %v2701
    %v2703 = vrot.slane %v2690, 4
    %v2704 = vsel %vm225, %v2703, %v2684
    %v2705 = vrot.slane %v2684, 4
    %v2706 = vsel %vm225, %v2690, %v2705
    %v2708 = vunpack.c.l.s4 1934713408
    %v2709 = vunpack.c.0.s8 %v2708
    %v2710 = vperm.slane %v2704, %v2709
    %v2712 = vunpack.c.l.s4 1934713408
    %v2713 = vunpack.c.0.s8 %v2712
    %v2714 = vperm.slane %v2706, %v2713
    %v2715 = vrot.slane %v2710, 4
    %v2716 = vsel %vm225, %v2715, %v2698
    %v2717 = vrot.slane %v2698, 4
    %v2718 = vsel %vm225, %v2710, %v2717
    %v2719 = vrot.slane %v2714, 4
    %v2720 = vsel %vm225, %v2719, %v2702
    %v2721 = vrot.slane %v2702, 4
    %v2722 = vsel %vm225, %v2714, %v2721
    %2724 = vrot.lane.b32.xlu0 %v1843, 120
    %v2725 = vpop.permute.xlu0 %2724
    %2727 = vrot.lane.b32.xlu0 %v1843, 112
    %v2728 = vpop.permute.xlu0 %2727
    %2730 = vrot.lane.b32.xlu0 %v1843, 104
    %v2731 = vpop.permute.xlu0 %2730
    %v2733 = vrot.slane %v2728, 4
    %v2734 = vsel %vm225, %v2733, %v1843
    %v2735 = vrot.slane %v1843, 4
    %v2736 = vsel %vm225, %v2728, %v2735
    %v2738 = vunpack.c.l.s4 1983009808
    %v2739 = vunpack.c.0.s8 %v2738
    %v2740 = vperm.slane %v2734, %v2739
    %v2742 = vunpack.c.l.s4 1983009808
    %v2743 = vunpack.c.0.s8 %v2742
    %v2744 = vperm.slane %v2736, %v2743
    %v2745 = vrot.slane %v2731, 4
    %v2746 = vsel %vm225, %v2745, %v2725
    %v2747 = vrot.slane %v2725, 4
    %v2748 = vsel %vm225, %v2731, %v2747
    %v2750 = vunpack.c.l.s4 1983009808
    %v2751 = vunpack.c.0.s8 %v2750
    %v2752 = vperm.slane %v2746, %v2751
    %v2754 = vunpack.c.l.s4 1983009808
    %v2755 = vunpack.c.0.s8 %v2754
    %v2756 = vperm.slane %v2748, %v2755
    %v2757 = vrot.slane %v2752, 4
    %v2758 = vsel %vm225, %v2757, %v2740
    %v2759 = vrot.slane %v2740, 4
    %v2760 = vsel %vm225, %v2752, %v2759
    %v2762 = vunpack.c.l.s4 1934713408
    %v2763 = vunpack.c.0.s8 %v2762
    %v2764 = vperm.slane %v2758, %v2763
    %v2766 = vunpack.c.l.s4 1934713408
    %v2767 = vunpack.c.0.s8 %v2766
    %v2768 = vperm.slane %v2760, %v2767
    %v2769 = vrot.slane %v2756, 4
    %v2770 = vsel %vm225, %v2769, %v2744
    %v2771 = vrot.slane %v2744, 4
    %v2772 = vsel %vm225, %v2756, %v2771
    %v2774 = vunpack.c.l.s4 1934713408
    %v2775 = vunpack.c.0.s8 %v2774
    %v2776 = vperm.slane %v2770, %v2775
    %v2778 = vunpack.c.l.s4 1934713408
    %v2779 = vunpack.c.0.s8 %v2778
    %v2780 = vperm.slane %v2772, %v2779
    %v2781 = vrot.slane %v2764, 4
    %v2782 = vsel %vm225, 0.0, %v2781
    %v2783 = vrot.slane %v2768, 4
    %v2784 = vsel %vm225, 0.0, %v2783
    %v2785 = vrot.slane %v2776, 4
    %v2786 = vsel %vm225, 0.0, %v2785
    %v2787 = vrot.slane %v2780, 4
    %v2788 = vsel %vm225, 0.0, %v2787
    %v2789 = vsel %vm225, %v2783, %v2764
    %v2791 = vunpack.c.l.s4 1983009808
    %v2792 = vunpack.c.0.s8 %v2791
    %v2793 = vperm.slane %v2789, %v2792
    %v2794 = vrot.slane %v2784, 4
    %v2795 = vsel %vm225, %v2794, %v2782
    %v2797 = vunpack.c.l.s4 1983009808
    %v2798 = vunpack.c.0.s8 %v2797
    %v2799 = vperm.slane %v2795, %v2798
    %v2800 = vsel %vm225, %v2787, %v2776
    %v2802 = vunpack.c.l.s4 1983009808
    %v2803 = vunpack.c.0.s8 %v2802
    %v2804 = vperm.slane %v2800, %v2803
    %v2805 = vrot.slane %v2788, 4
    %v2806 = vsel %vm225, %v2805, %v2786
    %v2808 = vunpack.c.l.s4 1983009808
    %v2809 = vunpack.c.0.s8 %v2808
    %v2810 = vperm.slane %v2806, %v2809
    %v2811 = vrot.slane %v2799, 4
    %v2812 = vsel %vm225, %v2811, %v2793
    %v2813 = vrot.slane %v2793, 4
    %v2814 = vsel %vm225, %v2799, %v2813
    %v2816 = vunpack.c.l.s4 1934713408
    %v2817 = vunpack.c.0.s8 %v2816
    %v2818 = vperm.slane %v2812, %v2817
    %v2820 = vunpack.c.l.s4 1934713408
    %v2821 = vunpack.c.0.s8 %v2820
    %v2822 = vperm.slane %v2814, %v2821
    %v2823 = vrot.slane %v2810, 4
    %v2824 = vsel %vm225, %v2823, %v2804
    %v2825 = vrot.slane %v2804, 4
    %v2826 = vsel %vm225, %v2810, %v2825
    %v2828 = vunpack.c.l.s4 1934713408
    %v2829 = vunpack.c.0.s8 %v2828
    %v2830 = vperm.slane %v2824, %v2829
    %v2832 = vunpack.c.l.s4 1934713408
    %v2833 = vunpack.c.0.s8 %v2832
    %v2834 = vperm.slane %v2826, %v2833
    %v2835 = vrot.slane %v2830, 4
    %v2836 = vsel %vm225, %v2835, %v2818
    %v2837 = vrot.slane %v2818, 4
    %v2838 = vsel %vm225, %v2830, %v2837
    %v2839 = vrot.slane %v2834, 4
    %v2840 = vsel %vm225, %v2839, %v2822
    %v2841 = vrot.slane %v2822, 4
    %v2842 = vsel %vm225, %v2834, %v2841
    %2844 = vrot.lane.b32.xlu0 %v1872, 120
    %v2845 = vpop.permute.xlu0 %2844
    %2847 = vrot.lane.b32.xlu0 %v1872, 112
    %v2848 = vpop.permute.xlu0 %2847
    %2850 = vrot.lane.b32.xlu0 %v1872, 104
    %v2851 = vpop.permute.xlu0 %2850
    %v2853 = vrot.slane %v2848, 4
    %v2854 = vsel %vm225, %v2853, %v1872
    %v2855 = vrot.slane %v1872, 4
    %v2856 = vsel %vm225, %v2848, %v2855
    %v2858 = vunpack.c.l.s4 1983009808
    %v2859 = vunpack.c.0.s8 %v2858
    %v2860 = vperm.slane %v2854, %v2859
    %v2862 = vunpack.c.l.s4 1983009808
    %v2863 = vunpack.c.0.s8 %v2862
    %v2864 = vperm.slane %v2856, %v2863
    %v2865 = vrot.slane %v2851, 4
    %v2866 = vsel %vm225, %v2865, %v2845
    %v2867 = vrot.slane %v2845, 4
    %v2868 = vsel %vm225, %v2851, %v2867
    %v2870 = vunpack.c.l.s4 1983009808
    %v2871 = vunpack.c.0.s8 %v2870
    %v2872 = vperm.slane %v2866, %v2871
    %v2874 = vunpack.c.l.s4 1983009808
    %v2875 = vunpack.c.0.s8 %v2874
    %v2876 = vperm.slane %v2868, %v2875
    %v2877 = vrot.slane %v2872, 4
    %v2878 = vsel %vm225, %v2877, %v2860
    %v2879 = vrot.slane %v2860, 4
    %v2880 = vsel %vm225, %v2872, %v2879
    %v2882 = vunpack.c.l.s4 1934713408
    %v2883 = vunpack.c.0.s8 %v2882
    %v2884 = vperm.slane %v2878, %v2883
    %v2886 = vunpack.c.l.s4 1934713408
    %v2887 = vunpack.c.0.s8 %v2886
    %v2888 = vperm.slane %v2880, %v2887
    %v2889 = vrot.slane %v2876, 4
    %v2890 = vsel %vm225, %v2889, %v2864
    %v2891 = vrot.slane %v2864, 4
    %v2892 = vsel %vm225, %v2876, %v2891
    %v2894 = vunpack.c.l.s4 1934713408
    %v2895 = vunpack.c.0.s8 %v2894
    %v2896 = vperm.slane %v2890, %v2895
    %v2898 = vunpack.c.l.s4 1934713408
    %v2899 = vunpack.c.0.s8 %v2898
    %v2900 = vperm.slane %v2892, %v2899
    %v2901 = vrot.slane %v2884, 4
    %v2902 = vsel %vm225, 0.0, %v2901
    %v2903 = vrot.slane %v2888, 4
    %v2904 = vsel %vm225, 0.0, %v2903
    %v2905 = vrot.slane %v2896, 4
    %v2906 = vsel %vm225, 0.0, %v2905
    %v2907 = vrot.slane %v2900, 4
    %v2908 = vsel %vm225, 0.0, %v2907
    %v2909 = vsel %vm225, %v2903, %v2884
    %v2911 = vunpack.c.l.s4 1983009808
    %v2912 = vunpack.c.0.s8 %v2911
    %v2913 = vperm.slane %v2909, %v2912
    %v2914 = vrot.slane %v2904, 4
    %v2915 = vsel %vm225, %v2914, %v2902
    %v2917 = vunpack.c.l.s4 1983009808
    %v2918 = vunpack.c.0.s8 %v2917
    %v2919 = vperm.slane %v2915, %v2918
    %v2920 = vsel %vm225, %v2907, %v2896
    %v2922 = vunpack.c.l.s4 1983009808
    %v2923 = vunpack.c.0.s8 %v2922
    %v2924 = vperm.slane %v2920, %v2923
    %v2925 = vrot.slane %v2908, 4
    %v2926 = vsel %vm225, %v2925, %v2906
    %v2928 = vunpack.c.l.s4 1983009808
    %v2929 = vunpack.c.0.s8 %v2928
    %v2930 = vperm.slane %v2926, %v2929
    %v2931 = vrot.slane %v2919, 4
    %v2932 = vsel %vm225, %v2931, %v2913
    %v2933 = vrot.slane %v2913, 4
    %v2934 = vsel %vm225, %v2919, %v2933
    %v2936 = vunpack.c.l.s4 1934713408
    %v2937 = vunpack.c.0.s8 %v2936
    %v2938 = vperm.slane %v2932, %v2937
    %v2940 = vunpack.c.l.s4 1934713408
    %v2941 = vunpack.c.0.s8 %v2940
    %v2942 = vperm.slane %v2934, %v2941
    %v2943 = vrot.slane %v2930, 4
    %v2944 = vsel %vm225, %v2943, %v2924
    %v2945 = vrot.slane %v2924, 4
    %v2946 = vsel %vm225, %v2930, %v2945
    %v2948 = vunpack.c.l.s4 1934713408
    %v2949 = vunpack.c.0.s8 %v2948
    %v2950 = vperm.slane %v2944, %v2949
    %v2952 = vunpack.c.l.s4 1934713408
    %v2953 = vunpack.c.0.s8 %v2952
    %v2954 = vperm.slane %v2946, %v2953
    %v2955 = vrot.slane %v2950, 4
    %v2956 = vsel %vm225, %v2955, %v2938
    %v2957 = vrot.slane %v2938, 4
    %v2958 = vsel %vm225, %v2950, %v2957
    %v2959 = vrot.slane %v2954, 4
    %v2960 = vsel %vm225, %v2959, %v2942
    %v2961 = vrot.slane %v2942, 4
    %v2962 = vsel %vm225, %v2954, %v2961
    %v2964 = vsel %vm575, %v2716, 0
    %v2967 = vsel %vm575, %v2836, 0
    %2969 = vmatpush.xpose.msra.mxu0 0.0
    %2970 = vmatpush.xpose.msra.mxu0 0.0
    %2971 = vmatpush.xpose.msra.mxu0 0.0
    %2972 = vmatpush.xpose.msra.mxu0 0.0
    %2973 = vmatpush.xpose.msra.mxu0 0.0
    %2974 = vmatpush.xpose.msra.mxu0 0.0
    %2975 = vmatpush.xpose.msra.mxu0 0.0
    %2976 = vmatpush.xpose.msra.mxu0 0.0
    %2977 = vmatpush.xpose.msra.mxu0 0.0
    %2978 = vmatpush.xpose.msra.mxu0 0.0
    %2979 = vmatpush.xpose.msra.mxu0 0.0
    %2980 = vmatpush.xpose.msra.mxu0 0.0
    %2981 = vmatpush.xpose.msra.mxu0 0.0
    %2982 = vmatpush.xpose.msra.mxu0 0.0
    %2983 = vmatpush.xpose.msra.mxu0 0.0
    %2984 = vmatpush.xpose.msra.mxu0 %v2967
    %2985 = vmatmul.f32.gmra.mxu0 %v2964
    %v2986 = vpop.f32.mrf.mxu0
    %v2987 = vadd.f32 0.0, %v2986
    %2988 = vdwg.mxu0
    %v2990 = vsel %vm575, %v2718, 0
    %v2993 = vsel %vm575, %v2838, 0
    %2995 = vmatpush.xpose.msra.mxu0 0.0
    %2996 = vmatpush.xpose.msra.mxu0 0.0
    %2997 = vmatpush.xpose.msra.mxu0 0.0
    %2998 = vmatpush.xpose.msra.mxu0 0.0
    %2999 = vmatpush.xpose.msra.mxu0 0.0
    %3000 = vmatpush.xpose.msra.mxu0 0.0
    %3001 = vmatpush.xpose.msra.mxu0 0.0
    %3002 = vmatpush.xpose.msra.mxu0 0.0
    %3003 = vmatpush.xpose.msra.mxu0 0.0
    %3004 = vmatpush.xpose.msra.mxu0 0.0
    %3005 = vmatpush.xpose.msra.mxu0 0.0
    %3006 = vmatpush.xpose.msra.mxu0 0.0
    %3007 = vmatpush.xpose.msra.mxu0 0.0
    %3008 = vmatpush.xpose.msra.mxu0 0.0
    %3009 = vmatpush.xpose.msra.mxu0 0.0
    %3010 = vmatpush.xpose.msra.mxu0 %v2993
    %3011 = vmatmul.f32.gmra.mxu0 %v2990
    %v3012 = vpop.f32.mrf.mxu0
    %v3013 = vadd.f32 0.0, %v3012
    %3014 = vdwg.mxu0
    %v3016 = vsel %vm575, %v2720, 0
    %v3019 = vsel %vm575, %v2840, 0
    %3021 = vmatpush.xpose.msra.mxu0 0.0
    %3022 = vmatpush.xpose.msra.mxu0 0.0
    %3023 = vmatpush.xpose.msra.mxu0 0.0
    %3024 = vmatpush.xpose.msra.mxu0 0.0
    %3025 = vmatpush.xpose.msra.mxu0 0.0
    %3026 = vmatpush.xpose.msra.mxu0 0.0
    %3027 = vmatpush.xpose.msra.mxu0 0.0
    %3028 = vmatpush.xpose.msra.mxu0 0.0
    %3029 = vmatpush.xpose.msra.mxu0 0.0
    %3030 = vmatpush.xpose.msra.mxu0 0.0
    %3031 = vmatpush.xpose.msra.mxu0 0.0
    %3032 = vmatpush.xpose.msra.mxu0 0.0
    %3033 = vmatpush.xpose.msra.mxu0 0.0
    %3034 = vmatpush.xpose.msra.mxu0 0.0
    %3035 = vmatpush.xpose.msra.mxu0 0.0
    %3036 = vmatpush.xpose.msra.mxu0 %v3019
    %3037 = vmatmul.f32.gmra.mxu0 %v3016
    %v3038 = vpop.f32.mrf.mxu0
    %v3039 = vadd.f32 0.0, %v3038
    %3040 = vdwg.mxu0
    %v3042 = vsel %vm575, %v2722, 0
    %v3045 = vsel %vm575, %v2842, 0
    %3047 = vmatpush.xpose.msra.mxu0 0.0
    %3048 = vmatpush.xpose.msra.mxu0 0.0
    %3049 = vmatpush.xpose.msra.mxu0 0.0
    %3050 = vmatpush.xpose.msra.mxu0 0.0
    %3051 = vmatpush.xpose.msra.mxu0 0.0
    %3052 = vmatpush.xpose.msra.mxu0 0.0
    %3053 = vmatpush.xpose.msra.mxu0 0.0
    %3054 = vmatpush.xpose.msra.mxu0 0.0
    %3055 = vmatpush.xpose.msra.mxu0 0.0
    %3056 = vmatpush.xpose.msra.mxu0 0.0
    %3057 = vmatpush.xpose.msra.mxu0 0.0
    %3058 = vmatpush.xpose.msra.mxu0 0.0
    %3059 = vmatpush.xpose.msra.mxu0 0.0
    %3060 = vmatpush.xpose.msra.mxu0 0.0
    %3061 = vmatpush.xpose.msra.mxu0 0.0
    %3062 = vmatpush.xpose.msra.mxu0 %v3045
    %3063 = vmatmul.f32.gmra.mxu0 %v3042
    %v3064 = vpop.f32.mrf.mxu0
    %v3065 = vadd.f32 0.0, %v3064
    %3066 = vdwg.mxu0
    %v3067 = vmul.f32 %v2987, 0.35355338
    %v3068 = vmul.f32 %v3013, 0.35355338
    %v3069 = vmul.f32 %v3039, 0.35355338
    %v3070 = vmul.f32 %v3065, 0.35355338
    %v3071 = vsel %vm575, %v3067, -inf
    %3072 = vmax.xlane.f32.xlu0 %v3071
    %v3073 = vpop.xlane.xlu0 %3072
    %v3074 = vsel %vm575, %v3068, -inf
    %3075 = vmax.xlane.f32.xlu0 %v3074
    %v3076 = vpop.xlane.xlu0 %3075
    %v3077 = vsel %vm575, %v3069, -inf
    %3078 = vmax.xlane.f32.xlu0 %v3077
    %v3079 = vpop.xlane.xlu0 %3078
    %v3080 = vsel %vm575, %v3070, -inf
    %3081 = vmax.xlane.f32.xlu0 %v3080
    %v3082 = vpop.xlane.xlu0 %3081
    %v3083 = vsub.f32 %v3067, %v3073
    %v3084 = vsub.f32 %v3068, %v3076
    %v3085 = vsub.f32 %v3069, %v3079
    %v3086 = vsub.f32 %v3070, %v3082
    %v3087 = vmul.f32 %v3083, 1.442695
    %v3088 = vpow.pop %v3087
    %v3089 = vmul.f32 %v3084, 1.442695
    %v3090 = vpow.pop %v3089
    %v3091 = vmul.f32 %v3085, 1.442695
    %v3092 = vpow.pop %v3091
    %v3093 = vmul.f32 %v3086, 1.442695
    %v3094 = vpow.pop %v3093
    %v3095 = vsel %vm575, %v3088, 0.0
    %3096 = vadd.xlane.f32.xlu0 %v3095
    %v3097 = vpop.xlane.xlu0 %3096
    %v3098 = vsel %vm575, %v3090, 0.0
    %3099 = vadd.xlane.f32.xlu0 %v3098
    %v3100 = vpop.xlane.xlu0 %3099
    %v3101 = vsel %vm575, %v3092, 0.0
    %3102 = vadd.xlane.f32.xlu0 %v3101
    %v3103 = vpop.xlane.xlu0 %3102
    %v3104 = vsel %vm575, %v3094, 0.0
    %3105 = vadd.xlane.f32.xlu0 %v3104
    %v3106 = vpop.xlane.xlu0 %3105
    %v3107 = vrcp.pop %v3097
    %v3108 = vrcp.pop %v3100
    %v3109 = vrcp.pop %v3103
    %v3110 = vrcp.pop %v3106
    %v3111 = vmul.f32 %v3088, %v3107
    %v3112 = vmul.f32 %v3090, %v3108
    %v3113 = vmul.f32 %v3092, %v3109
    %v3114 = vmul.f32 %v3094, %v3110
    %v3116 = vsel %vm575, %v3111, 0
    %3118 = vmatpush.msra.mxu0 0.0
    %3119 = vmatpush.msra.mxu0 0.0
    %3120 = vmatpush.msra.mxu0 0.0
    %3121 = vmatpush.msra.mxu0 0.0
    %3122 = vmatpush.msra.mxu0 0.0
    %3123 = vmatpush.msra.mxu0 0.0
    %3124 = vmatpush.msra.mxu0 0.0
    %3125 = vmatpush.msra.mxu0 0.0
    %3126 = vmatpush.msra.mxu0 0.0
    %3127 = vmatpush.msra.mxu0 0.0
    %3128 = vmatpush.msra.mxu0 0.0
    %3129 = vmatpush.msra.mxu0 0.0
    %3130 = vmatpush.msra.mxu0 0.0
    %3131 = vmatpush.msra.mxu0 0.0
    %3132 = vmatpush.msra.mxu0 0.0
    %3133 = vmatpush.msra.mxu0 %v2956
    %3134 = vmatmul.f32.gmra.mxu0 %v3116
    %v3135 = vpop.f32.mrf.mxu0
    %v3136 = vadd.f32 0.0, %v3135
    %3137 = vdwg.mxu0
    %v3139 = vsel %vm575, %v3112, 0
    %3141 = vmatpush.msra.mxu0 0.0
    %3142 = vmatpush.msra.mxu0 0.0
    %3143 = vmatpush.msra.mxu0 0.0
    %3144 = vmatpush.msra.mxu0 0.0
    %3145 = vmatpush.msra.mxu0 0.0
    %3146 = vmatpush.msra.mxu0 0.0
    %3147 = vmatpush.msra.mxu0 0.0
    %3148 = vmatpush.msra.mxu0 0.0
    %3149 = vmatpush.msra.mxu0 0.0
    %3150 = vmatpush.msra.mxu0 0.0
    %3151 = vmatpush.msra.mxu0 0.0
    %3152 = vmatpush.msra.mxu0 0.0
    %3153 = vmatpush.msra.mxu0 0.0
    %3154 = vmatpush.msra.mxu0 0.0
    %3155 = vmatpush.msra.mxu0 0.0
    %3156 = vmatpush.msra.mxu0 %v2958
    %3157 = vmatmul.f32.gmra.mxu0 %v3139
    %v3158 = vpop.f32.mrf.mxu0
    %v3159 = vadd.f32 0.0, %v3158
    %3160 = vdwg.mxu0
    %v3162 = vsel %vm575, %v3113, 0
    %3164 = vmatpush.msra.mxu0 0.0
    %3165 = vmatpush.msra.mxu0 0.0
    %3166 = vmatpush.msra.mxu0 0.0
    %3167 = vmatpush.msra.mxu0 0.0
    %3168 = vmatpush.msra.mxu0 0.0
    %3169 = vmatpush.msra.mxu0 0.0
    %3170 = vmatpush.msra.mxu0 0.0
    %3171 = vmatpush.msra.mxu0 0.0
    %3172 = vmatpush.msra.mxu0 0.0
    %3173 = vmatpush.msra.mxu0 0.0
    %3174 = vmatpush.msra.mxu0 0.0
    %3175 = vmatpush.msra.mxu0 0.0
    %3176 = vmatpush.msra.mxu0 0.0
    %3177 = vmatpush.msra.mxu0 0.0
    %3178 = vmatpush.msra.mxu0 0.0
    %3179 = vmatpush.msra.mxu0 %v2960
    %3180 = vmatmul.f32.gmra.mxu0 %v3162
    %v3181 = vpop.f32.mrf.mxu0
    %v3182 = vadd.f32 0.0, %v3181
    %3183 = vdwg.mxu0
    %v3185 = vsel %vm575, %v3114, 0
    %3187 = vmatpush.msra.mxu0 0.0
    %3188 = vmatpush.msra.mxu0 0.0
    %3189 = vmatpush.msra.mxu0 0.0
    %3190 = vmatpush.msra.mxu0 0.0
    %3191 = vmatpush.msra.mxu0 0.0
    %3192 = vmatpush.msra.mxu0 0.0
    %3193 = vmatpush.msra.mxu0 0.0
    %3194 = vmatpush.msra.mxu0 0.0
    %3195 = vmatpush.msra.mxu0 0.0
    %3196 = vmatpush.msra.mxu0 0.0
    %3197 = vmatpush.msra.mxu0 0.0
    %3198 = vmatpush.msra.mxu0 0.0
    %3199 = vmatpush.msra.mxu0 0.0
    %3200 = vmatpush.msra.mxu0 0.0
    %3201 = vmatpush.msra.mxu0 0.0
    %3202 = vmatpush.msra.mxu0 %v2962
    %3203 = vmatmul.f32.gmra.mxu0 %v3185
    %v3204 = vpop.f32.mrf.mxu0
    %v3205 = vadd.f32 0.0, %v3204
    %3206 = vdwg.mxu0
    %v3207 = vrot.slane %v3182, 4
    %v3208 = vsel %vm225, %v3207, %v3136
    %v3209 = vrot.slane %v3136, 4
    %v3210 = vsel %vm225, %v3182, %v3209
    %v3212 = vunpack.c.l.s4 1983009808
    %v3213 = vunpack.c.0.s8 %v3212
    %v3214 = vperm.slane %v3208, %v3213
    %v3216 = vunpack.c.l.s4 1983009808
    %v3217 = vunpack.c.0.s8 %v3216
    %v3218 = vperm.slane %v3210, %v3217
    %v3219 = vrot.slane %v3205, 4
    %v3220 = vsel %vm225, %v3219, %v3159
    %v3221 = vrot.slane %v3159, 4
    %v3222 = vsel %vm225, %v3205, %v3221
    %v3224 = vunpack.c.l.s4 1983009808
    %v3225 = vunpack.c.0.s8 %v3224
    %v3226 = vperm.slane %v3220, %v3225
    %v3228 = vunpack.c.l.s4 1983009808
    %v3229 = vunpack.c.0.s8 %v3228
    %v3230 = vperm.slane %v3222, %v3229
    %v3231 = vrot.slane %v3226, 4
    %v3232 = vsel %vm225, %v3231, %v3214
    %v3233 = vrot.slane %v3214, 4
    %v3234 = vsel %vm225, %v3226, %v3233
    %v3236 = vunpack.c.l.s4 1934713408
    %v3237 = vunpack.c.0.s8 %v3236
    %v3238 = vperm.slane %v3232, %v3237
    %v3240 = vunpack.c.l.s4 1934713408
    %v3241 = vunpack.c.0.s8 %v3240
    %v3242 = vperm.slane %v3234, %v3241
    %v3243 = vrot.slane %v3230, 4
    %v3244 = vsel %vm225, %v3243, %v3218
    %v3245 = vrot.slane %v3218, 4
    %v3246 = vsel %vm225, %v3230, %v3245
    %v3248 = vunpack.c.l.s4 1934713408
    %v3249 = vunpack.c.0.s8 %v3248
    %v3250 = vperm.slane %v3244, %v3249
    %v3252 = vunpack.c.l.s4 1934713408
    %v3253 = vunpack.c.0.s8 %v3252
    %v3254 = vperm.slane %v3246, %v3253
    %v3255 = vrot.slane %v3238, 4
    %v3256 = vsel %vm225, 0.0, %v3255
    %v3257 = vrot.slane %v3242, 4
    %v3258 = vsel %vm225, 0.0, %v3257
    %v3259 = vrot.slane %v3250, 4
    %v3260 = vsel %vm225, 0.0, %v3259
    %v3261 = vrot.slane %v3254, 4
    %v3262 = vsel %vm225, 0.0, %v3261
    %v3263 = vsel %vm225, %v3257, %v3238
    %v3265 = vunpack.c.l.s4 1983009808
    %v3266 = vunpack.c.0.s8 %v3265
    %v3267 = vperm.slane %v3263, %v3266
    %v3268 = vrot.slane %v3258, 4
    %v3269 = vsel %vm225, %v3268, %v3256
    %v3271 = vunpack.c.l.s4 1983009808
    %v3272 = vunpack.c.0.s8 %v3271
    %v3273 = vperm.slane %v3269, %v3272
    %v3274 = vsel %vm225, %v3261, %v3250
    %v3276 = vunpack.c.l.s4 1983009808
    %v3277 = vunpack.c.0.s8 %v3276
    %v3278 = vperm.slane %v3274, %v3277
    %v3279 = vrot.slane %v3262, 4
    %v3280 = vsel %vm225, %v3279, %v3260
    %v3282 = vunpack.c.l.s4 1983009808
    %v3283 = vunpack.c.0.s8 %v3282
    %v3284 = vperm.slane %v3280, %v3283
    %v3285 = vrot.slane %v3273, 4
    %v3286 = vsel %vm225, %v3285, %v3267
    %v3287 = vrot.slane %v3267, 4
    %v3288 = vsel %vm225, %v3273, %v3287
    %v3290 = vunpack.c.l.s4 1934713408
    %v3291 = vunpack.c.0.s8 %v3290
    %v3292 = vperm.slane %v3286, %v3291
    %v3294 = vunpack.c.l.s4 1934713408
    %v3295 = vunpack.c.0.s8 %v3294
    %v3296 = vperm.slane %v3288, %v3295
    %v3297 = vrot.slane %v3284, 4
    %v3298 = vsel %vm225, %v3297, %v3278
    %v3299 = vrot.slane %v3278, 4
    %v3300 = vsel %vm225, %v3284, %v3299
    %v3302 = vunpack.c.l.s4 1934713408
    %v3303 = vunpack.c.0.s8 %v3302
    %v3304 = vperm.slane %v3298, %v3303
    %v3306 = vunpack.c.l.s4 1934713408
    %v3307 = vunpack.c.0.s8 %v3306
    %v3308 = vperm.slane %v3300, %v3307
    %v3309 = vrot.slane %v3304, 4
    %v3310 = vsel %vm225, %v3309, %v3292
    %v3311 = vrot.slane %v3292, 4
    %v3312 = vsel %vm225, %v3304, %v3311
    %v3313 = vrot.slane %v3308, 4
    %v3314 = vsel %vm225, %v3313, %v3296
    %v3315 = vrot.slane %v3296, 4
    %v3316 = vsel %vm225, %v3308, %v3315
    %3318 = vrot.lane.b32.xlu0 %v3312, 8
    %v3319 = vpop.permute.xlu0 %3318
    %3322 = vrot.lane.b32.xlu0 %v3314, 16
    %v3323 = vpop.permute.xlu0 %3322
    %3326 = vrot.lane.b32.xlu0 %v3316, 24
    %v3327 = vpop.permute.xlu0 %3326
    %v3329 = vsel %vm575, %v3310, %v3319
    %v3330 = vsel %vm949, %v3329, %v3323
    %v3331 = vsel %vm951, %v3330, %v3327
    %s3332 = scalar_lea.vmem [#allocation2], 224
    %v3333 = vld [vmem:[%s3332] sm:$0xff]
    %v3334 = vld [vmem:[%s3332 + $0x8] sm:$0xff]
    %v3335 = vld [vmem:[%s3332 + $0x10] sm:$0xff]
    %v3336 = vld [vmem:[%s3332 + $0x18] sm:$0xff]
    %v3338 = vsel %vm64, %v2602, 0
    %v3341 = vsel %vm64, %v3331, 0
    %3343 = vmatpush.msra.mxu0 0.0
    %3344 = vmatpush.msra.mxu0 0.0
    %3345 = vmatpush.msra.mxu0 0.0
    %3346 = vmatpush.msra.mxu0 0.0
    %3347 = vmatpush.msra.mxu0 0.0
    %3348 = vmatpush.msra.mxu0 0.0
    %3349 = vmatpush.msra.mxu0 0.0
    %3350 = vmatpush.msra.mxu0 0.0
    %3351 = vmatpush.msra.mxu0 0.0
    %3352 = vmatpush.msra.mxu0 0.0
    %3353 = vmatpush.msra.mxu0 0.0
    %3354 = vmatpush.msra.mxu0 0.0
    %3355 = vmatpush.msra.mxu0 %v3336
    %3356 = vmatpush.msra.mxu0 %v3335
    %3357 = vmatpush.msra.mxu0 %v3334
    %3358 = vmatpush.msra.mxu0 %v3333
    %3359 = vmatmul.f32.gmra.mxu0 %v3338
    %v3360 = vpop.f32.mrf.mxu0
    %v3361 = vadd.f32 0.0, %v3360
    %3362 = vmatmul.f32.gmra.mxu0 %v3341
    %v3363 = vpop.f32.mrf.mxu0
    %v3364 = vadd.f32 0.0, %v3363
    %3365 = vdwg.mxu0
    %v3366 = vadd.f32 %v1723, %v3361
    %v3367 = vadd.f32 %v1724, %v3364
    %v3368 = vperm.slane %v62, 3
    %v3369 = vadd.f32 %v3366, %v3368
    %v3370 = vadd.f32 %v3367, %v3368
    %v3371 = vsel %vm64, %v3369, 0.0
    %3372 = vadd.xlane.f32.xlu0 %v3371
    %v3373 = vpop.xlane.xlu0 %3372
    %v3374 = vsel %vm64, %v3370, 0.0
    %3375 = vadd.xlane.f32.xlu0 %v3374
    %v3376 = vpop.xlane.xlu0 %3375
    %v3377 = vmul.f32 %v3373, %v77
    %v3378 = vmul.f32 %v3376, %v77
    %v3379 = vsub.f32 %v3369, %v3377
    %v3380 = vsub.f32 %v3370, %v3378
    %v3381 = vmul.f32 %v3379, %v3379
    %v3382 = vmul.f32 %v3380, %v3380
    %v3383 = vsel %vm64, %v3381, 0.0
    %3384 = vadd.xlane.f32.xlu0 %v3383
    %v3385 = vpop.xlane.xlu0 %3384
    %v3386 = vsel %vm64, %v3382, 0.0
    %3387 = vadd.xlane.f32.xlu0 %v3386
    %v3388 = vpop.xlane.xlu0 %3387
    %v3389 = vmul.f32 %v3385, %v77
    %v3390 = vmul.f32 %v3388, %v77
    %v3391 = vadd.f32 %v3389, 1e-05
    %v3392 = vadd.f32 %v3390, 1e-05
    %v3393 = vrsqrt.pop %v3391
    %v3394 = vmul.f32 %v3393, %v3391
    %v3395 = vmul.f32 %v3394, %v3393
    %v3396 = vmul.f32 0.5, %v3395
    %v3397 = vsub.f32 1.5, %v3396
    %v3398 = vmul.f32 %v3393, %v3397
    %vm3399 = vweird.f32 %v3391
    %vm3400 = vweird.f32 %v3393
    %vm3401 = vmor %vm3399, %vm3400
    %v3402 = vsel %vm3401, %v3393, %v3398
    %v3403 = vrsqrt.pop %v3392
    %v3404 = vmul.f32 %v3403, %v3392
    %v3405 = vmul.f32 %v3404, %v3403
    %v3406 = vmul.f32 0.5, %v3405
    %v3407 = vsub.f32 1.5, %v3406
    %v3408 = vmul.f32 %v3403, %v3407
    %vm3409 = vweird.f32 %v3392
    %vm3410 = vweird.f32 %v3403
    %vm3411 = vmor %vm3409, %vm3410
    %v3412 = vsel %vm3411, %v3403, %v3408
    %v3413 = vmul.f32 %v3379, %v3402
    %v3414 = vmul.f32 %v3380, %v3412
    %v3415 = vperm.slane %v62, 4
    %v3416 = vmul.f32 %v3413, %v3415
    %v3417 = vmul.f32 %v3414, %v3415
    %v3418 = vperm.slane %v62, 5
    %v3419 = vadd.f32 %v3416, %v3418
    %v3420 = vadd.f32 %v3417, %v3418
    %v3421 = vld [vmem:[%s3] sm:$0xff]
    %v3422 = vld [vmem:[%s3 + $0x8] sm:$0xff]
    %v3423 = vld [vmem:[%s3 + $0x10] sm:$0xff]
    %v3424 = vld [vmem:[%s3 + $0x18] sm:$0xff]
    %v3426 = vperm.slane %v63, 0
    %v3429 = vsel %vm64, %v3419, 0
    %v3432 = vsel %vm64, %v3420, 0
    %3434 = vmatpush.msra.mxu0 0.0
    %3435 = vmatpush.msra.mxu0 0.0
    %3436 = vmatpush.msra.mxu0 0.0
    %3437 = vmatpush.msra.mxu0 0.0
    %3438 = vmatpush.msra.mxu0 0.0
    %3439 = vmatpush.msra.mxu0 0.0
    %3440 = vmatpush.msra.mxu0 0.0
    %3441 = vmatpush.msra.mxu0 0.0
    %3442 = vmatpush.msra.mxu0 0.0
    %3443 = vmatpush.msra.mxu0 0.0
    %3444 = vmatpush.msra.mxu0 0.0
    %3445 = vmatpush.msra.mxu0 0.0
    %3446 = vmatpush.msra.mxu0 %v3424
    %3447 = vmatpush.msra.mxu0 %v3423
    %3448 = vmatpush.msra.mxu0 %v3422
    %3449 = vmatpush.msra.mxu0 %v3421
    %3450 = vmatmul.f32.gmra.mxu0 %v3429
    %v3451 = vpop.f32.mrf.mxu0
    %v3452 = vadd.f32 %v3426, %v3451
    %3453 = vmatmul.f32.gmra.mxu0 %v3432
    %v3454 = vpop.f32.mrf.mxu0
    %v3455 = vadd.f32 %v3426, %v3454
    %3456 = vdwg.mxu0
    %v3457 = vmax.f32 %v3452, 0.0
    %v3458 = vmax.f32 %v3455, 0.0
    %v3459 = vld [vmem:[%s4] sm:$0xff]
    %v3460 = vld [vmem:[%s4 + $0x8] sm:$0xff]
    %v3461 = vld [vmem:[%s4 + $0x10] sm:$0xff]
    %v3462 = vld [vmem:[%s4 + $0x18] sm:$0xff]
    %v3463 = vld [vmem:[%s4 + $0x20] sm:$0xff]
    %v3464 = vld [vmem:[%s4 + $0x28] sm:$0xff]
    %v3465 = vld [vmem:[%s4 + $0x30] sm:$0xff]
    %v3466 = vld [vmem:[%s4 + $0x38] sm:$0xff]
    %v3467 = vld [vmem:[%s4 + $0x40] sm:$0xff]
    %v3468 = vld [vmem:[%s4 + $0x48] sm:$0xff]
    %v3469 = vld [vmem:[%s4 + $0x50] sm:$0xff]
    %v3470 = vld [vmem:[%s4 + $0x58] sm:$0xff]
    %v3471 = vld [vmem:[%s4 + $0x60] sm:$0xff]
    %v3472 = vld [vmem:[%s4 + $0x68] sm:$0xff]
    %v3473 = vld [vmem:[%s4 + $0x70] sm:$0xff]
    %v3474 = vld [vmem:[%s4 + $0x78] sm:$0xff]
    %3475 = vmatpush.msra.mxu0 %v3474
    %3476 = vmatpush.msra.mxu0 %v3473
    %3477 = vmatpush.msra.mxu0 %v3472
    %3478 = vmatpush.msra.mxu0 %v3471
    %3479 = vmatpush.msra.mxu0 %v3470
    %3480 = vmatpush.msra.mxu0 %v3469
    %3481 = vmatpush.msra.mxu0 %v3468
    %3482 = vmatpush.msra.mxu0 %v3467
    %3483 = vmatpush.msra.mxu0 %v3466
    %3484 = vmatpush.msra.mxu0 %v3465
    %3485 = vmatpush.msra.mxu0 %v3464
    %3486 = vmatpush.msra.mxu0 %v3463
    %3487 = vmatpush.msra.mxu0 %v3462
    %3488 = vmatpush.msra.mxu0 %v3461
    %3489 = vmatpush.msra.mxu0 %v3460
    %3490 = vmatpush.msra.mxu0 %v3459
    %3491 = vmatmul.f32.gmra.mxu0 %v3457
    %v3492 = vpop.f32.mrf.mxu0
    %v3493 = vadd.f32 0.0, %v3492
    %3494 = vmatmul.f32.gmra.mxu0 %v3458
    %v3495 = vpop.f32.mrf.mxu0
    %v3496 = vadd.f32 0.0, %v3495
    %3497 = vdwg.mxu0
    %v3498 = vadd.f32 %v3369, %v3493
    %v3499 = vadd.f32 %v3370, %v3496
    %v3500 = vperm.slane %v62, 6
    %v3501 = vadd.f32 %v3498, %v3500
    %v3502 = vadd.f32 %v3499, %v3500
    %s3503 = scalar_lea.vmem %s5, 16
    %v3504 = vld [vmem:[%s3503] sm:$0xff]
    %v3505 = vld [vmem:[%s3503 + $0x8] sm:$0x7f]
    %s3506 = scalar_lea.vmem %s6, 1
    %v3507 = vld [vmem:[%s3506] sm:$0x1]
    %v3508 = vsel %vm64, %v3501, 0.0
    %3509 = vadd.xlane.f32.xlu0 %v3508
    %v3510 = vpop.xlane.xlu0 %3509
    %v3511 = vsel %vm64, %v3502, 0.0
    %3512 = vadd.xlane.f32.xlu0 %v3511
    %v3513 = vpop.xlane.xlu0 %3512
    %v3514 = vmul.f32 %v3510, %v77
    %v3515 = vmul.f32 %v3513, %v77
    %v3516 = vsub.f32 %v3501, %v3514
    %v3517 = vsub.f32 %v3502, %v3515
    %v3518 = vmul.f32 %v3516, %v3516
    %v3519 = vmul.f32 %v3517, %v3517
    %v3520 = vsel %vm64, %v3518, 0.0
    %3521 = vadd.xlane.f32.xlu0 %v3520
    %v3522 = vpop.xlane.xlu0 %3521
    %v3523 = vsel %vm64, %v3519, 0.0
    %3524 = vadd.xlane.f32.xlu0 %v3523
    %v3525 = vpop.xlane.xlu0 %3524
    %v3526 = vmul.f32 %v3522, %v77
    %v3527 = vmul.f32 %v3525, %v77
    %v3528 = vadd.f32 %v3526, 1e-05
    %v3529 = vadd.f32 %v3527, 1e-05
    %v3530 = vrsqrt.pop %v3528
    %v3531 = vmul.f32 %v3530, %v3528
    %v3532 = vmul.f32 %v3531, %v3530
    %v3533 = vmul.f32 0.5, %v3532
    %v3534 = vsub.f32 1.5, %v3533
    %v3535 = vmul.f32 %v3530, %v3534
    %vm3536 = vweird.f32 %v3528
    %vm3537 = vweird.f32 %v3530
    %vm3538 = vmor %vm3536, %vm3537
    %v3539 = vsel %vm3538, %v3530, %v3535
    %v3540 = vrsqrt.pop %v3529
    %v3541 = vmul.f32 %v3540, %v3529
    %v3542 = vmul.f32 %v3541, %v3540
    %v3543 = vmul.f32 0.5, %v3542
    %v3544 = vsub.f32 1.5, %v3543
    %v3545 = vmul.f32 %v3540, %v3544
    %vm3546 = vweird.f32 %v3529
    %vm3547 = vweird.f32 %v3540
    %vm3548 = vmor %vm3546, %vm3547
    %v3549 = vsel %vm3548, %v3540, %v3545
    %v3550 = vmul.f32 %v3516, %v3539
    %v3551 = vmul.f32 %v3517, %v3549
    %v3552 = vperm.slane %v3504, 0
    %v3553 = vmul.f32 %v3550, %v3552
    %v3554 = vmul.f32 %v3551, %v3552
    %v3555 = vperm.slane %v3504, 1
    %v3556 = vadd.f32 %v3553, %v3555
    %v3557 = vadd.f32 %v3554, %v3555
    %s3558 = scalar_lea.vmem [#allocation2], 256
    %v3559 = vld [vmem:[%s3558] sm:$0xff]
    %v3560 = vld [vmem:[%s3558 + $0x8] sm:$0xff]
    %v3561 = vld [vmem:[%s3558 + $0x10] sm:$0xff]
    %v3562 = vld [vmem:[%s3558 + $0x18] sm:$0xff]
    %v3563 = vperm.slane %v3504, 2
    %v3565 = vsel %vm64, %v3556, 0
    %v3568 = vsel %vm64, %v3557, 0
    %3570 = vmatpush.msra.mxu0 0.0
    %3571 = vmatpush.msra.mxu0 0.0
    %3572 = vmatpush.msra.mxu0 0.0
    %3573 = vmatpush.msra.mxu0 0.0
    %3574 = vmatpush.msra.mxu0 0.0
    %3575 = vmatpush.msra.mxu0 0.0
    %3576 = vmatpush.msra.mxu0 0.0
    %3577 = vmatpush.msra.mxu0 0.0
    %3578 = vmatpush.msra.mxu0 0.0
    %3579 = vmatpush.msra.mxu0 0.0
    %3580 = vmatpush.msra.mxu0 0.0
    %3581 = vmatpush.msra.mxu0 0.0
    %3582 = vmatpush.msra.mxu0 %v3562
    %3583 = vmatpush.msra.mxu0 %v3561
    %3584 = vmatpush.msra.mxu0 %v3560
    %3585 = vmatpush.msra.mxu0 %v3559
    %3586 = vmatmul.f32.gmra.mxu0 %v3565
    %v3587 = vpop.f32.mrf.mxu0
    %v3588 = vadd.f32 %v3563, %v3587
    %3589 = vmatmul.f32.gmra.mxu0 %v3568
    %v3590 = vpop.f32.mrf.mxu0
    %v3591 = vadd.f32 %v3563, %v3590
    %3592 = vdwg.mxu0
    %s3593 = scalar_lea.vmem [#allocation2], 288
    %v3594 = vld [vmem:[%s3593] sm:$0xff]
    %v3595 = vld [vmem:[%s3593 + $0x8] sm:$0xff]
    %v3596 = vld [vmem:[%s3593 + $0x10] sm:$0xff]
    %v3597 = vld [vmem:[%s3593 + $0x18] sm:$0xff]
    %v3598 = vperm.slane %v3504, 3
    %3599 = vmatpush.msra.mxu0 0.0
    %3600 = vmatpush.msra.mxu0 0.0
    %3601 = vmatpush.msra.mxu0 0.0
    %3602 = vmatpush.msra.mxu0 0.0
    %3603 = vmatpush.msra.mxu0 0.0
    %3604 = vmatpush.msra.mxu0 0.0
    %3605 = vmatpush.msra.mxu0 0.0
    %3606 = vmatpush.msra.mxu0 0.0
    %3607 = vmatpush.msra.mxu0 0.0
    %3608 = vmatpush.msra.mxu0 0.0
    %3609 = vmatpush.msra.mxu0 0.0
    %3610 = vmatpush.msra.mxu0 0.0
    %3611 = vmatpush.msra.mxu0 %v3597
    %3612 = vmatpush.msra.mxu0 %v3596
    %3613 = vmatpush.msra.mxu0 %v3595
    %3614 = vmatpush.msra.mxu0 %v3594
    %3615 = vmatmul.f32.gmra.mxu0 %v3565
    %v3616 = vpop.f32.mrf.mxu0
    %v3617 = vadd.f32 %v3598, %v3616
    %3618 = vmatmul.f32.gmra.mxu0 %v3568
    %v3619 = vpop.f32.mrf.mxu0
    %v3620 = vadd.f32 %v3598, %v3619
    %3621 = vdwg.mxu0
    %s3622 = scalar_lea.vmem [#allocation2], 320
    %v3623 = vld [vmem:[%s3622] sm:$0xff]
    %v3624 = vld [vmem:[%s3622 + $0x8] sm:$0xff]
    %v3625 = vld [vmem:[%s3622 + $0x10] sm:$0xff]
    %v3626 = vld [vmem:[%s3622 + $0x18] sm:$0xff]
    %v3627 = vperm.slane %v3504, 4
    %3628 = vmatpush.msra.mxu0 0.0
    %3629 = vmatpush.msra.mxu0 0.0
    %3630 = vmatpush.msra.mxu0 0.0
    %3631 = vmatpush.msra.mxu0 0.0
    %3632 = vmatpush.msra.mxu0 0.0
    %3633 = vmatpush.msra.mxu0 0.0
    %3634 = vmatpush.msra.mxu0 0.0
    %3635 = vmatpush.msra.mxu0 0.0
    %3636 = vmatpush.msra.mxu0 0.0
    %3637 = vmatpush.msra.mxu0 0.0
    %3638 = vmatpush.msra.mxu0 0.0
    %3639 = vmatpush.msra.mxu0 0.0
    %3640 = vmatpush.msra.mxu0 %v3626
    %3641 = vmatpush.msra.mxu0 %v3625
    %3642 = vmatpush.msra.mxu0 %v3624
    %3643 = vmatpush.msra.mxu0 %v3623
    %3644 = vmatmul.f32.gmra.mxu0 %v3565
    %v3645 = vpop.f32.mrf.mxu0
    %v3646 = vadd.f32 %v3627, %v3645
    %3647 = vmatmul.f32.gmra.mxu0 %v3568
    %v3648 = vpop.f32.mrf.mxu0
    %v3649 = vadd.f32 %v3627, %v3648
    %3650 = vdwg.mxu0
    %3652 = vrot.lane.b32.xlu0 %v3588, 120
    %v3653 = vpop.permute.xlu0 %3652
    %3655 = vrot.lane.b32.xlu0 %v3588, 112
    %v3656 = vpop.permute.xlu0 %3655
    %3658 = vrot.lane.b32.xlu0 %v3588, 104
    %v3659 = vpop.permute.xlu0 %3658
    %v3661 = vrot.slane %v3656, 4
    %v3662 = vsel %vm225, %v3661, %v3588
    %v3663 = vrot.slane %v3588, 4
    %v3664 = vsel %vm225, %v3656, %v3663
    %v3666 = vunpack.c.l.s4 1983009808
    %v3667 = vunpack.c.0.s8 %v3666
    %v3668 = vperm.slane %v3662, %v3667
    %v3670 = vunpack.c.l.s4 1983009808
    %v3671 = vunpack.c.0.s8 %v3670
    %v3672 = vperm.slane %v3664, %v3671
    %v3673 = vrot.slane %v3659, 4
    %v3674 = vsel %vm225, %v3673, %v3653
    %v3675 = vrot.slane %v3653, 4
    %v3676 = vsel %vm225, %v3659, %v3675
    %v3678 = vunpack.c.l.s4 1983009808
    %v3679 = vunpack.c.0.s8 %v3678
    %v3680 = vperm.slane %v3674, %v3679
    %v3682 = vunpack.c.l.s4 1983009808
    %v3683 = vunpack.c.0.s8 %v3682
    %v3684 = vperm.slane %v3676, %v3683
    %v3685 = vrot.slane %v3680, 4
    %v3686 = vsel %vm225, %v3685, %v3668
    %v3687 = vrot.slane %v3668, 4
    %v3688 = vsel %vm225, %v3680, %v3687
    %v3690 = vunpack.c.l.s4 1934713408
    %v3691 = vunpack.c.0.s8 %v3690
    %v3692 = vperm.slane %v3686, %v3691
    %v3694 = vunpack.c.l.s4 1934713408
    %v3695 = vunpack.c.0.s8 %v3694
    %v3696 = vperm.slane %v3688, %v3695
    %v3697 = vrot.slane %v3684, 4
    %v3698 = vsel %vm225, %v3697, %v3672
    %v3699 = vrot.slane %v3672, 4
    %v3700 = vsel %vm225, %v3684, %v3699
    %v3702 = vunpack.c.l.s4 1934713408
    %v3703 = vunpack.c.0.s8 %v3702
    %v3704 = vperm.slane %v3698, %v3703
    %v3706 = vunpack.c.l.s4 1934713408
    %v3707 = vunpack.c.0.s8 %v3706
    %v3708 = vperm.slane %v3700, %v3707
    %v3709 = vrot.slane %v3692, 4
    %v3710 = vsel %vm225, 0.0, %v3709
    %v3711 = vrot.slane %v3696, 4
    %v3712 = vsel %vm225, 0.0, %v3711
    %v3713 = vrot.slane %v3704, 4
    %v3714 = vsel %vm225, 0.0, %v3713
    %v3715 = vrot.slane %v3708, 4
    %v3716 = vsel %vm225, 0.0, %v3715
    %v3717 = vsel %vm225, %v3711, %v3692
    %v3719 = vunpack.c.l.s4 1983009808
    %v3720 = vunpack.c.0.s8 %v3719
    %v3721 = vperm.slane %v3717, %v3720
    %v3722 = vrot.slane %v3712, 4
    %v3723 = vsel %vm225, %v3722, %v3710
    %v3725 = vunpack.c.l.s4 1983009808
    %v3726 = vunpack.c.0.s8 %v3725
    %v3727 = vperm.slane %v3723, %v3726
    %v3728 = vsel %vm225, %v3715, %v3704
    %v3730 = vunpack.c.l.s4 1983009808
    %v3731 = vunpack.c.0.s8 %v3730
    %v3732 = vperm.slane %v3728, %v3731
    %v3733 = vrot.slane %v3716, 4
    %v3734 = vsel %vm225, %v3733, %v3714
    %v3736 = vunpack.c.l.s4 1983009808
    %v3737 = vunpack.c.0.s8 %v3736
    %v3738 = vperm.slane %v3734, %v3737
    %v3739 = vrot.slane %v3727, 4
    %v3740 = vsel %vm225, %v3739, %v3721
    %v3741 = vrot.slane %v3721, 4
    %v3742 = vsel %vm225, %v3727, %v3741
    %v3744 = vunpack.c.l.s4 1934713408
    %v3745 = vunpack.c.0.s8 %v3744
    %v3746 = vperm.slane %v3740, %v3745
    %v3748 = vunpack.c.l.s4 1934713408
    %v3749 = vunpack.c.0.s8 %v3748
    %v3750 = vperm.slane %v3742, %v3749
    %v3751 = vrot.slane %v3738, 4
    %v3752 = vsel %vm225, %v3751, %v3732
    %v3753 = vrot.slane %v3732, 4
    %v3754 = vsel %vm225, %v3738, %v3753
    %v3756 = vunpack.c.l.s4 1934713408
    %v3757 = vunpack.c.0.s8 %v3756
    %v3758 = vperm.slane %v3752, %v3757
    %v3760 = vunpack.c.l.s4 1934713408
    %v3761 = vunpack.c.0.s8 %v3760
    %v3762 = vperm.slane %v3754, %v3761
    %v3763 = vrot.slane %v3758, 4
    %v3764 = vsel %vm225, %v3763, %v3746
    %v3765 = vrot.slane %v3746, 4
    %v3766 = vsel %vm225, %v3758, %v3765
    %v3767 = vrot.slane %v3762, 4
    %v3768 = vsel %vm225, %v3767, %v3750
    %v3769 = vrot.slane %v3750, 4
    %v3770 = vsel %vm225, %v3762, %v3769
    %3772 = vrot.lane.b32.xlu0 %v3617, 120
    %v3773 = vpop.permute.xlu0 %3772
    %3775 = vrot.lane.b32.xlu0 %v3617, 112
    %v3776 = vpop.permute.xlu0 %3775
    %3778 = vrot.lane.b32.xlu0 %v3617, 104
    %v3779 = vpop.permute.xlu0 %3778
    %v3781 = vrot.slane %v3776, 4
    %v3782 = vsel %vm225, %v3781, %v3617
    %v3783 = vrot.slane %v3617, 4
    %v3784 = vsel %vm225, %v3776, %v3783
    %v3786 = vunpack.c.l.s4 1983009808
    %v3787 = vunpack.c.0.s8 %v3786
    %v3788 = vperm.slane %v3782, %v3787
    %v3790 = vunpack.c.l.s4 1983009808
    %v3791 = vunpack.c.0.s8 %v3790
    %v3792 = vperm.slane %v3784, %v3791
    %v3793 = vrot.slane %v3779, 4
    %v3794 = vsel %vm225, %v3793, %v3773
    %v3795 = vrot.slane %v3773, 4
    %v3796 = vsel %vm225, %v3779, %v3795
    %v3798 = vunpack.c.l.s4 1983009808
    %v3799 = vunpack.c.0.s8 %v3798
    %v3800 = vperm.slane %v3794, %v3799
    %v3802 = vunpack.c.l.s4 1983009808
    %v3803 = vunpack.c.0.s8 %v3802
    %v3804 = vperm.slane %v3796, %v3803
    %v3805 = vrot.slane %v3800, 4
    %v3806 = vsel %vm225, %v3805, %v3788
    %v3807 = vrot.slane %v3788, 4
    %v3808 = vsel %vm225, %v3800, %v3807
    %v3810 = vunpack.c.l.s4 1934713408
    %v3811 = vunpack.c.0.s8 %v3810
    %v3812 = vperm.slane %v3806, %v3811
    %v3814 = vunpack.c.l.s4 1934713408
    %v3815 = vunpack.c.0.s8 %v3814
    %v3816 = vperm.slane %v3808, %v3815
    %v3817 = vrot.slane %v3804, 4
    %v3818 = vsel %vm225, %v3817, %v3792
    %v3819 = vrot.slane %v3792, 4
    %v3820 = vsel %vm225, %v3804, %v3819
    %v3822 = vunpack.c.l.s4 1934713408
    %v3823 = vunpack.c.0.s8 %v3822
    %v3824 = vperm.slane %v3818, %v3823
    %v3826 = vunpack.c.l.s4 1934713408
    %v3827 = vunpack.c.0.s8 %v3826
    %v3828 = vperm.slane %v3820, %v3827
    %v3829 = vrot.slane %v3812, 4
    %v3830 = vsel %vm225, 0.0, %v3829
    %v3831 = vrot.slane %v3816, 4
    %v3832 = vsel %vm225, 0.0, %v3831
    %v3833 = vrot.slane %v3824, 4
    %v3834 = vsel %vm225, 0.0, %v3833
    %v3835 = vrot.slane %v3828, 4
    %v3836 = vsel %vm225, 0.0, %v3835
    %v3837 = vsel %vm225, %v3831, %v3812
    %v3839 = vunpack.c.l.s4 1983009808
    %v3840 = vunpack.c.0.s8 %v3839
    %v3841 = vperm.slane %v3837, %v3840
    %v3842 = vrot.slane %v3832, 4
    %v3843 = vsel %vm225, %v3842, %v3830
    %v3845 = vunpack.c.l.s4 1983009808
    %v3846 = vunpack.c.0.s8 %v3845
    %v3847 = vperm.slane %v3843, %v3846
    %v3848 = vsel %vm225, %v3835, %v3824
    %v3850 = vunpack.c.l.s4 1983009808
    %v3851 = vunpack.c.0.s8 %v3850
    %v3852 = vperm.slane %v3848, %v3851
    %v3853 = vrot.slane %v3836, 4
    %v3854 = vsel %vm225, %v3853, %v3834
    %v3856 = vunpack.c.l.s4 1983009808
    %v3857 = vunpack.c.0.s8 %v3856
    %v3858 = vperm.slane %v3854, %v3857
    %v3859 = vrot.slane %v3847, 4
    %v3860 = vsel %vm225, %v3859, %v3841
    %v3861 = vrot.slane %v3841, 4
    %v3862 = vsel %vm225, %v3847, %v3861
    %v3864 = vunpack.c.l.s4 1934713408
    %v3865 = vunpack.c.0.s8 %v3864
    %v3866 = vperm.slane %v3860, %v3865
    %v3868 = vunpack.c.l.s4 1934713408
    %v3869 = vunpack.c.0.s8 %v3868
    %v3870 = vperm.slane %v3862, %v3869
    %v3871 = vrot.slane %v3858, 4
    %v3872 = vsel %vm225, %v3871, %v3852
    %v3873 = vrot.slane %v3852, 4
    %v3874 = vsel %vm225, %v3858, %v3873
    %v3876 = vunpack.c.l.s4 1934713408
    %v3877 = vunpack.c.0.s8 %v3876
    %v3878 = vperm.slane %v3872, %v3877
    %v3880 = vunpack.c.l.s4 1934713408
    %v3881 = vunpack.c.0.s8 %v3880
    %v3882 = vperm.slane %v3874, %v3881
    %v3883 = vrot.slane %v3878, 4
    %v3884 = vsel %vm225, %v3883, %v3866
    %v3885 = vrot.slane %v3866, 4
    %v3886 = vsel %vm225, %v3878, %v3885
    %v3887 = vrot.slane %v3882, 4
    %v3888 = vsel %vm225, %v3887, %v3870
    %v3889 = vrot.slane %v3870, 4
    %v3890 = vsel %vm225, %v3882, %v3889
    %3892 = vrot.lane.b32.xlu0 %v3646, 120
    %v3893 = vpop.permute.xlu0 %3892
    %3895 = vrot.lane.b32.xlu0 %v3646, 112
    %v3896 = vpop.permute.xlu0 %3895
    %3898 = vrot.lane.b32.xlu0 %v3646, 104
    %v3899 = vpop.permute.xlu0 %3898
    %v3901 = vrot.slane %v3896, 4
    %v3902 = vsel %vm225, %v3901, %v3646
    %v3903 = vrot.slane %v3646, 4
    %v3904 = vsel %vm225, %v3896, %v3903
    %v3906 = vunpack.c.l.s4 1983009808
    %v3907 = vunpack.c.0.s8 %v3906
    %v3908 = vperm.slane %v3902, %v3907
    %v3910 = vunpack.c.l.s4 1983009808
    %v3911 = vunpack.c.0.s8 %v3910
    %v3912 = vperm.slane %v3904, %v3911
    %v3913 = vrot.slane %v3899, 4
    %v3914 = vsel %vm225, %v3913, %v3893
    %v3915 = vrot.slane %v3893, 4
    %v3916 = vsel %vm225, %v3899, %v3915
    %v3918 = vunpack.c.l.s4 1983009808
    %v3919 = vunpack.c.0.s8 %v3918
    %v3920 = vperm.slane %v3914, %v3919
    %v3922 = vunpack.c.l.s4 1983009808
    %v3923 = vunpack.c.0.s8 %v3922
    %v3924 = vperm.slane %v3916, %v3923
    %v3925 = vrot.slane %v3920, 4
    %v3926 = vsel %vm225, %v3925, %v3908
    %v3927 = vrot.slane %v3908, 4
    %v3928 = vsel %vm225, %v3920, %v3927
    %v3930 = vunpack.c.l.s4 1934713408
    %v3931 = vunpack.c.0.s8 %v3930
    %v3932 = vperm.slane %v3926, %v3931
    %v3934 = vunpack.c.l.s4 1934713408
    %v3935 = vunpack.c.0.s8 %v3934
    %v3936 = vperm.slane %v3928, %v3935
    %v3937 = vrot.slane %v3924, 4
    %v3938 = vsel %vm225, %v3937, %v3912
    %v3939 = vrot.slane %v3912, 4
    %v3940 = vsel %vm225, %v3924, %v3939
    %v3942 = vunpack.c.l.s4 1934713408
    %v3943 = vunpack.c.0.s8 %v3942
    %v3944 = vperm.slane %v3938, %v3943
    %v3946 = vunpack.c.l.s4 1934713408
    %v3947 = vunpack.c.0.s8 %v3946
    %v3948 = vperm.slane %v3940, %v3947
    %v3949 = vrot.slane %v3932, 4
    %v3950 = vsel %vm225, 0.0, %v3949
    %v3951 = vrot.slane %v3936, 4
    %v3952 = vsel %vm225, 0.0, %v3951
    %v3953 = vrot.slane %v3944, 4
    %v3954 = vsel %vm225, 0.0, %v3953
    %v3955 = vrot.slane %v3948, 4
    %v3956 = vsel %vm225, 0.0, %v3955
    %v3957 = vsel %vm225, %v3951, %v3932
    %v3959 = vunpack.c.l.s4 1983009808
    %v3960 = vunpack.c.0.s8 %v3959
    %v3961 = vperm.slane %v3957, %v3960
    %v3962 = vrot.slane %v3952, 4
    %v3963 = vsel %vm225, %v3962, %v3950
    %v3965 = vunpack.c.l.s4 1983009808
    %v3966 = vunpack.c.0.s8 %v3965
    %v3967 = vperm.slane %v3963, %v3966
    %v3968 = vsel %vm225, %v3955, %v3944
    %v3970 = vunpack.c.l.s4 1983009808
    %v3971 = vunpack.c.0.s8 %v3970
    %v3972 = vperm.slane %v3968, %v3971
    %v3973 = vrot.slane %v3956, 4
    %v3974 = vsel %vm225, %v3973, %v3954
    %v3976 = vunpack.c.l.s4 1983009808
    %v3977 = vunpack.c.0.s8 %v3976
    %v3978 = vperm.slane %v3974, %v3977
    %v3979 = vrot.slane %v3967, 4
    %v3980 = vsel %vm225, %v3979, %v3961
    %v3981 = vrot.slane %v3961, 4
    %v3982 = vsel %vm225, %v3967, %v3981
    %v3984 = vunpack.c.l.s4 1934713408
    %v3985 = vunpack.c.0.s8 %v3984
    %v3986 = vperm.slane %v3980, %v3985
    %v3988 = vunpack.c.l.s4 1934713408
    %v3989 = vunpack.c.0.s8 %v3988
    %v3990 = vperm.slane %v3982, %v3989
    %v3991 = vrot.slane %v3978, 4
    %v3992 = vsel %vm225, %v3991, %v3972
    %v3993 = vrot.slane %v3972, 4
    %v3994 = vsel %vm225, %v3978, %v3993
    %v3996 = vunpack.c.l.s4 1934713408
    %v3997 = vunpack.c.0.s8 %v3996
    %v3998 = vperm.slane %v3992, %v3997
    %v4000 = vunpack.c.l.s4 1934713408
    %v4001 = vunpack.c.0.s8 %v4000
    %v4002 = vperm.slane %v3994, %v4001
    %v4003 = vrot.slane %v3998, 4
    %v4004 = vsel %vm225, %v4003, %v3986
    %v4005 = vrot.slane %v3986, 4
    %v4006 = vsel %vm225, %v3998, %v4005
    %v4007 = vrot.slane %v4002, 4
    %v4008 = vsel %vm225, %v4007, %v3990
    %v4009 = vrot.slane %v3990, 4
    %v4010 = vsel %vm225, %v4002, %v4009
    %v4012 = vsel %vm575, %v3764, 0
    %v4015 = vsel %vm575, %v3884, 0
    %4017 = vmatpush.xpose.msra.mxu0 0.0
    %4018 = vmatpush.xpose.msra.mxu0 0.0
    %4019 = vmatpush.xpose.msra.mxu0 0.0
    %4020 = vmatpush.xpose.msra.mxu0 0.0
    %4021 = vmatpush.xpose.msra.mxu0 0.0
    %4022 = vmatpush.xpose.msra.mxu0 0.0
    %4023 = vmatpush.xpose.msra.mxu0 0.0
    %4024 = vmatpush.xpose.msra.mxu0 0.0
    %4025 = vmatpush.xpose.msra.mxu0 0.0
    %4026 = vmatpush.xpose.msra.mxu0 0.0
    %4027 = vmatpush.xpose.msra.mxu0 0.0
    %4028 = vmatpush.xpose.msra.mxu0 0.0
    %4029 = vmatpush.xpose.msra.mxu0 0.0
    %4030 = vmatpush.xpose.msra.mxu0 0.0
    %4031 = vmatpush.xpose.msra.mxu0 0.0
    %4032 = vmatpush.xpose.msra.mxu0 %v4015
    %4033 = vmatmul.f32.gmra.mxu0 %v4012
    %v4034 = vpop.f32.mrf.mxu0
    %v4035 = vadd.f32 0.0, %v4034
    %4036 = vdwg.mxu0
    %v4038 = vsel %vm575, %v3766, 0
    %v4041 = vsel %vm575, %v3886, 0
    %4043 = vmatpush.xpose.msra.mxu0 0.0
    %4044 = vmatpush.xpose.msra.mxu0 0.0
    %4045 = vmatpush.xpose.msra.mxu0 0.0
    %4046 = vmatpush.xpose.msra.mxu0 0.0
    %4047 = vmatpush.xpose.msra.mxu0 0.0
    %4048 = vmatpush.xpose.msra.mxu0 0.0
    %4049 = vmatpush.xpose.msra.mxu0 0.0
    %4050 = vmatpush.xpose.msra.mxu0 0.0
    %4051 = vmatpush.xpose.msra.mxu0 0.0
    %4052 = vmatpush.xpose.msra.mxu0 0.0
    %4053 = vmatpush.xpose.msra.mxu0 0.0
    %4054 = vmatpush.xpose.msra.mxu0 0.0
    %4055 = vmatpush.xpose.msra.mxu0 0.0
    %4056 = vmatpush.xpose.msra.mxu0 0.0
    %4057 = vmatpush.xpose.msra.mxu0 0.0
    %4058 = vmatpush.xpose.msra.mxu0 %v4041
    %4059 = vmatmul.f32.gmra.mxu0 %v4038
    %v4060 = vpop.f32.mrf.mxu0
    %v4061 = vadd.f32 0.0, %v4060
    %4062 = vdwg.mxu0
    %v4064 = vsel %vm575, %v3768, 0
    %v4067 = vsel %vm575, %v3888, 0
    %4069 = vmatpush.xpose.msra.mxu0 0.0
    %4070 = vmatpush.xpose.msra.mxu0 0.0
    %4071 = vmatpush.xpose.msra.mxu0 0.0
    %4072 = vmatpush.xpose.msra.mxu0 0.0
    %4073 = vmatpush.xpose.msra.mxu0 0.0
    %4074 = vmatpush.xpose.msra.mxu0 0.0
    %4075 = vmatpush.xpose.msra.mxu0 0.0
    %4076 = vmatpush.xpose.msra.mxu0 0.0
    %4077 = vmatpush.xpose.msra.mxu0 0.0
    %4078 = vmatpush.xpose.msra.mxu0 0.0
    %4079 = vmatpush.xpose.msra.mxu0 0.0
    %4080 = vmatpush.xpose.msra.mxu0 0.0
    %4081 = vmatpush.xpose.msra.mxu0 0.0
    %4082 = vmatpush.xpose.msra.mxu0 0.0
    %4083 = vmatpush.xpose.msra.mxu0 0.0
    %4084 = vmatpush.xpose.msra.mxu0 %v4067
    %4085 = vmatmul.f32.gmra.mxu0 %v4064
    %v4086 = vpop.f32.mrf.mxu0
    %v4087 = vadd.f32 0.0, %v4086
    %4088 = vdwg.mxu0
    %v4090 = vsel %vm575, %v3770, 0
    %v4093 = vsel %vm575, %v3890, 0
    %4095 = vmatpush.xpose.msra.mxu0 0.0
    %4096 = vmatpush.xpose.msra.mxu0 0.0
    %4097 = vmatpush.xpose.msra.mxu0 0.0
    %4098 = vmatpush.xpose.msra.mxu0 0.0
    %4099 = vmatpush.xpose.msra.mxu0 0.0
    %4100 = vmatpush.xpose.msra.mxu0 0.0
    %4101 = vmatpush.xpose.msra.mxu0 0.0
    %4102 = vmatpush.xpose.msra.mxu0 0.0
    %4103 = vmatpush.xpose.msra.mxu0 0.0
    %4104 = vmatpush.xpose.msra.mxu0 0.0
    %4105 = vmatpush.xpose.msra.mxu0 0.0
    %4106 = vmatpush.xpose.msra.mxu0 0.0
    %4107 = vmatpush.xpose.msra.mxu0 0.0
    %4108 = vmatpush.xpose.msra.mxu0 0.0
    %4109 = vmatpush.xpose.msra.mxu0 0.0
    %4110 = vmatpush.xpose.msra.mxu0 %v4093
    %4111 = vmatmul.f32.gmra.mxu0 %v4090
    %v4112 = vpop.f32.mrf.mxu0
    %v4113 = vadd.f32 0.0, %v4112
    %4114 = vdwg.mxu0
    %v4115 = vmul.f32 %v4035, 0.35355338
    %v4116 = vmul.f32 %v4061, 0.35355338
    %v4117 = vmul.f32 %v4087, 0.35355338
    %v4118 = vmul.f32 %v4113, 0.35355338
    %v4119 = vsel %vm685, %v4115, -1e+30
    %v4120 = vsel %vm685, %v4116, -1e+30
    %v4121 = vsel %vm685, %v4117, -1e+30
    %v4122 = vsel %vm685, %v4118, -1e+30
    %v4123 = vsel %vm575, %v4119, -inf
    %4124 = vmax.xlane.f32.xlu0 %v4123
    %v4125 = vpop.xlane.xlu0 %4124
    %v4126 = vsel %vm575, %v4120, -inf
    %4127 = vmax.xlane.f32.xlu0 %v4126
    %v4128 = vpop.xlane.xlu0 %4127
    %v4129 = vsel %vm575, %v4121, -inf
    %4130 = vmax.xlane.f32.xlu0 %v4129
    %v4131 = vpop.xlane.xlu0 %4130
    %v4132 = vsel %vm575, %v4122, -inf
    %4133 = vmax.xlane.f32.xlu0 %v4132
    %v4134 = vpop.xlane.xlu0 %4133
    %v4135 = vsub.f32 %v4119, %v4125
    %v4136 = vsub.f32 %v4120, %v4128
    %v4137 = vsub.f32 %v4121, %v4131
    %v4138 = vsub.f32 %v4122, %v4134
    %v4139 = vmul.f32 %v4135, 1.442695
    %v4140 = vpow.pop %v4139
    %v4141 = vmul.f32 %v4136, 1.442695
    %v4142 = vpow.pop %v4141
    %v4143 = vmul.f32 %v4137, 1.442695
    %v4144 = vpow.pop %v4143
    %v4145 = vmul.f32 %v4138, 1.442695
    %v4146 = vpow.pop %v4145
    %v4147 = vsel %vm575, %v4140, 0.0
    %4148 = vadd.xlane.f32.xlu0 %v4147
    %v4149 = vpop.xlane.xlu0 %4148
    %v4150 = vsel %vm575, %v4142, 0.0
    %4151 = vadd.xlane.f32.xlu0 %v4150
    %v4152 = vpop.xlane.xlu0 %4151
    %v4153 = vsel %vm575, %v4144, 0.0
    %4154 = vadd.xlane.f32.xlu0 %v4153
    %v4155 = vpop.xlane.xlu0 %4154
    %v4156 = vsel %vm575, %v4146, 0.0
    %4157 = vadd.xlane.f32.xlu0 %v4156
    %v4158 = vpop.xlane.xlu0 %4157
    %v4159 = vrcp.pop %v4149
    %v4160 = vrcp.pop %v4152
    %v4161 = vrcp.pop %v4155
    %v4162 = vrcp.pop %v4158
    %v4163 = vmul.f32 %v4140, %v4159
    %v4164 = vmul.f32 %v4142, %v4160
    %v4165 = vmul.f32 %v4144, %v4161
    %v4166 = vmul.f32 %v4146, %v4162
    %v4168 = vsel %vm575, %v4163, 0
    %4170 = vmatpush.msra.mxu0 0.0
    %4171 = vmatpush.msra.mxu0 0.0
    %4172 = vmatpush.msra.mxu0 0.0
    %4173 = vmatpush.msra.mxu0 0.0
    %4174 = vmatpush.msra.mxu0 0.0
    %4175 = vmatpush.msra.mxu0 0.0
    %4176 = vmatpush.msra.mxu0 0.0
    %4177 = vmatpush.msra.mxu0 0.0
    %4178 = vmatpush.msra.mxu0 0.0
    %4179 = vmatpush.msra.mxu0 0.0
    %4180 = vmatpush.msra.mxu0 0.0
    %4181 = vmatpush.msra.mxu0 0.0
    %4182 = vmatpush.msra.mxu0 0.0
    %4183 = vmatpush.msra.mxu0 0.0
    %4184 = vmatpush.msra.mxu0 0.0
    %4185 = vmatpush.msra.mxu0 %v4004
    %4186 = vmatmul.f32.gmra.mxu0 %v4168
    %v4187 = vpop.f32.mrf.mxu0
    %v4188 = vadd.f32 0.0, %v4187
    %4189 = vdwg.mxu0
    %v4191 = vsel %vm575, %v4164, 0
    %4193 = vmatpush.msra.mxu0 0.0
    %4194 = vmatpush.msra.mxu0 0.0
    %4195 = vmatpush.msra.mxu0 0.0
    %4196 = vmatpush.msra.mxu0 0.0
    %4197 = vmatpush.msra.mxu0 0.0
    %4198 = vmatpush.msra.mxu0 0.0
    %4199 = vmatpush.msra.mxu0 0.0
    %4200 = vmatpush.msra.mxu0 0.0
    %4201 = vmatpush.msra.mxu0 0.0
    %4202 = vmatpush.msra.mxu0 0.0
    %4203 = vmatpush.msra.mxu0 0.0
    %4204 = vmatpush.msra.mxu0 0.0
    %4205 = vmatpush.msra.mxu0 0.0
    %4206 = vmatpush.msra.mxu0 0.0
    %4207 = vmatpush.msra.mxu0 0.0
    %4208 = vmatpush.msra.mxu0 %v4006
    %4209 = vmatmul.f32.gmra.mxu0 %v4191
    %v4210 = vpop.f32.mrf.mxu0
    %v4211 = vadd.f32 0.0, %v4210
    %4212 = vdwg.mxu0
    %v4214 = vsel %vm575, %v4165, 0
    %4216 = vmatpush.msra.mxu0 0.0
    %4217 = vmatpush.msra.mxu0 0.0
    %4218 = vmatpush.msra.mxu0 0.0
    %4219 = vmatpush.msra.mxu0 0.0
    %4220 = vmatpush.msra.mxu0 0.0
    %4221 = vmatpush.msra.mxu0 0.0
    %4222 = vmatpush.msra.mxu0 0.0
    %4223 = vmatpush.msra.mxu0 0.0
    %4224 = vmatpush.msra.mxu0 0.0
    %4225 = vmatpush.msra.mxu0 0.0
    %4226 = vmatpush.msra.mxu0 0.0
    %4227 = vmatpush.msra.mxu0 0.0
    %4228 = vmatpush.msra.mxu0 0.0
    %4229 = vmatpush.msra.mxu0 0.0
    %4230 = vmatpush.msra.mxu0 0.0
    %4231 = vmatpush.msra.mxu0 %v4008
    %4232 = vmatmul.f32.gmra.mxu0 %v4214
    %v4233 = vpop.f32.mrf.mxu0
    %v4234 = vadd.f32 0.0, %v4233
    %4235 = vdwg.mxu0
    %v4237 = vsel %vm575, %v4166, 0
    %4239 = vmatpush.msra.mxu0 0.0
    %4240 = vmatpush.msra.mxu0 0.0
    %4241 = vmatpush.msra.mxu0 0.0
    %4242 = vmatpush.msra.mxu0 0.0
    %4243 = vmatpush.msra.mxu0 0.0
    %4244 = vmatpush.msra.mxu0 0.0
    %4245 = vmatpush.msra.mxu0 0.0
    %4246 = vmatpush.msra.mxu0 0.0
    %4247 = vmatpush.msra.mxu0 0.0
    %4248 = vmatpush.msra.mxu0 0.0
    %4249 = vmatpush.msra.mxu0 0.0
    %4250 = vmatpush.msra.mxu0 0.0
    %4251 = vmatpush.msra.mxu0 0.0
    %4252 = vmatpush.msra.mxu0 0.0
    %4253 = vmatpush.msra.mxu0 0.0
    %4254 = vmatpush.msra.mxu0 %v4010
    %4255 = vmatmul.f32.gmra.mxu0 %v4237
    %v4256 = vpop.f32.mrf.mxu0
    %v4257 = vadd.f32 0.0, %v4256
    %4258 = vdwg.mxu0
    %v4259 = vrot.slane %v4234, 4
    %v4260 = vsel %vm225, %v4259, %v4188
    %v4261 = vrot.slane %v4188, 4
    %v4262 = vsel %vm225, %v4234, %v4261
    %v4264 = vunpack.c.l.s4 1983009808
    %v4265 = vunpack.c.0.s8 %v4264
    %v4266 = vperm.slane %v4260, %v4265
    %v4268 = vunpack.c.l.s4 1983009808
    %v4269 = vunpack.c.0.s8 %v4268
    %v4270 = vperm.slane %v4262, %v4269
    %v4271 = vrot.slane %v4257, 4
    %v4272 = vsel %vm225, %v4271, %v4211
    %v4273 = vrot.slane %v4211, 4
    %v4274 = vsel %vm225, %v4257, %v4273
    %v4276 = vunpack.c.l.s4 1983009808
    %v4277 = vunpack.c.0.s8 %v4276
    %v4278 = vperm.slane %v4272, %v4277
    %v4280 = vunpack.c.l.s4 1983009808
    %v4281 = vunpack.c.0.s8 %v4280
    %v4282 = vperm.slane %v4274, %v4281
    %v4283 = vrot.slane %v4278, 4
    %v4284 = vsel %vm225, %v4283, %v4266
    %v4285 = vrot.slane %v4266, 4
    %v4286 = vsel %vm225, %v4278, %v4285
    %v4288 = vunpack.c.l.s4 1934713408
    %v4289 = vunpack.c.0.s8 %v4288
    %v4290 = vperm.slane %v4284, %v4289
    %v4292 = vunpack.c.l.s4 1934713408
    %v4293 = vunpack.c.0.s8 %v4292
    %v4294 = vperm.slane %v4286, %v4293
    %v4295 = vrot.slane %v4282, 4
    %v4296 = vsel %vm225, %v4295, %v4270
    %v4297 = vrot.slane %v4270, 4
    %v4298 = vsel %vm225, %v4282, %v4297
    %v4300 = vunpack.c.l.s4 1934713408
    %v4301 = vunpack.c.0.s8 %v4300
    %v4302 = vperm.slane %v4296, %v4301
    %v4304 = vunpack.c.l.s4 1934713408
    %v4305 = vunpack.c.0.s8 %v4304
    %v4306 = vperm.slane %v4298, %v4305
    %v4307 = vrot.slane %v4290, 4
    %v4308 = vsel %vm225, 0.0, %v4307
    %v4309 = vrot.slane %v4294, 4
    %v4310 = vsel %vm225, 0.0, %v4309
    %v4311 = vrot.slane %v4302, 4
    %v4312 = vsel %vm225, 0.0, %v4311
    %v4313 = vrot.slane %v4306, 4
    %v4314 = vsel %vm225, 0.0, %v4313
    %v4315 = vsel %vm225, %v4309, %v4290
    %v4317 = vunpack.c.l.s4 1983009808
    %v4318 = vunpack.c.0.s8 %v4317
    %v4319 = vperm.slane %v4315, %v4318
    %v4320 = vrot.slane %v4310, 4
    %v4321 = vsel %vm225, %v4320, %v4308
    %v4323 = vunpack.c.l.s4 1983009808
    %v4324 = vunpack.c.0.s8 %v4323
    %v4325 = vperm.slane %v4321, %v4324
    %v4326 = vsel %vm225, %v4313, %v4302
    %v4328 = vunpack.c.l.s4 1983009808
    %v4329 = vunpack.c.0.s8 %v4328
    %v4330 = vperm.slane %v4326, %v4329
    %v4331 = vrot.slane %v4314, 4
    %v4332 = vsel %vm225, %v4331, %v4312
    %v4334 = vunpack.c.l.s4 1983009808
    %v4335 = vunpack.c.0.s8 %v4334
    %v4336 = vperm.slane %v4332, %v4335
    %v4337 = vrot.slane %v4325, 4
    %v4338 = vsel %vm225, %v4337, %v4319
    %v4339 = vrot.slane %v4319, 4
    %v4340 = vsel %vm225, %v4325, %v4339
    %v4342 = vunpack.c.l.s4 1934713408
    %v4343 = vunpack.c.0.s8 %v4342
    %v4344 = vperm.slane %v4338, %v4343
    %v4346 = vunpack.c.l.s4 1934713408
    %v4347 = vunpack.c.0.s8 %v4346
    %v4348 = vperm.slane %v4340, %v4347
    %v4349 = vrot.slane %v4336, 4
    %v4350 = vsel %vm225, %v4349, %v4330
    %v4351 = vrot.slane %v4330, 4
    %v4352 = vsel %vm225, %v4336, %v4351
    %v4354 = vunpack.c.l.s4 1934713408
    %v4355 = vunpack.c.0.s8 %v4354
    %v4356 = vperm.slane %v4350, %v4355
    %v4358 = vunpack.c.l.s4 1934713408
    %v4359 = vunpack.c.0.s8 %v4358
    %v4360 = vperm.slane %v4352, %v4359
    %v4361 = vrot.slane %v4356, 4
    %v4362 = vsel %vm225, %v4361, %v4344
    %v4363 = vrot.slane %v4344, 4
    %v4364 = vsel %vm225, %v4356, %v4363
    %v4365 = vrot.slane %v4360, 4
    %v4366 = vsel %vm225, %v4365, %v4348
    %v4367 = vrot.slane %v4348, 4
    %v4368 = vsel %vm225, %v4360, %v4367
    %4370 = vrot.lane.b32.xlu0 %v4364, 8
    %v4371 = vpop.permute.xlu0 %4370
    %4374 = vrot.lane.b32.xlu0 %v4366, 16
    %v4375 = vpop.permute.xlu0 %4374
    %4378 = vrot.lane.b32.xlu0 %v4368, 24
    %v4379 = vpop.permute.xlu0 %4378
    %v4381 = vsel %vm575, %v4362, %v4371
    %v4382 = vsel %vm949, %v4381, %v4375
    %v4383 = vsel %vm951, %v4382, %v4379
    %4385 = vrot.lane.b32.xlu0 %v3591, 120
    %v4386 = vpop.permute.xlu0 %4385
    %4388 = vrot.lane.b32.xlu0 %v3591, 112
    %v4389 = vpop.permute.xlu0 %4388
    %4391 = vrot.lane.b32.xlu0 %v3591, 104
    %v4392 = vpop.permute.xlu0 %4391
    %v4394 = vrot.slane %v4389, 4
    %v4395 = vsel %vm225, %v4394, %v3591
    %v4396 = vrot.slane %v3591, 4
    %v4397 = vsel %vm225, %v4389, %v4396
    %v4399 = vunpack.c.l.s4 1983009808
    %v4400 = vunpack.c.0.s8 %v4399
    %v4401 = vperm.slane %v4395, %v4400
    %v4403 = vunpack.c.l.s4 1983009808
    %v4404 = vunpack.c.0.s8 %v4403
    %v4405 = vperm.slane %v4397, %v4404
    %v4406 = vrot.slane %v4392, 4
    %v4407 = vsel %vm225, %v4406, %v4386
    %v4408 = vrot.slane %v4386, 4
    %v4409 = vsel %vm225, %v4392, %v4408
    %v4411 = vunpack.c.l.s4 1983009808
    %v4412 = vunpack.c.0.s8 %v4411
    %v4413 = vperm.slane %v4407, %v4412
    %v4415 = vunpack.c.l.s4 1983009808
    %v4416 = vunpack.c.0.s8 %v4415
    %v4417 = vperm.slane %v4409, %v4416
    %v4418 = vrot.slane %v4413, 4
    %v4419 = vsel %vm225, %v4418, %v4401
    %v4420 = vrot.slane %v4401, 4
    %v4421 = vsel %vm225, %v4413, %v4420
    %v4423 = vunpack.c.l.s4 1934713408
    %v4424 = vunpack.c.0.s8 %v4423
    %v4425 = vperm.slane %v4419, %v4424
    %v4427 = vunpack.c.l.s4 1934713408
    %v4428 = vunpack.c.0.s8 %v4427
    %v4429 = vperm.slane %v4421, %v4428
    %v4430 = vrot.slane %v4417, 4
    %v4431 = vsel %vm225, %v4430, %v4405
    %v4432 = vrot.slane %v4405, 4
    %v4433 = vsel %vm225, %v4417, %v4432
    %v4435 = vunpack.c.l.s4 1934713408
    %v4436 = vunpack.c.0.s8 %v4435
    %v4437 = vperm.slane %v4431, %v4436
    %v4439 = vunpack.c.l.s4 1934713408
    %v4440 = vunpack.c.0.s8 %v4439
    %v4441 = vperm.slane %v4433, %v4440
    %v4442 = vrot.slane %v4425, 4
    %v4443 = vsel %vm225, 0.0, %v4442
    %v4444 = vrot.slane %v4429, 4
    %v4445 = vsel %vm225, 0.0, %v4444
    %v4446 = vrot.slane %v4437, 4
    %v4447 = vsel %vm225, 0.0, %v4446
    %v4448 = vrot.slane %v4441, 4
    %v4449 = vsel %vm225, 0.0, %v4448
    %v4450 = vsel %vm225, %v4444, %v4425
    %v4452 = vunpack.c.l.s4 1983009808
    %v4453 = vunpack.c.0.s8 %v4452
    %v4454 = vperm.slane %v4450, %v4453
    %v4455 = vrot.slane %v4445, 4
    %v4456 = vsel %vm225, %v4455, %v4443
    %v4458 = vunpack.c.l.s4 1983009808
    %v4459 = vunpack.c.0.s8 %v4458
    %v4460 = vperm.slane %v4456, %v4459
    %v4461 = vsel %vm225, %v4448, %v4437
    %v4463 = vunpack.c.l.s4 1983009808
    %v4464 = vunpack.c.0.s8 %v4463
    %v4465 = vperm.slane %v4461, %v4464
    %v4466 = vrot.slane %v4449, 4
    %v4467 = vsel %vm225, %v4466, %v4447
    %v4469 = vunpack.c.l.s4 1983009808
    %v4470 = vunpack.c.0.s8 %v4469
    %v4471 = vperm.slane %v4467, %v4470
    %v4472 = vrot.slane %v4460, 4
    %v4473 = vsel %vm225, %v4472, %v4454
    %v4474 = vrot.slane %v4454, 4
    %v4475 = vsel %vm225, %v4460, %v4474
    %v4477 = vunpack.c.l.s4 1934713408
    %v4478 = vunpack.c.0.s8 %v4477
    %v4479 = vperm.slane %v4473, %v4478
    %v4481 = vunpack.c.l.s4 1934713408
    %v4482 = vunpack.c.0.s8 %v4481
    %v4483 = vperm.slane %v4475, %v4482
    %v4484 = vrot.slane %v4471, 4
    %v4485 = vsel %vm225, %v4484, %v4465
    %v4486 = vrot.slane %v4465, 4
    %v4487 = vsel %vm225, %v4471, %v4486
    %v4489 = vunpack.c.l.s4 1934713408
    %v4490 = vunpack.c.0.s8 %v4489
    %v4491 = vperm.slane %v4485, %v4490
    %v4493 = vunpack.c.l.s4 1934713408
    %v4494 = vunpack.c.0.s8 %v4493
    %v4495 = vperm.slane %v4487, %v4494
    %v4496 = vrot.slane %v4491, 4
    %v4497 = vsel %vm225, %v4496, %v4479
    %v4498 = vrot.slane %v4479, 4
    %v4499 = vsel %vm225, %v4491, %v4498
    %v4500 = vrot.slane %v4495, 4
    %v4501 = vsel %vm225, %v4500, %v4483
    %v4502 = vrot.slane %v4483, 4
    %v4503 = vsel %vm225, %v4495, %v4502
    %4505 = vrot.lane.b32.xlu0 %v3620, 120
    %v4506 = vpop.permute.xlu0 %4505
    %4508 = vrot.lane.b32.xlu0 %v3620, 112
    %v4509 = vpop.permute.xlu0 %4508
    %4511 = vrot.lane.b32.xlu0 %v3620, 104
    %v4512 = vpop.permute.xlu0 %4511
    %v4514 = vrot.slane %v4509, 4
    %v4515 = vsel %vm225, %v4514, %v3620
    %v4516 = vrot.slane %v3620, 4
    %v4517 = vsel %vm225, %v4509, %v4516
    %v4519 = vunpack.c.l.s4 1983009808
    %v4520 = vunpack.c.0.s8 %v4519
    %v4521 = vperm.slane %v4515, %v4520
    %v4523 = vunpack.c.l.s4 1983009808
    %v4524 = vunpack.c.0.s8 %v4523
    %v4525 = vperm.slane %v4517, %v4524
    %v4526 = vrot.slane %v4512, 4
    %v4527 = vsel %vm225, %v4526, %v4506
    %v4528 = vrot.slane %v4506, 4
    %v4529 = vsel %vm225, %v4512, %v4528
    %v4531 = vunpack.c.l.s4 1983009808
    %v4532 = vunpack.c.0.s8 %v4531
    %v4533 = vperm.slane %v4527, %v4532
    %v4535 = vunpack.c.l.s4 1983009808
    %v4536 = vunpack.c.0.s8 %v4535
    %v4537 = vperm.slane %v4529, %v4536
    %v4538 = vrot.slane %v4533, 4
    %v4539 = vsel %vm225, %v4538, %v4521
    %v4540 = vrot.slane %v4521, 4
    %v4541 = vsel %vm225, %v4533, %v4540
    %v4543 = vunpack.c.l.s4 1934713408
    %v4544 = vunpack.c.0.s8 %v4543
    %v4545 = vperm.slane %v4539, %v4544
    %v4547 = vunpack.c.l.s4 1934713408
    %v4548 = vunpack.c.0.s8 %v4547
    %v4549 = vperm.slane %v4541, %v4548
    %v4550 = vrot.slane %v4537, 4
    %v4551 = vsel %vm225, %v4550, %v4525
    %v4552 = vrot.slane %v4525, 4
    %v4553 = vsel %vm225, %v4537, %v4552
    %v4555 = vunpack.c.l.s4 1934713408
    %v4556 = vunpack.c.0.s8 %v4555
    %v4557 = vperm.slane %v4551, %v4556
    %v4559 = vunpack.c.l.s4 1934713408
    %v4560 = vunpack.c.0.s8 %v4559
    %v4561 = vperm.slane %v4553, %v4560
    %v4562 = vrot.slane %v4545, 4
    %v4563 = vsel %vm225, 0.0, %v4562
    %v4564 = vrot.slane %v4549, 4
    %v4565 = vsel %vm225, 0.0, %v4564
    %v4566 = vrot.slane %v4557, 4
    %v4567 = vsel %vm225, 0.0, %v4566
    %v4568 = vrot.slane %v4561, 4
    %v4569 = vsel %vm225, 0.0, %v4568
    %v4570 = vsel %vm225, %v4564, %v4545
    %v4572 = vunpack.c.l.s4 1983009808
    %v4573 = vunpack.c.0.s8 %v4572
    %v4574 = vperm.slane %v4570, %v4573
    %v4575 = vrot.slane %v4565, 4
    %v4576 = vsel %vm225, %v4575, %v4563
    %v4578 = vunpack.c.l.s4 1983009808
    %v4579 = vunpack.c.0.s8 %v4578
    %v4580 = vperm.slane %v4576, %v4579
    %v4581 = vsel %vm225, %v4568, %v4557
    %v4583 = vunpack.c.l.s4 1983009808
    %v4584 = vunpack.c.0.s8 %v4583
    %v4585 = vperm.slane %v4581, %v4584
    %v4586 = vrot.slane %v4569, 4
    %v4587 = vsel %vm225, %v4586, %v4567
    %v4589 = vunpack.c.l.s4 1983009808
    %v4590 = vunpack.c.0.s8 %v4589
    %v4591 = vperm.slane %v4587, %v4590
    %v4592 = vrot.slane %v4580, 4
    %v4593 = vsel %vm225, %v4592, %v4574
    %v4594 = vrot.slane %v4574, 4
    %v4595 = vsel %vm225, %v4580, %v4594
    %v4597 = vunpack.c.l.s4 1934713408
    %v4598 = vunpack.c.0.s8 %v4597
    %v4599 = vperm.slane %v4593, %v4598
    %v4601 = vunpack.c.l.s4 1934713408
    %v4602 = vunpack.c.0.s8 %v4601
    %v4603 = vperm.slane %v4595, %v4602
    %v4604 = vrot.slane %v4591, 4
    %v4605 = vsel %vm225, %v4604, %v4585
    %v4606 = vrot.slane %v4585, 4
    %v4607 = vsel %vm225, %v4591, %v4606
    %v4609 = vunpack.c.l.s4 1934713408
    %v4610 = vunpack.c.0.s8 %v4609
    %v4611 = vperm.slane %v4605, %v4610
    %v4613 = vunpack.c.l.s4 1934713408
    %v4614 = vunpack.c.0.s8 %v4613
    %v4615 = vperm.slane %v4607, %v4614
    %v4616 = vrot.slane %v4611, 4
    %v4617 = vsel %vm225, %v4616, %v4599
    %v4618 = vrot.slane %v4599, 4
    %v4619 = vsel %vm225, %v4611, %v4618
    %v4620 = vrot.slane %v4615, 4
    %v4621 = vsel %vm225, %v4620, %v4603
    %v4622 = vrot.slane %v4603, 4
    %v4623 = vsel %vm225, %v4615, %v4622
    %4625 = vrot.lane.b32.xlu0 %v3649, 120
    %v4626 = vpop.permute.xlu0 %4625
    %4628 = vrot.lane.b32.xlu0 %v3649, 112
    %v4629 = vpop.permute.xlu0 %4628
    %4631 = vrot.lane.b32.xlu0 %v3649, 104
    %v4632 = vpop.permute.xlu0 %4631
    %v4634 = vrot.slane %v4629, 4
    %v4635 = vsel %vm225, %v4634, %v3649
    %v4636 = vrot.slane %v3649, 4
    %v4637 = vsel %vm225, %v4629, %v4636
    %v4639 = vunpack.c.l.s4 1983009808
    %v4640 = vunpack.c.0.s8 %v4639
    %v4641 = vperm.slane %v4635, %v4640
    %v4643 = vunpack.c.l.s4 1983009808
    %v4644 = vunpack.c.0.s8 %v4643
    %v4645 = vperm.slane %v4637, %v4644
    %v4646 = vrot.slane %v4632, 4
    %v4647 = vsel %vm225, %v4646, %v4626
    %v4648 = vrot.slane %v4626, 4
    %v4649 = vsel %vm225, %v4632, %v4648
    %v4651 = vunpack.c.l.s4 1983009808
    %v4652 = vunpack.c.0.s8 %v4651
    %v4653 = vperm.slane %v4647, %v4652
    %v4655 = vunpack.c.l.s4 1983009808
    %v4656 = vunpack.c.0.s8 %v4655
    %v4657 = vperm.slane %v4649, %v4656
    %v4658 = vrot.slane %v4653, 4
    %v4659 = vsel %vm225, %v4658, %v4641
    %v4660 = vrot.slane %v4641, 4
    %v4661 = vsel %vm225, %v4653, %v4660
    %v4663 = vunpack.c.l.s4 1934713408
    %v4664 = vunpack.c.0.s8 %v4663
    %v4665 = vperm.slane %v4659, %v4664
    %v4667 = vunpack.c.l.s4 1934713408
    %v4668 = vunpack.c.0.s8 %v4667
    %v4669 = vperm.slane %v4661, %v4668
    %v4670 = vrot.slane %v4657, 4
    %v4671 = vsel %vm225, %v4670, %v4645
    %v4672 = vrot.slane %v4645, 4
    %v4673 = vsel %vm225, %v4657, %v4672
    %v4675 = vunpack.c.l.s4 1934713408
    %v4676 = vunpack.c.0.s8 %v4675
    %v4677 = vperm.slane %v4671, %v4676
    %v4679 = vunpack.c.l.s4 1934713408
    %v4680 = vunpack.c.0.s8 %v4679
    %v4681 = vperm.slane %v4673, %v4680
    %v4682 = vrot.slane %v4665, 4
    %v4683 = vsel %vm225, 0.0, %v4682
    %v4684 = vrot.slane %v4669, 4
    %v4685 = vsel %vm225, 0.0, %v4684
    %v4686 = vrot.slane %v4677, 4
    %v4687 = vsel %vm225, 0.0, %v4686
    %v4688 = vrot.slane %v4681, 4
    %v4689 = vsel %vm225, 0.0, %v4688
    %v4690 = vsel %vm225, %v4684, %v4665
    %v4692 = vunpack.c.l.s4 1983009808
    %v4693 = vunpack.c.0.s8 %v4692
    %v4694 = vperm.slane %v4690, %v4693
    %v4695 = vrot.slane %v4685, 4
    %v4696 = vsel %vm225, %v4695, %v4683
    %v4698 = vunpack.c.l.s4 1983009808
    %v4699 = vunpack.c.0.s8 %v4698
    %v4700 = vperm.slane %v4696, %v4699
    %v4701 = vsel %vm225, %v4688, %v4677
    %v4703 = vunpack.c.l.s4 1983009808
    %v4704 = vunpack.c.0.s8 %v4703
    %v4705 = vperm.slane %v4701, %v4704
    %v4706 = vrot.slane %v4689, 4
    %v4707 = vsel %vm225, %v4706, %v4687
    %v4709 = vunpack.c.l.s4 1983009808
    %v4710 = vunpack.c.0.s8 %v4709
    %v4711 = vperm.slane %v4707, %v4710
    %v4712 = vrot.slane %v4700, 4
    %v4713 = vsel %vm225, %v4712, %v4694
    %v4714 = vrot.slane %v4694, 4
    %v4715 = vsel %vm225, %v4700, %v4714
    %v4717 = vunpack.c.l.s4 1934713408
    %v4718 = vunpack.c.0.s8 %v4717
    %v4719 = vperm.slane %v4713, %v4718
    %v4721 = vunpack.c.l.s4 1934713408
    %v4722 = vunpack.c.0.s8 %v4721
    %v4723 = vperm.slane %v4715, %v4722
    %v4724 = vrot.slane %v4711, 4
    %v4725 = vsel %vm225, %v4724, %v4705
    %v4726 = vrot.slane %v4705, 4
    %v4727 = vsel %vm225, %v4711, %v4726
    %v4729 = vunpack.c.l.s4 1934713408
    %v4730 = vunpack.c.0.s8 %v4729
    %v4731 = vperm.slane %v4725, %v4730
    %v4733 = vunpack.c.l.s4 1934713408
    %v4734 = vunpack.c.0.s8 %v4733
    %v4735 = vperm.slane %v4727, %v4734
    %v4736 = vrot.slane %v4731, 4
    %v4737 = vsel %vm225, %v4736, %v4719
    %v4738 = vrot.slane %v4719, 4
    %v4739 = vsel %vm225, %v4731, %v4738
    %v4740 = vrot.slane %v4735, 4
    %v4741 = vsel %vm225, %v4740, %v4723
    %v4742 = vrot.slane %v4723, 4
    %v4743 = vsel %vm225, %v4735, %v4742
    %v4745 = vsel %vm575, %v4497, 0
    %v4748 = vsel %vm575, %v4617, 0
    %4750 = vmatpush.xpose.msra.mxu0 0.0
    %4751 = vmatpush.xpose.msra.mxu0 0.0
    %4752 = vmatpush.xpose.msra.mxu0 0.0
    %4753 = vmatpush.xpose.msra.mxu0 0.0
    %4754 = vmatpush.xpose.msra.mxu0 0.0
    %4755 = vmatpush.xpose.msra.mxu0 0.0
    %4756 = vmatpush.xpose.msra.mxu0 0.0
    %4757 = vmatpush.xpose.msra.mxu0 0.0
    %4758 = vmatpush.xpose.msra.mxu0 0.0
    %4759 = vmatpush.xpose.msra.mxu0 0.0
    %4760 = vmatpush.xpose.msra.mxu0 0.0
    %4761 = vmatpush.xpose.msra.mxu0 0.0
    %4762 = vmatpush.xpose.msra.mxu0 0.0
    %4763 = vmatpush.xpose.msra.mxu0 0.0
    %4764 = vmatpush.xpose.msra.mxu0 0.0
    %4765 = vmatpush.xpose.msra.mxu0 %v4748
    %4766 = vmatmul.f32.gmra.mxu0 %v4745
    %v4767 = vpop.f32.mrf.mxu0
    %v4768 = vadd.f32 0.0, %v4767
    %4769 = vdwg.mxu0
    %v4771 = vsel %vm575, %v4499, 0
    %v4774 = vsel %vm575, %v4619, 0
    %4776 = vmatpush.xpose.msra.mxu0 0.0
    %4777 = vmatpush.xpose.msra.mxu0 0.0
    %4778 = vmatpush.xpose.msra.mxu0 0.0
    %4779 = vmatpush.xpose.msra.mxu0 0.0
    %4780 = vmatpush.xpose.msra.mxu0 0.0
    %4781 = vmatpush.xpose.msra.mxu0 0.0
    %4782 = vmatpush.xpose.msra.mxu0 0.0
    %4783 = vmatpush.xpose.msra.mxu0 0.0
    %4784 = vmatpush.xpose.msra.mxu0 0.0
    %4785 = vmatpush.xpose.msra.mxu0 0.0
    %4786 = vmatpush.xpose.msra.mxu0 0.0
    %4787 = vmatpush.xpose.msra.mxu0 0.0
    %4788 = vmatpush.xpose.msra.mxu0 0.0
    %4789 = vmatpush.xpose.msra.mxu0 0.0
    %4790 = vmatpush.xpose.msra.mxu0 0.0
    %4791 = vmatpush.xpose.msra.mxu0 %v4774
    %4792 = vmatmul.f32.gmra.mxu0 %v4771
    %v4793 = vpop.f32.mrf.mxu0
    %v4794 = vadd.f32 0.0, %v4793
    %4795 = vdwg.mxu0
    %v4797 = vsel %vm575, %v4501, 0
    %v4800 = vsel %vm575, %v4621, 0
    %4802 = vmatpush.xpose.msra.mxu0 0.0
    %4803 = vmatpush.xpose.msra.mxu0 0.0
    %4804 = vmatpush.xpose.msra.mxu0 0.0
    %4805 = vmatpush.xpose.msra.mxu0 0.0
    %4806 = vmatpush.xpose.msra.mxu0 0.0
    %4807 = vmatpush.xpose.msra.mxu0 0.0
    %4808 = vmatpush.xpose.msra.mxu0 0.0
    %4809 = vmatpush.xpose.msra.mxu0 0.0
    %4810 = vmatpush.xpose.msra.mxu0 0.0
    %4811 = vmatpush.xpose.msra.mxu0 0.0
    %4812 = vmatpush.xpose.msra.mxu0 0.0
    %4813 = vmatpush.xpose.msra.mxu0 0.0
    %4814 = vmatpush.xpose.msra.mxu0 0.0
    %4815 = vmatpush.xpose.msra.mxu0 0.0
    %4816 = vmatpush.xpose.msra.mxu0 0.0
    %4817 = vmatpush.xpose.msra.mxu0 %v4800
    %4818 = vmatmul.f32.gmra.mxu0 %v4797
    %v4819 = vpop.f32.mrf.mxu0
    %v4820 = vadd.f32 0.0, %v4819
    %4821 = vdwg.mxu0
    %v4823 = vsel %vm575, %v4503, 0
    %v4826 = vsel %vm575, %v4623, 0
    %4828 = vmatpush.xpose.msra.mxu0 0.0
    %4829 = vmatpush.xpose.msra.mxu0 0.0
    %4830 = vmatpush.xpose.msra.mxu0 0.0
    %4831 = vmatpush.xpose.msra.mxu0 0.0
    %4832 = vmatpush.xpose.msra.mxu0 0.0
    %4833 = vmatpush.xpose.msra.mxu0 0.0
    %4834 = vmatpush.xpose.msra.mxu0 0.0
    %4835 = vmatpush.xpose.msra.mxu0 0.0
    %4836 = vmatpush.xpose.msra.mxu0 0.0
    %4837 = vmatpush.xpose.msra.mxu0 0.0
    %4838 = vmatpush.xpose.msra.mxu0 0.0
    %4839 = vmatpush.xpose.msra.mxu0 0.0
    %4840 = vmatpush.xpose.msra.mxu0 0.0
    %4841 = vmatpush.xpose.msra.mxu0 0.0
    %4842 = vmatpush.xpose.msra.mxu0 0.0
    %4843 = vmatpush.xpose.msra.mxu0 %v4826
    %4844 = vmatmul.f32.gmra.mxu0 %v4823
    %v4845 = vpop.f32.mrf.mxu0
    %v4846 = vadd.f32 0.0, %v4845
    %4847 = vdwg.mxu0
    %v4848 = vmul.f32 %v4768, 0.35355338
    %v4849 = vmul.f32 %v4794, 0.35355338
    %v4850 = vmul.f32 %v4820, 0.35355338
    %v4851 = vmul.f32 %v4846, 0.35355338
    %v4852 = vsel %vm685, %v4848, -1e+30
    %v4853 = vsel %vm685, %v4849, -1e+30
    %v4854 = vsel %vm685, %v4850, -1e+30
    %v4855 = vsel %vm685, %v4851, -1e+30
    %v4856 = vsel %vm575, %v4852, -inf
    %4857 = vmax.xlane.f32.xlu0 %v4856
    %v4858 = vpop.xlane.xlu0 %4857
    %v4859 = vsel %vm575, %v4853, -inf
    %4860 = vmax.xlane.f32.xlu0 %v4859
    %v4861 = vpop.xlane.xlu0 %4860
    %v4862 = vsel %vm575, %v4854, -inf
    %4863 = vmax.xlane.f32.xlu0 %v4862
    %v4864 = vpop.xlane.xlu0 %4863
    %v4865 = vsel %vm575, %v4855, -inf
    %4866 = vmax.xlane.f32.xlu0 %v4865
    %v4867 = vpop.xlane.xlu0 %4866
    %v4868 = vsub.f32 %v4852, %v4858
    %v4869 = vsub.f32 %v4853, %v4861
    %v4870 = vsub.f32 %v4854, %v4864
    %v4871 = vsub.f32 %v4855, %v4867
    %v4872 = vmul.f32 %v4868, 1.442695
    %v4873 = vpow.pop %v4872
    %v4874 = vmul.f32 %v4869, 1.442695
    %v4875 = vpow.pop %v4874
    %v4876 = vmul.f32 %v4870, 1.442695
    %v4877 = vpow.pop %v4876
    %v4878 = vmul.f32 %v4871, 1.442695
    %v4879 = vpow.pop %v4878
    %v4880 = vsel %vm575, %v4873, 0.0
    %4881 = vadd.xlane.f32.xlu0 %v4880
    %v4882 = vpop.xlane.xlu0 %4881
    %v4883 = vsel %vm575, %v4875, 0.0
    %4884 = vadd.xlane.f32.xlu0 %v4883
    %v4885 = vpop.xlane.xlu0 %4884
    %v4886 = vsel %vm575, %v4877, 0.0
    %4887 = vadd.xlane.f32.xlu0 %v4886
    %v4888 = vpop.xlane.xlu0 %4887
    %v4889 = vsel %vm575, %v4879, 0.0
    %4890 = vadd.xlane.f32.xlu0 %v4889
    %v4891 = vpop.xlane.xlu0 %4890
    %v4892 = vrcp.pop %v4882
    %v4893 = vrcp.pop %v4885
    %v4894 = vrcp.pop %v4888
    %v4895 = vrcp.pop %v4891
    %v4896 = vmul.f32 %v4873, %v4892
    %v4897 = vmul.f32 %v4875, %v4893
    %v4898 = vmul.f32 %v4877, %v4894
    %v4899 = vmul.f32 %v4879, %v4895
    %v4901 = vsel %vm575, %v4896, 0
    %4903 = vmatpush.msra.mxu0 0.0
    %4904 = vmatpush.msra.mxu0 0.0
    %4905 = vmatpush.msra.mxu0 0.0
    %4906 = vmatpush.msra.mxu0 0.0
    %4907 = vmatpush.msra.mxu0 0.0
    %4908 = vmatpush.msra.mxu0 0.0
    %4909 = vmatpush.msra.mxu0 0.0
    %4910 = vmatpush.msra.mxu0 0.0
    %4911 = vmatpush.msra.mxu0 0.0
    %4912 = vmatpush.msra.mxu0 0.0
    %4913 = vmatpush.msra.mxu0 0.0
    %4914 = vmatpush.msra.mxu0 0.0
    %4915 = vmatpush.msra.mxu0 0.0
    %4916 = vmatpush.msra.mxu0 0.0
    %4917 = vmatpush.msra.mxu0 0.0
    %4918 = vmatpush.msra.mxu0 %v4737
    %4919 = vmatmul.f32.gmra.mxu0 %v4901
    %v4920 = vpop.f32.mrf.mxu0
    %v4921 = vadd.f32 0.0, %v4920
    %4922 = vdwg.mxu0
    %v4924 = vsel %vm575, %v4897, 0
    %4926 = vmatpush.msra.mxu0 0.0
    %4927 = vmatpush.msra.mxu0 0.0
    %4928 = vmatpush.msra.mxu0 0.0
    %4929 = vmatpush.msra.mxu0 0.0
    %4930 = vmatpush.msra.mxu0 0.0
    %4931 = vmatpush.msra.mxu0 0.0
    %4932 = vmatpush.msra.mxu0 0.0
    %4933 = vmatpush.msra.mxu0 0.0
    %4934 = vmatpush.msra.mxu0 0.0
    %4935 = vmatpush.msra.mxu0 0.0
    %4936 = vmatpush.msra.mxu0 0.0
    %4937 = vmatpush.msra.mxu0 0.0
    %4938 = vmatpush.msra.mxu0 0.0
    %4939 = vmatpush.msra.mxu0 0.0
    %4940 = vmatpush.msra.mxu0 0.0
    %4941 = vmatpush.msra.mxu0 %v4739
    %4942 = vmatmul.f32.gmra.mxu0 %v4924
    %v4943 = vpop.f32.mrf.mxu0
    %v4944 = vadd.f32 0.0, %v4943
    %4945 = vdwg.mxu0
    %v4947 = vsel %vm575, %v4898, 0
    %4949 = vmatpush.msra.mxu0 0.0
    %4950 = vmatpush.msra.mxu0 0.0
    %4951 = vmatpush.msra.mxu0 0.0
    %4952 = vmatpush.msra.mxu0 0.0
    %4953 = vmatpush.msra.mxu0 0.0
    %4954 = vmatpush.msra.mxu0 0.0
    %4955 = vmatpush.msra.mxu0 0.0
    %4956 = vmatpush.msra.mxu0 0.0
    %4957 = vmatpush.msra.mxu0 0.0
    %4958 = vmatpush.msra.mxu0 0.0
    %4959 = vmatpush.msra.mxu0 0.0
    %4960 = vmatpush.msra.mxu0 0.0
    %4961 = vmatpush.msra.mxu0 0.0
    %4962 = vmatpush.msra.mxu0 0.0
    %4963 = vmatpush.msra.mxu0 0.0
    %4964 = vmatpush.msra.mxu0 %v4741
    %4965 = vmatmul.f32.gmra.mxu0 %v4947
    %v4966 = vpop.f32.mrf.mxu0
    %v4967 = vadd.f32 0.0, %v4966
    %4968 = vdwg.mxu0
    %v4970 = vsel %vm575, %v4899, 0
    %4972 = vmatpush.msra.mxu0 0.0
    %4973 = vmatpush.msra.mxu0 0.0
    %4974 = vmatpush.msra.mxu0 0.0
    %4975 = vmatpush.msra.mxu0 0.0
    %4976 = vmatpush.msra.mxu0 0.0
    %4977 = vmatpush.msra.mxu0 0.0
    %4978 = vmatpush.msra.mxu0 0.0
    %4979 = vmatpush.msra.mxu0 0.0
    %4980 = vmatpush.msra.mxu0 0.0
    %4981 = vmatpush.msra.mxu0 0.0
    %4982 = vmatpush.msra.mxu0 0.0
    %4983 = vmatpush.msra.mxu0 0.0
    %4984 = vmatpush.msra.mxu0 0.0
    %4985 = vmatpush.msra.mxu0 0.0
    %4986 = vmatpush.msra.mxu0 0.0
    %4987 = vmatpush.msra.mxu0 %v4743
    %4988 = vmatmul.f32.gmra.mxu0 %v4970
    %v4989 = vpop.f32.mrf.mxu0
    %v4990 = vadd.f32 0.0, %v4989
    %4991 = vdwg.mxu0
    %v4992 = vrot.slane %v4967, 4
    %v4993 = vsel %vm225, %v4992, %v4921
    %v4994 = vrot.slane %v4921, 4
    %v4995 = vsel %vm225, %v4967, %v4994
    %v4997 = vunpack.c.l.s4 1983009808
    %v4998 = vunpack.c.0.s8 %v4997
    %v4999 = vperm.slane %v4993, %v4998
    %v5001 = vunpack.c.l.s4 1983009808
    %v5002 = vunpack.c.0.s8 %v5001
    %v5003 = vperm.slane %v4995, %v5002
    %v5004 = vrot.slane %v4990, 4
    %v5005 = vsel %vm225, %v5004, %v4944
    %v5006 = vrot.slane %v4944, 4
    %v5007 = vsel %vm225, %v4990, %v5006
    %v5009 = vunpack.c.l.s4 1983009808
    %v5010 = vunpack.c.0.s8 %v5009
    %v5011 = vperm.slane %v5005, %v5010
    %v5013 = vunpack.c.l.s4 1983009808
    %v5014 = vunpack.c.0.s8 %v5013
    %v5015 = vperm.slane %v5007, %v5014
    %v5016 = vrot.slane %v5011, 4
    %v5017 = vsel %vm225, %v5016, %v4999
    %v5018 = vrot.slane %v4999, 4
    %v5019 = vsel %vm225, %v5011, %v5018
    %v5021 = vunpack.c.l.s4 1934713408
    %v5022 = vunpack.c.0.s8 %v5021
    %v5023 = vperm.slane %v5017, %v5022
    %v5025 = vunpack.c.l.s4 1934713408
    %v5026 = vunpack.c.0.s8 %v5025
    %v5027 = vperm.slane %v5019, %v5026
    %v5028 = vrot.slane %v5015, 4
    %v5029 = vsel %vm225, %v5028, %v5003
    %v5030 = vrot.slane %v5003, 4
    %v5031 = vsel %vm225, %v5015, %v5030
    %v5033 = vunpack.c.l.s4 1934713408
    %v5034 = vunpack.c.0.s8 %v5033
    %v5035 = vperm.slane %v5029, %v5034
    %v5037 = vunpack.c.l.s4 1934713408
    %v5038 = vunpack.c.0.s8 %v5037
    %v5039 = vperm.slane %v5031, %v5038
    %v5040 = vrot.slane %v5023, 4
    %v5041 = vsel %vm225, 0.0, %v5040
    %v5042 = vrot.slane %v5027, 4
    %v5043 = vsel %vm225, 0.0, %v5042
    %v5044 = vrot.slane %v5035, 4
    %v5045 = vsel %vm225, 0.0, %v5044
    %v5046 = vrot.slane %v5039, 4
    %v5047 = vsel %vm225, 0.0, %v5046
    %v5048 = vsel %vm225, %v5042, %v5023
    %v5050 = vunpack.c.l.s4 1983009808
    %v5051 = vunpack.c.0.s8 %v5050
    %v5052 = vperm.slane %v5048, %v5051
    %v5053 = vrot.slane %v5043, 4
    %v5054 = vsel %vm225, %v5053, %v5041
    %v5056 = vunpack.c.l.s4 1983009808
    %v5057 = vunpack.c.0.s8 %v5056
    %v5058 = vperm.slane %v5054, %v5057
    %v5059 = vsel %vm225, %v5046, %v5035
    %v5061 = vunpack.c.l.s4 1983009808
    %v5062 = vunpack.c.0.s8 %v5061
    %v5063 = vperm.slane %v5059, %v5062
    %v5064 = vrot.slane %v5047, 4
    %v5065 = vsel %vm225, %v5064, %v5045
    %v5067 = vunpack.c.l.s4 1983009808
    %v5068 = vunpack.c.0.s8 %v5067
    %v5069 = vperm.slane %v5065, %v5068
    %v5070 = vrot.slane %v5058, 4
    %v5071 = vsel %vm225, %v5070, %v5052
    %v5072 = vrot.slane %v5052, 4
    %v5073 = vsel %vm225, %v5058, %v5072
    %v5075 = vunpack.c.l.s4 1934713408
    %v5076 = vunpack.c.0.s8 %v5075
    %v5077 = vperm.slane %v5071, %v5076
    %v5079 = vunpack.c.l.s4 1934713408
    %v5080 = vunpack.c.0.s8 %v5079
    %v5081 = vperm.slane %v5073, %v5080
    %v5082 = vrot.slane %v5069, 4
    %v5083 = vsel %vm225, %v5082, %v5063
    %v5084 = vrot.slane %v5063, 4
    %v5085 = vsel %vm225, %v5069, %v5084
    %v5087 = vunpack.c.l.s4 1934713408
    %v5088 = vunpack.c.0.s8 %v5087
    %v5089 = vperm.slane %v5083, %v5088
    %v5091 = vunpack.c.l.s4 1934713408
    %v5092 = vunpack.c.0.s8 %v5091
    %v5093 = vperm.slane %v5085, %v5092
    %v5094 = vrot.slane %v5089, 4
    %v5095 = vsel %vm225, %v5094, %v5077
    %v5096 = vrot.slane %v5077, 4
    %v5097 = vsel %vm225, %v5089, %v5096
    %v5098 = vrot.slane %v5093, 4
    %v5099 = vsel %vm225, %v5098, %v5081
    %v5100 = vrot.slane %v5081, 4
    %v5101 = vsel %vm225, %v5093, %v5100
    %5103 = vrot.lane.b32.xlu0 %v5097, 8
    %v5104 = vpop.permute.xlu0 %5103
    %5107 = vrot.lane.b32.xlu0 %v5099, 16
    %v5108 = vpop.permute.xlu0 %5107
    %5111 = vrot.lane.b32.xlu0 %v5101, 24
    %v5112 = vpop.permute.xlu0 %5111
    %v5114 = vsel %vm575, %v5095, %v5104
    %v5115 = vsel %vm949, %v5114, %v5108
    %v5116 = vsel %vm951, %v5115, %v5112
    %s5117 = scalar_lea.vmem [#allocation2], 352
    %v5118 = vld [vmem:[%s5117] sm:$0xff]
    %v5119 = vld [vmem:[%s5117 + $0x8] sm:$0xff]
    %v5120 = vld [vmem:[%s5117 + $0x10] sm:$0xff]
    %v5121 = vld [vmem:[%s5117 + $0x18] sm:$0xff]
    %v5123 = vsel %vm64, %v4383, 0
    %v5126 = vsel %vm64, %v5116, 0
    %5128 = vmatpush.msra.mxu0 0.0
    %5129 = vmatpush.msra.mxu0 0.0
    %5130 = vmatpush.msra.mxu0 0.0
    %5131 = vmatpush.msra.mxu0 0.0
    %5132 = vmatpush.msra.mxu0 0.0
    %5133 = vmatpush.msra.mxu0 0.0
    %5134 = vmatpush.msra.mxu0 0.0
    %5135 = vmatpush.msra.mxu0 0.0
    %5136 = vmatpush.msra.mxu0 0.0
    %5137 = vmatpush.msra.mxu0 0.0
    %5138 = vmatpush.msra.mxu0 0.0
    %5139 = vmatpush.msra.mxu0 0.0
    %5140 = vmatpush.msra.mxu0 %v5121
    %5141 = vmatpush.msra.mxu0 %v5120
    %5142 = vmatpush.msra.mxu0 %v5119
    %5143 = vmatpush.msra.mxu0 %v5118
    %5144 = vmatmul.f32.gmra.mxu0 %v5123
    %v5145 = vpop.f32.mrf.mxu0
    %v5146 = vadd.f32 0.0, %v5145
    %5147 = vmatmul.f32.gmra.mxu0 %v5126
    %v5148 = vpop.f32.mrf.mxu0
    %v5149 = vadd.f32 0.0, %v5148
    %5150 = vdwg.mxu0
    %v5151 = vadd.f32 %v3501, %v5146
    %v5152 = vadd.f32 %v3502, %v5149
    %v5153 = vperm.slane %v3504, 5
    %v5154 = vadd.f32 %v5151, %v5153
    %v5155 = vadd.f32 %v5152, %v5153
    %v5156 = vsel %vm64, %v5154, 0.0
    %5157 = vadd.xlane.f32.xlu0 %v5156
    %v5158 = vpop.xlane.xlu0 %5157
    %v5159 = vsel %vm64, %v5155, 0.0
    %5160 = vadd.xlane.f32.xlu0 %v5159
    %v5161 = vpop.xlane.xlu0 %5160
    %v5162 = vmul.f32 %v5158, %v77
    %v5163 = vmul.f32 %v5161, %v77
    %v5164 = vsub.f32 %v5154, %v5162
    %v5165 = vsub.f32 %v5155, %v5163
    %v5166 = vmul.f32 %v5164, %v5164
    %v5167 = vmul.f32 %v5165, %v5165
    %v5168 = vsel %vm64, %v5166, 0.0
    %5169 = vadd.xlane.f32.xlu0 %v5168
    %v5170 = vpop.xlane.xlu0 %5169
    %v5171 = vsel %vm64, %v5167, 0.0
    %5172 = vadd.xlane.f32.xlu0 %v5171
    %v5173 = vpop.xlane.xlu0 %5172
    %v5174 = vmul.f32 %v5170, %v77
    %v5175 = vmul.f32 %v5173, %v77
    %v5176 = vadd.f32 %v5174, 1e-05
    %v5177 = vadd.f32 %v5175, 1e-05
    %v5178 = vrsqrt.pop %v5176
    %v5179 = vmul.f32 %v5178, %v5176
    %v5180 = vmul.f32 %v5179, %v5178
    %v5181 = vmul.f32 0.5, %v5180
    %v5182 = vsub.f32 1.5, %v5181
    %v5183 = vmul.f32 %v5178, %v5182
    %vm5184 = vweird.f32 %v5176
    %vm5185 = vweird.f32 %v5178
    %vm5186 = vmor %vm5184, %vm5185
    %v5187 = vsel %vm5186, %v5178, %v5183
    %v5188 = vrsqrt.pop %v5177
    %v5189 = vmul.f32 %v5188, %v5177
    %v5190 = vmul.f32 %v5189, %v5188
    %v5191 = vmul.f32 0.5, %v5190
    %v5192 = vsub.f32 1.5, %v5191
    %v5193 = vmul.f32 %v5188, %v5192
    %vm5194 = vweird.f32 %v5177
    %vm5195 = vweird.f32 %v5188
    %vm5196 = vmor %vm5194, %vm5195
    %v5197 = vsel %vm5196, %v5188, %v5193
    %v5198 = vmul.f32 %v5164, %v5187
    %v5199 = vmul.f32 %v5165, %v5197
    %v5200 = vperm.slane %v3504, 6
    %v5201 = vmul.f32 %v5198, %v5200
    %v5202 = vmul.f32 %v5199, %v5200
    %v5203 = vperm.slane %v3504, 7
    %v5204 = vadd.f32 %v5201, %v5203
    %v5205 = vadd.f32 %v5202, %v5203
    %s5206 = scalar_lea.vmem [#allocation2], 384
    %v5207 = vld [vmem:[%s5206] sm:$0xff]
    %v5208 = vld [vmem:[%s5206 + $0x8] sm:$0xff]
    %v5209 = vld [vmem:[%s5206 + $0x10] sm:$0xff]
    %v5210 = vld [vmem:[%s5206 + $0x18] sm:$0xff]
    %v5211 = vperm.slane %v3505, 0
    %v5213 = vsel %vm64, %v5204, 0
    %v5216 = vsel %vm64, %v5205, 0
    %5218 = vmatpush.msra.mxu0 0.0
    %5219 = vmatpush.msra.mxu0 0.0
    %5220 = vmatpush.msra.mxu0 0.0
    %5221 = vmatpush.msra.mxu0 0.0
    %5222 = vmatpush.msra.mxu0 0.0
    %5223 = vmatpush.msra.mxu0 0.0
    %5224 = vmatpush.msra.mxu0 0.0
    %5225 = vmatpush.msra.mxu0 0.0
    %5226 = vmatpush.msra.mxu0 0.0
    %5227 = vmatpush.msra.mxu0 0.0
    %5228 = vmatpush.msra.mxu0 0.0
    %5229 = vmatpush.msra.mxu0 0.0
    %5230 = vmatpush.msra.mxu0 %v5210
    %5231 = vmatpush.msra.mxu0 %v5209
    %5232 = vmatpush.msra.mxu0 %v5208
    %5233 = vmatpush.msra.mxu0 %v5207
    %5234 = vmatmul.f32.gmra.mxu0 %v5213
    %v5235 = vpop.f32.mrf.mxu0
    %v5236 = vadd.f32 %v5211, %v5235
    %5237 = vmatmul.f32.gmra.mxu0 %v5216
    %v5238 = vpop.f32.mrf.mxu0
    %v5239 = vadd.f32 %v5211, %v5238
    %5240 = vdwg.mxu0
    %s5241 = scalar_lea.vmem [#allocation2], 416
    %v5242 = vld [vmem:[%s5241] sm:$0xff]
    %v5243 = vld [vmem:[%s5241 + $0x8] sm:$0xff]
    %v5244 = vld [vmem:[%s5241 + $0x10] sm:$0xff]
    %v5245 = vld [vmem:[%s5241 + $0x18] sm:$0xff]
    %v5246 = vperm.slane %v3505, 1
    %5247 = vmatpush.msra.mxu0 0.0
    %5248 = vmatpush.msra.mxu0 0.0
    %5249 = vmatpush.msra.mxu0 0.0
    %5250 = vmatpush.msra.mxu0 0.0
    %5251 = vmatpush.msra.mxu0 0.0
    %5252 = vmatpush.msra.mxu0 0.0
    %5253 = vmatpush.msra.mxu0 0.0
    %5254 = vmatpush.msra.mxu0 0.0
    %5255 = vmatpush.msra.mxu0 0.0
    %5256 = vmatpush.msra.mxu0 0.0
    %5257 = vmatpush.msra.mxu0 0.0
    %5258 = vmatpush.msra.mxu0 0.0
    %5259 = vmatpush.msra.mxu0 %v5245
    %5260 = vmatpush.msra.mxu0 %v5244
    %5261 = vmatpush.msra.mxu0 %v5243
    %5262 = vmatpush.msra.mxu0 %v5242
    %5263 = vmatmul.f32.gmra.mxu0 %v1817
    %v5264 = vpop.f32.mrf.mxu0
    %v5265 = vadd.f32 %v5246, %v5264
    %5266 = vmatmul.f32.gmra.mxu0 %v1820
    %v5267 = vpop.f32.mrf.mxu0
    %v5268 = vadd.f32 %v5246, %v5267
    %5269 = vdwg.mxu0
    %s5270 = scalar_lea.vmem [#allocation2], 448
    %v5271 = vld [vmem:[%s5270] sm:$0xff]
    %v5272 = vld [vmem:[%s5270 + $0x8] sm:$0xff]
    %v5273 = vld [vmem:[%s5270 + $0x10] sm:$0xff]
    %v5274 = vld [vmem:[%s5270 + $0x18] sm:$0xff]
    %v5275 = vperm.slane %v3505, 2
    %5276 = vmatpush.msra.mxu0 0.0
    %5277 = vmatpush.msra.mxu0 0.0
    %5278 = vmatpush.msra.mxu0 0.0
    %5279 = vmatpush.msra.mxu0 0.0
    %5280 = vmatpush.msra.mxu0 0.0
    %5281 = vmatpush.msra.mxu0 0.0
    %5282 = vmatpush.msra.mxu0 0.0
    %5283 = vmatpush.msra.mxu0 0.0
    %5284 = vmatpush.msra.mxu0 0.0
    %5285 = vmatpush.msra.mxu0 0.0
    %5286 = vmatpush.msra.mxu0 0.0
    %5287 = vmatpush.msra.mxu0 0.0
    %5288 = vmatpush.msra.mxu0 %v5274
    %5289 = vmatpush.msra.mxu0 %v5273
    %5290 = vmatpush.msra.mxu0 %v5272
    %5291 = vmatpush.msra.mxu0 %v5271
    %5292 = vmatmul.f32.gmra.mxu0 %v1817
    %v5293 = vpop.f32.mrf.mxu0
    %v5294 = vadd.f32 %v5275, %v5293
    %5295 = vmatmul.f32.gmra.mxu0 %v1820
    %v5296 = vpop.f32.mrf.mxu0
    %v5297 = vadd.f32 %v5275, %v5296
    %5298 = vdwg.mxu0
    %5300 = vrot.lane.b32.xlu0 %v5236, 120
    %v5301 = vpop.permute.xlu0 %5300
    %5303 = vrot.lane.b32.xlu0 %v5236, 112
    %v5304 = vpop.permute.xlu0 %5303
    %5306 = vrot.lane.b32.xlu0 %v5236, 104
    %v5307 = vpop.permute.xlu0 %5306
    %v5309 = vrot.slane %v5304, 4
    %v5310 = vsel %vm225, %v5309, %v5236
    %v5311 = vrot.slane %v5236, 4
    %v5312 = vsel %vm225, %v5304, %v5311
    %v5314 = vunpack.c.l.s4 1983009808
    %v5315 = vunpack.c.0.s8 %v5314
    %v5316 = vperm.slane %v5310, %v5315
    %v5318 = vunpack.c.l.s4 1983009808
    %v5319 = vunpack.c.0.s8 %v5318
    %v5320 = vperm.slane %v5312, %v5319
    %v5321 = vrot.slane %v5307, 4
    %v5322 = vsel %vm225, %v5321, %v5301
    %v5323 = vrot.slane %v5301, 4
    %v5324 = vsel %vm225, %v5307, %v5323
    %v5326 = vunpack.c.l.s4 1983009808
    %v5327 = vunpack.c.0.s8 %v5326
    %v5328 = vperm.slane %v5322, %v5327
    %v5330 = vunpack.c.l.s4 1983009808
    %v5331 = vunpack.c.0.s8 %v5330
    %v5332 = vperm.slane %v5324, %v5331
    %v5333 = vrot.slane %v5328, 4
    %v5334 = vsel %vm225, %v5333, %v5316
    %v5335 = vrot.slane %v5316, 4
    %v5336 = vsel %vm225, %v5328, %v5335
    %v5338 = vunpack.c.l.s4 1934713408
    %v5339 = vunpack.c.0.s8 %v5338
    %v5340 = vperm.slane %v5334, %v5339
    %v5342 = vunpack.c.l.s4 1934713408
    %v5343 = vunpack.c.0.s8 %v5342
    %v5344 = vperm.slane %v5336, %v5343
    %v5345 = vrot.slane %v5332, 4
    %v5346 = vsel %vm225, %v5345, %v5320
    %v5347 = vrot.slane %v5320, 4
    %v5348 = vsel %vm225, %v5332, %v5347
    %v5350 = vunpack.c.l.s4 1934713408
    %v5351 = vunpack.c.0.s8 %v5350
    %v5352 = vperm.slane %v5346, %v5351
    %v5354 = vunpack.c.l.s4 1934713408
    %v5355 = vunpack.c.0.s8 %v5354
    %v5356 = vperm.slane %v5348, %v5355
    %v5357 = vrot.slane %v5340, 4
    %v5358 = vsel %vm225, 0.0, %v5357
    %v5359 = vrot.slane %v5344, 4
    %v5360 = vsel %vm225, 0.0, %v5359
    %v5361 = vrot.slane %v5352, 4
    %v5362 = vsel %vm225, 0.0, %v5361
    %v5363 = vrot.slane %v5356, 4
    %v5364 = vsel %vm225, 0.0, %v5363
    %v5365 = vsel %vm225, %v5359, %v5340
    %v5367 = vunpack.c.l.s4 1983009808
    %v5368 = vunpack.c.0.s8 %v5367
    %v5369 = vperm.slane %v5365, %v5368
    %v5370 = vrot.slane %v5360, 4
    %v5371 = vsel %vm225, %v5370, %v5358
    %v5373 = vunpack.c.l.s4 1983009808
    %v5374 = vunpack.c.0.s8 %v5373
    %v5375 = vperm.slane %v5371, %v5374
    %v5376 = vsel %vm225, %v5363, %v5352
    %v5378 = vunpack.c.l.s4 1983009808
    %v5379 = vunpack.c.0.s8 %v5378
    %v5380 = vperm.slane %v5376, %v5379
    %v5381 = vrot.slane %v5364, 4
    %v5382 = vsel %vm225, %v5381, %v5362
    %v5384 = vunpack.c.l.s4 1983009808
    %v5385 = vunpack.c.0.s8 %v5384
    %v5386 = vperm.slane %v5382, %v5385
    %v5387 = vrot.slane %v5375, 4
    %v5388 = vsel %vm225, %v5387, %v5369
    %v5389 = vrot.slane %v5369, 4
    %v5390 = vsel %vm225, %v5375, %v5389
    %v5392 = vunpack.c.l.s4 1934713408
    %v5393 = vunpack.c.0.s8 %v5392
    %v5394 = vperm.slane %v5388, %v5393
    %v5396 = vunpack.c.l.s4 1934713408
    %v5397 = vunpack.c.0.s8 %v5396
    %v5398 = vperm.slane %v5390, %v5397
    %v5399 = vrot.slane %v5386, 4
    %v5400 = vsel %vm225, %v5399, %v5380
    %v5401 = vrot.slane %v5380, 4
    %v5402 = vsel %vm225, %v5386, %v5401
    %v5404 = vunpack.c.l.s4 1934713408
    %v5405 = vunpack.c.0.s8 %v5404
    %v5406 = vperm.slane %v5400, %v5405
    %v5408 = vunpack.c.l.s4 1934713408
    %v5409 = vunpack.c.0.s8 %v5408
    %v5410 = vperm.slane %v5402, %v5409
    %v5411 = vrot.slane %v5406, 4
    %v5412 = vsel %vm225, %v5411, %v5394
    %v5413 = vrot.slane %v5394, 4
    %v5414 = vsel %vm225, %v5406, %v5413
    %v5415 = vrot.slane %v5410, 4
    %v5416 = vsel %vm225, %v5415, %v5398
    %v5417 = vrot.slane %v5398, 4
    %v5418 = vsel %vm225, %v5410, %v5417
    %5420 = vrot.lane.b32.xlu0 %v5265, 120
    %v5421 = vpop.permute.xlu0 %5420
    %5423 = vrot.lane.b32.xlu0 %v5265, 112
    %v5424 = vpop.permute.xlu0 %5423
    %5426 = vrot.lane.b32.xlu0 %v5265, 104
    %v5427 = vpop.permute.xlu0 %5426
    %v5429 = vrot.slane %v5424, 4
    %v5430 = vsel %vm225, %v5429, %v5265
    %v5431 = vrot.slane %v5265, 4
    %v5432 = vsel %vm225, %v5424, %v5431
    %v5434 = vunpack.c.l.s4 1983009808
    %v5435 = vunpack.c.0.s8 %v5434
    %v5436 = vperm.slane %v5430, %v5435
    %v5438 = vunpack.c.l.s4 1983009808
    %v5439 = vunpack.c.0.s8 %v5438
    %v5440 = vperm.slane %v5432, %v5439
    %v5441 = vrot.slane %v5427, 4
    %v5442 = vsel %vm225, %v5441, %v5421
    %v5443 = vrot.slane %v5421, 4
    %v5444 = vsel %vm225, %v5427, %v5443
    %v5446 = vunpack.c.l.s4 1983009808
    %v5447 = vunpack.c.0.s8 %v5446
    %v5448 = vperm.slane %v5442, %v5447
    %v5450 = vunpack.c.l.s4 1983009808
    %v5451 = vunpack.c.0.s8 %v5450
    %v5452 = vperm.slane %v5444, %v5451
    %v5453 = vrot.slane %v5448, 4
    %v5454 = vsel %vm225, %v5453, %v5436
    %v5455 = vrot.slane %v5436, 4
    %v5456 = vsel %vm225, %v5448, %v5455
    %v5458 = vunpack.c.l.s4 1934713408
    %v5459 = vunpack.c.0.s8 %v5458
    %v5460 = vperm.slane %v5454, %v5459
    %v5462 = vunpack.c.l.s4 1934713408
    %v5463 = vunpack.c.0.s8 %v5462
    %v5464 = vperm.slane %v5456, %v5463
    %v5465 = vrot.slane %v5452, 4
    %v5466 = vsel %vm225, %v5465, %v5440
    %v5467 = vrot.slane %v5440, 4
    %v5468 = vsel %vm225, %v5452, %v5467
    %v5470 = vunpack.c.l.s4 1934713408
    %v5471 = vunpack.c.0.s8 %v5470
    %v5472 = vperm.slane %v5466, %v5471
    %v5474 = vunpack.c.l.s4 1934713408
    %v5475 = vunpack.c.0.s8 %v5474
    %v5476 = vperm.slane %v5468, %v5475
    %v5477 = vrot.slane %v5460, 4
    %v5478 = vsel %vm225, 0.0, %v5477
    %v5479 = vrot.slane %v5464, 4
    %v5480 = vsel %vm225, 0.0, %v5479
    %v5481 = vrot.slane %v5472, 4
    %v5482 = vsel %vm225, 0.0, %v5481
    %v5483 = vrot.slane %v5476, 4
    %v5484 = vsel %vm225, 0.0, %v5483
    %v5485 = vsel %vm225, %v5479, %v5460
    %v5487 = vunpack.c.l.s4 1983009808
    %v5488 = vunpack.c.0.s8 %v5487
    %v5489 = vperm.slane %v5485, %v5488
    %v5490 = vrot.slane %v5480, 4
    %v5491 = vsel %vm225, %v5490, %v5478
    %v5493 = vunpack.c.l.s4 1983009808
    %v5494 = vunpack.c.0.s8 %v5493
    %v5495 = vperm.slane %v5491, %v5494
    %v5496 = vsel %vm225, %v5483, %v5472
    %v5498 = vunpack.c.l.s4 1983009808
    %v5499 = vunpack.c.0.s8 %v5498
    %v5500 = vperm.slane %v5496, %v5499
    %v5501 = vrot.slane %v5484, 4
    %v5502 = vsel %vm225, %v5501, %v5482
    %v5504 = vunpack.c.l.s4 1983009808
    %v5505 = vunpack.c.0.s8 %v5504
    %v5506 = vperm.slane %v5502, %v5505
    %v5507 = vrot.slane %v5495, 4
    %v5508 = vsel %vm225, %v5507, %v5489
    %v5509 = vrot.slane %v5489, 4
    %v5510 = vsel %vm225, %v5495, %v5509
    %v5512 = vunpack.c.l.s4 1934713408
    %v5513 = vunpack.c.0.s8 %v5512
    %v5514 = vperm.slane %v5508, %v5513
    %v5516 = vunpack.c.l.s4 1934713408
    %v5517 = vunpack.c.0.s8 %v5516
    %v5518 = vperm.slane %v5510, %v5517
    %v5519 = vrot.slane %v5506, 4
    %v5520 = vsel %vm225, %v5519, %v5500
    %v5521 = vrot.slane %v5500, 4
    %v5522 = vsel %vm225, %v5506, %v5521
    %v5524 = vunpack.c.l.s4 1934713408
    %v5525 = vunpack.c.0.s8 %v5524
    %v5526 = vperm.slane %v5520, %v5525
    %v5528 = vunpack.c.l.s4 1934713408
    %v5529 = vunpack.c.0.s8 %v5528
    %v5530 = vperm.slane %v5522, %v5529
    %v5531 = vrot.slane %v5526, 4
    %v5532 = vsel %vm225, %v5531, %v5514
    %v5533 = vrot.slane %v5514, 4
    %v5534 = vsel %vm225, %v5526, %v5533
    %v5535 = vrot.slane %v5530, 4
    %v5536 = vsel %vm225, %v5535, %v5518
    %v5537 = vrot.slane %v5518, 4
    %v5538 = vsel %vm225, %v5530, %v5537
    %5540 = vrot.lane.b32.xlu0 %v5294, 120
    %v5541 = vpop.permute.xlu0 %5540
    %5543 = vrot.lane.b32.xlu0 %v5294, 112
    %v5544 = vpop.permute.xlu0 %5543
    %5546 = vrot.lane.b32.xlu0 %v5294, 104
    %v5547 = vpop.permute.xlu0 %5546
    %v5549 = vrot.slane %v5544, 4
    %v5550 = vsel %vm225, %v5549, %v5294
    %v5551 = vrot.slane %v5294, 4
    %v5552 = vsel %vm225, %v5544, %v5551
    %v5554 = vunpack.c.l.s4 1983009808
    %v5555 = vunpack.c.0.s8 %v5554
    %v5556 = vperm.slane %v5550, %v5555
    %v5558 = vunpack.c.l.s4 1983009808
    %v5559 = vunpack.c.0.s8 %v5558
    %v5560 = vperm.slane %v5552, %v5559
    %v5561 = vrot.slane %v5547, 4
    %v5562 = vsel %vm225, %v5561, %v5541
    %v5563 = vrot.slane %v5541, 4
    %v5564 = vsel %vm225, %v5547, %v5563
    %v5566 = vunpack.c.l.s4 1983009808
    %v5567 = vunpack.c.0.s8 %v5566
    %v5568 = vperm.slane %v5562, %v5567
    %v5570 = vunpack.c.l.s4 1983009808
    %v5571 = vunpack.c.0.s8 %v5570
    %v5572 = vperm.slane %v5564, %v5571
    %v5573 = vrot.slane %v5568, 4
    %v5574 = vsel %vm225, %v5573, %v5556
    %v5575 = vrot.slane %v5556, 4
    %v5576 = vsel %vm225, %v5568, %v5575
    %v5578 = vunpack.c.l.s4 1934713408
    %v5579 = vunpack.c.0.s8 %v5578
    %v5580 = vperm.slane %v5574, %v5579
    %v5582 = vunpack.c.l.s4 1934713408
    %v5583 = vunpack.c.0.s8 %v5582
    %v5584 = vperm.slane %v5576, %v5583
    %v5585 = vrot.slane %v5572, 4
    %v5586 = vsel %vm225, %v5585, %v5560
    %v5587 = vrot.slane %v5560, 4
    %v5588 = vsel %vm225, %v5572, %v5587
    %v5590 = vunpack.c.l.s4 1934713408
    %v5591 = vunpack.c.0.s8 %v5590
    %v5592 = vperm.slane %v5586, %v5591
    %v5594 = vunpack.c.l.s4 1934713408
    %v5595 = vunpack.c.0.s8 %v5594
    %v5596 = vperm.slane %v5588, %v5595
    %v5597 = vrot.slane %v5580, 4
    %v5598 = vsel %vm225, 0.0, %v5597
    %v5599 = vrot.slane %v5584, 4
    %v5600 = vsel %vm225, 0.0, %v5599
    %v5601 = vrot.slane %v5592, 4
    %v5602 = vsel %vm225, 0.0, %v5601
    %v5603 = vrot.slane %v5596, 4
    %v5604 = vsel %vm225, 0.0, %v5603
    %v5605 = vsel %vm225, %v5599, %v5580
    %v5607 = vunpack.c.l.s4 1983009808
    %v5608 = vunpack.c.0.s8 %v5607
    %v5609 = vperm.slane %v5605, %v5608
    %v5610 = vrot.slane %v5600, 4
    %v5611 = vsel %vm225, %v5610, %v5598
    %v5613 = vunpack.c.l.s4 1983009808
    %v5614 = vunpack.c.0.s8 %v5613
    %v5615 = vperm.slane %v5611, %v5614
    %v5616 = vsel %vm225, %v5603, %v5592
    %v5618 = vunpack.c.l.s4 1983009808
    %v5619 = vunpack.c.0.s8 %v5618
    %v5620 = vperm.slane %v5616, %v5619
    %v5621 = vrot.slane %v5604, 4
    %v5622 = vsel %vm225, %v5621, %v5602
    %v5624 = vunpack.c.l.s4 1983009808
    %v5625 = vunpack.c.0.s8 %v5624
    %v5626 = vperm.slane %v5622, %v5625
    %v5627 = vrot.slane %v5615, 4
    %v5628 = vsel %vm225, %v5627, %v5609
    %v5629 = vrot.slane %v5609, 4
    %v5630 = vsel %vm225, %v5615, %v5629
    %v5632 = vunpack.c.l.s4 1934713408
    %v5633 = vunpack.c.0.s8 %v5632
    %v5634 = vperm.slane %v5628, %v5633
    %v5636 = vunpack.c.l.s4 1934713408
    %v5637 = vunpack.c.0.s8 %v5636
    %v5638 = vperm.slane %v5630, %v5637
    %v5639 = vrot.slane %v5626, 4
    %v5640 = vsel %vm225, %v5639, %v5620
    %v5641 = vrot.slane %v5620, 4
    %v5642 = vsel %vm225, %v5626, %v5641
    %v5644 = vunpack.c.l.s4 1934713408
    %v5645 = vunpack.c.0.s8 %v5644
    %v5646 = vperm.slane %v5640, %v5645
    %v5648 = vunpack.c.l.s4 1934713408
    %v5649 = vunpack.c.0.s8 %v5648
    %v5650 = vperm.slane %v5642, %v5649
    %v5651 = vrot.slane %v5646, 4
    %v5652 = vsel %vm225, %v5651, %v5634
    %v5653 = vrot.slane %v5634, 4
    %v5654 = vsel %vm225, %v5646, %v5653
    %v5655 = vrot.slane %v5650, 4
    %v5656 = vsel %vm225, %v5655, %v5638
    %v5657 = vrot.slane %v5638, 4
    %v5658 = vsel %vm225, %v5650, %v5657
    %v5660 = vsel %vm575, %v5412, 0
    %v5663 = vsel %vm575, %v5532, 0
    %5665 = vmatpush.xpose.msra.mxu0 0.0
    %5666 = vmatpush.xpose.msra.mxu0 0.0
    %5667 = vmatpush.xpose.msra.mxu0 0.0
    %5668 = vmatpush.xpose.msra.mxu0 0.0
    %5669 = vmatpush.xpose.msra.mxu0 0.0
    %5670 = vmatpush.xpose.msra.mxu0 0.0
    %5671 = vmatpush.xpose.msra.mxu0 0.0
    %5672 = vmatpush.xpose.msra.mxu0 0.0
    %5673 = vmatpush.xpose.msra.mxu0 0.0
    %5674 = vmatpush.xpose.msra.mxu0 0.0
    %5675 = vmatpush.xpose.msra.mxu0 0.0
    %5676 = vmatpush.xpose.msra.mxu0 0.0
    %5677 = vmatpush.xpose.msra.mxu0 0.0
    %5678 = vmatpush.xpose.msra.mxu0 0.0
    %5679 = vmatpush.xpose.msra.mxu0 0.0
    %5680 = vmatpush.xpose.msra.mxu0 %v5663
    %5681 = vmatmul.f32.gmra.mxu0 %v5660
    %v5682 = vpop.f32.mrf.mxu0
    %v5683 = vadd.f32 0.0, %v5682
    %5684 = vdwg.mxu0
    %v5686 = vsel %vm575, %v5414, 0
    %v5689 = vsel %vm575, %v5534, 0
    %5691 = vmatpush.xpose.msra.mxu0 0.0
    %5692 = vmatpush.xpose.msra.mxu0 0.0
    %5693 = vmatpush.xpose.msra.mxu0 0.0
    %5694 = vmatpush.xpose.msra.mxu0 0.0
    %5695 = vmatpush.xpose.msra.mxu0 0.0
    %5696 = vmatpush.xpose.msra.mxu0 0.0
    %5697 = vmatpush.xpose.msra.mxu0 0.0
    %5698 = vmatpush.xpose.msra.mxu0 0.0
    %5699 = vmatpush.xpose.msra.mxu0 0.0
    %5700 = vmatpush.xpose.msra.mxu0 0.0
    %5701 = vmatpush.xpose.msra.mxu0 0.0
    %5702 = vmatpush.xpose.msra.mxu0 0.0
    %5703 = vmatpush.xpose.msra.mxu0 0.0
    %5704 = vmatpush.xpose.msra.mxu0 0.0
    %5705 = vmatpush.xpose.msra.mxu0 0.0
    %5706 = vmatpush.xpose.msra.mxu0 %v5689
    %5707 = vmatmul.f32.gmra.mxu0 %v5686
    %v5708 = vpop.f32.mrf.mxu0
    %v5709 = vadd.f32 0.0, %v5708
    %5710 = vdwg.mxu0
    %v5712 = vsel %vm575, %v5416, 0
    %v5715 = vsel %vm575, %v5536, 0
    %5717 = vmatpush.xpose.msra.mxu0 0.0
    %5718 = vmatpush.xpose.msra.mxu0 0.0
    %5719 = vmatpush.xpose.msra.mxu0 0.0
    %5720 = vmatpush.xpose.msra.mxu0 0.0
    %5721 = vmatpush.xpose.msra.mxu0 0.0
    %5722 = vmatpush.xpose.msra.mxu0 0.0
    %5723 = vmatpush.xpose.msra.mxu0 0.0
    %5724 = vmatpush.xpose.msra.mxu0 0.0
    %5725 = vmatpush.xpose.msra.mxu0 0.0
    %5726 = vmatpush.xpose.msra.mxu0 0.0
    %5727 = vmatpush.xpose.msra.mxu0 0.0
    %5728 = vmatpush.xpose.msra.mxu0 0.0
    %5729 = vmatpush.xpose.msra.mxu0 0.0
    %5730 = vmatpush.xpose.msra.mxu0 0.0
    %5731 = vmatpush.xpose.msra.mxu0 0.0
    %5732 = vmatpush.xpose.msra.mxu0 %v5715
    %5733 = vmatmul.f32.gmra.mxu0 %v5712
    %v5734 = vpop.f32.mrf.mxu0
    %v5735 = vadd.f32 0.0, %v5734
    %5736 = vdwg.mxu0
    %v5738 = vsel %vm575, %v5418, 0
    %v5741 = vsel %vm575, %v5538, 0
    %5743 = vmatpush.xpose.msra.mxu0 0.0
    %5744 = vmatpush.xpose.msra.mxu0 0.0
    %5745 = vmatpush.xpose.msra.mxu0 0.0
    %5746 = vmatpush.xpose.msra.mxu0 0.0
    %5747 = vmatpush.xpose.msra.mxu0 0.0
    %5748 = vmatpush.xpose.msra.mxu0 0.0
    %5749 = vmatpush.xpose.msra.mxu0 0.0
    %5750 = vmatpush.xpose.msra.mxu0 0.0
    %5751 = vmatpush.xpose.msra.mxu0 0.0
    %5752 = vmatpush.xpose.msra.mxu0 0.0
    %5753 = vmatpush.xpose.msra.mxu0 0.0
    %5754 = vmatpush.xpose.msra.mxu0 0.0
    %5755 = vmatpush.xpose.msra.mxu0 0.0
    %5756 = vmatpush.xpose.msra.mxu0 0.0
    %5757 = vmatpush.xpose.msra.mxu0 0.0
    %5758 = vmatpush.xpose.msra.mxu0 %v5741
    %5759 = vmatmul.f32.gmra.mxu0 %v5738
    %v5760 = vpop.f32.mrf.mxu0
    %v5761 = vadd.f32 0.0, %v5760
    %5762 = vdwg.mxu0
    %v5763 = vmul.f32 %v5683, 0.35355338
    %v5764 = vmul.f32 %v5709, 0.35355338
    %v5765 = vmul.f32 %v5735, 0.35355338
    %v5766 = vmul.f32 %v5761, 0.35355338
    %v5767 = vsel %vm575, %v5763, -inf
    %5768 = vmax.xlane.f32.xlu0 %v5767
    %v5769 = vpop.xlane.xlu0 %5768
    %v5770 = vsel %vm575, %v5764, -inf
    %5771 = vmax.xlane.f32.xlu0 %v5770
    %v5772 = vpop.xlane.xlu0 %5771
    %v5773 = vsel %vm575, %v5765, -inf
    %5774 = vmax.xlane.f32.xlu0 %v5773
    %v5775 = vpop.xlane.xlu0 %5774
    %v5776 = vsel %vm575, %v5766, -inf
    %5777 = vmax.xlane.f32.xlu0 %v5776
    %v5778 = vpop.xlane.xlu0 %5777
    %v5779 = vsub.f32 %v5763, %v5769
    %v5780 = vsub.f32 %v5764, %v5772
    %v5781 = vsub.f32 %v5765, %v5775
    %v5782 = vsub.f32 %v5766, %v5778
    %v5783 = vmul.f32 %v5779, 1.442695
    %v5784 = vpow.pop %v5783
    %v5785 = vmul.f32 %v5780, 1.442695
    %v5786 = vpow.pop %v5785
    %v5787 = vmul.f32 %v5781, 1.442695
    %v5788 = vpow.pop %v5787
    %v5789 = vmul.f32 %v5782, 1.442695
    %v5790 = vpow.pop %v5789
    %v5791 = vsel %vm575, %v5784, 0.0
    %5792 = vadd.xlane.f32.xlu0 %v5791
    %v5793 = vpop.xlane.xlu0 %5792
    %v5794 = vsel %vm575, %v5786, 0.0
    %5795 = vadd.xlane.f32.xlu0 %v5794
    %v5796 = vpop.xlane.xlu0 %5795
    %v5797 = vsel %vm575, %v5788, 0.0
    %5798 = vadd.xlane.f32.xlu0 %v5797
    %v5799 = vpop.xlane.xlu0 %5798
    %v5800 = vsel %vm575, %v5790, 0.0
    %5801 = vadd.xlane.f32.xlu0 %v5800
    %v5802 = vpop.xlane.xlu0 %5801
    %v5803 = vrcp.pop %v5793
    %v5804 = vrcp.pop %v5796
    %v5805 = vrcp.pop %v5799
    %v5806 = vrcp.pop %v5802
    %v5807 = vmul.f32 %v5784, %v5803
    %v5808 = vmul.f32 %v5786, %v5804
    %v5809 = vmul.f32 %v5788, %v5805
    %v5810 = vmul.f32 %v5790, %v5806
    %v5812 = vsel %vm575, %v5807, 0
    %5814 = vmatpush.msra.mxu0 0.0
    %5815 = vmatpush.msra.mxu0 0.0
    %5816 = vmatpush.msra.mxu0 0.0
    %5817 = vmatpush.msra.mxu0 0.0
    %5818 = vmatpush.msra.mxu0 0.0
    %5819 = vmatpush.msra.mxu0 0.0
    %5820 = vmatpush.msra.mxu0 0.0
    %5821 = vmatpush.msra.mxu0 0.0
    %5822 = vmatpush.msra.mxu0 0.0
    %5823 = vmatpush.msra.mxu0 0.0
    %5824 = vmatpush.msra.mxu0 0.0
    %5825 = vmatpush.msra.mxu0 0.0
    %5826 = vmatpush.msra.mxu0 0.0
    %5827 = vmatpush.msra.mxu0 0.0
    %5828 = vmatpush.msra.mxu0 0.0
    %5829 = vmatpush.msra.mxu0 %v5652
    %5830 = vmatmul.f32.gmra.mxu0 %v5812
    %v5831 = vpop.f32.mrf.mxu0
    %v5832 = vadd.f32 0.0, %v5831
    %5833 = vdwg.mxu0
    %v5835 = vsel %vm575, %v5808, 0
    %5837 = vmatpush.msra.mxu0 0.0
    %5838 = vmatpush.msra.mxu0 0.0
    %5839 = vmatpush.msra.mxu0 0.0
    %5840 = vmatpush.msra.mxu0 0.0
    %5841 = vmatpush.msra.mxu0 0.0
    %5842 = vmatpush.msra.mxu0 0.0
    %5843 = vmatpush.msra.mxu0 0.0
    %5844 = vmatpush.msra.mxu0 0.0
    %5845 = vmatpush.msra.mxu0 0.0
    %5846 = vmatpush.msra.mxu0 0.0
    %5847 = vmatpush.msra.mxu0 0.0
    %5848 = vmatpush.msra.mxu0 0.0
    %5849 = vmatpush.msra.mxu0 0.0
    %5850 = vmatpush.msra.mxu0 0.0
    %5851 = vmatpush.msra.mxu0 0.0
    %5852 = vmatpush.msra.mxu0 %v5654
    %5853 = vmatmul.f32.gmra.mxu0 %v5835
    %v5854 = vpop.f32.mrf.mxu0
    %v5855 = vadd.f32 0.0, %v5854
    %5856 = vdwg.mxu0
    %v5858 = vsel %vm575, %v5809, 0
    %5860 = vmatpush.msra.mxu0 0.0
    %5861 = vmatpush.msra.mxu0 0.0
    %5862 = vmatpush.msra.mxu0 0.0
    %5863 = vmatpush.msra.mxu0 0.0
    %5864 = vmatpush.msra.mxu0 0.0
    %5865 = vmatpush.msra.mxu0 0.0
    %5866 = vmatpush.msra.mxu0 0.0
    %5867 = vmatpush.msra.mxu0 0.0
    %5868 = vmatpush.msra.mxu0 0.0
    %5869 = vmatpush.msra.mxu0 0.0
    %5870 = vmatpush.msra.mxu0 0.0
    %5871 = vmatpush.msra.mxu0 0.0
    %5872 = vmatpush.msra.mxu0 0.0
    %5873 = vmatpush.msra.mxu0 0.0
    %5874 = vmatpush.msra.mxu0 0.0
    %5875 = vmatpush.msra.mxu0 %v5656
    %5876 = vmatmul.f32.gmra.mxu0 %v5858
    %v5877 = vpop.f32.mrf.mxu0
    %v5878 = vadd.f32 0.0, %v5877
    %5879 = vdwg.mxu0
    %v5881 = vsel %vm575, %v5810, 0
    %5883 = vmatpush.msra.mxu0 0.0
    %5884 = vmatpush.msra.mxu0 0.0
    %5885 = vmatpush.msra.mxu0 0.0
    %5886 = vmatpush.msra.mxu0 0.0
    %5887 = vmatpush.msra.mxu0 0.0
    %5888 = vmatpush.msra.mxu0 0.0
    %5889 = vmatpush.msra.mxu0 0.0
    %5890 = vmatpush.msra.mxu0 0.0
    %5891 = vmatpush.msra.mxu0 0.0
    %5892 = vmatpush.msra.mxu0 0.0
    %5893 = vmatpush.msra.mxu0 0.0
    %5894 = vmatpush.msra.mxu0 0.0
    %5895 = vmatpush.msra.mxu0 0.0
    %5896 = vmatpush.msra.mxu0 0.0
    %5897 = vmatpush.msra.mxu0 0.0
    %5898 = vmatpush.msra.mxu0 %v5658
    %5899 = vmatmul.f32.gmra.mxu0 %v5881
    %v5900 = vpop.f32.mrf.mxu0
    %v5901 = vadd.f32 0.0, %v5900
    %5902 = vdwg.mxu0
    %v5903 = vrot.slane %v5878, 4
    %v5904 = vsel %vm225, %v5903, %v5832
    %v5905 = vrot.slane %v5832, 4
    %v5906 = vsel %vm225, %v5878, %v5905
    %v5908 = vunpack.c.l.s4 1983009808
    %v5909 = vunpack.c.0.s8 %v5908
    %v5910 = vperm.slane %v5904, %v5909
    %v5912 = vunpack.c.l.s4 1983009808
    %v5913 = vunpack.c.0.s8 %v5912
    %v5914 = vperm.slane %v5906, %v5913
    %v5915 = vrot.slane %v5901, 4
    %v5916 = vsel %vm225, %v5915, %v5855
    %v5917 = vrot.slane %v5855, 4
    %v5918 = vsel %vm225, %v5901, %v5917
    %v5920 = vunpack.c.l.s4 1983009808
    %v5921 = vunpack.c.0.s8 %v5920
    %v5922 = vperm.slane %v5916, %v5921
    %v5924 = vunpack.c.l.s4 1983009808
    %v5925 = vunpack.c.0.s8 %v5924
    %v5926 = vperm.slane %v5918, %v5925
    %v5927 = vrot.slane %v5922, 4
    %v5928 = vsel %vm225, %v5927, %v5910
    %v5929 = vrot.slane %v5910, 4
    %v5930 = vsel %vm225, %v5922, %v5929
    %v5932 = vunpack.c.l.s4 1934713408
    %v5933 = vunpack.c.0.s8 %v5932
    %v5934 = vperm.slane %v5928, %v5933
    %v5936 = vunpack.c.l.s4 1934713408
    %v5937 = vunpack.c.0.s8 %v5936
    %v5938 = vperm.slane %v5930, %v5937
    %v5939 = vrot.slane %v5926, 4
    %v5940 = vsel %vm225, %v5939, %v5914
    %v5941 = vrot.slane %v5914, 4
    %v5942 = vsel %vm225, %v5926, %v5941
    %v5944 = vunpack.c.l.s4 1934713408
    %v5945 = vunpack.c.0.s8 %v5944
    %v5946 = vperm.slane %v5940, %v5945
    %v5948 = vunpack.c.l.s4 1934713408
    %v5949 = vunpack.c.0.s8 %v5948
    %v5950 = vperm.slane %v5942, %v5949
    %v5951 = vrot.slane %v5934, 4
    %v5952 = vsel %vm225, 0.0, %v5951
    %v5953 = vrot.slane %v5938, 4
    %v5954 = vsel %vm225, 0.0, %v5953
    %v5955 = vrot.slane %v5946, 4
    %v5956 = vsel %vm225, 0.0, %v5955
    %v5957 = vrot.slane %v5950, 4
    %v5958 = vsel %vm225, 0.0, %v5957
    %v5959 = vsel %vm225, %v5953, %v5934
    %v5961 = vunpack.c.l.s4 1983009808
    %v5962 = vunpack.c.0.s8 %v5961
    %v5963 = vperm.slane %v5959, %v5962
    %v5964 = vrot.slane %v5954, 4
    %v5965 = vsel %vm225, %v5964, %v5952
    %v5967 = vunpack.c.l.s4 1983009808
    %v5968 = vunpack.c.0.s8 %v5967
    %v5969 = vperm.slane %v5965, %v5968
    %v5970 = vsel %vm225, %v5957, %v5946
    %v5972 = vunpack.c.l.s4 1983009808
    %v5973 = vunpack.c.0.s8 %v5972
    %v5974 = vperm.slane %v5970, %v5973
    %v5975 = vrot.slane %v5958, 4
    %v5976 = vsel %vm225, %v5975, %v5956
    %v5978 = vunpack.c.l.s4 1983009808
    %v5979 = vunpack.c.0.s8 %v5978
    %v5980 = vperm.slane %v5976, %v5979
    %v5981 = vrot.slane %v5969, 4
    %v5982 = vsel %vm225, %v5981, %v5963
    %v5983 = vrot.slane %v5963, 4
    %v5984 = vsel %vm225, %v5969, %v5983
    %v5986 = vunpack.c.l.s4 1934713408
    %v5987 = vunpack.c.0.s8 %v5986
    %v5988 = vperm.slane %v5982, %v5987
    %v5990 = vunpack.c.l.s4 1934713408
    %v5991 = vunpack.c.0.s8 %v5990
    %v5992 = vperm.slane %v5984, %v5991
    %v5993 = vrot.slane %v5980, 4
    %v5994 = vsel %vm225, %v5993, %v5974
    %v5995 = vrot.slane %v5974, 4
    %v5996 = vsel %vm225, %v5980, %v5995
    %v5998 = vunpack.c.l.s4 1934713408
    %v5999 = vunpack.c.0.s8 %v5998
    %v6000 = vperm.slane %v5994, %v5999
    %v6002 = vunpack.c.l.s4 1934713408
    %v6003 = vunpack.c.0.s8 %v6002
    %v6004 = vperm.slane %v5996, %v6003
    %v6005 = vrot.slane %v6000, 4
    %v6006 = vsel %vm225, %v6005, %v5988
    %v6007 = vrot.slane %v5988, 4
    %v6008 = vsel %vm225, %v6000, %v6007
    %v6009 = vrot.slane %v6004, 4
    %v6010 = vsel %vm225, %v6009, %v5992
    %v6011 = vrot.slane %v5992, 4
    %v6012 = vsel %vm225, %v6004, %v6011
    %6014 = vrot.lane.b32.xlu0 %v6008, 8
    %v6015 = vpop.permute.xlu0 %6014
    %6018 = vrot.lane.b32.xlu0 %v6010, 16
    %v6019 = vpop.permute.xlu0 %6018
    %6022 = vrot.lane.b32.xlu0 %v6012, 24
    %v6023 = vpop.permute.xlu0 %6022
    %v6025 = vsel %vm575, %v6006, %v6015
    %v6026 = vsel %vm949, %v6025, %v6019
    %v6027 = vsel %vm951, %v6026, %v6023
    %6029 = vrot.lane.b32.xlu0 %v5239, 120
    %v6030 = vpop.permute.xlu0 %6029
    %6032 = vrot.lane.b32.xlu0 %v5239, 112
    %v6033 = vpop.permute.xlu0 %6032
    %6035 = vrot.lane.b32.xlu0 %v5239, 104
    %v6036 = vpop.permute.xlu0 %6035
    %v6038 = vrot.slane %v6033, 4
    %v6039 = vsel %vm225, %v6038, %v5239
    %v6040 = vrot.slane %v5239, 4
    %v6041 = vsel %vm225, %v6033, %v6040
    %v6043 = vunpack.c.l.s4 1983009808
    %v6044 = vunpack.c.0.s8 %v6043
    %v6045 = vperm.slane %v6039, %v6044
    %v6047 = vunpack.c.l.s4 1983009808
    %v6048 = vunpack.c.0.s8 %v6047
    %v6049 = vperm.slane %v6041, %v6048
    %v6050 = vrot.slane %v6036, 4
    %v6051 = vsel %vm225, %v6050, %v6030
    %v6052 = vrot.slane %v6030, 4
    %v6053 = vsel %vm225, %v6036, %v6052
    %v6055 = vunpack.c.l.s4 1983009808
    %v6056 = vunpack.c.0.s8 %v6055
    %v6057 = vperm.slane %v6051, %v6056
    %v6059 = vunpack.c.l.s4 1983009808
    %v6060 = vunpack.c.0.s8 %v6059
    %v6061 = vperm.slane %v6053, %v6060
    %v6062 = vrot.slane %v6057, 4
    %v6063 = vsel %vm225, %v6062, %v6045
    %v6064 = vrot.slane %v6045, 4
    %v6065 = vsel %vm225, %v6057, %v6064
    %v6067 = vunpack.c.l.s4 1934713408
    %v6068 = vunpack.c.0.s8 %v6067
    %v6069 = vperm.slane %v6063, %v6068
    %v6071 = vunpack.c.l.s4 1934713408
    %v6072 = vunpack.c.0.s8 %v6071
    %v6073 = vperm.slane %v6065, %v6072
    %v6074 = vrot.slane %v6061, 4
    %v6075 = vsel %vm225, %v6074, %v6049
    %v6076 = vrot.slane %v6049, 4
    %v6077 = vsel %vm225, %v6061, %v6076
    %v6079 = vunpack.c.l.s4 1934713408
    %v6080 = vunpack.c.0.s8 %v6079
    %v6081 = vperm.slane %v6075, %v6080
    %v6083 = vunpack.c.l.s4 1934713408
    %v6084 = vunpack.c.0.s8 %v6083
    %v6085 = vperm.slane %v6077, %v6084
    %v6086 = vrot.slane %v6069, 4
    %v6087 = vsel %vm225, 0.0, %v6086
    %v6088 = vrot.slane %v6073, 4
    %v6089 = vsel %vm225, 0.0, %v6088
    %v6090 = vrot.slane %v6081, 4
    %v6091 = vsel %vm225, 0.0, %v6090
    %v6092 = vrot.slane %v6085, 4
    %v6093 = vsel %vm225, 0.0, %v6092
    %v6094 = vsel %vm225, %v6088, %v6069
    %v6096 = vunpack.c.l.s4 1983009808
    %v6097 = vunpack.c.0.s8 %v6096
    %v6098 = vperm.slane %v6094, %v6097
    %v6099 = vrot.slane %v6089, 4
    %v6100 = vsel %vm225, %v6099, %v6087
    %v6102 = vunpack.c.l.s4 1983009808
    %v6103 = vunpack.c.0.s8 %v6102
    %v6104 = vperm.slane %v6100, %v6103
    %v6105 = vsel %vm225, %v6092, %v6081
    %v6107 = vunpack.c.l.s4 1983009808
    %v6108 = vunpack.c.0.s8 %v6107
    %v6109 = vperm.slane %v6105, %v6108
    %v6110 = vrot.slane %v6093, 4
    %v6111 = vsel %vm225, %v6110, %v6091
    %v6113 = vunpack.c.l.s4 1983009808
    %v6114 = vunpack.c.0.s8 %v6113
    %v6115 = vperm.slane %v6111, %v6114
    %v6116 = vrot.slane %v6104, 4
    %v6117 = vsel %vm225, %v6116, %v6098
    %v6118 = vrot.slane %v6098, 4
    %v6119 = vsel %vm225, %v6104, %v6118
    %v6121 = vunpack.c.l.s4 1934713408
    %v6122 = vunpack.c.0.s8 %v6121
    %v6123 = vperm.slane %v6117, %v6122
    %v6125 = vunpack.c.l.s4 1934713408
    %v6126 = vunpack.c.0.s8 %v6125
    %v6127 = vperm.slane %v6119, %v6126
    %v6128 = vrot.slane %v6115, 4
    %v6129 = vsel %vm225, %v6128, %v6109
    %v6130 = vrot.slane %v6109, 4
    %v6131 = vsel %vm225, %v6115, %v6130
    %v6133 = vunpack.c.l.s4 1934713408
    %v6134 = vunpack.c.0.s8 %v6133
    %v6135 = vperm.slane %v6129, %v6134
    %v6137 = vunpack.c.l.s4 1934713408
    %v6138 = vunpack.c.0.s8 %v6137
    %v6139 = vperm.slane %v6131, %v6138
    %v6140 = vrot.slane %v6135, 4
    %v6141 = vsel %vm225, %v6140, %v6123
    %v6142 = vrot.slane %v6123, 4
    %v6143 = vsel %vm225, %v6135, %v6142
    %v6144 = vrot.slane %v6139, 4
    %v6145 = vsel %vm225, %v6144, %v6127
    %v6146 = vrot.slane %v6127, 4
    %v6147 = vsel %vm225, %v6139, %v6146
    %6149 = vrot.lane.b32.xlu0 %v5268, 120
    %v6150 = vpop.permute.xlu0 %6149
    %6152 = vrot.lane.b32.xlu0 %v5268, 112
    %v6153 = vpop.permute.xlu0 %6152
    %6155 = vrot.lane.b32.xlu0 %v5268, 104
    %v6156 = vpop.permute.xlu0 %6155
    %v6158 = vrot.slane %v6153, 4
    %v6159 = vsel %vm225, %v6158, %v5268
    %v6160 = vrot.slane %v5268, 4
    %v6161 = vsel %vm225, %v6153, %v6160
    %v6163 = vunpack.c.l.s4 1983009808
    %v6164 = vunpack.c.0.s8 %v6163
    %v6165 = vperm.slane %v6159, %v6164
    %v6167 = vunpack.c.l.s4 1983009808
    %v6168 = vunpack.c.0.s8 %v6167
    %v6169 = vperm.slane %v6161, %v6168
    %v6170 = vrot.slane %v6156, 4
    %v6171 = vsel %vm225, %v6170, %v6150
    %v6172 = vrot.slane %v6150, 4
    %v6173 = vsel %vm225, %v6156, %v6172
    %v6175 = vunpack.c.l.s4 1983009808
    %v6176 = vunpack.c.0.s8 %v6175
    %v6177 = vperm.slane %v6171, %v6176
    %v6179 = vunpack.c.l.s4 1983009808
    %v6180 = vunpack.c.0.s8 %v6179
    %v6181 = vperm.slane %v6173, %v6180
    %v6182 = vrot.slane %v6177, 4
    %v6183 = vsel %vm225, %v6182, %v6165
    %v6184 = vrot.slane %v6165, 4
    %v6185 = vsel %vm225, %v6177, %v6184
    %v6187 = vunpack.c.l.s4 1934713408
    %v6188 = vunpack.c.0.s8 %v6187
    %v6189 = vperm.slane %v6183, %v6188
    %v6191 = vunpack.c.l.s4 1934713408
    %v6192 = vunpack.c.0.s8 %v6191
    %v6193 = vperm.slane %v6185, %v6192
    %v6194 = vrot.slane %v6181, 4
    %v6195 = vsel %vm225, %v6194, %v6169
    %v6196 = vrot.slane %v6169, 4
    %v6197 = vsel %vm225, %v6181, %v6196
    %v6199 = vunpack.c.l.s4 1934713408
    %v6200 = vunpack.c.0.s8 %v6199
    %v6201 = vperm.slane %v6195, %v6200
    %v6203 = vunpack.c.l.s4 1934713408
    %v6204 = vunpack.c.0.s8 %v6203
    %v6205 = vperm.slane %v6197, %v6204
    %v6206 = vrot.slane %v6189, 4
    %v6207 = vsel %vm225, 0.0, %v6206
    %v6208 = vrot.slane %v6193, 4
    %v6209 = vsel %vm225, 0.0, %v6208
    %v6210 = vrot.slane %v6201, 4
    %v6211 = vsel %vm225, 0.0, %v6210
    %v6212 = vrot.slane %v6205, 4
    %v6213 = vsel %vm225, 0.0, %v6212
    %v6214 = vsel %vm225, %v6208, %v6189
    %v6216 = vunpack.c.l.s4 1983009808
    %v6217 = vunpack.c.0.s8 %v6216
    %v6218 = vperm.slane %v6214, %v6217
    %v6219 = vrot.slane %v6209, 4
    %v6220 = vsel %vm225, %v6219, %v6207
    %v6222 = vunpack.c.l.s4 1983009808
    %v6223 = vunpack.c.0.s8 %v6222
    %v6224 = vperm.slane %v6220, %v6223
    %v6225 = vsel %vm225, %v6212, %v6201
    %v6227 = vunpack.c.l.s4 1983009808
    %v6228 = vunpack.c.0.s8 %v6227
    %v6229 = vperm.slane %v6225, %v6228
    %v6230 = vrot.slane %v6213, 4
    %v6231 = vsel %vm225, %v6230, %v6211
    %v6233 = vunpack.c.l.s4 1983009808
    %v6234 = vunpack.c.0.s8 %v6233
    %v6235 = vperm.slane %v6231, %v6234
    %v6236 = vrot.slane %v6224, 4
    %v6237 = vsel %vm225, %v6236, %v6218
    %v6238 = vrot.slane %v6218, 4
    %v6239 = vsel %vm225, %v6224, %v6238
    %v6241 = vunpack.c.l.s4 1934713408
    %v6242 = vunpack.c.0.s8 %v6241
    %v6243 = vperm.slane %v6237, %v6242
    %v6245 = vunpack.c.l.s4 1934713408
    %v6246 = vunpack.c.0.s8 %v6245
    %v6247 = vperm.slane %v6239, %v6246
    %v6248 = vrot.slane %v6235, 4
    %v6249 = vsel %vm225, %v6248, %v6229
    %v6250 = vrot.slane %v6229, 4
    %v6251 = vsel %vm225, %v6235, %v6250
    %v6253 = vunpack.c.l.s4 1934713408
    %v6254 = vunpack.c.0.s8 %v6253
    %v6255 = vperm.slane %v6249, %v6254
    %v6257 = vunpack.c.l.s4 1934713408
    %v6258 = vunpack.c.0.s8 %v6257
    %v6259 = vperm.slane %v6251, %v6258
    %v6260 = vrot.slane %v6255, 4
    %v6261 = vsel %vm225, %v6260, %v6243
    %v6262 = vrot.slane %v6243, 4
    %v6263 = vsel %vm225, %v6255, %v6262
    %v6264 = vrot.slane %v6259, 4
    %v6265 = vsel %vm225, %v6264, %v6247
    %v6266 = vrot.slane %v6247, 4
    %v6267 = vsel %vm225, %v6259, %v6266
    %6269 = vrot.lane.b32.xlu0 %v5297, 120
    %v6270 = vpop.permute.xlu0 %6269
    %6272 = vrot.lane.b32.xlu0 %v5297, 112
    %v6273 = vpop.permute.xlu0 %6272
    %6275 = vrot.lane.b32.xlu0 %v5297, 104
    %v6276 = vpop.permute.xlu0 %6275
    %v6278 = vrot.slane %v6273, 4
    %v6279 = vsel %vm225, %v6278, %v5297
    %v6280 = vrot.slane %v5297, 4
    %v6281 = vsel %vm225, %v6273, %v6280
    %v6283 = vunpack.c.l.s4 1983009808
    %v6284 = vunpack.c.0.s8 %v6283
    %v6285 = vperm.slane %v6279, %v6284
    %v6287 = vunpack.c.l.s4 1983009808
    %v6288 = vunpack.c.0.s8 %v6287
    %v6289 = vperm.slane %v6281, %v6288
    %v6290 = vrot.slane %v6276, 4
    %v6291 = vsel %vm225, %v6290, %v6270
    %v6292 = vrot.slane %v6270, 4
    %v6293 = vsel %vm225, %v6276, %v6292
    %v6295 = vunpack.c.l.s4 1983009808
    %v6296 = vunpack.c.0.s8 %v6295
    %v6297 = vperm.slane %v6291, %v6296
    %v6299 = vunpack.c.l.s4 1983009808
    %v6300 = vunpack.c.0.s8 %v6299
    %v6301 = vperm.slane %v6293, %v6300
    %v6302 = vrot.slane %v6297, 4
    %v6303 = vsel %vm225, %v6302, %v6285
    %v6304 = vrot.slane %v6285, 4
    %v6305 = vsel %vm225, %v6297, %v6304
    %v6307 = vunpack.c.l.s4 1934713408
    %v6308 = vunpack.c.0.s8 %v6307
    %v6309 = vperm.slane %v6303, %v6308
    %v6311 = vunpack.c.l.s4 1934713408
    %v6312 = vunpack.c.0.s8 %v6311
    %v6313 = vperm.slane %v6305, %v6312
    %v6314 = vrot.slane %v6301, 4
    %v6315 = vsel %vm225, %v6314, %v6289
    %v6316 = vrot.slane %v6289, 4
    %v6317 = vsel %vm225, %v6301, %v6316
    %v6319 = vunpack.c.l.s4 1934713408
    %v6320 = vunpack.c.0.s8 %v6319
    %v6321 = vperm.slane %v6315, %v6320
    %v6323 = vunpack.c.l.s4 1934713408
    %v6324 = vunpack.c.0.s8 %v6323
    %v6325 = vperm.slane %v6317, %v6324
    %v6326 = vrot.slane %v6309, 4
    %v6327 = vsel %vm225, 0.0, %v6326
    %v6328 = vrot.slane %v6313, 4
    %v6329 = vsel %vm225, 0.0, %v6328
    %v6330 = vrot.slane %v6321, 4
    %v6331 = vsel %vm225, 0.0, %v6330
    %v6332 = vrot.slane %v6325, 4
    %v6333 = vsel %vm225, 0.0, %v6332
    %v6334 = vsel %vm225, %v6328, %v6309
    %v6336 = vunpack.c.l.s4 1983009808
    %v6337 = vunpack.c.0.s8 %v6336
    %v6338 = vperm.slane %v6334, %v6337
    %v6339 = vrot.slane %v6329, 4
    %v6340 = vsel %vm225, %v6339, %v6327
    %v6342 = vunpack.c.l.s4 1983009808
    %v6343 = vunpack.c.0.s8 %v6342
    %v6344 = vperm.slane %v6340, %v6343
    %v6345 = vsel %vm225, %v6332, %v6321
    %v6347 = vunpack.c.l.s4 1983009808
    %v6348 = vunpack.c.0.s8 %v6347
    %v6349 = vperm.slane %v6345, %v6348
    %v6350 = vrot.slane %v6333, 4
    %v6351 = vsel %vm225, %v6350, %v6331
    %v6353 = vunpack.c.l.s4 1983009808
    %v6354 = vunpack.c.0.s8 %v6353
    %v6355 = vperm.slane %v6351, %v6354
    %v6356 = vrot.slane %v6344, 4
    %v6357 = vsel %vm225, %v6356, %v6338
    %v6358 = vrot.slane %v6338, 4
    %v6359 = vsel %vm225, %v6344, %v6358
    %v6361 = vunpack.c.l.s4 1934713408
    %v6362 = vunpack.c.0.s8 %v6361
    %v6363 = vperm.slane %v6357, %v6362
    %v6365 = vunpack.c.l.s4 1934713408
    %v6366 = vunpack.c.0.s8 %v6365
    %v6367 = vperm.slane %v6359, %v6366
    %v6368 = vrot.slane %v6355, 4
    %v6369 = vsel %vm225, %v6368, %v6349
    %v6370 = vrot.slane %v6349, 4
    %v6371 = vsel %vm225, %v6355, %v6370
    %v6373 = vunpack.c.l.s4 1934713408
    %v6374 = vunpack.c.0.s8 %v6373
    %v6375 = vperm.slane %v6369, %v6374
    %v6377 = vunpack.c.l.s4 1934713408
    %v6378 = vunpack.c.0.s8 %v6377
    %v6379 = vperm.slane %v6371, %v6378
    %v6380 = vrot.slane %v6375, 4
    %v6381 = vsel %vm225, %v6380, %v6363
    %v6382 = vrot.slane %v6363, 4
    %v6383 = vsel %vm225, %v6375, %v6382
    %v6384 = vrot.slane %v6379, 4
    %v6385 = vsel %vm225, %v6384, %v6367
    %v6386 = vrot.slane %v6367, 4
    %v6387 = vsel %vm225, %v6379, %v6386
    %v6389 = vsel %vm575, %v6141, 0
    %v6392 = vsel %vm575, %v6261, 0
    %6394 = vmatpush.xpose.msra.mxu0 0.0
    %6395 = vmatpush.xpose.msra.mxu0 0.0
    %6396 = vmatpush.xpose.msra.mxu0 0.0
    %6397 = vmatpush.xpose.msra.mxu0 0.0
    %6398 = vmatpush.xpose.msra.mxu0 0.0
    %6399 = vmatpush.xpose.msra.mxu0 0.0
    %6400 = vmatpush.xpose.msra.mxu0 0.0
    %6401 = vmatpush.xpose.msra.mxu0 0.0
    %6402 = vmatpush.xpose.msra.mxu0 0.0
    %6403 = vmatpush.xpose.msra.mxu0 0.0
    %6404 = vmatpush.xpose.msra.mxu0 0.0
    %6405 = vmatpush.xpose.msra.mxu0 0.0
    %6406 = vmatpush.xpose.msra.mxu0 0.0
    %6407 = vmatpush.xpose.msra.mxu0 0.0
    %6408 = vmatpush.xpose.msra.mxu0 0.0
    %6409 = vmatpush.xpose.msra.mxu0 %v6392
    %6410 = vmatmul.f32.gmra.mxu0 %v6389
    %v6411 = vpop.f32.mrf.mxu0
    %v6412 = vadd.f32 0.0, %v6411
    %6413 = vdwg.mxu0
    %v6415 = vsel %vm575, %v6143, 0
    %v6418 = vsel %vm575, %v6263, 0
    %6420 = vmatpush.xpose.msra.mxu0 0.0
    %6421 = vmatpush.xpose.msra.mxu0 0.0
    %6422 = vmatpush.xpose.msra.mxu0 0.0
    %6423 = vmatpush.xpose.msra.mxu0 0.0
    %6424 = vmatpush.xpose.msra.mxu0 0.0
    %6425 = vmatpush.xpose.msra.mxu0 0.0
    %6426 = vmatpush.xpose.msra.mxu0 0.0
    %6427 = vmatpush.xpose.msra.mxu0 0.0
    %6428 = vmatpush.xpose.msra.mxu0 0.0
    %6429 = vmatpush.xpose.msra.mxu0 0.0
    %6430 = vmatpush.xpose.msra.mxu0 0.0
    %6431 = vmatpush.xpose.msra.mxu0 0.0
    %6432 = vmatpush.xpose.msra.mxu0 0.0
    %6433 = vmatpush.xpose.msra.mxu0 0.0
    %6434 = vmatpush.xpose.msra.mxu0 0.0
    %6435 = vmatpush.xpose.msra.mxu0 %v6418
    %6436 = vmatmul.f32.gmra.mxu0 %v6415
    %v6437 = vpop.f32.mrf.mxu0
    %v6438 = vadd.f32 0.0, %v6437
    %6439 = vdwg.mxu0
    %v6441 = vsel %vm575, %v6145, 0
    %v6444 = vsel %vm575, %v6265, 0
    %6446 = vmatpush.xpose.msra.mxu0 0.0
    %6447 = vmatpush.xpose.msra.mxu0 0.0
    %6448 = vmatpush.xpose.msra.mxu0 0.0
    %6449 = vmatpush.xpose.msra.mxu0 0.0
    %6450 = vmatpush.xpose.msra.mxu0 0.0
    %6451 = vmatpush.xpose.msra.mxu0 0.0
    %6452 = vmatpush.xpose.msra.mxu0 0.0
    %6453 = vmatpush.xpose.msra.mxu0 0.0
    %6454 = vmatpush.xpose.msra.mxu0 0.0
    %6455 = vmatpush.xpose.msra.mxu0 0.0
    %6456 = vmatpush.xpose.msra.mxu0 0.0
    %6457 = vmatpush.xpose.msra.mxu0 0.0
    %6458 = vmatpush.xpose.msra.mxu0 0.0
    %6459 = vmatpush.xpose.msra.mxu0 0.0
    %6460 = vmatpush.xpose.msra.mxu0 0.0
    %6461 = vmatpush.xpose.msra.mxu0 %v6444
    %6462 = vmatmul.f32.gmra.mxu0 %v6441
    %v6463 = vpop.f32.mrf.mxu0
    %v6464 = vadd.f32 0.0, %v6463
    %6465 = vdwg.mxu0
    %v6467 = vsel %vm575, %v6147, 0
    %v6470 = vsel %vm575, %v6267, 0
    %6472 = vmatpush.xpose.msra.mxu0 0.0
    %6473 = vmatpush.xpose.msra.mxu0 0.0
    %6474 = vmatpush.xpose.msra.mxu0 0.0
    %6475 = vmatpush.xpose.msra.mxu0 0.0
    %6476 = vmatpush.xpose.msra.mxu0 0.0
    %6477 = vmatpush.xpose.msra.mxu0 0.0
    %6478 = vmatpush.xpose.msra.mxu0 0.0
    %6479 = vmatpush.xpose.msra.mxu0 0.0
    %6480 = vmatpush.xpose.msra.mxu0 0.0
    %6481 = vmatpush.xpose.msra.mxu0 0.0
    %6482 = vmatpush.xpose.msra.mxu0 0.0
    %6483 = vmatpush.xpose.msra.mxu0 0.0
    %6484 = vmatpush.xpose.msra.mxu0 0.0
    %6485 = vmatpush.xpose.msra.mxu0 0.0
    %6486 = vmatpush.xpose.msra.mxu0 0.0
    %6487 = vmatpush.xpose.msra.mxu0 %v6470
    %6488 = vmatmul.f32.gmra.mxu0 %v6467
    %v6489 = vpop.f32.mrf.mxu0
    %v6490 = vadd.f32 0.0, %v6489
    %6491 = vdwg.mxu0
    %v6492 = vmul.f32 %v6412, 0.35355338
    %v6493 = vmul.f32 %v6438, 0.35355338
    %v6494 = vmul.f32 %v6464, 0.35355338
    %v6495 = vmul.f32 %v6490, 0.35355338
    %v6496 = vsel %vm575, %v6492, -inf
    %6497 = vmax.xlane.f32.xlu0 %v6496
    %v6498 = vpop.xlane.xlu0 %6497
    %v6499 = vsel %vm575, %v6493, -inf
    %6500 = vmax.xlane.f32.xlu0 %v6499
    %v6501 = vpop.xlane.xlu0 %6500
    %v6502 = vsel %vm575, %v6494, -inf
    %6503 = vmax.xlane.f32.xlu0 %v6502
    %v6504 = vpop.xlane.xlu0 %6503
    %v6505 = vsel %vm575, %v6495, -inf
    %6506 = vmax.xlane.f32.xlu0 %v6505
    %v6507 = vpop.xlane.xlu0 %6506
    %v6508 = vsub.f32 %v6492, %v6498
    %v6509 = vsub.f32 %v6493, %v6501
    %v6510 = vsub.f32 %v6494, %v6504
    %v6511 = vsub.f32 %v6495, %v6507
    %v6512 = vmul.f32 %v6508, 1.442695
    %v6513 = vpow.pop %v6512
    %v6514 = vmul.f32 %v6509, 1.442695
    %v6515 = vpow.pop %v6514
    %v6516 = vmul.f32 %v6510, 1.442695
    %v6517 = vpow.pop %v6516
    %v6518 = vmul.f32 %v6511, 1.442695
    %v6519 = vpow.pop %v6518
    %v6520 = vsel %vm575, %v6513, 0.0
    %6521 = vadd.xlane.f32.xlu0 %v6520
    %v6522 = vpop.xlane.xlu0 %6521
    %v6523 = vsel %vm575, %v6515, 0.0
    %6524 = vadd.xlane.f32.xlu0 %v6523
    %v6525 = vpop.xlane.xlu0 %6524
    %v6526 = vsel %vm575, %v6517, 0.0
    %6527 = vadd.xlane.f32.xlu0 %v6526
    %v6528 = vpop.xlane.xlu0 %6527
    %v6529 = vsel %vm575, %v6519, 0.0
    %6530 = vadd.xlane.f32.xlu0 %v6529
    %v6531 = vpop.xlane.xlu0 %6530
    %v6532 = vrcp.pop %v6522
    %v6533 = vrcp.pop %v6525
    %v6534 = vrcp.pop %v6528
    %v6535 = vrcp.pop %v6531
    %v6536 = vmul.f32 %v6513, %v6532
    %v6537 = vmul.f32 %v6515, %v6533
    %v6538 = vmul.f32 %v6517, %v6534
    %v6539 = vmul.f32 %v6519, %v6535
    %v6541 = vsel %vm575, %v6536, 0
    %6543 = vmatpush.msra.mxu0 0.0
    %6544 = vmatpush.msra.mxu0 0.0
    %6545 = vmatpush.msra.mxu0 0.0
    %6546 = vmatpush.msra.mxu0 0.0
    %6547 = vmatpush.msra.mxu0 0.0
    %6548 = vmatpush.msra.mxu0 0.0
    %6549 = vmatpush.msra.mxu0 0.0
    %6550 = vmatpush.msra.mxu0 0.0
    %6551 = vmatpush.msra.mxu0 0.0
    %6552 = vmatpush.msra.mxu0 0.0
    %6553 = vmatpush.msra.mxu0 0.0
    %6554 = vmatpush.msra.mxu0 0.0
    %6555 = vmatpush.msra.mxu0 0.0
    %6556 = vmatpush.msra.mxu0 0.0
    %6557 = vmatpush.msra.mxu0 0.0
    %6558 = vmatpush.msra.mxu0 %v6381
    %6559 = vmatmul.f32.gmra.mxu0 %v6541
    %v6560 = vpop.f32.mrf.mxu0
    %v6561 = vadd.f32 0.0, %v6560
    %6562 = vdwg.mxu0
    %v6564 = vsel %vm575, %v6537, 0
    %6566 = vmatpush.msra.mxu0 0.0
    %6567 = vmatpush.msra.mxu0 0.0
    %6568 = vmatpush.msra.mxu0 0.0
    %6569 = vmatpush.msra.mxu0 0.0
    %6570 = vmatpush.msra.mxu0 0.0
    %6571 = vmatpush.msra.mxu0 0.0
    %6572 = vmatpush.msra.mxu0 0.0
    %6573 = vmatpush.msra.mxu0 0.0
    %6574 = vmatpush.msra.mxu0 0.0
    %6575 = vmatpush.msra.mxu0 0.0
    %6576 = vmatpush.msra.mxu0 0.0
    %6577 = vmatpush.msra.mxu0 0.0
    %6578 = vmatpush.msra.mxu0 0.0
    %6579 = vmatpush.msra.mxu0 0.0
    %6580 = vmatpush.msra.mxu0 0.0
    %6581 = vmatpush.msra.mxu0 %v6383
    %6582 = vmatmul.f32.gmra.mxu0 %v6564
    %v6583 = vpop.f32.mrf.mxu0
    %v6584 = vadd.f32 0.0, %v6583
    %6585 = vdwg.mxu0
    %v6587 = vsel %vm575, %v6538, 0
    %6589 = vmatpush.msra.mxu0 0.0
    %6590 = vmatpush.msra.mxu0 0.0
    %6591 = vmatpush.msra.mxu0 0.0
    %6592 = vmatpush.msra.mxu0 0.0
    %6593 = vmatpush.msra.mxu0 0.0
    %6594 = vmatpush.msra.mxu0 0.0
    %6595 = vmatpush.msra.mxu0 0.0
    %6596 = vmatpush.msra.mxu0 0.0
    %6597 = vmatpush.msra.mxu0 0.0
    %6598 = vmatpush.msra.mxu0 0.0
    %6599 = vmatpush.msra.mxu0 0.0
    %6600 = vmatpush.msra.mxu0 0.0
    %6601 = vmatpush.msra.mxu0 0.0
    %6602 = vmatpush.msra.mxu0 0.0
    %6603 = vmatpush.msra.mxu0 0.0
    %6604 = vmatpush.msra.mxu0 %v6385
    %6605 = vmatmul.f32.gmra.mxu0 %v6587
    %v6606 = vpop.f32.mrf.mxu0
    %v6607 = vadd.f32 0.0, %v6606
    %6608 = vdwg.mxu0
    %v6610 = vsel %vm575, %v6539, 0
    %6612 = vmatpush.msra.mxu0 0.0
    %6613 = vmatpush.msra.mxu0 0.0
    %6614 = vmatpush.msra.mxu0 0.0
    %6615 = vmatpush.msra.mxu0 0.0
    %6616 = vmatpush.msra.mxu0 0.0
    %6617 = vmatpush.msra.mxu0 0.0
    %6618 = vmatpush.msra.mxu0 0.0
    %6619 = vmatpush.msra.mxu0 0.0
    %6620 = vmatpush.msra.mxu0 0.0
    %6621 = vmatpush.msra.mxu0 0.0
    %6622 = vmatpush.msra.mxu0 0.0
    %6623 = vmatpush.msra.mxu0 0.0
    %6624 = vmatpush.msra.mxu0 0.0
    %6625 = vmatpush.msra.mxu0 0.0
    %6626 = vmatpush.msra.mxu0 0.0
    %6627 = vmatpush.msra.mxu0 %v6387
    %6628 = vmatmul.f32.gmra.mxu0 %v6610
    %v6629 = vpop.f32.mrf.mxu0
    %v6630 = vadd.f32 0.0, %v6629
    %6631 = vdwg.mxu0
    %v6632 = vrot.slane %v6607, 4
    %v6633 = vsel %vm225, %v6632, %v6561
    %v6634 = vrot.slane %v6561, 4
    %v6635 = vsel %vm225, %v6607, %v6634
    %v6637 = vunpack.c.l.s4 1983009808
    %v6638 = vunpack.c.0.s8 %v6637
    %v6639 = vperm.slane %v6633, %v6638
    %v6641 = vunpack.c.l.s4 1983009808
    %v6642 = vunpack.c.0.s8 %v6641
    %v6643 = vperm.slane %v6635, %v6642
    %v6644 = vrot.slane %v6630, 4
    %v6645 = vsel %vm225, %v6644, %v6584
    %v6646 = vrot.slane %v6584, 4
    %v6647 = vsel %vm225, %v6630, %v6646
    %v6649 = vunpack.c.l.s4 1983009808
    %v6650 = vunpack.c.0.s8 %v6649
    %v6651 = vperm.slane %v6645, %v6650
    %v6653 = vunpack.c.l.s4 1983009808
    %v6654 = vunpack.c.0.s8 %v6653
    %v6655 = vperm.slane %v6647, %v6654
    %v6656 = vrot.slane %v6651, 4
    %v6657 = vsel %vm225, %v6656, %v6639
    %v6658 = vrot.slane %v6639, 4
    %v6659 = vsel %vm225, %v6651, %v6658
    %v6661 = vunpack.c.l.s4 1934713408
    %v6662 = vunpack.c.0.s8 %v6661
    %v6663 = vperm.slane %v6657, %v6662
    %v6665 = vunpack.c.l.s4 1934713408
    %v6666 = vunpack.c.0.s8 %v6665
    %v6667 = vperm.slane %v6659, %v6666
    %v6668 = vrot.slane %v6655, 4
    %v6669 = vsel %vm225, %v6668, %v6643
    %v6670 = vrot.slane %v6643, 4
    %v6671 = vsel %vm225, %v6655, %v6670
    %v6673 = vunpack.c.l.s4 1934713408
    %v6674 = vunpack.c.0.s8 %v6673
    %v6675 = vperm.slane %v6669, %v6674
    %v6677 = vunpack.c.l.s4 1934713408
    %v6678 = vunpack.c.0.s8 %v6677
    %v6679 = vperm.slane %v6671, %v6678
    %v6680 = vrot.slane %v6663, 4
    %v6681 = vsel %vm225, 0.0, %v6680
    %v6682 = vrot.slane %v6667, 4
    %v6683 = vsel %vm225, 0.0, %v6682
    %v6684 = vrot.slane %v6675, 4
    %v6685 = vsel %vm225, 0.0, %v6684
    %v6686 = vrot.slane %v6679, 4
    %v6687 = vsel %vm225, 0.0, %v6686
    %v6688 = vsel %vm225, %v6682, %v6663
    %v6690 = vunpack.c.l.s4 1983009808
    %v6691 = vunpack.c.0.s8 %v6690
    %v6692 = vperm.slane %v6688, %v6691
    %v6693 = vrot.slane %v6683, 4
    %v6694 = vsel %vm225, %v6693, %v6681
    %v6696 = vunpack.c.l.s4 1983009808
    %v6697 = vunpack.c.0.s8 %v6696
    %v6698 = vperm.slane %v6694, %v6697
    %v6699 = vsel %vm225, %v6686, %v6675
    %v6701 = vunpack.c.l.s4 1983009808
    %v6702 = vunpack.c.0.s8 %v6701
    %v6703 = vperm.slane %v6699, %v6702
    %v6704 = vrot.slane %v6687, 4
    %v6705 = vsel %vm225, %v6704, %v6685
    %v6707 = vunpack.c.l.s4 1983009808
    %v6708 = vunpack.c.0.s8 %v6707
    %v6709 = vperm.slane %v6705, %v6708
    %v6710 = vrot.slane %v6698, 4
    %v6711 = vsel %vm225, %v6710, %v6692
    %v6712 = vrot.slane %v6692, 4
    %v6713 = vsel %vm225, %v6698, %v6712
    %v6715 = vunpack.c.l.s4 1934713408
    %v6716 = vunpack.c.0.s8 %v6715
    %v6717 = vperm.slane %v6711, %v6716
    %v6719 = vunpack.c.l.s4 1934713408
    %v6720 = vunpack.c.0.s8 %v6719
    %v6721 = vperm.slane %v6713, %v6720
    %v6722 = vrot.slane %v6709, 4
    %v6723 = vsel %vm225, %v6722, %v6703
    %v6724 = vrot.slane %v6703, 4
    %v6725 = vsel %vm225, %v6709, %v6724
    %v6727 = vunpack.c.l.s4 1934713408
    %v6728 = vunpack.c.0.s8 %v6727
    %v6729 = vperm.slane %v6723, %v6728
    %v6731 = vunpack.c.l.s4 1934713408
    %v6732 = vunpack.c.0.s8 %v6731
    %v6733 = vperm.slane %v6725, %v6732
    %v6734 = vrot.slane %v6729, 4
    %v6735 = vsel %vm225, %v6734, %v6717
    %v6736 = vrot.slane %v6717, 4
    %v6737 = vsel %vm225, %v6729, %v6736
    %v6738 = vrot.slane %v6733, 4
    %v6739 = vsel %vm225, %v6738, %v6721
    %v6740 = vrot.slane %v6721, 4
    %v6741 = vsel %vm225, %v6733, %v6740
    %6743 = vrot.lane.b32.xlu0 %v6737, 8
    %v6744 = vpop.permute.xlu0 %6743
    %6747 = vrot.lane.b32.xlu0 %v6739, 16
    %v6748 = vpop.permute.xlu0 %6747
    %6751 = vrot.lane.b32.xlu0 %v6741, 24
    %v6752 = vpop.permute.xlu0 %6751
    %v6754 = vsel %vm575, %v6735, %v6744
    %v6755 = vsel %vm949, %v6754, %v6748
    %v6756 = vsel %vm951, %v6755, %v6752
    %s6757 = scalar_lea.vmem [#allocation2], 480
    %v6758 = vld [vmem:[%s6757] sm:$0xff]
    %v6759 = vld [vmem:[%s6757 + $0x8] sm:$0xff]
    %v6760 = vld [vmem:[%s6757 + $0x10] sm:$0xff]
    %v6761 = vld [vmem:[%s6757 + $0x18] sm:$0xff]
    %v6763 = vsel %vm64, %v6027, 0
    %v6766 = vsel %vm64, %v6756, 0
    %6768 = vmatpush.msra.mxu0 0.0
    %6769 = vmatpush.msra.mxu0 0.0
    %6770 = vmatpush.msra.mxu0 0.0
    %6771 = vmatpush.msra.mxu0 0.0
    %6772 = vmatpush.msra.mxu0 0.0
    %6773 = vmatpush.msra.mxu0 0.0
    %6774 = vmatpush.msra.mxu0 0.0
    %6775 = vmatpush.msra.mxu0 0.0
    %6776 = vmatpush.msra.mxu0 0.0
    %6777 = vmatpush.msra.mxu0 0.0
    %6778 = vmatpush.msra.mxu0 0.0
    %6779 = vmatpush.msra.mxu0 0.0
    %6780 = vmatpush.msra.mxu0 %v6761
    %6781 = vmatpush.msra.mxu0 %v6760
    %6782 = vmatpush.msra.mxu0 %v6759
    %6783 = vmatpush.msra.mxu0 %v6758
    %6784 = vmatmul.f32.gmra.mxu0 %v6763
    %v6785 = vpop.f32.mrf.mxu0
    %v6786 = vadd.f32 0.0, %v6785
    %6787 = vmatmul.f32.gmra.mxu0 %v6766
    %v6788 = vpop.f32.mrf.mxu0
    %v6789 = vadd.f32 0.0, %v6788
    %6790 = vdwg.mxu0
    %v6791 = vadd.f32 %v5154, %v6786
    %v6792 = vadd.f32 %v5155, %v6789
    %v6793 = vperm.slane %v3505, 3
    %v6794 = vadd.f32 %v6791, %v6793
    %v6795 = vadd.f32 %v6792, %v6793
    %v6796 = vsel %vm64, %v6794, 0.0
    %6797 = vadd.xlane.f32.xlu0 %v6796
    %v6798 = vpop.xlane.xlu0 %6797
    %v6799 = vsel %vm64, %v6795, 0.0
    %6800 = vadd.xlane.f32.xlu0 %v6799
    %v6801 = vpop.xlane.xlu0 %6800
    %v6802 = vmul.f32 %v6798, %v77
    %v6803 = vmul.f32 %v6801, %v77
    %v6804 = vsub.f32 %v6794, %v6802
    %v6805 = vsub.f32 %v6795, %v6803
    %v6806 = vmul.f32 %v6804, %v6804
    %v6807 = vmul.f32 %v6805, %v6805
    %v6808 = vsel %vm64, %v6806, 0.0
    %6809 = vadd.xlane.f32.xlu0 %v6808
    %v6810 = vpop.xlane.xlu0 %6809
    %v6811 = vsel %vm64, %v6807, 0.0
    %6812 = vadd.xlane.f32.xlu0 %v6811
    %v6813 = vpop.xlane.xlu0 %6812
    %v6814 = vmul.f32 %v6810, %v77
    %v6815 = vmul.f32 %v6813, %v77
    %v6816 = vadd.f32 %v6814, 1e-05
    %v6817 = vadd.f32 %v6815, 1e-05
    %v6818 = vrsqrt.pop %v6816
    %v6819 = vmul.f32 %v6818, %v6816
    %v6820 = vmul.f32 %v6819, %v6818
    %v6821 = vmul.f32 0.5, %v6820
    %v6822 = vsub.f32 1.5, %v6821
    %v6823 = vmul.f32 %v6818, %v6822
    %vm6824 = vweird.f32 %v6816
    %vm6825 = vweird.f32 %v6818
    %vm6826 = vmor %vm6824, %vm6825
    %v6827 = vsel %vm6826, %v6818, %v6823
    %v6828 = vrsqrt.pop %v6817
    %v6829 = vmul.f32 %v6828, %v6817
    %v6830 = vmul.f32 %v6829, %v6828
    %v6831 = vmul.f32 0.5, %v6830
    %v6832 = vsub.f32 1.5, %v6831
    %v6833 = vmul.f32 %v6828, %v6832
    %vm6834 = vweird.f32 %v6817
    %vm6835 = vweird.f32 %v6828
    %vm6836 = vmor %vm6834, %vm6835
    %v6837 = vsel %vm6836, %v6828, %v6833
    %v6838 = vmul.f32 %v6804, %v6827
    %v6839 = vmul.f32 %v6805, %v6837
    %v6840 = vperm.slane %v3505, 4
    %v6841 = vmul.f32 %v6838, %v6840
    %v6842 = vmul.f32 %v6839, %v6840
    %v6843 = vperm.slane %v3505, 5
    %v6844 = vadd.f32 %v6841, %v6843
    %v6845 = vadd.f32 %v6842, %v6843
    %s6846 = scalar_lea.vmem %s3, 32
    %v6847 = vld [vmem:[%s6846] sm:$0xff]
    %v6848 = vld [vmem:[%s6846 + $0x8] sm:$0xff]
    %v6849 = vld [vmem:[%s6846 + $0x10] sm:$0xff]
    %v6850 = vld [vmem:[%s6846 + $0x18] sm:$0xff]
    %v6852 = vperm.slane %v3507, 0
    %v6855 = vsel %vm64, %v6844, 0
    %v6858 = vsel %vm64, %v6845, 0
    %6860 = vmatpush.msra.mxu0 0.0
    %6861 = vmatpush.msra.mxu0 0.0
    %6862 = vmatpush.msra.mxu0 0.0
    %6863 = vmatpush.msra.mxu0 0.0
    %6864 = vmatpush.msra.mxu0 0.0
    %6865 = vmatpush.msra.mxu0 0.0
    %6866 = vmatpush.msra.mxu0 0.0
    %6867 = vmatpush.msra.mxu0 0.0
    %6868 = vmatpush.msra.mxu0 0.0
    %6869 = vmatpush.msra.mxu0 0.0
    %6870 = vmatpush.msra.mxu0 0.0
    %6871 = vmatpush.msra.mxu0 0.0
    %6872 = vmatpush.msra.mxu0 %v6850
    %6873 = vmatpush.msra.mxu0 %v6849
    %6874 = vmatpush.msra.mxu0 %v6848
    %6875 = vmatpush.msra.mxu0 %v6847
    %6876 = vmatmul.f32.gmra.mxu0 %v6855
    %v6877 = vpop.f32.mrf.mxu0
    %v6878 = vadd.f32 %v6852, %v6877
    %6879 = vmatmul.f32.gmra.mxu0 %v6858
    %v6880 = vpop.f32.mrf.mxu0
    %v6881 = vadd.f32 %v6852, %v6880
    %6882 = vdwg.mxu0
    %v6883 = vmax.f32 %v6878, 0.0
    %v6884 = vmax.f32 %v6881, 0.0
    %s6885 = scalar_lea.vmem %s4, 128
    %v6886 = vld [vmem:[%s6885] sm:$0xff]
    %v6887 = vld [vmem:[%s6885 + $0x8] sm:$0xff]
    %v6888 = vld [vmem:[%s6885 + $0x10] sm:$0xff]
    %v6889 = vld [vmem:[%s6885 + $0x18] sm:$0xff]
    %v6890 = vld [vmem:[%s6885 + $0x20] sm:$0xff]
    %v6891 = vld [vmem:[%s6885 + $0x28] sm:$0xff]
    %v6892 = vld [vmem:[%s6885 + $0x30] sm:$0xff]
    %v6893 = vld [vmem:[%s6885 + $0x38] sm:$0xff]
    %v6894 = vld [vmem:[%s6885 + $0x40] sm:$0xff]
    %v6895 = vld [vmem:[%s6885 + $0x48] sm:$0xff]
    %v6896 = vld [vmem:[%s6885 + $0x50] sm:$0xff]
    %v6897 = vld [vmem:[%s6885 + $0x58] sm:$0xff]
    %v6898 = vld [vmem:[%s6885 + $0x60] sm:$0xff]
    %v6899 = vld [vmem:[%s6885 + $0x68] sm:$0xff]
    %v6900 = vld [vmem:[%s6885 + $0x70] sm:$0xff]
    %v6901 = vld [vmem:[%s6885 + $0x78] sm:$0xff]
    %6902 = vmatpush.msra.mxu0 %v6901
    %6903 = vmatpush.msra.mxu0 %v6900
    %6904 = vmatpush.msra.mxu0 %v6899
    %6905 = vmatpush.msra.mxu0 %v6898
    %6906 = vmatpush.msra.mxu0 %v6897
    %6907 = vmatpush.msra.mxu0 %v6896
    %6908 = vmatpush.msra.mxu0 %v6895
    %6909 = vmatpush.msra.mxu0 %v6894
    %6910 = vmatpush.msra.mxu0 %v6893
    %6911 = vmatpush.msra.mxu0 %v6892
    %6912 = vmatpush.msra.mxu0 %v6891
    %6913 = vmatpush.msra.mxu0 %v6890
    %6914 = vmatpush.msra.mxu0 %v6889
    %6915 = vmatpush.msra.mxu0 %v6888
    %6916 = vmatpush.msra.mxu0 %v6887
    %6917 = vmatpush.msra.mxu0 %v6886
    %6918 = vmatmul.f32.gmra.mxu0 %v6883
    %v6919 = vpop.f32.mrf.mxu0
    %v6920 = vadd.f32 0.0, %v6919
    %6921 = vmatmul.f32.gmra.mxu0 %v6884
    %v6922 = vpop.f32.mrf.mxu0
    %v6923 = vadd.f32 0.0, %v6922
    %6924 = vdwg.mxu0
    %v6925 = vadd.f32 %v6794, %v6920
    %v6926 = vadd.f32 %v6795, %v6923
    %v6927 = vperm.slane %v3505, 6
    %v6928 = vadd.f32 %v6925, %v6927
    %v6929 = vadd.f32 %v6926, %v6927
    %s6930 = scalar_lea.vmem %s5, 32
    %v6931 = vld [vmem:[%s6930] sm:$0xff]
    %v6932 = vld [vmem:[%s6930 + $0x8] sm:$0x7f]
    %s6933 = scalar_lea.vmem %s6, 2
    %v6934 = vld [vmem:[%s6933] sm:$0x1]
    %v6935 = vsel %vm64, %v6928, 0.0
    %6936 = vadd.xlane.f32.xlu0 %v6935
    %v6937 = vpop.xlane.xlu0 %6936
    %v6938 = vsel %vm64, %v6929, 0.0
    %6939 = vadd.xlane.f32.xlu0 %v6938
    %v6940 = vpop.xlane.xlu0 %6939
    %v6941 = vmul.f32 %v6937, %v77
    %v6942 = vmul.f32 %v6940, %v77
    %v6943 = vsub.f32 %v6928, %v6941
    %v6944 = vsub.f32 %v6929, %v6942
    %v6945 = vmul.f32 %v6943, %v6943
    %v6946 = vmul.f32 %v6944, %v6944
    %v6947 = vsel %vm64, %v6945, 0.0
    %6948 = vadd.xlane.f32.xlu0 %v6947
    %v6949 = vpop.xlane.xlu0 %6948
    %v6950 = vsel %vm64, %v6946, 0.0
    %6951 = vadd.xlane.f32.xlu0 %v6950
    %v6952 = vpop.xlane.xlu0 %6951
    %v6953 = vmul.f32 %v6949, %v77
    %v6954 = vmul.f32 %v6952, %v77
    %v6955 = vadd.f32 %v6953, 1e-05
    %v6956 = vadd.f32 %v6954, 1e-05
    %v6957 = vrsqrt.pop %v6955
    %v6958 = vmul.f32 %v6957, %v6955
    %v6959 = vmul.f32 %v6958, %v6957
    %v6960 = vmul.f32 0.5, %v6959
    %v6961 = vsub.f32 1.5, %v6960
    %v6962 = vmul.f32 %v6957, %v6961
    %vm6963 = vweird.f32 %v6955
    %vm6964 = vweird.f32 %v6957
    %vm6965 = vmor %vm6963, %vm6964
    %v6966 = vsel %vm6965, %v6957, %v6962
    %v6967 = vrsqrt.pop %v6956
    %v6968 = vmul.f32 %v6967, %v6956
    %v6969 = vmul.f32 %v6968, %v6967
    %v6970 = vmul.f32 0.5, %v6969
    %v6971 = vsub.f32 1.5, %v6970
    %v6972 = vmul.f32 %v6967, %v6971
    %vm6973 = vweird.f32 %v6956
    %vm6974 = vweird.f32 %v6967
    %vm6975 = vmor %vm6973, %vm6974
    %v6976 = vsel %vm6975, %v6967, %v6972
    %v6977 = vmul.f32 %v6943, %v6966
    %v6978 = vmul.f32 %v6944, %v6976
    %v6979 = vperm.slane %v6931, 0
    %v6980 = vmul.f32 %v6977, %v6979
    %v6981 = vmul.f32 %v6978, %v6979
    %v6982 = vperm.slane %v6931, 1
    %v6983 = vadd.f32 %v6980, %v6982
    %v6984 = vadd.f32 %v6981, %v6982
    %s6985 = scalar_lea.vmem [#allocation2], 512
    %v6986 = vld [vmem:[%s6985] sm:$0xff]
    %v6987 = vld [vmem:[%s6985 + $0x8] sm:$0xff]
    %v6988 = vld [vmem:[%s6985 + $0x10] sm:$0xff]
    %v6989 = vld [vmem:[%s6985 + $0x18] sm:$0xff]
    %v6990 = vperm.slane %v6931, 2
    %v6992 = vsel %vm64, %v6983, 0
    %v6995 = vsel %vm64, %v6984, 0
    %6997 = vmatpush.msra.mxu0 0.0
    %6998 = vmatpush.msra.mxu0 0.0
    %6999 = vmatpush.msra.mxu0 0.0
    %7000 = vmatpush.msra.mxu0 0.0
    %7001 = vmatpush.msra.mxu0 0.0
    %7002 = vmatpush.msra.mxu0 0.0
    %7003 = vmatpush.msra.mxu0 0.0
    %7004 = vmatpush.msra.mxu0 0.0
    %7005 = vmatpush.msra.mxu0 0.0
    %7006 = vmatpush.msra.mxu0 0.0
    %7007 = vmatpush.msra.mxu0 0.0
    %7008 = vmatpush.msra.mxu0 0.0
    %7009 = vmatpush.msra.mxu0 %v6989
    %7010 = vmatpush.msra.mxu0 %v6988
    %7011 = vmatpush.msra.mxu0 %v6987
    %7012 = vmatpush.msra.mxu0 %v6986
    %7013 = vmatmul.f32.gmra.mxu0 %v6992
    %v7014 = vpop.f32.mrf.mxu0
    %v7015 = vadd.f32 %v6990, %v7014
    %7016 = vmatmul.f32.gmra.mxu0 %v6995
    %v7017 = vpop.f32.mrf.mxu0
    %v7018 = vadd.f32 %v6990, %v7017
    %7019 = vdwg.mxu0
    %s7020 = scalar_lea.vmem [#allocation2], 544
    %v7021 = vld [vmem:[%s7020] sm:$0xff]
    %v7022 = vld [vmem:[%s7020 + $0x8] sm:$0xff]
    %v7023 = vld [vmem:[%s7020 + $0x10] sm:$0xff]
    %v7024 = vld [vmem:[%s7020 + $0x18] sm:$0xff]
    %v7025 = vperm.slane %v6931, 3
    %7026 = vmatpush.msra.mxu0 0.0
    %7027 = vmatpush.msra.mxu0 0.0
    %7028 = vmatpush.msra.mxu0 0.0
    %7029 = vmatpush.msra.mxu0 0.0
    %7030 = vmatpush.msra.mxu0 0.0
    %7031 = vmatpush.msra.mxu0 0.0
    %7032 = vmatpush.msra.mxu0 0.0
    %7033 = vmatpush.msra.mxu0 0.0
    %7034 = vmatpush.msra.mxu0 0.0
    %7035 = vmatpush.msra.mxu0 0.0
    %7036 = vmatpush.msra.mxu0 0.0
    %7037 = vmatpush.msra.mxu0 0.0
    %7038 = vmatpush.msra.mxu0 %v7024
    %7039 = vmatpush.msra.mxu0 %v7023
    %7040 = vmatpush.msra.mxu0 %v7022
    %7041 = vmatpush.msra.mxu0 %v7021
    %7042 = vmatmul.f32.gmra.mxu0 %v6992
    %v7043 = vpop.f32.mrf.mxu0
    %v7044 = vadd.f32 %v7025, %v7043
    %7045 = vmatmul.f32.gmra.mxu0 %v6995
    %v7046 = vpop.f32.mrf.mxu0
    %v7047 = vadd.f32 %v7025, %v7046
    %7048 = vdwg.mxu0
    %s7049 = scalar_lea.vmem [#allocation2], 576
    %v7050 = vld [vmem:[%s7049] sm:$0xff]
    %v7051 = vld [vmem:[%s7049 + $0x8] sm:$0xff]
    %v7052 = vld [vmem:[%s7049 + $0x10] sm:$0xff]
    %v7053 = vld [vmem:[%s7049 + $0x18] sm:$0xff]
    %v7054 = vperm.slane %v6931, 4
    %7055 = vmatpush.msra.mxu0 0.0
    %7056 = vmatpush.msra.mxu0 0.0
    %7057 = vmatpush.msra.mxu0 0.0
    %7058 = vmatpush.msra.mxu0 0.0
    %7059 = vmatpush.msra.mxu0 0.0
    %7060 = vmatpush.msra.mxu0 0.0
    %7061 = vmatpush.msra.mxu0 0.0
    %7062 = vmatpush.msra.mxu0 0.0
    %7063 = vmatpush.msra.mxu0 0.0
    %7064 = vmatpush.msra.mxu0 0.0
    %7065 = vmatpush.msra.mxu0 0.0
    %7066 = vmatpush.msra.mxu0 0.0
    %7067 = vmatpush.msra.mxu0 %v7053
    %7068 = vmatpush.msra.mxu0 %v7052
    %7069 = vmatpush.msra.mxu0 %v7051
    %7070 = vmatpush.msra.mxu0 %v7050
    %7071 = vmatmul.f32.gmra.mxu0 %v6992
    %v7072 = vpop.f32.mrf.mxu0
    %v7073 = vadd.f32 %v7054, %v7072
    %7074 = vmatmul.f32.gmra.mxu0 %v6995
    %v7075 = vpop.f32.mrf.mxu0
    %v7076 = vadd.f32 %v7054, %v7075
    %7077 = vdwg.mxu0
    %7079 = vrot.lane.b32.xlu0 %v7015, 120
    %v7080 = vpop.permute.xlu0 %7079
    %7082 = vrot.lane.b32.xlu0 %v7015, 112
    %v7083 = vpop.permute.xlu0 %7082
    %7085 = vrot.lane.b32.xlu0 %v7015, 104
    %v7086 = vpop.permute.xlu0 %7085
    %v7088 = vrot.slane %v7083, 4
    %v7089 = vsel %vm225, %v7088, %v7015
    %v7090 = vrot.slane %v7015, 4
    %v7091 = vsel %vm225, %v7083, %v7090
    %v7093 = vunpack.c.l.s4 1983009808
    %v7094 = vunpack.c.0.s8 %v7093
    %v7095 = vperm.slane %v7089, %v7094
    %v7097 = vunpack.c.l.s4 1983009808
    %v7098 = vunpack.c.0.s8 %v7097
    %v7099 = vperm.slane %v7091, %v7098
    %v7100 = vrot.slane %v7086, 4
    %v7101 = vsel %vm225, %v7100, %v7080
    %v7102 = vrot.slane %v7080, 4
    %v7103 = vsel %vm225, %v7086, %v7102
    %v7105 = vunpack.c.l.s4 1983009808
    %v7106 = vunpack.c.0.s8 %v7105
    %v7107 = vperm.slane %v7101, %v7106
    %v7109 = vunpack.c.l.s4 1983009808
    %v7110 = vunpack.c.0.s8 %v7109
    %v7111 = vperm.slane %v7103, %v7110
    %v7112 = vrot.slane %v7107, 4
    %v7113 = vsel %vm225, %v7112, %v7095
    %v7114 = vrot.slane %v7095, 4
    %v7115 = vsel %vm225, %v7107, %v7114
    %v7117 = vunpack.c.l.s4 1934713408
    %v7118 = vunpack.c.0.s8 %v7117
    %v7119 = vperm.slane %v7113, %v7118
    %v7121 = vunpack.c.l.s4 1934713408
    %v7122 = vunpack.c.0.s8 %v7121
    %v7123 = vperm.slane %v7115, %v7122
    %v7124 = vrot.slane %v7111, 4
    %v7125 = vsel %vm225, %v7124, %v7099
    %v7126 = vrot.slane %v7099, 4
    %v7127 = vsel %vm225, %v7111, %v7126
    %v7129 = vunpack.c.l.s4 1934713408
    %v7130 = vunpack.c.0.s8 %v7129
    %v7131 = vperm.slane %v7125, %v7130
    %v7133 = vunpack.c.l.s4 1934713408
    %v7134 = vunpack.c.0.s8 %v7133
    %v7135 = vperm.slane %v7127, %v7134
    %v7136 = vrot.slane %v7119, 4
    %v7137 = vsel %vm225, 0.0, %v7136
    %v7138 = vrot.slane %v7123, 4
    %v7139 = vsel %vm225, 0.0, %v7138
    %v7140 = vrot.slane %v7131, 4
    %v7141 = vsel %vm225, 0.0, %v7140
    %v7142 = vrot.slane %v7135, 4
    %v7143 = vsel %vm225, 0.0, %v7142
    %v7144 = vsel %vm225, %v7138, %v7119
    %v7146 = vunpack.c.l.s4 1983009808
    %v7147 = vunpack.c.0.s8 %v7146
    %v7148 = vperm.slane %v7144, %v7147
    %v7149 = vrot.slane %v7139, 4
    %v7150 = vsel %vm225, %v7149, %v7137
    %v7152 = vunpack.c.l.s4 1983009808
    %v7153 = vunpack.c.0.s8 %v7152
    %v7154 = vperm.slane %v7150, %v7153
    %v7155 = vsel %vm225, %v7142, %v7131
    %v7157 = vunpack.c.l.s4 1983009808
    %v7158 = vunpack.c.0.s8 %v7157
    %v7159 = vperm.slane %v7155, %v7158
    %v7160 = vrot.slane %v7143, 4
    %v7161 = vsel %vm225, %v7160, %v7141
    %v7163 = vunpack.c.l.s4 1983009808
    %v7164 = vunpack.c.0.s8 %v7163
    %v7165 = vperm.slane %v7161, %v7164
    %v7166 = vrot.slane %v7154, 4
    %v7167 = vsel %vm225, %v7166, %v7148
    %v7168 = vrot.slane %v7148, 4
    %v7169 = vsel %vm225, %v7154, %v7168
    %v7171 = vunpack.c.l.s4 1934713408
    %v7172 = vunpack.c.0.s8 %v7171
    %v7173 = vperm.slane %v7167, %v7172
    %v7175 = vunpack.c.l.s4 1934713408
    %v7176 = vunpack.c.0.s8 %v7175
    %v7177 = vperm.slane %v7169, %v7176
    %v7178 = vrot.slane %v7165, 4
    %v7179 = vsel %vm225, %v7178, %v7159
    %v7180 = vrot.slane %v7159, 4
    %v7181 = vsel %vm225, %v7165, %v7180
    %v7183 = vunpack.c.l.s4 1934713408
    %v7184 = vunpack.c.0.s8 %v7183
    %v7185 = vperm.slane %v7179, %v7184
    %v7187 = vunpack.c.l.s4 1934713408
    %v7188 = vunpack.c.0.s8 %v7187
    %v7189 = vperm.slane %v7181, %v7188
    %v7190 = vrot.slane %v7185, 4
    %v7191 = vsel %vm225, %v7190, %v7173
    %v7192 = vrot.slane %v7173, 4
    %v7193 = vsel %vm225, %v7185, %v7192
    %v7194 = vrot.slane %v7189, 4
    %v7195 = vsel %vm225, %v7194, %v7177
    %v7196 = vrot.slane %v7177, 4
    %v7197 = vsel %vm225, %v7189, %v7196
    %7199 = vrot.lane.b32.xlu0 %v7044, 120
    %v7200 = vpop.permute.xlu0 %7199
    %7202 = vrot.lane.b32.xlu0 %v7044, 112
    %v7203 = vpop.permute.xlu0 %7202
    %7205 = vrot.lane.b32.xlu0 %v7044, 104
    %v7206 = vpop.permute.xlu0 %7205
    %v7208 = vrot.slane %v7203, 4
    %v7209 = vsel %vm225, %v7208, %v7044
    %v7210 = vrot.slane %v7044, 4
    %v7211 = vsel %vm225, %v7203, %v7210
    %v7213 = vunpack.c.l.s4 1983009808
    %v7214 = vunpack.c.0.s8 %v7213
    %v7215 = vperm.slane %v7209, %v7214
    %v7217 = vunpack.c.l.s4 1983009808
    %v7218 = vunpack.c.0.s8 %v7217
    %v7219 = vperm.slane %v7211, %v7218
    %v7220 = vrot.slane %v7206, 4
    %v7221 = vsel %vm225, %v7220, %v7200
    %v7222 = vrot.slane %v7200, 4
    %v7223 = vsel %vm225, %v7206, %v7222
    %v7225 = vunpack.c.l.s4 1983009808
    %v7226 = vunpack.c.0.s8 %v7225
    %v7227 = vperm.slane %v7221, %v7226
    %v7229 = vunpack.c.l.s4 1983009808
    %v7230 = vunpack.c.0.s8 %v7229
    %v7231 = vperm.slane %v7223, %v7230
    %v7232 = vrot.slane %v7227, 4
    %v7233 = vsel %vm225, %v7232, %v7215
    %v7234 = vrot.slane %v7215, 4
    %v7235 = vsel %vm225, %v7227, %v7234
    %v7237 = vunpack.c.l.s4 1934713408
    %v7238 = vunpack.c.0.s8 %v7237
    %v7239 = vperm.slane %v7233, %v7238
    %v7241 = vunpack.c.l.s4 1934713408
    %v7242 = vunpack.c.0.s8 %v7241
    %v7243 = vperm.slane %v7235, %v7242
    %v7244 = vrot.slane %v7231, 4
    %v7245 = vsel %vm225, %v7244, %v7219
    %v7246 = vrot.slane %v7219, 4
    %v7247 = vsel %vm225, %v7231, %v7246
    %v7249 = vunpack.c.l.s4 1934713408
    %v7250 = vunpack.c.0.s8 %v7249
    %v7251 = vperm.slane %v7245, %v7250
    %v7253 = vunpack.c.l.s4 1934713408
    %v7254 = vunpack.c.0.s8 %v7253
    %v7255 = vperm.slane %v7247, %v7254
    %v7256 = vrot.slane %v7239, 4
    %v7257 = vsel %vm225, 0.0, %v7256
    %v7258 = vrot.slane %v7243, 4
    %v7259 = vsel %vm225, 0.0, %v7258
    %v7260 = vrot.slane %v7251, 4
    %v7261 = vsel %vm225, 0.0, %v7260
    %v7262 = vrot.slane %v7255, 4
    %v7263 = vsel %vm225, 0.0, %v7262
    %v7264 = vsel %vm225, %v7258, %v7239
    %v7266 = vunpack.c.l.s4 1983009808
    %v7267 = vunpack.c.0.s8 %v7266
    %v7268 = vperm.slane %v7264, %v7267
    %v7269 = vrot.slane %v7259, 4
    %v7270 = vsel %vm225, %v7269, %v7257
    %v7272 = vunpack.c.l.s4 1983009808
    %v7273 = vunpack.c.0.s8 %v7272
    %v7274 = vperm.slane %v7270, %v7273
    %v7275 = vsel %vm225, %v7262, %v7251
    %v7277 = vunpack.c.l.s4 1983009808
    %v7278 = vunpack.c.0.s8 %v7277
    %v7279 = vperm.slane %v7275, %v7278
    %v7280 = vrot.slane %v7263, 4
    %v7281 = vsel %vm225, %v7280, %v7261
    %v7283 = vunpack.c.l.s4 1983009808
    %v7284 = vunpack.c.0.s8 %v7283
    %v7285 = vperm.slane %v7281, %v7284
    %v7286 = vrot.slane %v7274, 4
    %v7287 = vsel %vm225, %v7286, %v7268
    %v7288 = vrot.slane %v7268, 4
    %v7289 = vsel %vm225, %v7274, %v7288
    %v7291 = vunpack.c.l.s4 1934713408
    %v7292 = vunpack.c.0.s8 %v7291
    %v7293 = vperm.slane %v7287, %v7292
    %v7295 = vunpack.c.l.s4 1934713408
    %v7296 = vunpack.c.0.s8 %v7295
    %v7297 = vperm.slane %v7289, %v7296
    %v7298 = vrot.slane %v7285, 4
    %v7299 = vsel %vm225, %v7298, %v7279
    %v7300 = vrot.slane %v7279, 4
    %v7301 = vsel %vm225, %v7285, %v7300
    %v7303 = vunpack.c.l.s4 1934713408
    %v7304 = vunpack.c.0.s8 %v7303
    %v7305 = vperm.slane %v7299, %v7304
    %v7307 = vunpack.c.l.s4 1934713408
    %v7308 = vunpack.c.0.s8 %v7307
    %v7309 = vperm.slane %v7301, %v7308
    %v7310 = vrot.slane %v7305, 4
    %v7311 = vsel %vm225, %v7310, %v7293
    %v7312 = vrot.slane %v7293, 4
    %v7313 = vsel %vm225, %v7305, %v7312
    %v7314 = vrot.slane %v7309, 4
    %v7315 = vsel %vm225, %v7314, %v7297
    %v7316 = vrot.slane %v7297, 4
    %v7317 = vsel %vm225, %v7309, %v7316
    %7319 = vrot.lane.b32.xlu0 %v7073, 120
    %v7320 = vpop.permute.xlu0 %7319
    %7322 = vrot.lane.b32.xlu0 %v7073, 112
    %v7323 = vpop.permute.xlu0 %7322
    %7325 = vrot.lane.b32.xlu0 %v7073, 104
    %v7326 = vpop.permute.xlu0 %7325
    %v7328 = vrot.slane %v7323, 4
    %v7329 = vsel %vm225, %v7328, %v7073
    %v7330 = vrot.slane %v7073, 4
    %v7331 = vsel %vm225, %v7323, %v7330
    %v7333 = vunpack.c.l.s4 1983009808
    %v7334 = vunpack.c.0.s8 %v7333
    %v7335 = vperm.slane %v7329, %v7334
    %v7337 = vunpack.c.l.s4 1983009808
    %v7338 = vunpack.c.0.s8 %v7337
    %v7339 = vperm.slane %v7331, %v7338
    %v7340 = vrot.slane %v7326, 4
    %v7341 = vsel %vm225, %v7340, %v7320
    %v7342 = vrot.slane %v7320, 4
    %v7343 = vsel %vm225, %v7326, %v7342
    %v7345 = vunpack.c.l.s4 1983009808
    %v7346 = vunpack.c.0.s8 %v7345
    %v7347 = vperm.slane %v7341, %v7346
    %v7349 = vunpack.c.l.s4 1983009808
    %v7350 = vunpack.c.0.s8 %v7349
    %v7351 = vperm.slane %v7343, %v7350
    %v7352 = vrot.slane %v7347, 4
    %v7353 = vsel %vm225, %v7352, %v7335
    %v7354 = vrot.slane %v7335, 4
    %v7355 = vsel %vm225, %v7347, %v7354
    %v7357 = vunpack.c.l.s4 1934713408
    %v7358 = vunpack.c.0.s8 %v7357
    %v7359 = vperm.slane %v7353, %v7358
    %v7361 = vunpack.c.l.s4 1934713408
    %v7362 = vunpack.c.0.s8 %v7361
    %v7363 = vperm.slane %v7355, %v7362
    %v7364 = vrot.slane %v7351, 4
    %v7365 = vsel %vm225, %v7364, %v7339
    %v7366 = vrot.slane %v7339, 4
    %v7367 = vsel %vm225, %v7351, %v7366
    %v7369 = vunpack.c.l.s4 1934713408
    %v7370 = vunpack.c.0.s8 %v7369
    %v7371 = vperm.slane %v7365, %v7370
    %v7373 = vunpack.c.l.s4 1934713408
    %v7374 = vunpack.c.0.s8 %v7373
    %v7375 = vperm.slane %v7367, %v7374
    %v7376 = vrot.slane %v7359, 4
    %v7377 = vsel %vm225, 0.0, %v7376
    %v7378 = vrot.slane %v7363, 4
    %v7379 = vsel %vm225, 0.0, %v7378
    %v7380 = vrot.slane %v7371, 4
    %v7381 = vsel %vm225, 0.0, %v7380
    %v7382 = vrot.slane %v7375, 4
    %v7383 = vsel %vm225, 0.0, %v7382
    %v7384 = vsel %vm225, %v7378, %v7359
    %v7386 = vunpack.c.l.s4 1983009808
    %v7387 = vunpack.c.0.s8 %v7386
    %v7388 = vperm.slane %v7384, %v7387
    %v7389 = vrot.slane %v7379, 4
    %v7390 = vsel %vm225, %v7389, %v7377
    %v7392 = vunpack.c.l.s4 1983009808
    %v7393 = vunpack.c.0.s8 %v7392
    %v7394 = vperm.slane %v7390, %v7393
    %v7395 = vsel %vm225, %v7382, %v7371
    %v7397 = vunpack.c.l.s4 1983009808
    %v7398 = vunpack.c.0.s8 %v7397
    %v7399 = vperm.slane %v7395, %v7398
    %v7400 = vrot.slane %v7383, 4
    %v7401 = vsel %vm225, %v7400, %v7381
    %v7403 = vunpack.c.l.s4 1983009808
    %v7404 = vunpack.c.0.s8 %v7403
    %v7405 = vperm.slane %v7401, %v7404
    %v7406 = vrot.slane %v7394, 4
    %v7407 = vsel %vm225, %v7406, %v7388
    %v7408 = vrot.slane %v7388, 4
    %v7409 = vsel %vm225, %v7394, %v7408
    %v7411 = vunpack.c.l.s4 1934713408
    %v7412 = vunpack.c.0.s8 %v7411
    %v7413 = vperm.slane %v7407, %v7412
    %v7415 = vunpack.c.l.s4 1934713408
    %v7416 = vunpack.c.0.s8 %v7415
    %v7417 = vperm.slane %v7409, %v7416
    %v7418 = vrot.slane %v7405, 4
    %v7419 = vsel %vm225, %v7418, %v7399
    %v7420 = vrot.slane %v7399, 4
    %v7421 = vsel %vm225, %v7405, %v7420
    %v7423 = vunpack.c.l.s4 1934713408
    %v7424 = vunpack.c.0.s8 %v7423
    %v7425 = vperm.slane %v7419, %v7424
    %v7427 = vunpack.c.l.s4 1934713408
    %v7428 = vunpack.c.0.s8 %v7427
    %v7429 = vperm.slane %v7421, %v7428
    %v7430 = vrot.slane %v7425, 4
    %v7431 = vsel %vm225, %v7430, %v7413
    %v7432 = vrot.slane %v7413, 4
    %v7433 = vsel %vm225, %v7425, %v7432
    %v7434 = vrot.slane %v7429, 4
    %v7435 = vsel %vm225, %v7434, %v7417
    %v7436 = vrot.slane %v7417, 4
    %v7437 = vsel %vm225, %v7429, %v7436
    %v7439 = vsel %vm575, %v7191, 0
    %v7442 = vsel %vm575, %v7311, 0
    %7444 = vmatpush.xpose.msra.mxu0 0.0
    %7445 = vmatpush.xpose.msra.mxu0 0.0
    %7446 = vmatpush.xpose.msra.mxu0 0.0
    %7447 = vmatpush.xpose.msra.mxu0 0.0
    %7448 = vmatpush.xpose.msra.mxu0 0.0
    %7449 = vmatpush.xpose.msra.mxu0 0.0
    %7450 = vmatpush.xpose.msra.mxu0 0.0
    %7451 = vmatpush.xpose.msra.mxu0 0.0
    %7452 = vmatpush.xpose.msra.mxu0 0.0
    %7453 = vmatpush.xpose.msra.mxu0 0.0
    %7454 = vmatpush.xpose.msra.mxu0 0.0
    %7455 = vmatpush.xpose.msra.mxu0 0.0
    %7456 = vmatpush.xpose.msra.mxu0 0.0
    %7457 = vmatpush.xpose.msra.mxu0 0.0
    %7458 = vmatpush.xpose.msra.mxu0 0.0
    %7459 = vmatpush.xpose.msra.mxu0 %v7442
    %7460 = vmatmul.f32.gmra.mxu0 %v7439
    %v7461 = vpop.f32.mrf.mxu0
    %v7462 = vadd.f32 0.0, %v7461
    %7463 = vdwg.mxu0
    %v7465 = vsel %vm575, %v7193, 0
    %v7468 = vsel %vm575, %v7313, 0
    %7470 = vmatpush.xpose.msra.mxu0 0.0
    %7471 = vmatpush.xpose.msra.mxu0 0.0
    %7472 = vmatpush.xpose.msra.mxu0 0.0
    %7473 = vmatpush.xpose.msra.mxu0 0.0
    %7474 = vmatpush.xpose.msra.mxu0 0.0
    %7475 = vmatpush.xpose.msra.mxu0 0.0
    %7476 = vmatpush.xpose.msra.mxu0 0.0
    %7477 = vmatpush.xpose.msra.mxu0 0.0
    %7478 = vmatpush.xpose.msra.mxu0 0.0
    %7479 = vmatpush.xpose.msra.mxu0 0.0
    %7480 = vmatpush.xpose.msra.mxu0 0.0
    %7481 = vmatpush.xpose.msra.mxu0 0.0
    %7482 = vmatpush.xpose.msra.mxu0 0.0
    %7483 = vmatpush.xpose.msra.mxu0 0.0
    %7484 = vmatpush.xpose.msra.mxu0 0.0
    %7485 = vmatpush.xpose.msra.mxu0 %v7468
    %7486 = vmatmul.f32.gmra.mxu0 %v7465
    %v7487 = vpop.f32.mrf.mxu0
    %v7488 = vadd.f32 0.0, %v7487
    %7489 = vdwg.mxu0
    %v7491 = vsel %vm575, %v7195, 0
    %v7494 = vsel %vm575, %v7315, 0
    %7496 = vmatpush.xpose.msra.mxu0 0.0
    %7497 = vmatpush.xpose.msra.mxu0 0.0
    %7498 = vmatpush.xpose.msra.mxu0 0.0
    %7499 = vmatpush.xpose.msra.mxu0 0.0
    %7500 = vmatpush.xpose.msra.mxu0 0.0
    %7501 = vmatpush.xpose.msra.mxu0 0.0
    %7502 = vmatpush.xpose.msra.mxu0 0.0
    %7503 = vmatpush.xpose.msra.mxu0 0.0
    %7504 = vmatpush.xpose.msra.mxu0 0.0
    %7505 = vmatpush.xpose.msra.mxu0 0.0
    %7506 = vmatpush.xpose.msra.mxu0 0.0
    %7507 = vmatpush.xpose.msra.mxu0 0.0
    %7508 = vmatpush.xpose.msra.mxu0 0.0
    %7509 = vmatpush.xpose.msra.mxu0 0.0
    %7510 = vmatpush.xpose.msra.mxu0 0.0
    %7511 = vmatpush.xpose.msra.mxu0 %v7494
    %7512 = vmatmul.f32.gmra.mxu0 %v7491
    %v7513 = vpop.f32.mrf.mxu0
    %v7514 = vadd.f32 0.0, %v7513
    %7515 = vdwg.mxu0
    %v7517 = vsel %vm575, %v7197, 0
    %v7520 = vsel %vm575, %v7317, 0
    %7522 = vmatpush.xpose.msra.mxu0 0.0
    %7523 = vmatpush.xpose.msra.mxu0 0.0
    %7524 = vmatpush.xpose.msra.mxu0 0.0
    %7525 = vmatpush.xpose.msra.mxu0 0.0
    %7526 = vmatpush.xpose.msra.mxu0 0.0
    %7527 = vmatpush.xpose.msra.mxu0 0.0
    %7528 = vmatpush.xpose.msra.mxu0 0.0
    %7529 = vmatpush.xpose.msra.mxu0 0.0
    %7530 = vmatpush.xpose.msra.mxu0 0.0
    %7531 = vmatpush.xpose.msra.mxu0 0.0
    %7532 = vmatpush.xpose.msra.mxu0 0.0
    %7533 = vmatpush.xpose.msra.mxu0 0.0
    %7534 = vmatpush.xpose.msra.mxu0 0.0
    %7535 = vmatpush.xpose.msra.mxu0 0.0
    %7536 = vmatpush.xpose.msra.mxu0 0.0
    %7537 = vmatpush.xpose.msra.mxu0 %v7520
    %7538 = vmatmul.f32.gmra.mxu0 %v7517
    %v7539 = vpop.f32.mrf.mxu0
    %v7540 = vadd.f32 0.0, %v7539
    %7541 = vdwg.mxu0
    %v7542 = vmul.f32 %v7462, 0.35355338
    %v7543 = vmul.f32 %v7488, 0.35355338
    %v7544 = vmul.f32 %v7514, 0.35355338
    %v7545 = vmul.f32 %v7540, 0.35355338
    %v7546 = vsel %vm685, %v7542, -1e+30
    %v7547 = vsel %vm685, %v7543, -1e+30
    %v7548 = vsel %vm685, %v7544, -1e+30
    %v7549 = vsel %vm685, %v7545, -1e+30
    %v7550 = vsel %vm575, %v7546, -inf
    %7551 = vmax.xlane.f32.xlu0 %v7550
    %v7552 = vpop.xlane.xlu0 %7551
    %v7553 = vsel %vm575, %v7547, -inf
    %7554 = vmax.xlane.f32.xlu0 %v7553
    %v7555 = vpop.xlane.xlu0 %7554
    %v7556 = vsel %vm575, %v7548, -inf
    %7557 = vmax.xlane.f32.xlu0 %v7556
    %v7558 = vpop.xlane.xlu0 %7557
    %v7559 = vsel %vm575, %v7549, -inf
    %7560 = vmax.xlane.f32.xlu0 %v7559
    %v7561 = vpop.xlane.xlu0 %7560
    %v7562 = vsub.f32 %v7546, %v7552
    %v7563 = vsub.f32 %v7547, %v7555
    %v7564 = vsub.f32 %v7548, %v7558
    %v7565 = vsub.f32 %v7549, %v7561
    %v7566 = vmul.f32 %v7562, 1.442695
    %v7567 = vpow.pop %v7566
    %v7568 = vmul.f32 %v7563, 1.442695
    %v7569 = vpow.pop %v7568
    %v7570 = vmul.f32 %v7564, 1.442695
    %v7571 = vpow.pop %v7570
    %v7572 = vmul.f32 %v7565, 1.442695
    %v7573 = vpow.pop %v7572
    %v7574 = vsel %vm575, %v7567, 0.0
    %7575 = vadd.xlane.f32.xlu0 %v7574
    %v7576 = vpop.xlane.xlu0 %7575
    %v7577 = vsel %vm575, %v7569, 0.0
    %7578 = vadd.xlane.f32.xlu0 %v7577
    %v7579 = vpop.xlane.xlu0 %7578
    %v7580 = vsel %vm575, %v7571, 0.0
    %7581 = vadd.xlane.f32.xlu0 %v7580
    %v7582 = vpop.xlane.xlu0 %7581
    %v7583 = vsel %vm575, %v7573, 0.0
    %7584 = vadd.xlane.f32.xlu0 %v7583
    %v7585 = vpop.xlane.xlu0 %7584
    %v7586 = vrcp.pop %v7576
    %v7587 = vrcp.pop %v7579
    %v7588 = vrcp.pop %v7582
    %v7589 = vrcp.pop %v7585
    %v7590 = vmul.f32 %v7567, %v7586
    %v7591 = vmul.f32 %v7569, %v7587
    %v7592 = vmul.f32 %v7571, %v7588
    %v7593 = vmul.f32 %v7573, %v7589
    %v7595 = vsel %vm575, %v7590, 0
    %7597 = vmatpush.msra.mxu0 0.0
    %7598 = vmatpush.msra.mxu0 0.0
    %7599 = vmatpush.msra.mxu0 0.0
    %7600 = vmatpush.msra.mxu0 0.0
    %7601 = vmatpush.msra.mxu0 0.0
    %7602 = vmatpush.msra.mxu0 0.0
    %7603 = vmatpush.msra.mxu0 0.0
    %7604 = vmatpush.msra.mxu0 0.0
    %7605 = vmatpush.msra.mxu0 0.0
    %7606 = vmatpush.msra.mxu0 0.0
    %7607 = vmatpush.msra.mxu0 0.0
    %7608 = vmatpush.msra.mxu0 0.0
    %7609 = vmatpush.msra.mxu0 0.0
    %7610 = vmatpush.msra.mxu0 0.0
    %7611 = vmatpush.msra.mxu0 0.0
    %7612 = vmatpush.msra.mxu0 %v7431
    %7613 = vmatmul.f32.gmra.mxu0 %v7595
    %v7614 = vpop.f32.mrf.mxu0
    %v7615 = vadd.f32 0.0, %v7614
    %7616 = vdwg.mxu0
    %v7618 = vsel %vm575, %v7591, 0
    %7620 = vmatpush.msra.mxu0 0.0
    %7621 = vmatpush.msra.mxu0 0.0
    %7622 = vmatpush.msra.mxu0 0.0
    %7623 = vmatpush.msra.mxu0 0.0
    %7624 = vmatpush.msra.mxu0 0.0
    %7625 = vmatpush.msra.mxu0 0.0
    %7626 = vmatpush.msra.mxu0 0.0
    %7627 = vmatpush.msra.mxu0 0.0
    %7628 = vmatpush.msra.mxu0 0.0
    %7629 = vmatpush.msra.mxu0 0.0
    %7630 = vmatpush.msra.mxu0 0.0
    %7631 = vmatpush.msra.mxu0 0.0
    %7632 = vmatpush.msra.mxu0 0.0
    %7633 = vmatpush.msra.mxu0 0.0
    %7634 = vmatpush.msra.mxu0 0.0
    %7635 = vmatpush.msra.mxu0 %v7433
    %7636 = vmatmul.f32.gmra.mxu0 %v7618
    %v7637 = vpop.f32.mrf.mxu0
    %v7638 = vadd.f32 0.0, %v7637
    %7639 = vdwg.mxu0
    %v7641 = vsel %vm575, %v7592, 0
    %7643 = vmatpush.msra.mxu0 0.0
    %7644 = vmatpush.msra.mxu0 0.0
    %7645 = vmatpush.msra.mxu0 0.0
    %7646 = vmatpush.msra.mxu0 0.0
    %7647 = vmatpush.msra.mxu0 0.0
    %7648 = vmatpush.msra.mxu0 0.0
    %7649 = vmatpush.msra.mxu0 0.0
    %7650 = vmatpush.msra.mxu0 0.0
    %7651 = vmatpush.msra.mxu0 0.0
    %7652 = vmatpush.msra.mxu0 0.0
    %7653 = vmatpush.msra.mxu0 0.0
    %7654 = vmatpush.msra.mxu0 0.0
    %7655 = vmatpush.msra.mxu0 0.0
    %7656 = vmatpush.msra.mxu0 0.0
    %7657 = vmatpush.msra.mxu0 0.0
    %7658 = vmatpush.msra.mxu0 %v7435
    %7659 = vmatmul.f32.gmra.mxu0 %v7641
    %v7660 = vpop.f32.mrf.mxu0
    %v7661 = vadd.f32 0.0, %v7660
    %7662 = vdwg.mxu0
    %v7664 = vsel %vm575, %v7593, 0
    %7666 = vmatpush.msra.mxu0 0.0
    %7667 = vmatpush.msra.mxu0 0.0
    %7668 = vmatpush.msra.mxu0 0.0
    %7669 = vmatpush.msra.mxu0 0.0
    %7670 = vmatpush.msra.mxu0 0.0
    %7671 = vmatpush.msra.mxu0 0.0
    %7672 = vmatpush.msra.mxu0 0.0
    %7673 = vmatpush.msra.mxu0 0.0
    %7674 = vmatpush.msra.mxu0 0.0
    %7675 = vmatpush.msra.mxu0 0.0
    %7676 = vmatpush.msra.mxu0 0.0
    %7677 = vmatpush.msra.mxu0 0.0
    %7678 = vmatpush.msra.mxu0 0.0
    %7679 = vmatpush.msra.mxu0 0.0
    %7680 = vmatpush.msra.mxu0 0.0
    %7681 = vmatpush.msra.mxu0 %v7437
    %7682 = vmatmul.f32.gmra.mxu0 %v7664
    %v7683 = vpop.f32.mrf.mxu0
    %v7684 = vadd.f32 0.0, %v7683
    %7685 = vdwg.mxu0
    %v7686 = vrot.slane %v7661, 4
    %v7687 = vsel %vm225, %v7686, %v7615
    %v7688 = vrot.slane %v7615, 4
    %v7689 = vsel %vm225, %v7661, %v7688
    %v7691 = vunpack.c.l.s4 1983009808
    %v7692 = vunpack.c.0.s8 %v7691
    %v7693 = vperm.slane %v7687, %v7692
    %v7695 = vunpack.c.l.s4 1983009808
    %v7696 = vunpack.c.0.s8 %v7695
    %v7697 = vperm.slane %v7689, %v7696
    %v7698 = vrot.slane %v7684, 4
    %v7699 = vsel %vm225, %v7698, %v7638
    %v7700 = vrot.slane %v7638, 4
    %v7701 = vsel %vm225, %v7684, %v7700
    %v7703 = vunpack.c.l.s4 1983009808
    %v7704 = vunpack.c.0.s8 %v7703
    %v7705 = vperm.slane %v7699, %v7704
    %v7707 = vunpack.c.l.s4 1983009808
    %v7708 = vunpack.c.0.s8 %v7707
    %v7709 = vperm.slane %v7701, %v7708
    %v7710 = vrot.slane %v7705, 4
    %v7711 = vsel %vm225, %v7710, %v7693
    %v7712 = vrot.slane %v7693, 4
    %v7713 = vsel %vm225, %v7705, %v7712
    %v7715 = vunpack.c.l.s4 1934713408
    %v7716 = vunpack.c.0.s8 %v7715
    %v7717 = vperm.slane %v7711, %v7716
    %v7719 = vunpack.c.l.s4 1934713408
    %v7720 = vunpack.c.0.s8 %v7719
    %v7721 = vperm.slane %v7713, %v7720
    %v7722 = vrot.slane %v7709, 4
    %v7723 = vsel %vm225, %v7722, %v7697
    %v7724 = vrot.slane %v7697, 4
    %v7725 = vsel %vm225, %v7709, %v7724
    %v7727 = vunpack.c.l.s4 1934713408
    %v7728 = vunpack.c.0.s8 %v7727
    %v7729 = vperm.slane %v7723, %v7728
    %v7731 = vunpack.c.l.s4 1934713408
    %v7732 = vunpack.c.0.s8 %v7731
    %v7733 = vperm.slane %v7725, %v7732
    %v7734 = vrot.slane %v7717, 4
    %v7735 = vsel %vm225, 0.0, %v7734
    %v7736 = vrot.slane %v7721, 4
    %v7737 = vsel %vm225, 0.0, %v7736
    %v7738 = vrot.slane %v7729, 4
    %v7739 = vsel %vm225, 0.0, %v7738
    %v7740 = vrot.slane %v7733, 4
    %v7741 = vsel %vm225, 0.0, %v7740
    %v7742 = vsel %vm225, %v7736, %v7717
    %v7744 = vunpack.c.l.s4 1983009808
    %v7745 = vunpack.c.0.s8 %v7744
    %v7746 = vperm.slane %v7742, %v7745
    %v7747 = vrot.slane %v7737, 4
    %v7748 = vsel %vm225, %v7747, %v7735
    %v7750 = vunpack.c.l.s4 1983009808
    %v7751 = vunpack.c.0.s8 %v7750
    %v7752 = vperm.slane %v7748, %v7751
    %v7753 = vsel %vm225, %v7740, %v7729
    %v7755 = vunpack.c.l.s4 1983009808
    %v7756 = vunpack.c.0.s8 %v7755
    %v7757 = vperm.slane %v7753, %v7756
    %v7758 = vrot.slane %v7741, 4
    %v7759 = vsel %vm225, %v7758, %v7739
    %v7761 = vunpack.c.l.s4 1983009808
    %v7762 = vunpack.c.0.s8 %v7761
    %v7763 = vperm.slane %v7759, %v7762
    %v7764 = vrot.slane %v7752, 4
    %v7765 = vsel %vm225, %v7764, %v7746
    %v7766 = vrot.slane %v7746, 4
    %v7767 = vsel %vm225, %v7752, %v7766
    %v7769 = vunpack.c.l.s4 1934713408
    %v7770 = vunpack.c.0.s8 %v7769
    %v7771 = vperm.slane %v7765, %v7770
    %v7773 = vunpack.c.l.s4 1934713408
    %v7774 = vunpack.c.0.s8 %v7773
    %v7775 = vperm.slane %v7767, %v7774
    %v7776 = vrot.slane %v7763, 4
    %v7777 = vsel %vm225, %v7776, %v7757
    %v7778 = vrot.slane %v7757, 4
    %v7779 = vsel %vm225, %v7763, %v7778
    %v7781 = vunpack.c.l.s4 1934713408
    %v7782 = vunpack.c.0.s8 %v7781
    %v7783 = vperm.slane %v7777, %v7782
    %v7785 = vunpack.c.l.s4 1934713408
    %v7786 = vunpack.c.0.s8 %v7785
    %v7787 = vperm.slane %v7779, %v7786
    %v7788 = vrot.slane %v7783, 4
    %v7789 = vsel %vm225, %v7788, %v7771
    %v7790 = vrot.slane %v7771, 4
    %v7791 = vsel %vm225, %v7783, %v7790
    %v7792 = vrot.slane %v7787, 4
    %v7793 = vsel %vm225, %v7792, %v7775
    %v7794 = vrot.slane %v7775, 4
    %v7795 = vsel %vm225, %v7787, %v7794
    %7797 = vrot.lane.b32.xlu0 %v7791, 8
    %v7798 = vpop.permute.xlu0 %7797
    %7801 = vrot.lane.b32.xlu0 %v7793, 16
    %v7802 = vpop.permute.xlu0 %7801
    %7805 = vrot.lane.b32.xlu0 %v7795, 24
    %v7806 = vpop.permute.xlu0 %7805
    %v7808 = vsel %vm575, %v7789, %v7798
    %v7809 = vsel %vm949, %v7808, %v7802
    %v7810 = vsel %vm951, %v7809, %v7806
    %7812 = vrot.lane.b32.xlu0 %v7018, 120
    %v7813 = vpop.permute.xlu0 %7812
    %7815 = vrot.lane.b32.xlu0 %v7018, 112
    %v7816 = vpop.permute.xlu0 %7815
    %7818 = vrot.lane.b32.xlu0 %v7018, 104
    %v7819 = vpop.permute.xlu0 %7818
    %v7821 = vrot.slane %v7816, 4
    %v7822 = vsel %vm225, %v7821, %v7018
    %v7823 = vrot.slane %v7018, 4
    %v7824 = vsel %vm225, %v7816, %v7823
    %v7826 = vunpack.c.l.s4 1983009808
    %v7827 = vunpack.c.0.s8 %v7826
    %v7828 = vperm.slane %v7822, %v7827
    %v7830 = vunpack.c.l.s4 1983009808
    %v7831 = vunpack.c.0.s8 %v7830
    %v7832 = vperm.slane %v7824, %v7831
    %v7833 = vrot.slane %v7819, 4
    %v7834 = vsel %vm225, %v7833, %v7813
    %v7835 = vrot.slane %v7813, 4
    %v7836 = vsel %vm225, %v7819, %v7835
    %v7838 = vunpack.c.l.s4 1983009808
    %v7839 = vunpack.c.0.s8 %v7838
    %v7840 = vperm.slane %v7834, %v7839
    %v7842 = vunpack.c.l.s4 1983009808
    %v7843 = vunpack.c.0.s8 %v7842
    %v7844 = vperm.slane %v7836, %v7843
    %v7845 = vrot.slane %v7840, 4
    %v7846 = vsel %vm225, %v7845, %v7828
    %v7847 = vrot.slane %v7828, 4
    %v7848 = vsel %vm225, %v7840, %v7847
    %v7850 = vunpack.c.l.s4 1934713408
    %v7851 = vunpack.c.0.s8 %v7850
    %v7852 = vperm.slane %v7846, %v7851
    %v7854 = vunpack.c.l.s4 1934713408
    %v7855 = vunpack.c.0.s8 %v7854
    %v7856 = vperm.slane %v7848, %v7855
    %v7857 = vrot.slane %v7844, 4
    %v7858 = vsel %vm225, %v7857, %v7832
    %v7859 = vrot.slane %v7832, 4
    %v7860 = vsel %vm225, %v7844, %v7859
    %v7862 = vunpack.c.l.s4 1934713408
    %v7863 = vunpack.c.0.s8 %v7862
    %v7864 = vperm.slane %v7858, %v7863
    %v7866 = vunpack.c.l.s4 1934713408
    %v7867 = vunpack.c.0.s8 %v7866
    %v7868 = vperm.slane %v7860, %v7867
    %v7869 = vrot.slane %v7852, 4
    %v7870 = vsel %vm225, 0.0, %v7869
    %v7871 = vrot.slane %v7856, 4
    %v7872 = vsel %vm225, 0.0, %v7871
    %v7873 = vrot.slane %v7864, 4
    %v7874 = vsel %vm225, 0.0, %v7873
    %v7875 = vrot.slane %v7868, 4
    %v7876 = vsel %vm225, 0.0, %v7875
    %v7877 = vsel %vm225, %v7871, %v7852
    %v7879 = vunpack.c.l.s4 1983009808
    %v7880 = vunpack.c.0.s8 %v7879
    %v7881 = vperm.slane %v7877, %v7880
    %v7882 = vrot.slane %v7872, 4
    %v7883 = vsel %vm225, %v7882, %v7870
    %v7885 = vunpack.c.l.s4 1983009808
    %v7886 = vunpack.c.0.s8 %v7885
    %v7887 = vperm.slane %v7883, %v7886
    %v7888 = vsel %vm225, %v7875, %v7864
    %v7890 = vunpack.c.l.s4 1983009808
    %v7891 = vunpack.c.0.s8 %v7890
    %v7892 = vperm.slane %v7888, %v7891
    %v7893 = vrot.slane %v7876, 4
    %v7894 = vsel %vm225, %v7893, %v7874
    %v7896 = vunpack.c.l.s4 1983009808
    %v7897 = vunpack.c.0.s8 %v7896
    %v7898 = vperm.slane %v7894, %v7897
    %v7899 = vrot.slane %v7887, 4
    %v7900 = vsel %vm225, %v7899, %v7881
    %v7901 = vrot.slane %v7881, 4
    %v7902 = vsel %vm225, %v7887, %v7901
    %v7904 = vunpack.c.l.s4 1934713408
    %v7905 = vunpack.c.0.s8 %v7904
    %v7906 = vperm.slane %v7900, %v7905
    %v7908 = vunpack.c.l.s4 1934713408
    %v7909 = vunpack.c.0.s8 %v7908
    %v7910 = vperm.slane %v7902, %v7909
    %v7911 = vrot.slane %v7898, 4
    %v7912 = vsel %vm225, %v7911, %v7892
    %v7913 = vrot.slane %v7892, 4
    %v7914 = vsel %vm225, %v7898, %v7913
    %v7916 = vunpack.c.l.s4 1934713408
    %v7917 = vunpack.c.0.s8 %v7916
    %v7918 = vperm.slane %v7912, %v7917
    %v7920 = vunpack.c.l.s4 1934713408
    %v7921 = vunpack.c.0.s8 %v7920
    %v7922 = vperm.slane %v7914, %v7921
    %v7923 = vrot.slane %v7918, 4
    %v7924 = vsel %vm225, %v7923, %v7906
    %v7925 = vrot.slane %v7906, 4
    %v7926 = vsel %vm225, %v7918, %v7925
    %v7927 = vrot.slane %v7922, 4
    %v7928 = vsel %vm225, %v7927, %v7910
    %v7929 = vrot.slane %v7910, 4
    %v7930 = vsel %vm225, %v7922, %v7929
    %7932 = vrot.lane.b32.xlu0 %v7047, 120
    %v7933 = vpop.permute.xlu0 %7932
    %7935 = vrot.lane.b32.xlu0 %v7047, 112
    %v7936 = vpop.permute.xlu0 %7935
    %7938 = vrot.lane.b32.xlu0 %v7047, 104
    %v7939 = vpop.permute.xlu0 %7938
    %v7941 = vrot.slane %v7936, 4
    %v7942 = vsel %vm225, %v7941, %v7047
    %v7943 = vrot.slane %v7047, 4
    %v7944 = vsel %vm225, %v7936, %v7943
    %v7946 = vunpack.c.l.s4 1983009808
    %v7947 = vunpack.c.0.s8 %v7946
    %v7948 = vperm.slane %v7942, %v7947
    %v7950 = vunpack.c.l.s4 1983009808
    %v7951 = vunpack.c.0.s8 %v7950
    %v7952 = vperm.slane %v7944, %v7951
    %v7953 = vrot.slane %v7939, 4
    %v7954 = vsel %vm225, %v7953, %v7933
    %v7955 = vrot.slane %v7933, 4
    %v7956 = vsel %vm225, %v7939, %v7955
    %v7958 = vunpack.c.l.s4 1983009808
    %v7959 = vunpack.c.0.s8 %v7958
    %v7960 = vperm.slane %v7954, %v7959
    %v7962 = vunpack.c.l.s4 1983009808
    %v7963 = vunpack.c.0.s8 %v7962
    %v7964 = vperm.slane %v7956, %v7963
    %v7965 = vrot.slane %v7960, 4
    %v7966 = vsel %vm225, %v7965, %v7948
    %v7967 = vrot.slane %v7948, 4
    %v7968 = vsel %vm225, %v7960, %v7967
    %v7970 = vunpack.c.l.s4 1934713408
    %v7971 = vunpack.c.0.s8 %v7970
    %v7972 = vperm.slane %v7966, %v7971
    %v7974 = vunpack.c.l.s4 1934713408
    %v7975 = vunpack.c.0.s8 %v7974
    %v7976 = vperm.slane %v7968, %v7975
    %v7977 = vrot.slane %v7964, 4
    %v7978 = vsel %vm225, %v7977, %v7952
    %v7979 = vrot.slane %v7952, 4
    %v7980 = vsel %vm225, %v7964, %v7979
    %v7982 = vunpack.c.l.s4 1934713408
    %v7983 = vunpack.c.0.s8 %v7982
    %v7984 = vperm.slane %v7978, %v7983
    %v7986 = vunpack.c.l.s4 1934713408
    %v7987 = vunpack.c.0.s8 %v7986
    %v7988 = vperm.slane %v7980, %v7987
    %v7989 = vrot.slane %v7972, 4
    %v7990 = vsel %vm225, 0.0, %v7989
    %v7991 = vrot.slane %v7976, 4
    %v7992 = vsel %vm225, 0.0, %v7991
    %v7993 = vrot.slane %v7984, 4
    %v7994 = vsel %vm225, 0.0, %v7993
    %v7995 = vrot.slane %v7988, 4
    %v7996 = vsel %vm225, 0.0, %v7995
    %v7997 = vsel %vm225, %v7991, %v7972
    %v7999 = vunpack.c.l.s4 1983009808
    %v8000 = vunpack.c.0.s8 %v7999
    %v8001 = vperm.slane %v7997, %v8000
    %v8002 = vrot.slane %v7992, 4
    %v8003 = vsel %vm225, %v8002, %v7990
    %v8005 = vunpack.c.l.s4 1983009808
    %v8006 = vunpack.c.0.s8 %v8005
    %v8007 = vperm.slane %v8003, %v8006
    %v8008 = vsel %vm225, %v7995, %v7984
    %v8010 = vunpack.c.l.s4 1983009808
    %v8011 = vunpack.c.0.s8 %v8010
    %v8012 = vperm.slane %v8008, %v8011
    %v8013 = vrot.slane %v7996, 4
    %v8014 = vsel %vm225, %v8013, %v7994
    %v8016 = vunpack.c.l.s4 1983009808
    %v8017 = vunpack.c.0.s8 %v8016
    %v8018 = vperm.slane %v8014, %v8017
    %v8019 = vrot.slane %v8007, 4
    %v8020 = vsel %vm225, %v8019, %v8001
    %v8021 = vrot.slane %v8001, 4
    %v8022 = vsel %vm225, %v8007, %v8021
    %v8024 = vunpack.c.l.s4 1934713408
    %v8025 = vunpack.c.0.s8 %v8024
    %v8026 = vperm.slane %v8020, %v8025
    %v8028 = vunpack.c.l.s4 1934713408
    %v8029 = vunpack.c.0.s8 %v8028
    %v8030 = vperm.slane %v8022, %v8029
    %v8031 = vrot.slane %v8018, 4
    %v8032 = vsel %vm225, %v8031, %v8012
    %v8033 = vrot.slane %v8012, 4
    %v8034 = vsel %vm225, %v8018, %v8033
    %v8036 = vunpack.c.l.s4 1934713408
    %v8037 = vunpack.c.0.s8 %v8036
    %v8038 = vperm.slane %v8032, %v8037
    %v8040 = vunpack.c.l.s4 1934713408
    %v8041 = vunpack.c.0.s8 %v8040
    %v8042 = vperm.slane %v8034, %v8041
    %v8043 = vrot.slane %v8038, 4
    %v8044 = vsel %vm225, %v8043, %v8026
    %v8045 = vrot.slane %v8026, 4
    %v8046 = vsel %vm225, %v8038, %v8045
    %v8047 = vrot.slane %v8042, 4
    %v8048 = vsel %vm225, %v8047, %v8030
    %v8049 = vrot.slane %v8030, 4
    %v8050 = vsel %vm225, %v8042, %v8049
    %8052 = vrot.lane.b32.xlu0 %v7076, 120
    %v8053 = vpop.permute.xlu0 %8052
    %8055 = vrot.lane.b32.xlu0 %v7076, 112
    %v8056 = vpop.permute.xlu0 %8055
    %8058 = vrot.lane.b32.xlu0 %v7076, 104
    %v8059 = vpop.permute.xlu0 %8058
    %v8061 = vrot.slane %v8056, 4
    %v8062 = vsel %vm225, %v8061, %v7076
    %v8063 = vrot.slane %v7076, 4
    %v8064 = vsel %vm225, %v8056, %v8063
    %v8066 = vunpack.c.l.s4 1983009808
    %v8067 = vunpack.c.0.s8 %v8066
    %v8068 = vperm.slane %v8062, %v8067
    %v8070 = vunpack.c.l.s4 1983009808
    %v8071 = vunpack.c.0.s8 %v8070
    %v8072 = vperm.slane %v8064, %v8071
    %v8073 = vrot.slane %v8059, 4
    %v8074 = vsel %vm225, %v8073, %v8053
    %v8075 = vrot.slane %v8053, 4
    %v8076 = vsel %vm225, %v8059, %v8075
    %v8078 = vunpack.c.l.s4 1983009808
    %v8079 = vunpack.c.0.s8 %v8078
    %v8080 = vperm.slane %v8074, %v8079
    %v8082 = vunpack.c.l.s4 1983009808
    %v8083 = vunpack.c.0.s8 %v8082
    %v8084 = vperm.slane %v8076, %v8083
    %v8085 = vrot.slane %v8080, 4
    %v8086 = vsel %vm225, %v8085, %v8068
    %v8087 = vrot.slane %v8068, 4
    %v8088 = vsel %vm225, %v8080, %v8087
    %v8090 = vunpack.c.l.s4 1934713408
    %v8091 = vunpack.c.0.s8 %v8090
    %v8092 = vperm.slane %v8086, %v8091
    %v8094 = vunpack.c.l.s4 1934713408
    %v8095 = vunpack.c.0.s8 %v8094
    %v8096 = vperm.slane %v8088, %v8095
    %v8097 = vrot.slane %v8084, 4
    %v8098 = vsel %vm225, %v8097, %v8072
    %v8099 = vrot.slane %v8072, 4
    %v8100 = vsel %vm225, %v8084, %v8099
    %v8102 = vunpack.c.l.s4 1934713408
    %v8103 = vunpack.c.0.s8 %v8102
    %v8104 = vperm.slane %v8098, %v8103
    %v8106 = vunpack.c.l.s4 1934713408
    %v8107 = vunpack.c.0.s8 %v8106
    %v8108 = vperm.slane %v8100, %v8107
    %v8109 = vrot.slane %v8092, 4
    %v8110 = vsel %vm225, 0.0, %v8109
    %v8111 = vrot.slane %v8096, 4
    %v8112 = vsel %vm225, 0.0, %v8111
    %v8113 = vrot.slane %v8104, 4
    %v8114 = vsel %vm225, 0.0, %v8113
    %v8115 = vrot.slane %v8108, 4
    %v8116 = vsel %vm225, 0.0, %v8115
    %v8117 = vsel %vm225, %v8111, %v8092
    %v8119 = vunpack.c.l.s4 1983009808
    %v8120 = vunpack.c.0.s8 %v8119
    %v8121 = vperm.slane %v8117, %v8120
    %v8122 = vrot.slane %v8112, 4
    %v8123 = vsel %vm225, %v8122, %v8110
    %v8125 = vunpack.c.l.s4 1983009808
    %v8126 = vunpack.c.0.s8 %v8125
    %v8127 = vperm.slane %v8123, %v8126
    %v8128 = vsel %vm225, %v8115, %v8104
    %v8130 = vunpack.c.l.s4 1983009808
    %v8131 = vunpack.c.0.s8 %v8130
    %v8132 = vperm.slane %v8128, %v8131
    %v8133 = vrot.slane %v8116, 4
    %v8134 = vsel %vm225, %v8133, %v8114
    %v8136 = vunpack.c.l.s4 1983009808
    %v8137 = vunpack.c.0.s8 %v8136
    %v8138 = vperm.slane %v8134, %v8137
    %v8139 = vrot.slane %v8127, 4
    %v8140 = vsel %vm225, %v8139, %v8121
    %v8141 = vrot.slane %v8121, 4
    %v8142 = vsel %vm225, %v8127, %v8141
    %v8144 = vunpack.c.l.s4 1934713408
    %v8145 = vunpack.c.0.s8 %v8144
    %v8146 = vperm.slane %v8140, %v8145
    %v8148 = vunpack.c.l.s4 1934713408
    %v8149 = vunpack.c.0.s8 %v8148
    %v8150 = vperm.slane %v8142, %v8149
    %v8151 = vrot.slane %v8138, 4
    %v8152 = vsel %vm225, %v8151, %v8132
    %v8153 = vrot.slane %v8132, 4
    %v8154 = vsel %vm225, %v8138, %v8153
    %v8156 = vunpack.c.l.s4 1934713408
    %v8157 = vunpack.c.0.s8 %v8156
    %v8158 = vperm.slane %v8152, %v8157
    %v8160 = vunpack.c.l.s4 1934713408
    %v8161 = vunpack.c.0.s8 %v8160
    %v8162 = vperm.slane %v8154, %v8161
    %v8163 = vrot.slane %v8158, 4
    %v8164 = vsel %vm225, %v8163, %v8146
    %v8165 = vrot.slane %v8146, 4
    %v8166 = vsel %vm225, %v8158, %v8165
    %v8167 = vrot.slane %v8162, 4
    %v8168 = vsel %vm225, %v8167, %v8150
    %v8169 = vrot.slane %v8150, 4
    %v8170 = vsel %vm225, %v8162, %v8169
    %v8172 = vsel %vm575, %v7924, 0
    %v8175 = vsel %vm575, %v8044, 0
    %8177 = vmatpush.xpose.msra.mxu0 0.0
    %8178 = vmatpush.xpose.msra.mxu0 0.0
    %8179 = vmatpush.xpose.msra.mxu0 0.0
    %8180 = vmatpush.xpose.msra.mxu0 0.0
    %8181 = vmatpush.xpose.msra.mxu0 0.0
    %8182 = vmatpush.xpose.msra.mxu0 0.0
    %8183 = vmatpush.xpose.msra.mxu0 0.0
    %8184 = vmatpush.xpose.msra.mxu0 0.0
    %8185 = vmatpush.xpose.msra.mxu0 0.0
    %8186 = vmatpush.xpose.msra.mxu0 0.0
    %8187 = vmatpush.xpose.msra.mxu0 0.0
    %8188 = vmatpush.xpose.msra.mxu0 0.0
    %8189 = vmatpush.xpose.msra.mxu0 0.0
    %8190 = vmatpush.xpose.msra.mxu0 0.0
    %8191 = vmatpush.xpose.msra.mxu0 0.0
    %8192 = vmatpush.xpose.msra.mxu0 %v8175
    %8193 = vmatmul.f32.gmra.mxu0 %v8172
    %v8194 = vpop.f32.mrf.mxu0
    %v8195 = vadd.f32 0.0, %v8194
    %8196 = vdwg.mxu0
    %v8198 = vsel %vm575, %v7926, 0
    %v8201 = vsel %vm575, %v8046, 0
    %8203 = vmatpush.xpose.msra.mxu0 0.0
    %8204 = vmatpush.xpose.msra.mxu0 0.0
    %8205 = vmatpush.xpose.msra.mxu0 0.0
    %8206 = vmatpush.xpose.msra.mxu0 0.0
    %8207 = vmatpush.xpose.msra.mxu0 0.0
    %8208 = vmatpush.xpose.msra.mxu0 0.0
    %8209 = vmatpush.xpose.msra.mxu0 0.0
    %8210 = vmatpush.xpose.msra.mxu0 0.0
    %8211 = vmatpush.xpose.msra.mxu0 0.0
    %8212 = vmatpush.xpose.msra.mxu0 0.0
    %8213 = vmatpush.xpose.msra.mxu0 0.0
    %8214 = vmatpush.xpose.msra.mxu0 0.0
    %8215 = vmatpush.xpose.msra.mxu0 0.0
    %8216 = vmatpush.xpose.msra.mxu0 0.0
    %8217 = vmatpush.xpose.msra.mxu0 0.0
    %8218 = vmatpush.xpose.msra.mxu0 %v8201
    %8219 = vmatmul.f32.gmra.mxu0 %v8198
    %v8220 = vpop.f32.mrf.mxu0
    %v8221 = vadd.f32 0.0, %v8220
    %8222 = vdwg.mxu0
    %v8224 = vsel %vm575, %v7928, 0
    %v8227 = vsel %vm575, %v8048, 0
    %8229 = vmatpush.xpose.msra.mxu0 0.0
    %8230 = vmatpush.xpose.msra.mxu0 0.0
    %8231 = vmatpush.xpose.msra.mxu0 0.0
    %8232 = vmatpush.xpose.msra.mxu0 0.0
    %8233 = vmatpush.xpose.msra.mxu0 0.0
    %8234 = vmatpush.xpose.msra.mxu0 0.0
    %8235 = vmatpush.xpose.msra.mxu0 0.0
    %8236 = vmatpush.xpose.msra.mxu0 0.0
    %8237 = vmatpush.xpose.msra.mxu0 0.0
    %8238 = vmatpush.xpose.msra.mxu0 0.0
    %8239 = vmatpush.xpose.msra.mxu0 0.0
    %8240 = vmatpush.xpose.msra.mxu0 0.0
    %8241 = vmatpush.xpose.msra.mxu0 0.0
    %8242 = vmatpush.xpose.msra.mxu0 0.0
    %8243 = vmatpush.xpose.msra.mxu0 0.0
    %8244 = vmatpush.xpose.msra.mxu0 %v8227
    %8245 = vmatmul.f32.gmra.mxu0 %v8224
    %v8246 = vpop.f32.mrf.mxu0
    %v8247 = vadd.f32 0.0, %v8246
    %8248 = vdwg.mxu0
    %v8250 = vsel %vm575, %v7930, 0
    %v8253 = vsel %vm575, %v8050, 0
    %8255 = vmatpush.xpose.msra.mxu0 0.0
    %8256 = vmatpush.xpose.msra.mxu0 0.0
    %8257 = vmatpush.xpose.msra.mxu0 0.0
    %8258 = vmatpush.xpose.msra.mxu0 0.0
    %8259 = vmatpush.xpose.msra.mxu0 0.0
    %8260 = vmatpush.xpose.msra.mxu0 0.0
    %8261 = vmatpush.xpose.msra.mxu0 0.0
    %8262 = vmatpush.xpose.msra.mxu0 0.0
    %8263 = vmatpush.xpose.msra.mxu0 0.0
    %8264 = vmatpush.xpose.msra.mxu0 0.0
    %8265 = vmatpush.xpose.msra.mxu0 0.0
    %8266 = vmatpush.xpose.msra.mxu0 0.0
    %8267 = vmatpush.xpose.msra.mxu0 0.0
    %8268 = vmatpush.xpose.msra.mxu0 0.0
    %8269 = vmatpush.xpose.msra.mxu0 0.0
    %8270 = vmatpush.xpose.msra.mxu0 %v8253
    %8271 = vmatmul.f32.gmra.mxu0 %v8250
    %v8272 = vpop.f32.mrf.mxu0
    %v8273 = vadd.f32 0.0, %v8272
    %8274 = vdwg.mxu0
    %v8275 = vmul.f32 %v8195, 0.35355338
    %v8276 = vmul.f32 %v8221, 0.35355338
    %v8277 = vmul.f32 %v8247, 0.35355338
    %v8278 = vmul.f32 %v8273, 0.35355338
    %v8279 = vsel %vm685, %v8275, -1e+30
    %v8280 = vsel %vm685, %v8276, -1e+30
    %v8281 = vsel %vm685, %v8277, -1e+30
    %v8282 = vsel %vm685, %v8278, -1e+30
    %v8283 = vsel %vm575, %v8279, -inf
    %8284 = vmax.xlane.f32.xlu0 %v8283
    %v8285 = vpop.xlane.xlu0 %8284
    %v8286 = vsel %vm575, %v8280, -inf
    %8287 = vmax.xlane.f32.xlu0 %v8286
    %v8288 = vpop.xlane.xlu0 %8287
    %v8289 = vsel %vm575, %v8281, -inf
    %8290 = vmax.xlane.f32.xlu0 %v8289
    %v8291 = vpop.xlane.xlu0 %8290
    %v8292 = vsel %vm575, %v8282, -inf
    %8293 = vmax.xlane.f32.xlu0 %v8292
    %v8294 = vpop.xlane.xlu0 %8293
    %v8295 = vsub.f32 %v8279, %v8285
    %v8296 = vsub.f32 %v8280, %v8288
    %v8297 = vsub.f32 %v8281, %v8291
    %v8298 = vsub.f32 %v8282, %v8294
    %v8299 = vmul.f32 %v8295, 1.442695
    %v8300 = vpow.pop %v8299
    %v8301 = vmul.f32 %v8296, 1.442695
    %v8302 = vpow.pop %v8301
    %v8303 = vmul.f32 %v8297, 1.442695
    %v8304 = vpow.pop %v8303
    %v8305 = vmul.f32 %v8298, 1.442695
    %v8306 = vpow.pop %v8305
    %v8307 = vsel %vm575, %v8300, 0.0
    %8308 = vadd.xlane.f32.xlu0 %v8307
    %v8309 = vpop.xlane.xlu0 %8308
    %v8310 = vsel %vm575, %v8302, 0.0
    %8311 = vadd.xlane.f32.xlu0 %v8310
    %v8312 = vpop.xlane.xlu0 %8311
    %v8313 = vsel %vm575, %v8304, 0.0
    %8314 = vadd.xlane.f32.xlu0 %v8313
    %v8315 = vpop.xlane.xlu0 %8314
    %v8316 = vsel %vm575, %v8306, 0.0
    %8317 = vadd.xlane.f32.xlu0 %v8316
    %v8318 = vpop.xlane.xlu0 %8317
    %v8319 = vrcp.pop %v8309
    %v8320 = vrcp.pop %v8312
    %v8321 = vrcp.pop %v8315
    %v8322 = vrcp.pop %v8318
    %v8323 = vmul.f32 %v8300, %v8319
    %v8324 = vmul.f32 %v8302, %v8320
    %v8325 = vmul.f32 %v8304, %v8321
    %v8326 = vmul.f32 %v8306, %v8322
    %v8328 = vsel %vm575, %v8323, 0
    %8330 = vmatpush.msra.mxu0 0.0
    %8331 = vmatpush.msra.mxu0 0.0
    %8332 = vmatpush.msra.mxu0 0.0
    %8333 = vmatpush.msra.mxu0 0.0
    %8334 = vmatpush.msra.mxu0 0.0
    %8335 = vmatpush.msra.mxu0 0.0
    %8336 = vmatpush.msra.mxu0 0.0
    %8337 = vmatpush.msra.mxu0 0.0
    %8338 = vmatpush.msra.mxu0 0.0
    %8339 = vmatpush.msra.mxu0 0.0
    %8340 = vmatpush.msra.mxu0 0.0
    %8341 = vmatpush.msra.mxu0 0.0
    %8342 = vmatpush.msra.mxu0 0.0
    %8343 = vmatpush.msra.mxu0 0.0
    %8344 = vmatpush.msra.mxu0 0.0
    %8345 = vmatpush.msra.mxu0 %v8164
    %8346 = vmatmul.f32.gmra.mxu0 %v8328
    %v8347 = vpop.f32.mrf.mxu0
    %v8348 = vadd.f32 0.0, %v8347
    %8349 = vdwg.mxu0
    %v8351 = vsel %vm575, %v8324, 0
    %8353 = vmatpush.msra.mxu0 0.0
    %8354 = vmatpush.msra.mxu0 0.0
    %8355 = vmatpush.msra.mxu0 0.0
    %8356 = vmatpush.msra.mxu0 0.0
    %8357 = vmatpush.msra.mxu0 0.0
    %8358 = vmatpush.msra.mxu0 0.0
    %8359 = vmatpush.msra.mxu0 0.0
    %8360 = vmatpush.msra.mxu0 0.0
    %8361 = vmatpush.msra.mxu0 0.0
    %8362 = vmatpush.msra.mxu0 0.0
    %8363 = vmatpush.msra.mxu0 0.0
    %8364 = vmatpush.msra.mxu0 0.0
    %8365 = vmatpush.msra.mxu0 0.0
    %8366 = vmatpush.msra.mxu0 0.0
    %8367 = vmatpush.msra.mxu0 0.0
    %8368 = vmatpush.msra.mxu0 %v8166
    %8369 = vmatmul.f32.gmra.mxu0 %v8351
    %v8370 = vpop.f32.mrf.mxu0
    %v8371 = vadd.f32 0.0, %v8370
    %8372 = vdwg.mxu0
    %v8374 = vsel %vm575, %v8325, 0
    %8376 = vmatpush.msra.mxu0 0.0
    %8377 = vmatpush.msra.mxu0 0.0
    %8378 = vmatpush.msra.mxu0 0.0
    %8379 = vmatpush.msra.mxu0 0.0
    %8380 = vmatpush.msra.mxu0 0.0
    %8381 = vmatpush.msra.mxu0 0.0
    %8382 = vmatpush.msra.mxu0 0.0
    %8383 = vmatpush.msra.mxu0 0.0
    %8384 = vmatpush.msra.mxu0 0.0
    %8385 = vmatpush.msra.mxu0 0.0
    %8386 = vmatpush.msra.mxu0 0.0
    %8387 = vmatpush.msra.mxu0 0.0
    %8388 = vmatpush.msra.mxu0 0.0
    %8389 = vmatpush.msra.mxu0 0.0
    %8390 = vmatpush.msra.mxu0 0.0
    %8391 = vmatpush.msra.mxu0 %v8168
    %8392 = vmatmul.f32.gmra.mxu0 %v8374
    %v8393 = vpop.f32.mrf.mxu0
    %v8394 = vadd.f32 0.0, %v8393
    %8395 = vdwg.mxu0
    %v8397 = vsel %vm575, %v8326, 0
    %8399 = vmatpush.msra.mxu0 0.0
    %8400 = vmatpush.msra.mxu0 0.0
    %8401 = vmatpush.msra.mxu0 0.0
    %8402 = vmatpush.msra.mxu0 0.0
    %8403 = vmatpush.msra.mxu0 0.0
    %8404 = vmatpush.msra.mxu0 0.0
    %8405 = vmatpush.msra.mxu0 0.0
    %8406 = vmatpush.msra.mxu0 0.0
    %8407 = vmatpush.msra.mxu0 0.0
    %8408 = vmatpush.msra.mxu0 0.0
    %8409 = vmatpush.msra.mxu0 0.0
    %8410 = vmatpush.msra.mxu0 0.0
    %8411 = vmatpush.msra.mxu0 0.0
    %8412 = vmatpush.msra.mxu0 0.0
    %8413 = vmatpush.msra.mxu0 0.0
    %8414 = vmatpush.msra.mxu0 %v8170
    %8415 = vmatmul.f32.gmra.mxu0 %v8397
    %v8416 = vpop.f32.mrf.mxu0
    %v8417 = vadd.f32 0.0, %v8416
    %8418 = vdwg.mxu0
    %v8419 = vrot.slane %v8394, 4
    %v8420 = vsel %vm225, %v8419, %v8348
    %v8421 = vrot.slane %v8348, 4
    %v8422 = vsel %vm225, %v8394, %v8421
    %v8424 = vunpack.c.l.s4 1983009808
    %v8425 = vunpack.c.0.s8 %v8424
    %v8426 = vperm.slane %v8420, %v8425
    %v8428 = vunpack.c.l.s4 1983009808
    %v8429 = vunpack.c.0.s8 %v8428
    %v8430 = vperm.slane %v8422, %v8429
    %v8431 = vrot.slane %v8417, 4
    %v8432 = vsel %vm225, %v8431, %v8371
    %v8433 = vrot.slane %v8371, 4
    %v8434 = vsel %vm225, %v8417, %v8433
    %v8436 = vunpack.c.l.s4 1983009808
    %v8437 = vunpack.c.0.s8 %v8436
    %v8438 = vperm.slane %v8432, %v8437
    %v8440 = vunpack.c.l.s4 1983009808
    %v8441 = vunpack.c.0.s8 %v8440
    %v8442 = vperm.slane %v8434, %v8441
    %v8443 = vrot.slane %v8438, 4
    %v8444 = vsel %vm225, %v8443, %v8426
    %v8445 = vrot.slane %v8426, 4
    %v8446 = vsel %vm225, %v8438, %v8445
    %v8448 = vunpack.c.l.s4 1934713408
    %v8449 = vunpack.c.0.s8 %v8448
    %v8450 = vperm.slane %v8444, %v8449
    %v8452 = vunpack.c.l.s4 1934713408
    %v8453 = vunpack.c.0.s8 %v8452
    %v8454 = vperm.slane %v8446, %v8453
    %v8455 = vrot.slane %v8442, 4
    %v8456 = vsel %vm225, %v8455, %v8430
    %v8457 = vrot.slane %v8430, 4
    %v8458 = vsel %vm225, %v8442, %v8457
    %v8460 = vunpack.c.l.s4 1934713408
    %v8461 = vunpack.c.0.s8 %v8460
    %v8462 = vperm.slane %v8456, %v8461
    %v8464 = vunpack.c.l.s4 1934713408
    %v8465 = vunpack.c.0.s8 %v8464
    %v8466 = vperm.slane %v8458, %v8465
    %v8467 = vrot.slane %v8450, 4
    %v8468 = vsel %vm225, 0.0, %v8467
    %v8469 = vrot.slane %v8454, 4
    %v8470 = vsel %vm225, 0.0, %v8469
    %v8471 = vrot.slane %v8462, 4
    %v8472 = vsel %vm225, 0.0, %v8471
    %v8473 = vrot.slane %v8466, 4
    %v8474 = vsel %vm225, 0.0, %v8473
    %v8475 = vsel %vm225, %v8469, %v8450
    %v8477 = vunpack.c.l.s4 1983009808
    %v8478 = vunpack.c.0.s8 %v8477
    %v8479 = vperm.slane %v8475, %v8478
    %v8480 = vrot.slane %v8470, 4
    %v8481 = vsel %vm225, %v8480, %v8468
    %v8483 = vunpack.c.l.s4 1983009808
    %v8484 = vunpack.c.0.s8 %v8483
    %v8485 = vperm.slane %v8481, %v8484
    %v8486 = vsel %vm225, %v8473, %v8462
    %v8488 = vunpack.c.l.s4 1983009808
    %v8489 = vunpack.c.0.s8 %v8488
    %v8490 = vperm.slane %v8486, %v8489
    %v8491 = vrot.slane %v8474, 4
    %v8492 = vsel %vm225, %v8491, %v8472
    %v8494 = vunpack.c.l.s4 1983009808
    %v8495 = vunpack.c.0.s8 %v8494
    %v8496 = vperm.slane %v8492, %v8495
    %v8497 = vrot.slane %v8485, 4
    %v8498 = vsel %vm225, %v8497, %v8479
    %v8499 = vrot.slane %v8479, 4
    %v8500 = vsel %vm225, %v8485, %v8499
    %v8502 = vunpack.c.l.s4 1934713408
    %v8503 = vunpack.c.0.s8 %v8502
    %v8504 = vperm.slane %v8498, %v8503
    %v8506 = vunpack.c.l.s4 1934713408
    %v8507 = vunpack.c.0.s8 %v8506
    %v8508 = vperm.slane %v8500, %v8507
    %v8509 = vrot.slane %v8496, 4
    %v8510 = vsel %vm225, %v8509, %v8490
    %v8511 = vrot.slane %v8490, 4
    %v8512 = vsel %vm225, %v8496, %v8511
    %v8514 = vunpack.c.l.s4 1934713408
    %v8515 = vunpack.c.0.s8 %v8514
    %v8516 = vperm.slane %v8510, %v8515
    %v8518 = vunpack.c.l.s4 1934713408
    %v8519 = vunpack.c.0.s8 %v8518
    %v8520 = vperm.slane %v8512, %v8519
    %v8521 = vrot.slane %v8516, 4
    %v8522 = vsel %vm225, %v8521, %v8504
    %v8523 = vrot.slane %v8504, 4
    %v8524 = vsel %vm225, %v8516, %v8523
    %v8525 = vrot.slane %v8520, 4
    %v8526 = vsel %vm225, %v8525, %v8508
    %v8527 = vrot.slane %v8508, 4
    %v8528 = vsel %vm225, %v8520, %v8527
    %8530 = vrot.lane.b32.xlu0 %v8524, 8
    %v8531 = vpop.permute.xlu0 %8530
    %8534 = vrot.lane.b32.xlu0 %v8526, 16
    %v8535 = vpop.permute.xlu0 %8534
    %8538 = vrot.lane.b32.xlu0 %v8528, 24
    %v8539 = vpop.permute.xlu0 %8538
    %v8541 = vsel %vm575, %v8522, %v8531
    %v8542 = vsel %vm949, %v8541, %v8535
    %v8543 = vsel %vm951, %v8542, %v8539
    %s8544 = scalar_lea.vmem [#allocation2], 608
    %v8545 = vld [vmem:[%s8544] sm:$0xff]
    %v8546 = vld [vmem:[%s8544 + $0x8] sm:$0xff]
    %v8547 = vld [vmem:[%s8544 + $0x10] sm:$0xff]
    %v8548 = vld [vmem:[%s8544 + $0x18] sm:$0xff]
    %v8550 = vsel %vm64, %v7810, 0
    %v8553 = vsel %vm64, %v8543, 0
    %8555 = vmatpush.msra.mxu0 0.0
    %8556 = vmatpush.msra.mxu0 0.0
    %8557 = vmatpush.msra.mxu0 0.0
    %8558 = vmatpush.msra.mxu0 0.0
    %8559 = vmatpush.msra.mxu0 0.0
    %8560 = vmatpush.msra.mxu0 0.0
    %8561 = vmatpush.msra.mxu0 0.0
    %8562 = vmatpush.msra.mxu0 0.0
    %8563 = vmatpush.msra.mxu0 0.0
    %8564 = vmatpush.msra.mxu0 0.0
    %8565 = vmatpush.msra.mxu0 0.0
    %8566 = vmatpush.msra.mxu0 0.0
    %8567 = vmatpush.msra.mxu0 %v8548
    %8568 = vmatpush.msra.mxu0 %v8547
    %8569 = vmatpush.msra.mxu0 %v8546
    %8570 = vmatpush.msra.mxu0 %v8545
    %8571 = vmatmul.f32.gmra.mxu0 %v8550
    %v8572 = vpop.f32.mrf.mxu0
    %v8573 = vadd.f32 0.0, %v8572
    %8574 = vmatmul.f32.gmra.mxu0 %v8553
    %v8575 = vpop.f32.mrf.mxu0
    %v8576 = vadd.f32 0.0, %v8575
    %8577 = vdwg.mxu0
    %v8578 = vadd.f32 %v6928, %v8573
    %v8579 = vadd.f32 %v6929, %v8576
    %v8580 = vperm.slane %v6931, 5
    %v8581 = vadd.f32 %v8578, %v8580
    %v8582 = vadd.f32 %v8579, %v8580
    %v8583 = vsel %vm64, %v8581, 0.0
    %8584 = vadd.xlane.f32.xlu0 %v8583
    %v8585 = vpop.xlane.xlu0 %8584
    %v8586 = vsel %vm64, %v8582, 0.0
    %8587 = vadd.xlane.f32.xlu0 %v8586
    %v8588 = vpop.xlane.xlu0 %8587
    %v8589 = vmul.f32 %v8585, %v77
    %v8590 = vmul.f32 %v8588, %v77
    %v8591 = vsub.f32 %v8581, %v8589
    %v8592 = vsub.f32 %v8582, %v8590
    %v8593 = vmul.f32 %v8591, %v8591
    %v8594 = vmul.f32 %v8592, %v8592
    %v8595 = vsel %vm64, %v8593, 0.0
    %8596 = vadd.xlane.f32.xlu0 %v8595
    %v8597 = vpop.xlane.xlu0 %8596
    %v8598 = vsel %vm64, %v8594, 0.0
    %8599 = vadd.xlane.f32.xlu0 %v8598
    %v8600 = vpop.xlane.xlu0 %8599
    %v8601 = vmul.f32 %v8597, %v77
    %v8602 = vmul.f32 %v8600, %v77
    %v8603 = vadd.f32 %v8601, 1e-05
    %v8604 = vadd.f32 %v8602, 1e-05
    %v8605 = vrsqrt.pop %v8603
    %v8606 = vmul.f32 %v8605, %v8603
    %v8607 = vmul.f32 %v8606, %v8605
    %v8608 = vmul.f32 0.5, %v8607
    %v8609 = vsub.f32 1.5, %v8608
    %v8610 = vmul.f32 %v8605, %v8609
    %vm8611 = vweird.f32 %v8603
    %vm8612 = vweird.f32 %v8605
    %vm8613 = vmor %vm8611, %vm8612
    %v8614 = vsel %vm8613, %v8605, %v8610
    %v8615 = vrsqrt.pop %v8604
    %v8616 = vmul.f32 %v8615, %v8604
    %v8617 = vmul.f32 %v8616, %v8615
    %v8618 = vmul.f32 0.5, %v8617
    %v8619 = vsub.f32 1.5, %v8618
    %v8620 = vmul.f32 %v8615, %v8619
    %vm8621 = vweird.f32 %v8604
    %vm8622 = vweird.f32 %v8615
    %vm8623 = vmor %vm8621, %vm8622
    %v8624 = vsel %vm8623, %v8615, %v8620
    %v8625 = vmul.f32 %v8591, %v8614
    %v8626 = vmul.f32 %v8592, %v8624
    %v8627 = vperm.slane %v6931, 6
    %v8628 = vmul.f32 %v8625, %v8627
    %v8629 = vmul.f32 %v8626, %v8627
    %v8630 = vperm.slane %v6931, 7
    %v8631 = vadd.f32 %v8628, %v8630
    %v8632 = vadd.f32 %v8629, %v8630
    %s8633 = scalar_lea.vmem [#allocation2], 640
    %v8634 = vld [vmem:[%s8633] sm:$0xff]
    %v8635 = vld [vmem:[%s8633 + $0x8] sm:$0xff]
    %v8636 = vld [vmem:[%s8633 + $0x10] sm:$0xff]
    %v8637 = vld [vmem:[%s8633 + $0x18] sm:$0xff]
    %v8638 = vperm.slane %v6932, 0
    %v8640 = vsel %vm64, %v8631, 0
    %v8643 = vsel %vm64, %v8632, 0
    %8645 = vmatpush.msra.mxu0 0.0
    %8646 = vmatpush.msra.mxu0 0.0
    %8647 = vmatpush.msra.mxu0 0.0
    %8648 = vmatpush.msra.mxu0 0.0
    %8649 = vmatpush.msra.mxu0 0.0
    %8650 = vmatpush.msra.mxu0 0.0
    %8651 = vmatpush.msra.mxu0 0.0
    %8652 = vmatpush.msra.mxu0 0.0
    %8653 = vmatpush.msra.mxu0 0.0
    %8654 = vmatpush.msra.mxu0 0.0
    %8655 = vmatpush.msra.mxu0 0.0
    %8656 = vmatpush.msra.mxu0 0.0
    %8657 = vmatpush.msra.mxu0 %v8637
    %8658 = vmatpush.msra.mxu0 %v8636
    %8659 = vmatpush.msra.mxu0 %v8635
    %8660 = vmatpush.msra.mxu0 %v8634
    %8661 = vmatmul.f32.gmra.mxu0 %v8640
    %v8662 = vpop.f32.mrf.mxu0
    %v8663 = vadd.f32 %v8638, %v8662
    %8664 = vmatmul.f32.gmra.mxu0 %v8643
    %v8665 = vpop.f32.mrf.mxu0
    %v8666 = vadd.f32 %v8638, %v8665
    %8667 = vdwg.mxu0
    %s8668 = scalar_lea.vmem [#allocation2], 672
    %v8669 = vld [vmem:[%s8668] sm:$0xff]
    %v8670 = vld [vmem:[%s8668 + $0x8] sm:$0xff]
    %v8671 = vld [vmem:[%s8668 + $0x10] sm:$0xff]
    %v8672 = vld [vmem:[%s8668 + $0x18] sm:$0xff]
    %v8673 = vperm.slane %v6932, 1
    %8674 = vmatpush.msra.mxu0 0.0
    %8675 = vmatpush.msra.mxu0 0.0
    %8676 = vmatpush.msra.mxu0 0.0
    %8677 = vmatpush.msra.mxu0 0.0
    %8678 = vmatpush.msra.mxu0 0.0
    %8679 = vmatpush.msra.mxu0 0.0
    %8680 = vmatpush.msra.mxu0 0.0
    %8681 = vmatpush.msra.mxu0 0.0
    %8682 = vmatpush.msra.mxu0 0.0
    %8683 = vmatpush.msra.mxu0 0.0
    %8684 = vmatpush.msra.mxu0 0.0
    %8685 = vmatpush.msra.mxu0 0.0
    %8686 = vmatpush.msra.mxu0 %v8672
    %8687 = vmatpush.msra.mxu0 %v8671
    %8688 = vmatpush.msra.mxu0 %v8670
    %8689 = vmatpush.msra.mxu0 %v8669
    %8690 = vmatmul.f32.gmra.mxu0 %v1817
    %v8691 = vpop.f32.mrf.mxu0
    %v8692 = vadd.f32 %v8673, %v8691
    %8693 = vmatmul.f32.gmra.mxu0 %v1820
    %v8694 = vpop.f32.mrf.mxu0
    %v8695 = vadd.f32 %v8673, %v8694
    %8696 = vdwg.mxu0
    %s8697 = scalar_lea.vmem [#allocation2], 704
    %v8698 = vld [vmem:[%s8697] sm:$0xff]
    %v8699 = vld [vmem:[%s8697 + $0x8] sm:$0xff]
    %v8700 = vld [vmem:[%s8697 + $0x10] sm:$0xff]
    %v8701 = vld [vmem:[%s8697 + $0x18] sm:$0xff]
    %v8702 = vperm.slane %v6932, 2
    %8703 = vmatpush.msra.mxu0 0.0
    %8704 = vmatpush.msra.mxu0 0.0
    %8705 = vmatpush.msra.mxu0 0.0
    %8706 = vmatpush.msra.mxu0 0.0
    %8707 = vmatpush.msra.mxu0 0.0
    %8708 = vmatpush.msra.mxu0 0.0
    %8709 = vmatpush.msra.mxu0 0.0
    %8710 = vmatpush.msra.mxu0 0.0
    %8711 = vmatpush.msra.mxu0 0.0
    %8712 = vmatpush.msra.mxu0 0.0
    %8713 = vmatpush.msra.mxu0 0.0
    %8714 = vmatpush.msra.mxu0 0.0
    %8715 = vmatpush.msra.mxu0 %v8701
    %8716 = vmatpush.msra.mxu0 %v8700
    %8717 = vmatpush.msra.mxu0 %v8699
    %8718 = vmatpush.msra.mxu0 %v8698
    %8719 = vmatmul.f32.gmra.mxu0 %v1817
    %v8720 = vpop.f32.mrf.mxu0
    %v8721 = vadd.f32 %v8702, %v8720
    %8722 = vmatmul.f32.gmra.mxu0 %v1820
    %v8723 = vpop.f32.mrf.mxu0
    %v8724 = vadd.f32 %v8702, %v8723
    %8725 = vdwg.mxu0
    %8727 = vrot.lane.b32.xlu0 %v8663, 120
    %v8728 = vpop.permute.xlu0 %8727
    %8730 = vrot.lane.b32.xlu0 %v8663, 112
    %v8731 = vpop.permute.xlu0 %8730
    %8733 = vrot.lane.b32.xlu0 %v8663, 104
    %v8734 = vpop.permute.xlu0 %8733
    %v8736 = vrot.slane %v8731, 4
    %v8737 = vsel %vm225, %v8736, %v8663
    %v8738 = vrot.slane %v8663, 4
    %v8739 = vsel %vm225, %v8731, %v8738
    %v8741 = vunpack.c.l.s4 1983009808
    %v8742 = vunpack.c.0.s8 %v8741
    %v8743 = vperm.slane %v8737, %v8742
    %v8745 = vunpack.c.l.s4 1983009808
    %v8746 = vunpack.c.0.s8 %v8745
    %v8747 = vperm.slane %v8739, %v8746
    %v8748 = vrot.slane %v8734, 4
    %v8749 = vsel %vm225, %v8748, %v8728
    %v8750 = vrot.slane %v8728, 4
    %v8751 = vsel %vm225, %v8734, %v8750
    %v8753 = vunpack.c.l.s4 1983009808
    %v8754 = vunpack.c.0.s8 %v8753
    %v8755 = vperm.slane %v8749, %v8754
    %v8757 = vunpack.c.l.s4 1983009808
    %v8758 = vunpack.c.0.s8 %v8757
    %v8759 = vperm.slane %v8751, %v8758
    %v8760 = vrot.slane %v8755, 4
    %v8761 = vsel %vm225, %v8760, %v8743
    %v8762 = vrot.slane %v8743, 4
    %v8763 = vsel %vm225, %v8755, %v8762
    %v8765 = vunpack.c.l.s4 1934713408
    %v8766 = vunpack.c.0.s8 %v8765
    %v8767 = vperm.slane %v8761, %v8766
    %v8769 = vunpack.c.l.s4 1934713408
    %v8770 = vunpack.c.0.s8 %v8769
    %v8771 = vperm.slane %v8763, %v8770
    %v8772 = vrot.slane %v8759, 4
    %v8773 = vsel %vm225, %v8772, %v8747
    %v8774 = vrot.slane %v8747, 4
    %v8775 = vsel %vm225, %v8759, %v8774
    %v8777 = vunpack.c.l.s4 1934713408
    %v8778 = vunpack.c.0.s8 %v8777
    %v8779 = vperm.slane %v8773, %v8778
    %v8781 = vunpack.c.l.s4 1934713408
    %v8782 = vunpack.c.0.s8 %v8781
    %v8783 = vperm.slane %v8775, %v8782
    %v8784 = vrot.slane %v8767, 4
    %v8785 = vsel %vm225, 0.0, %v8784
    %v8786 = vrot.slane %v8771, 4
    %v8787 = vsel %vm225, 0.0, %v8786
    %v8788 = vrot.slane %v8779, 4
    %v8789 = vsel %vm225, 0.0, %v8788
    %v8790 = vrot.slane %v8783, 4
    %v8791 = vsel %vm225, 0.0, %v8790
    %v8792 = vsel %vm225, %v8786, %v8767
    %v8794 = vunpack.c.l.s4 1983009808
    %v8795 = vunpack.c.0.s8 %v8794
    %v8796 = vperm.slane %v8792, %v8795
    %v8797 = vrot.slane %v8787, 4
    %v8798 = vsel %vm225, %v8797, %v8785
    %v8800 = vunpack.c.l.s4 1983009808
    %v8801 = vunpack.c.0.s8 %v8800
    %v8802 = vperm.slane %v8798, %v8801
    %v8803 = vsel %vm225, %v8790, %v8779
    %v8805 = vunpack.c.l.s4 1983009808
    %v8806 = vunpack.c.0.s8 %v8805
    %v8807 = vperm.slane %v8803, %v8806
    %v8808 = vrot.slane %v8791, 4
    %v8809 = vsel %vm225, %v8808, %v8789
    %v8811 = vunpack.c.l.s4 1983009808
    %v8812 = vunpack.c.0.s8 %v8811
    %v8813 = vperm.slane %v8809, %v8812
    %v8814 = vrot.slane %v8802, 4
    %v8815 = vsel %vm225, %v8814, %v8796
    %v8816 = vrot.slane %v8796, 4
    %v8817 = vsel %vm225, %v8802, %v8816
    %v8819 = vunpack.c.l.s4 1934713408
    %v8820 = vunpack.c.0.s8 %v8819
    %v8821 = vperm.slane %v8815, %v8820
    %v8823 = vunpack.c.l.s4 1934713408
    %v8824 = vunpack.c.0.s8 %v8823
    %v8825 = vperm.slane %v8817, %v8824
    %v8826 = vrot.slane %v8813, 4
    %v8827 = vsel %vm225, %v8826, %v8807
    %v8828 = vrot.slane %v8807, 4
    %v8829 = vsel %vm225, %v8813, %v8828
    %v8831 = vunpack.c.l.s4 1934713408
    %v8832 = vunpack.c.0.s8 %v8831
    %v8833 = vperm.slane %v8827, %v8832
    %v8835 = vunpack.c.l.s4 1934713408
    %v8836 = vunpack.c.0.s8 %v8835
    %v8837 = vperm.slane %v8829, %v8836
    %v8838 = vrot.slane %v8833, 4
    %v8839 = vsel %vm225, %v8838, %v8821
    %v8840 = vrot.slane %v8821, 4
    %v8841 = vsel %vm225, %v8833, %v8840
    %v8842 = vrot.slane %v8837, 4
    %v8843 = vsel %vm225, %v8842, %v8825
    %v8844 = vrot.slane %v8825, 4
    %v8845 = vsel %vm225, %v8837, %v8844
    %8847 = vrot.lane.b32.xlu0 %v8692, 120
    %v8848 = vpop.permute.xlu0 %8847
    %8850 = vrot.lane.b32.xlu0 %v8692, 112
    %v8851 = vpop.permute.xlu0 %8850
    %8853 = vrot.lane.b32.xlu0 %v8692, 104
    %v8854 = vpop.permute.xlu0 %8853
    %v8856 = vrot.slane %v8851, 4
    %v8857 = vsel %vm225, %v8856, %v8692
    %v8858 = vrot.slane %v8692, 4
    %v8859 = vsel %vm225, %v8851, %v8858
    %v8861 = vunpack.c.l.s4 1983009808
    %v8862 = vunpack.c.0.s8 %v8861
    %v8863 = vperm.slane %v8857, %v8862
    %v8865 = vunpack.c.l.s4 1983009808
    %v8866 = vunpack.c.0.s8 %v8865
    %v8867 = vperm.slane %v8859, %v8866
    %v8868 = vrot.slane %v8854, 4
    %v8869 = vsel %vm225, %v8868, %v8848
    %v8870 = vrot.slane %v8848, 4
    %v8871 = vsel %vm225, %v8854, %v8870
    %v8873 = vunpack.c.l.s4 1983009808
    %v8874 = vunpack.c.0.s8 %v8873
    %v8875 = vperm.slane %v8869, %v8874
    %v8877 = vunpack.c.l.s4 1983009808
    %v8878 = vunpack.c.0.s8 %v8877
    %v8879 = vperm.slane %v8871, %v8878
    %v8880 = vrot.slane %v8875, 4
    %v8881 = vsel %vm225, %v8880, %v8863
    %v8882 = vrot.slane %v8863, 4
    %v8883 = vsel %vm225, %v8875, %v8882
    %v8885 = vunpack.c.l.s4 1934713408
    %v8886 = vunpack.c.0.s8 %v8885
    %v8887 = vperm.slane %v8881, %v8886
    %v8889 = vunpack.c.l.s4 1934713408
    %v8890 = vunpack.c.0.s8 %v8889
    %v8891 = vperm.slane %v8883, %v8890
    %v8892 = vrot.slane %v8879, 4
    %v8893 = vsel %vm225, %v8892, %v8867
    %v8894 = vrot.slane %v8867, 4
    %v8895 = vsel %vm225, %v8879, %v8894
    %v8897 = vunpack.c.l.s4 1934713408
    %v8898 = vunpack.c.0.s8 %v8897
    %v8899 = vperm.slane %v8893, %v8898
    %v8901 = vunpack.c.l.s4 1934713408
    %v8902 = vunpack.c.0.s8 %v8901
    %v8903 = vperm.slane %v8895, %v8902
    %v8904 = vrot.slane %v8887, 4
    %v8905 = vsel %vm225, 0.0, %v8904
    %v8906 = vrot.slane %v8891, 4
    %v8907 = vsel %vm225, 0.0, %v8906
    %v8908 = vrot.slane %v8899, 4
    %v8909 = vsel %vm225, 0.0, %v8908
    %v8910 = vrot.slane %v8903, 4
    %v8911 = vsel %vm225, 0.0, %v8910
    %v8912 = vsel %vm225, %v8906, %v8887
    %v8914 = vunpack.c.l.s4 1983009808
    %v8915 = vunpack.c.0.s8 %v8914
    %v8916 = vperm.slane %v8912, %v8915
    %v8917 = vrot.slane %v8907, 4
    %v8918 = vsel %vm225, %v8917, %v8905
    %v8920 = vunpack.c.l.s4 1983009808
    %v8921 = vunpack.c.0.s8 %v8920
    %v8922 = vperm.slane %v8918, %v8921
    %v8923 = vsel %vm225, %v8910, %v8899
    %v8925 = vunpack.c.l.s4 1983009808
    %v8926 = vunpack.c.0.s8 %v8925
    %v8927 = vperm.slane %v8923, %v8926
    %v8928 = vrot.slane %v8911, 4
    %v8929 = vsel %vm225, %v8928, %v8909
    %v8931 = vunpack.c.l.s4 1983009808
    %v8932 = vunpack.c.0.s8 %v8931
    %v8933 = vperm.slane %v8929, %v8932
    %v8934 = vrot.slane %v8922, 4
    %v8935 = vsel %vm225, %v8934, %v8916
    %v8936 = vrot.slane %v8916, 4
    %v8937 = vsel %vm225, %v8922, %v8936
    %v8939 = vunpack.c.l.s4 1934713408
    %v8940 = vunpack.c.0.s8 %v8939
    %v8941 = vperm.slane %v8935, %v8940
    %v8943 = vunpack.c.l.s4 1934713408
    %v8944 = vunpack.c.0.s8 %v8943
    %v8945 = vperm.slane %v8937, %v8944
    %v8946 = vrot.slane %v8933, 4
    %v8947 = vsel %vm225, %v8946, %v8927
    %v8948 = vrot.slane %v8927, 4
    %v8949 = vsel %vm225, %v8933, %v8948
    %v8951 = vunpack.c.l.s4 1934713408
    %v8952 = vunpack.c.0.s8 %v8951
    %v8953 = vperm.slane %v8947, %v8952
    %v8955 = vunpack.c.l.s4 1934713408
    %v8956 = vunpack.c.0.s8 %v8955
    %v8957 = vperm.slane %v8949, %v8956
    %v8958 = vrot.slane %v8953, 4
    %v8959 = vsel %vm225, %v8958, %v8941
    %v8960 = vrot.slane %v8941, 4
    %v8961 = vsel %vm225, %v8953, %v8960
    %v8962 = vrot.slane %v8957, 4
    %v8963 = vsel %vm225, %v8962, %v8945
    %v8964 = vrot.slane %v8945, 4
    %v8965 = vsel %vm225, %v8957, %v8964
    %8967 = vrot.lane.b32.xlu0 %v8721, 120
    %v8968 = vpop.permute.xlu0 %8967
    %8970 = vrot.lane.b32.xlu0 %v8721, 112
    %v8971 = vpop.permute.xlu0 %8970
    %8973 = vrot.lane.b32.xlu0 %v8721, 104
    %v8974 = vpop.permute.xlu0 %8973
    %v8976 = vrot.slane %v8971, 4
    %v8977 = vsel %vm225, %v8976, %v8721
    %v8978 = vrot.slane %v8721, 4
    %v8979 = vsel %vm225, %v8971, %v8978
    %v8981 = vunpack.c.l.s4 1983009808
    %v8982 = vunpack.c.0.s8 %v8981
    %v8983 = vperm.slane %v8977, %v8982
    %v8985 = vunpack.c.l.s4 1983009808
    %v8986 = vunpack.c.0.s8 %v8985
    %v8987 = vperm.slane %v8979, %v8986
    %v8988 = vrot.slane %v8974, 4
    %v8989 = vsel %vm225, %v8988, %v8968
    %v8990 = vrot.slane %v8968, 4
    %v8991 = vsel %vm225, %v8974, %v8990
    %v8993 = vunpack.c.l.s4 1983009808
    %v8994 = vunpack.c.0.s8 %v8993
    %v8995 = vperm.slane %v8989, %v8994
    %v8997 = vunpack.c.l.s4 1983009808
    %v8998 = vunpack.c.0.s8 %v8997
    %v8999 = vperm.slane %v8991, %v8998
    %v9000 = vrot.slane %v8995, 4
    %v9001 = vsel %vm225, %v9000, %v8983
    %v9002 = vrot.slane %v8983, 4
    %v9003 = vsel %vm225, %v8995, %v9002
    %v9005 = vunpack.c.l.s4 1934713408
    %v9006 = vunpack.c.0.s8 %v9005
    %v9007 = vperm.slane %v9001, %v9006
    %v9009 = vunpack.c.l.s4 1934713408
    %v9010 = vunpack.c.0.s8 %v9009
    %v9011 = vperm.slane %v9003, %v9010
    %v9012 = vrot.slane %v8999, 4
    %v9013 = vsel %vm225, %v9012, %v8987
    %v9014 = vrot.slane %v8987, 4
    %v9015 = vsel %vm225, %v8999, %v9014
    %v9017 = vunpack.c.l.s4 1934713408
    %v9018 = vunpack.c.0.s8 %v9017
    %v9019 = vperm.slane %v9013, %v9018
    %v9021 = vunpack.c.l.s4 1934713408
    %v9022 = vunpack.c.0.s8 %v9021
    %v9023 = vperm.slane %v9015, %v9022
    %v9024 = vrot.slane %v9007, 4
    %v9025 = vsel %vm225, 0.0, %v9024
    %v9026 = vrot.slane %v9011, 4
    %v9027 = vsel %vm225, 0.0, %v9026
    %v9028 = vrot.slane %v9019, 4
    %v9029 = vsel %vm225, 0.0, %v9028
    %v9030 = vrot.slane %v9023, 4
    %v9031 = vsel %vm225, 0.0, %v9030
    %v9032 = vsel %vm225, %v9026, %v9007
    %v9034 = vunpack.c.l.s4 1983009808
    %v9035 = vunpack.c.0.s8 %v9034
    %v9036 = vperm.slane %v9032, %v9035
    %v9037 = vrot.slane %v9027, 4
    %v9038 = vsel %vm225, %v9037, %v9025
    %v9040 = vunpack.c.l.s4 1983009808
    %v9041 = vunpack.c.0.s8 %v9040
    %v9042 = vperm.slane %v9038, %v9041
    %v9043 = vsel %vm225, %v9030, %v9019
    %v9045 = vunpack.c.l.s4 1983009808
    %v9046 = vunpack.c.0.s8 %v9045
    %v9047 = vperm.slane %v9043, %v9046
    %v9048 = vrot.slane %v9031, 4
    %v9049 = vsel %vm225, %v9048, %v9029
    %v9051 = vunpack.c.l.s4 1983009808
    %v9052 = vunpack.c.0.s8 %v9051
    %v9053 = vperm.slane %v9049, %v9052
    %v9054 = vrot.slane %v9042, 4
    %v9055 = vsel %vm225, %v9054, %v9036
    %v9056 = vrot.slane %v9036, 4
    %v9057 = vsel %vm225, %v9042, %v9056
    %v9059 = vunpack.c.l.s4 1934713408
    %v9060 = vunpack.c.0.s8 %v9059
    %v9061 = vperm.slane %v9055, %v9060
    %v9063 = vunpack.c.l.s4 1934713408
    %v9064 = vunpack.c.0.s8 %v9063
    %v9065 = vperm.slane %v9057, %v9064
    %v9066 = vrot.slane %v9053, 4
    %v9067 = vsel %vm225, %v9066, %v9047
    %v9068 = vrot.slane %v9047, 4
    %v9069 = vsel %vm225, %v9053, %v9068
    %v9071 = vunpack.c.l.s4 1934713408
    %v9072 = vunpack.c.0.s8 %v9071
    %v9073 = vperm.slane %v9067, %v9072
    %v9075 = vunpack.c.l.s4 1934713408
    %v9076 = vunpack.c.0.s8 %v9075
    %v9077 = vperm.slane %v9069, %v9076
    %v9078 = vrot.slane %v9073, 4
    %v9079 = vsel %vm225, %v9078, %v9061
    %v9080 = vrot.slane %v9061, 4
    %v9081 = vsel %vm225, %v9073, %v9080
    %v9082 = vrot.slane %v9077, 4
    %v9083 = vsel %vm225, %v9082, %v9065
    %v9084 = vrot.slane %v9065, 4
    %v9085 = vsel %vm225, %v9077, %v9084
    %v9087 = vsel %vm575, %v8839, 0
    %v9090 = vsel %vm575, %v8959, 0
    %9092 = vmatpush.xpose.msra.mxu0 0.0
    %9093 = vmatpush.xpose.msra.mxu0 0.0
    %9094 = vmatpush.xpose.msra.mxu0 0.0
    %9095 = vmatpush.xpose.msra.mxu0 0.0
    %9096 = vmatpush.xpose.msra.mxu0 0.0
    %9097 = vmatpush.xpose.msra.mxu0 0.0
    %9098 = vmatpush.xpose.msra.mxu0 0.0
    %9099 = vmatpush.xpose.msra.mxu0 0.0
    %9100 = vmatpush.xpose.msra.mxu0 0.0
    %9101 = vmatpush.xpose.msra.mxu0 0.0
    %9102 = vmatpush.xpose.msra.mxu0 0.0
    %9103 = vmatpush.xpose.msra.mxu0 0.0
    %9104 = vmatpush.xpose.msra.mxu0 0.0
    %9105 = vmatpush.xpose.msra.mxu0 0.0
    %9106 = vmatpush.xpose.msra.mxu0 0.0
    %9107 = vmatpush.xpose.msra.mxu0 %v9090
    %9108 = vmatmul.f32.gmra.mxu0 %v9087
    %v9109 = vpop.f32.mrf.mxu0
    %v9110 = vadd.f32 0.0, %v9109
    %9111 = vdwg.mxu0
    %v9113 = vsel %vm575, %v8841, 0
    %v9116 = vsel %vm575, %v8961, 0
    %9118 = vmatpush.xpose.msra.mxu0 0.0
    %9119 = vmatpush.xpose.msra.mxu0 0.0
    %9120 = vmatpush.xpose.msra.mxu0 0.0
    %9121 = vmatpush.xpose.msra.mxu0 0.0
    %9122 = vmatpush.xpose.msra.mxu0 0.0
    %9123 = vmatpush.xpose.msra.mxu0 0.0
    %9124 = vmatpush.xpose.msra.mxu0 0.0
    %9125 = vmatpush.xpose.msra.mxu0 0.0
    %9126 = vmatpush.xpose.msra.mxu0 0.0
    %9127 = vmatpush.xpose.msra.mxu0 0.0
    %9128 = vmatpush.xpose.msra.mxu0 0.0
    %9129 = vmatpush.xpose.msra.mxu0 0.0
    %9130 = vmatpush.xpose.msra.mxu0 0.0
    %9131 = vmatpush.xpose.msra.mxu0 0.0
    %9132 = vmatpush.xpose.msra.mxu0 0.0
    %9133 = vmatpush.xpose.msra.mxu0 %v9116
    %9134 = vmatmul.f32.gmra.mxu0 %v9113
    %v9135 = vpop.f32.mrf.mxu0
    %v9136 = vadd.f32 0.0, %v9135
    %9137 = vdwg.mxu0
    %v9139 = vsel %vm575, %v8843, 0
    %v9142 = vsel %vm575, %v8963, 0
    %9144 = vmatpush.xpose.msra.mxu0 0.0
    %9145 = vmatpush.xpose.msra.mxu0 0.0
    %9146 = vmatpush.xpose.msra.mxu0 0.0
    %9147 = vmatpush.xpose.msra.mxu0 0.0
    %9148 = vmatpush.xpose.msra.mxu0 0.0
    %9149 = vmatpush.xpose.msra.mxu0 0.0
    %9150 = vmatpush.xpose.msra.mxu0 0.0
    %9151 = vmatpush.xpose.msra.mxu0 0.0
    %9152 = vmatpush.xpose.msra.mxu0 0.0
    %9153 = vmatpush.xpose.msra.mxu0 0.0
    %9154 = vmatpush.xpose.msra.mxu0 0.0
    %9155 = vmatpush.xpose.msra.mxu0 0.0
    %9156 = vmatpush.xpose.msra.mxu0 0.0
    %9157 = vmatpush.xpose.msra.mxu0 0.0
    %9158 = vmatpush.xpose.msra.mxu0 0.0
    %9159 = vmatpush.xpose.msra.mxu0 %v9142
    %9160 = vmatmul.f32.gmra.mxu0 %v9139
    %v9161 = vpop.f32.mrf.mxu0
    %v9162 = vadd.f32 0.0, %v9161
    %9163 = vdwg.mxu0
    %v9165 = vsel %vm575, %v8845, 0
    %v9168 = vsel %vm575, %v8965, 0
    %9170 = vmatpush.xpose.msra.mxu0 0.0
    %9171 = vmatpush.xpose.msra.mxu0 0.0
    %9172 = vmatpush.xpose.msra.mxu0 0.0
    %9173 = vmatpush.xpose.msra.mxu0 0.0
    %9174 = vmatpush.xpose.msra.mxu0 0.0
    %9175 = vmatpush.xpose.msra.mxu0 0.0
    %9176 = vmatpush.xpose.msra.mxu0 0.0
    %9177 = vmatpush.xpose.msra.mxu0 0.0
    %9178 = vmatpush.xpose.msra.mxu0 0.0
    %9179 = vmatpush.xpose.msra.mxu0 0.0
    %9180 = vmatpush.xpose.msra.mxu0 0.0
    %9181 = vmatpush.xpose.msra.mxu0 0.0
    %9182 = vmatpush.xpose.msra.mxu0 0.0
    %9183 = vmatpush.xpose.msra.mxu0 0.0
    %9184 = vmatpush.xpose.msra.mxu0 0.0
    %9185 = vmatpush.xpose.msra.mxu0 %v9168
    %9186 = vmatmul.f32.gmra.mxu0 %v9165
    %v9187 = vpop.f32.mrf.mxu0
    %v9188 = vadd.f32 0.0, %v9187
    %9189 = vdwg.mxu0
    %v9190 = vmul.f32 %v9110, 0.35355338
    %v9191 = vmul.f32 %v9136, 0.35355338
    %v9192 = vmul.f32 %v9162, 0.35355338
    %v9193 = vmul.f32 %v9188, 0.35355338
    %v9194 = vsel %vm575, %v9190, -inf
    %9195 = vmax.xlane.f32.xlu0 %v9194
    %v9196 = vpop.xlane.xlu0 %9195
    %v9197 = vsel %vm575, %v9191, -inf
    %9198 = vmax.xlane.f32.xlu0 %v9197
    %v9199 = vpop.xlane.xlu0 %9198
    %v9200 = vsel %vm575, %v9192, -inf
    %9201 = vmax.xlane.f32.xlu0 %v9200
    %v9202 = vpop.xlane.xlu0 %9201
    %v9203 = vsel %vm575, %v9193, -inf
    %9204 = vmax.xlane.f32.xlu0 %v9203
    %v9205 = vpop.xlane.xlu0 %9204
    %v9206 = vsub.f32 %v9190, %v9196
    %v9207 = vsub.f32 %v9191, %v9199
    %v9208 = vsub.f32 %v9192, %v9202
    %v9209 = vsub.f32 %v9193, %v9205
    %v9210 = vmul.f32 %v9206, 1.442695
    %v9211 = vpow.pop %v9210
    %v9212 = vmul.f32 %v9207, 1.442695
    %v9213 = vpow.pop %v9212
    %v9214 = vmul.f32 %v9208, 1.442695
    %v9215 = vpow.pop %v9214
    %v9216 = vmul.f32 %v9209, 1.442695
    %v9217 = vpow.pop %v9216
    %v9218 = vsel %vm575, %v9211, 0.0
    %9219 = vadd.xlane.f32.xlu0 %v9218
    %v9220 = vpop.xlane.xlu0 %9219
    %v9221 = vsel %vm575, %v9213, 0.0
    %9222 = vadd.xlane.f32.xlu0 %v9221
    %v9223 = vpop.xlane.xlu0 %9222
    %v9224 = vsel %vm575, %v9215, 0.0
    %9225 = vadd.xlane.f32.xlu0 %v9224
    %v9226 = vpop.xlane.xlu0 %9225
    %v9227 = vsel %vm575, %v9217, 0.0
    %9228 = vadd.xlane.f32.xlu0 %v9227
    %v9229 = vpop.xlane.xlu0 %9228
    %v9230 = vrcp.pop %v9220
    %v9231 = vrcp.pop %v9223
    %v9232 = vrcp.pop %v9226
    %v9233 = vrcp.pop %v9229
    %v9234 = vmul.f32 %v9211, %v9230
    %v9235 = vmul.f32 %v9213, %v9231
    %v9236 = vmul.f32 %v9215, %v9232
    %v9237 = vmul.f32 %v9217, %v9233
    %v9239 = vsel %vm575, %v9234, 0
    %9241 = vmatpush.msra.mxu0 0.0
    %9242 = vmatpush.msra.mxu0 0.0
    %9243 = vmatpush.msra.mxu0 0.0
    %9244 = vmatpush.msra.mxu0 0.0
    %9245 = vmatpush.msra.mxu0 0.0
    %9246 = vmatpush.msra.mxu0 0.0
    %9247 = vmatpush.msra.mxu0 0.0
    %9248 = vmatpush.msra.mxu0 0.0
    %9249 = vmatpush.msra.mxu0 0.0
    %9250 = vmatpush.msra.mxu0 0.0
    %9251 = vmatpush.msra.mxu0 0.0
    %9252 = vmatpush.msra.mxu0 0.0
    %9253 = vmatpush.msra.mxu0 0.0
    %9254 = vmatpush.msra.mxu0 0.0
    %9255 = vmatpush.msra.mxu0 0.0
    %9256 = vmatpush.msra.mxu0 %v9079
    %9257 = vmatmul.f32.gmra.mxu0 %v9239
    %v9258 = vpop.f32.mrf.mxu0
    %v9259 = vadd.f32 0.0, %v9258
    %9260 = vdwg.mxu0
    %v9262 = vsel %vm575, %v9235, 0
    %9264 = vmatpush.msra.mxu0 0.0
    %9265 = vmatpush.msra.mxu0 0.0
    %9266 = vmatpush.msra.mxu0 0.0
    %9267 = vmatpush.msra.mxu0 0.0
    %9268 = vmatpush.msra.mxu0 0.0
    %9269 = vmatpush.msra.mxu0 0.0
    %9270 = vmatpush.msra.mxu0 0.0
    %9271 = vmatpush.msra.mxu0 0.0
    %9272 = vmatpush.msra.mxu0 0.0
    %9273 = vmatpush.msra.mxu0 0.0
    %9274 = vmatpush.msra.mxu0 0.0
    %9275 = vmatpush.msra.mxu0 0.0
    %9276 = vmatpush.msra.mxu0 0.0
    %9277 = vmatpush.msra.mxu0 0.0
    %9278 = vmatpush.msra.mxu0 0.0
    %9279 = vmatpush.msra.mxu0 %v9081
    %9280 = vmatmul.f32.gmra.mxu0 %v9262
    %v9281 = vpop.f32.mrf.mxu0
    %v9282 = vadd.f32 0.0, %v9281
    %9283 = vdwg.mxu0
    %v9285 = vsel %vm575, %v9236, 0
    %9287 = vmatpush.msra.mxu0 0.0
    %9288 = vmatpush.msra.mxu0 0.0
    %9289 = vmatpush.msra.mxu0 0.0
    %9290 = vmatpush.msra.mxu0 0.0
    %9291 = vmatpush.msra.mxu0 0.0
    %9292 = vmatpush.msra.mxu0 0.0
    %9293 = vmatpush.msra.mxu0 0.0
    %9294 = vmatpush.msra.mxu0 0.0
    %9295 = vmatpush.msra.mxu0 0.0
    %9296 = vmatpush.msra.mxu0 0.0
    %9297 = vmatpush.msra.mxu0 0.0
    %9298 = vmatpush.msra.mxu0 0.0
    %9299 = vmatpush.msra.mxu0 0.0
    %9300 = vmatpush.msra.mxu0 0.0
    %9301 = vmatpush.msra.mxu0 0.0
    %9302 = vmatpush.msra.mxu0 %v9083
    %9303 = vmatmul.f32.gmra.mxu0 %v9285
    %v9304 = vpop.f32.mrf.mxu0
    %v9305 = vadd.f32 0.0, %v9304
    %9306 = vdwg.mxu0
    %v9308 = vsel %vm575, %v9237, 0
    %9310 = vmatpush.msra.mxu0 0.0
    %9311 = vmatpush.msra.mxu0 0.0
    %9312 = vmatpush.msra.mxu0 0.0
    %9313 = vmatpush.msra.mxu0 0.0
    %9314 = vmatpush.msra.mxu0 0.0
    %9315 = vmatpush.msra.mxu0 0.0
    %9316 = vmatpush.msra.mxu0 0.0
    %9317 = vmatpush.msra.mxu0 0.0
    %9318 = vmatpush.msra.mxu0 0.0
    %9319 = vmatpush.msra.mxu0 0.0
    %9320 = vmatpush.msra.mxu0 0.0
    %9321 = vmatpush.msra.mxu0 0.0
    %9322 = vmatpush.msra.mxu0 0.0
    %9323 = vmatpush.msra.mxu0 0.0
    %9324 = vmatpush.msra.mxu0 0.0
    %9325 = vmatpush.msra.mxu0 %v9085
    %9326 = vmatmul.f32.gmra.mxu0 %v9308
    %v9327 = vpop.f32.mrf.mxu0
    %v9328 = vadd.f32 0.0, %v9327
    %9329 = vdwg.mxu0
    %v9330 = vrot.slane %v9305, 4
    %v9331 = vsel %vm225, %v9330, %v9259
    %v9332 = vrot.slane %v9259, 4
    %v9333 = vsel %vm225, %v9305, %v9332
    %v9335 = vunpack.c.l.s4 1983009808
    %v9336 = vunpack.c.0.s8 %v9335
    %v9337 = vperm.slane %v9331, %v9336
    %v9339 = vunpack.c.l.s4 1983009808
    %v9340 = vunpack.c.0.s8 %v9339
    %v9341 = vperm.slane %v9333, %v9340
    %v9342 = vrot.slane %v9328, 4
    %v9343 = vsel %vm225, %v9342, %v9282
    %v9344 = vrot.slane %v9282, 4
    %v9345 = vsel %vm225, %v9328, %v9344
    %v9347 = vunpack.c.l.s4 1983009808
    %v9348 = vunpack.c.0.s8 %v9347
    %v9349 = vperm.slane %v9343, %v9348
    %v9351 = vunpack.c.l.s4 1983009808
    %v9352 = vunpack.c.0.s8 %v9351
    %v9353 = vperm.slane %v9345, %v9352
    %v9354 = vrot.slane %v9349, 4
    %v9355 = vsel %vm225, %v9354, %v9337
    %v9356 = vrot.slane %v9337, 4
    %v9357 = vsel %vm225, %v9349, %v9356
    %v9359 = vunpack.c.l.s4 1934713408
    %v9360 = vunpack.c.0.s8 %v9359
    %v9361 = vperm.slane %v9355, %v9360
    %v9363 = vunpack.c.l.s4 1934713408
    %v9364 = vunpack.c.0.s8 %v9363
    %v9365 = vperm.slane %v9357, %v9364
    %v9366 = vrot.slane %v9353, 4
    %v9367 = vsel %vm225, %v9366, %v9341
    %v9368 = vrot.slane %v9341, 4
    %v9369 = vsel %vm225, %v9353, %v9368
    %v9371 = vunpack.c.l.s4 1934713408
    %v9372 = vunpack.c.0.s8 %v9371
    %v9373 = vperm.slane %v9367, %v9372
    %v9375 = vunpack.c.l.s4 1934713408
    %v9376 = vunpack.c.0.s8 %v9375
    %v9377 = vperm.slane %v9369, %v9376
    %v9378 = vrot.slane %v9361, 4
    %v9379 = vsel %vm225, 0.0, %v9378
    %v9380 = vrot.slane %v9365, 4
    %v9381 = vsel %vm225, 0.0, %v9380
    %v9382 = vrot.slane %v9373, 4
    %v9383 = vsel %vm225, 0.0, %v9382
    %v9384 = vrot.slane %v9377, 4
    %v9385 = vsel %vm225, 0.0, %v9384
    %v9386 = vsel %vm225, %v9380, %v9361
    %v9388 = vunpack.c.l.s4 1983009808
    %v9389 = vunpack.c.0.s8 %v9388
    %v9390 = vperm.slane %v9386, %v9389
    %v9391 = vrot.slane %v9381, 4
    %v9392 = vsel %vm225, %v9391, %v9379
    %v9394 = vunpack.c.l.s4 1983009808
    %v9395 = vunpack.c.0.s8 %v9394
    %v9396 = vperm.slane %v9392, %v9395
    %v9397 = vsel %vm225, %v9384, %v9373
    %v9399 = vunpack.c.l.s4 1983009808
    %v9400 = vunpack.c.0.s8 %v9399
    %v9401 = vperm.slane %v9397, %v9400
    %v9402 = vrot.slane %v9385, 4
    %v9403 = vsel %vm225, %v9402, %v9383
    %v9405 = vunpack.c.l.s4 1983009808
    %v9406 = vunpack.c.0.s8 %v9405
    %v9407 = vperm.slane %v9403, %v9406
    %v9408 = vrot.slane %v9396, 4
    %v9409 = vsel %vm225, %v9408, %v9390
    %v9410 = vrot.slane %v9390, 4
    %v9411 = vsel %vm225, %v9396, %v9410
    %v9413 = vunpack.c.l.s4 1934713408
    %v9414 = vunpack.c.0.s8 %v9413
    %v9415 = vperm.slane %v9409, %v9414
    %v9417 = vunpack.c.l.s4 1934713408
    %v9418 = vunpack.c.0.s8 %v9417
    %v9419 = vperm.slane %v9411, %v9418
    %v9420 = vrot.slane %v9407, 4
    %v9421 = vsel %vm225, %v9420, %v9401
    %v9422 = vrot.slane %v9401, 4
    %v9423 = vsel %vm225, %v9407, %v9422
    %v9425 = vunpack.c.l.s4 1934713408
    %v9426 = vunpack.c.0.s8 %v9425
    %v9427 = vperm.slane %v9421, %v9426
    %v9429 = vunpack.c.l.s4 1934713408
    %v9430 = vunpack.c.0.s8 %v9429
    %v9431 = vperm.slane %v9423, %v9430
    %v9432 = vrot.slane %v9427, 4
    %v9433 = vsel %vm225, %v9432, %v9415
    %v9434 = vrot.slane %v9415, 4
    %v9435 = vsel %vm225, %v9427, %v9434
    %v9436 = vrot.slane %v9431, 4
    %v9437 = vsel %vm225, %v9436, %v9419
    %v9438 = vrot.slane %v9419, 4
    %v9439 = vsel %vm225, %v9431, %v9438
    %9441 = vrot.lane.b32.xlu0 %v9435, 8
    %v9442 = vpop.permute.xlu0 %9441
    %9445 = vrot.lane.b32.xlu0 %v9437, 16
    %v9446 = vpop.permute.xlu0 %9445
    %9449 = vrot.lane.b32.xlu0 %v9439, 24
    %v9450 = vpop.permute.xlu0 %9449
    %v9452 = vsel %vm575, %v9433, %v9442
    %v9453 = vsel %vm949, %v9452, %v9446
    %v9454 = vsel %vm951, %v9453, %v9450
    %9456 = vrot.lane.b32.xlu0 %v8666, 120
    %v9457 = vpop.permute.xlu0 %9456
    %9459 = vrot.lane.b32.xlu0 %v8666, 112
    %v9460 = vpop.permute.xlu0 %9459
    %9462 = vrot.lane.b32.xlu0 %v8666, 104
    %v9463 = vpop.permute.xlu0 %9462
    %v9465 = vrot.slane %v9460, 4
    %v9466 = vsel %vm225, %v9465, %v8666
    %v9467 = vrot.slane %v8666, 4
    %v9468 = vsel %vm225, %v9460, %v9467
    %v9470 = vunpack.c.l.s4 1983009808
    %v9471 = vunpack.c.0.s8 %v9470
    %v9472 = vperm.slane %v9466, %v9471
    %v9474 = vunpack.c.l.s4 1983009808
    %v9475 = vunpack.c.0.s8 %v9474
    %v9476 = vperm.slane %v9468, %v9475
    %v9477 = vrot.slane %v9463, 4
    %v9478 = vsel %vm225, %v9477, %v9457
    %v9479 = vrot.slane %v9457, 4
    %v9480 = vsel %vm225, %v9463, %v9479
    %v9482 = vunpack.c.l.s4 1983009808
    %v9483 = vunpack.c.0.s8 %v9482
    %v9484 = vperm.slane %v9478, %v9483
    %v9486 = vunpack.c.l.s4 1983009808
    %v9487 = vunpack.c.0.s8 %v9486
    %v9488 = vperm.slane %v9480, %v9487
    %v9489 = vrot.slane %v9484, 4
    %v9490 = vsel %vm225, %v9489, %v9472
    %v9491 = vrot.slane %v9472, 4
    %v9492 = vsel %vm225, %v9484, %v9491
    %v9494 = vunpack.c.l.s4 1934713408
    %v9495 = vunpack.c.0.s8 %v9494
    %v9496 = vperm.slane %v9490, %v9495
    %v9498 = vunpack.c.l.s4 1934713408
    %v9499 = vunpack.c.0.s8 %v9498
    %v9500 = vperm.slane %v9492, %v9499
    %v9501 = vrot.slane %v9488, 4
    %v9502 = vsel %vm225, %v9501, %v9476
    %v9503 = vrot.slane %v9476, 4
    %v9504 = vsel %vm225, %v9488, %v9503
    %v9506 = vunpack.c.l.s4 1934713408
    %v9507 = vunpack.c.0.s8 %v9506
    %v9508 = vperm.slane %v9502, %v9507
    %v9510 = vunpack.c.l.s4 1934713408
    %v9511 = vunpack.c.0.s8 %v9510
    %v9512 = vperm.slane %v9504, %v9511
    %v9513 = vrot.slane %v9496, 4
    %v9514 = vsel %vm225, 0.0, %v9513
    %v9515 = vrot.slane %v9500, 4
    %v9516 = vsel %vm225, 0.0, %v9515
    %v9517 = vrot.slane %v9508, 4
    %v9518 = vsel %vm225, 0.0, %v9517
    %v9519 = vrot.slane %v9512, 4
    %v9520 = vsel %vm225, 0.0, %v9519
    %v9521 = vsel %vm225, %v9515, %v9496
    %v9523 = vunpack.c.l.s4 1983009808
    %v9524 = vunpack.c.0.s8 %v9523
    %v9525 = vperm.slane %v9521, %v9524
    %v9526 = vrot.slane %v9516, 4
    %v9527 = vsel %vm225, %v9526, %v9514
    %v9529 = vunpack.c.l.s4 1983009808
    %v9530 = vunpack.c.0.s8 %v9529
    %v9531 = vperm.slane %v9527, %v9530
    %v9532 = vsel %vm225, %v9519, %v9508
    %v9534 = vunpack.c.l.s4 1983009808
    %v9535 = vunpack.c.0.s8 %v9534
    %v9536 = vperm.slane %v9532, %v9535
    %v9537 = vrot.slane %v9520, 4
    %v9538 = vsel %vm225, %v9537, %v9518
    %v9540 = vunpack.c.l.s4 1983009808
    %v9541 = vunpack.c.0.s8 %v9540
    %v9542 = vperm.slane %v9538, %v9541
    %v9543 = vrot.slane %v9531, 4
    %v9544 = vsel %vm225, %v9543, %v9525
    %v9545 = vrot.slane %v9525, 4
    %v9546 = vsel %vm225, %v9531, %v9545
    %v9548 = vunpack.c.l.s4 1934713408
    %v9549 = vunpack.c.0.s8 %v9548
    %v9550 = vperm.slane %v9544, %v9549
    %v9552 = vunpack.c.l.s4 1934713408
    %v9553 = vunpack.c.0.s8 %v9552
    %v9554 = vperm.slane %v9546, %v9553
    %v9555 = vrot.slane %v9542, 4
    %v9556 = vsel %vm225, %v9555, %v9536
    %v9557 = vrot.slane %v9536, 4
    %v9558 = vsel %vm225, %v9542, %v9557
    %v9560 = vunpack.c.l.s4 1934713408
    %v9561 = vunpack.c.0.s8 %v9560
    %v9562 = vperm.slane %v9556, %v9561
    %v9564 = vunpack.c.l.s4 1934713408
    %v9565 = vunpack.c.0.s8 %v9564
    %v9566 = vperm.slane %v9558, %v9565
    %v9567 = vrot.slane %v9562, 4
    %v9568 = vsel %vm225, %v9567, %v9550
    %v9569 = vrot.slane %v9550, 4
    %v9570 = vsel %vm225, %v9562, %v9569
    %v9571 = vrot.slane %v9566, 4
    %v9572 = vsel %vm225, %v9571, %v9554
    %v9573 = vrot.slane %v9554, 4
    %v9574 = vsel %vm225, %v9566, %v9573
    %9576 = vrot.lane.b32.xlu0 %v8695, 120
    %v9577 = vpop.permute.xlu0 %9576
    %9579 = vrot.lane.b32.xlu0 %v8695, 112
    %v9580 = vpop.permute.xlu0 %9579
    %9582 = vrot.lane.b32.xlu0 %v8695, 104
    %v9583 = vpop.permute.xlu0 %9582
    %v9585 = vrot.slane %v9580, 4
    %v9586 = vsel %vm225, %v9585, %v8695
    %v9587 = vrot.slane %v8695, 4
    %v9588 = vsel %vm225, %v9580, %v9587
    %v9590 = vunpack.c.l.s4 1983009808
    %v9591 = vunpack.c.0.s8 %v9590
    %v9592 = vperm.slane %v9586, %v9591
    %v9594 = vunpack.c.l.s4 1983009808
    %v9595 = vunpack.c.0.s8 %v9594
    %v9596 = vperm.slane %v9588, %v9595
    %v9597 = vrot.slane %v9583, 4
    %v9598 = vsel %vm225, %v9597, %v9577
    %v9599 = vrot.slane %v9577, 4
    %v9600 = vsel %vm225, %v9583, %v9599
    %v9602 = vunpack.c.l.s4 1983009808
    %v9603 = vunpack.c.0.s8 %v9602
    %v9604 = vperm.slane %v9598, %v9603
    %v9606 = vunpack.c.l.s4 1983009808
    %v9607 = vunpack.c.0.s8 %v9606
    %v9608 = vperm.slane %v9600, %v9607
    %v9609 = vrot.slane %v9604, 4
    %v9610 = vsel %vm225, %v9609, %v9592
    %v9611 = vrot.slane %v9592, 4
    %v9612 = vsel %vm225, %v9604, %v9611
    %v9614 = vunpack.c.l.s4 1934713408
    %v9615 = vunpack.c.0.s8 %v9614
    %v9616 = vperm.slane %v9610, %v9615
    %v9618 = vunpack.c.l.s4 1934713408
    %v9619 = vunpack.c.0.s8 %v9618
    %v9620 = vperm.slane %v9612, %v9619
    %v9621 = vrot.slane %v9608, 4
    %v9622 = vsel %vm225, %v9621, %v9596
    %v9623 = vrot.slane %v9596, 4
    %v9624 = vsel %vm225, %v9608, %v9623
    %v9626 = vunpack.c.l.s4 1934713408
    %v9627 = vunpack.c.0.s8 %v9626
    %v9628 = vperm.slane %v9622, %v9627
    %v9630 = vunpack.c.l.s4 1934713408
    %v9631 = vunpack.c.0.s8 %v9630
    %v9632 = vperm.slane %v9624, %v9631
    %v9633 = vrot.slane %v9616, 4
    %v9634 = vsel %vm225, 0.0, %v9633
    %v9635 = vrot.slane %v9620, 4
    %v9636 = vsel %vm225, 0.0, %v9635
    %v9637 = vrot.slane %v9628, 4
    %v9638 = vsel %vm225, 0.0, %v9637
    %v9639 = vrot.slane %v9632, 4
    %v9640 = vsel %vm225, 0.0, %v9639
    %v9641 = vsel %vm225, %v9635, %v9616
    %v9643 = vunpack.c.l.s4 1983009808
    %v9644 = vunpack.c.0.s8 %v9643
    %v9645 = vperm.slane %v9641, %v9644
    %v9646 = vrot.slane %v9636, 4
    %v9647 = vsel %vm225, %v9646, %v9634
    %v9649 = vunpack.c.l.s4 1983009808
    %v9650 = vunpack.c.0.s8 %v9649
    %v9651 = vperm.slane %v9647, %v9650
    %v9652 = vsel %vm225, %v9639, %v9628
    %v9654 = vunpack.c.l.s4 1983009808
    %v9655 = vunpack.c.0.s8 %v9654
    %v9656 = vperm.slane %v9652, %v9655
    %v9657 = vrot.slane %v9640, 4
    %v9658 = vsel %vm225, %v9657, %v9638
    %v9660 = vunpack.c.l.s4 1983009808
    %v9661 = vunpack.c.0.s8 %v9660
    %v9662 = vperm.slane %v9658, %v9661
    %v9663 = vrot.slane %v9651, 4
    %v9664 = vsel %vm225, %v9663, %v9645
    %v9665 = vrot.slane %v9645, 4
    %v9666 = vsel %vm225, %v9651, %v9665
    %v9668 = vunpack.c.l.s4 1934713408
    %v9669 = vunpack.c.0.s8 %v9668
    %v9670 = vperm.slane %v9664, %v9669
    %v9672 = vunpack.c.l.s4 1934713408
    %v9673 = vunpack.c.0.s8 %v9672
    %v9674 = vperm.slane %v9666, %v9673
    %v9675 = vrot.slane %v9662, 4
    %v9676 = vsel %vm225, %v9675, %v9656
    %v9677 = vrot.slane %v9656, 4
    %v9678 = vsel %vm225, %v9662, %v9677
    %v9680 = vunpack.c.l.s4 1934713408
    %v9681 = vunpack.c.0.s8 %v9680
    %v9682 = vperm.slane %v9676, %v9681
    %v9684 = vunpack.c.l.s4 1934713408
    %v9685 = vunpack.c.0.s8 %v9684
    %v9686 = vperm.slane %v9678, %v9685
    %v9687 = vrot.slane %v9682, 4
    %v9688 = vsel %vm225, %v9687, %v9670
    %v9689 = vrot.slane %v9670, 4
    %v9690 = vsel %vm225, %v9682, %v9689
    %v9691 = vrot.slane %v9686, 4
    %v9692 = vsel %vm225, %v9691, %v9674
    %v9693 = vrot.slane %v9674, 4
    %v9694 = vsel %vm225, %v9686, %v9693
    %9696 = vrot.lane.b32.xlu0 %v8724, 120
    %v9697 = vpop.permute.xlu0 %9696
    %9699 = vrot.lane.b32.xlu0 %v8724, 112
    %v9700 = vpop.permute.xlu0 %9699
    %9702 = vrot.lane.b32.xlu0 %v8724, 104
    %v9703 = vpop.permute.xlu0 %9702
    %v9705 = vrot.slane %v9700, 4
    %v9706 = vsel %vm225, %v9705, %v8724
    %v9707 = vrot.slane %v8724, 4
    %v9708 = vsel %vm225, %v9700, %v9707
    %v9710 = vunpack.c.l.s4 1983009808
    %v9711 = vunpack.c.0.s8 %v9710
    %v9712 = vperm.slane %v9706, %v9711
    %v9714 = vunpack.c.l.s4 1983009808
    %v9715 = vunpack.c.0.s8 %v9714
    %v9716 = vperm.slane %v9708, %v9715
    %v9717 = vrot.slane %v9703, 4
    %v9718 = vsel %vm225, %v9717, %v9697
    %v9719 = vrot.slane %v9697, 4
    %v9720 = vsel %vm225, %v9703, %v9719
    %v9722 = vunpack.c.l.s4 1983009808
    %v9723 = vunpack.c.0.s8 %v9722
    %v9724 = vperm.slane %v9718, %v9723
    %v9726 = vunpack.c.l.s4 1983009808
    %v9727 = vunpack.c.0.s8 %v9726
    %v9728 = vperm.slane %v9720, %v9727
    %v9729 = vrot.slane %v9724, 4
    %v9730 = vsel %vm225, %v9729, %v9712
    %v9731 = vrot.slane %v9712, 4
    %v9732 = vsel %vm225, %v9724, %v9731
    %v9734 = vunpack.c.l.s4 1934713408
    %v9735 = vunpack.c.0.s8 %v9734
    %v9736 = vperm.slane %v9730, %v9735
    %v9738 = vunpack.c.l.s4 1934713408
    %v9739 = vunpack.c.0.s8 %v9738
    %v9740 = vperm.slane %v9732, %v9739
    %v9741 = vrot.slane %v9728, 4
    %v9742 = vsel %vm225, %v9741, %v9716
    %v9743 = vrot.slane %v9716, 4
    %v9744 = vsel %vm225, %v9728, %v9743
    %v9746 = vunpack.c.l.s4 1934713408
    %v9747 = vunpack.c.0.s8 %v9746
    %v9748 = vperm.slane %v9742, %v9747
    %v9750 = vunpack.c.l.s4 1934713408
    %v9751 = vunpack.c.0.s8 %v9750
    %v9752 = vperm.slane %v9744, %v9751
    %v9753 = vrot.slane %v9736, 4
    %v9754 = vsel %vm225, 0.0, %v9753
    %v9755 = vrot.slane %v9740, 4
    %v9756 = vsel %vm225, 0.0, %v9755
    %v9757 = vrot.slane %v9748, 4
    %v9758 = vsel %vm225, 0.0, %v9757
    %v9759 = vrot.slane %v9752, 4
    %v9760 = vsel %vm225, 0.0, %v9759
    %v9761 = vsel %vm225, %v9755, %v9736
    %v9763 = vunpack.c.l.s4 1983009808
    %v9764 = vunpack.c.0.s8 %v9763
    %v9765 = vperm.slane %v9761, %v9764
    %v9766 = vrot.slane %v9756, 4
    %v9767 = vsel %vm225, %v9766, %v9754
    %v9769 = vunpack.c.l.s4 1983009808
    %v9770 = vunpack.c.0.s8 %v9769
    %v9771 = vperm.slane %v9767, %v9770
    %v9772 = vsel %vm225, %v9759, %v9748
    %v9774 = vunpack.c.l.s4 1983009808
    %v9775 = vunpack.c.0.s8 %v9774
    %v9776 = vperm.slane %v9772, %v9775
    %v9777 = vrot.slane %v9760, 4
    %v9778 = vsel %vm225, %v9777, %v9758
    %v9780 = vunpack.c.l.s4 1983009808
    %v9781 = vunpack.c.0.s8 %v9780
    %v9782 = vperm.slane %v9778, %v9781
    %v9783 = vrot.slane %v9771, 4
    %v9784 = vsel %vm225, %v9783, %v9765
    %v9785 = vrot.slane %v9765, 4
    %v9786 = vsel %vm225, %v9771, %v9785
    %v9788 = vunpack.c.l.s4 1934713408
    %v9789 = vunpack.c.0.s8 %v9788
    %v9790 = vperm.slane %v9784, %v9789
    %v9792 = vunpack.c.l.s4 1934713408
    %v9793 = vunpack.c.0.s8 %v9792
    %v9794 = vperm.slane %v9786, %v9793
    %v9795 = vrot.slane %v9782, 4
    %v9796 = vsel %vm225, %v9795, %v9776
    %v9797 = vrot.slane %v9776, 4
    %v9798 = vsel %vm225, %v9782, %v9797
    %v9800 = vunpack.c.l.s4 1934713408
    %v9801 = vunpack.c.0.s8 %v9800
    %v9802 = vperm.slane %v9796, %v9801
    %v9804 = vunpack.c.l.s4 1934713408
    %v9805 = vunpack.c.0.s8 %v9804
    %v9806 = vperm.slane %v9798, %v9805
    %v9807 = vrot.slane %v9802, 4
    %v9808 = vsel %vm225, %v9807, %v9790
    %v9809 = vrot.slane %v9790, 4
    %v9810 = vsel %vm225, %v9802, %v9809
    %v9811 = vrot.slane %v9806, 4
    %v9812 = vsel %vm225, %v9811, %v9794
    %v9813 = vrot.slane %v9794, 4
    %v9814 = vsel %vm225, %v9806, %v9813
    %v9816 = vsel %vm575, %v9568, 0
    %v9819 = vsel %vm575, %v9688, 0
    %9821 = vmatpush.xpose.msra.mxu0 0.0
    %9822 = vmatpush.xpose.msra.mxu0 0.0
    %9823 = vmatpush.xpose.msra.mxu0 0.0
    %9824 = vmatpush.xpose.msra.mxu0 0.0
    %9825 = vmatpush.xpose.msra.mxu0 0.0
    %9826 = vmatpush.xpose.msra.mxu0 0.0
    %9827 = vmatpush.xpose.msra.mxu0 0.0
    %9828 = vmatpush.xpose.msra.mxu0 0.0
    %9829 = vmatpush.xpose.msra.mxu0 0.0
    %9830 = vmatpush.xpose.msra.mxu0 0.0
    %9831 = vmatpush.xpose.msra.mxu0 0.0
    %9832 = vmatpush.xpose.msra.mxu0 0.0
    %9833 = vmatpush.xpose.msra.mxu0 0.0
    %9834 = vmatpush.xpose.msra.mxu0 0.0
    %9835 = vmatpush.xpose.msra.mxu0 0.0
    %9836 = vmatpush.xpose.msra.mxu0 %v9819
    %9837 = vmatmul.f32.gmra.mxu0 %v9816
    %v9838 = vpop.f32.mrf.mxu0
    %v9839 = vadd.f32 0.0, %v9838
    %9840 = vdwg.mxu0
    %v9842 = vsel %vm575, %v9570, 0
    %v9845 = vsel %vm575, %v9690, 0
    %9847 = vmatpush.xpose.msra.mxu0 0.0
    %9848 = vmatpush.xpose.msra.mxu0 0.0
    %9849 = vmatpush.xpose.msra.mxu0 0.0
    %9850 = vmatpush.xpose.msra.mxu0 0.0
    %9851 = vmatpush.xpose.msra.mxu0 0.0
    %9852 = vmatpush.xpose.msra.mxu0 0.0
    %9853 = vmatpush.xpose.msra.mxu0 0.0
    %9854 = vmatpush.xpose.msra.mxu0 0.0
    %9855 = vmatpush.xpose.msra.mxu0 0.0
    %9856 = vmatpush.xpose.msra.mxu0 0.0
    %9857 = vmatpush.xpose.msra.mxu0 0.0
    %9858 = vmatpush.xpose.msra.mxu0 0.0
    %9859 = vmatpush.xpose.msra.mxu0 0.0
    %9860 = vmatpush.xpose.msra.mxu0 0.0
    %9861 = vmatpush.xpose.msra.mxu0 0.0
    %9862 = vmatpush.xpose.msra.mxu0 %v9845
    %9863 = vmatmul.f32.gmra.mxu0 %v9842
    %v9864 = vpop.f32.mrf.mxu0
    %v9865 = vadd.f32 0.0, %v9864
    %9866 = vdwg.mxu0
    %v9868 = vsel %vm575, %v9572, 0
    %v9871 = vsel %vm575, %v9692, 0
    %9873 = vmatpush.xpose.msra.mxu0 0.0
    %9874 = vmatpush.xpose.msra.mxu0 0.0
    %9875 = vmatpush.xpose.msra.mxu0 0.0
    %9876 = vmatpush.xpose.msra.mxu0 0.0
    %9877 = vmatpush.xpose.msra.mxu0 0.0
    %9878 = vmatpush.xpose.msra.mxu0 0.0
    %9879 = vmatpush.xpose.msra.mxu0 0.0
    %9880 = vmatpush.xpose.msra.mxu0 0.0
    %9881 = vmatpush.xpose.msra.mxu0 0.0
    %9882 = vmatpush.xpose.msra.mxu0 0.0
    %9883 = vmatpush.xpose.msra.mxu0 0.0
    %9884 = vmatpush.xpose.msra.mxu0 0.0
    %9885 = vmatpush.xpose.msra.mxu0 0.0
    %9886 = vmatpush.xpose.msra.mxu0 0.0
    %9887 = vmatpush.xpose.msra.mxu0 0.0
    %9888 = vmatpush.xpose.msra.mxu0 %v9871
    %9889 = vmatmul.f32.gmra.mxu0 %v9868
    %v9890 = vpop.f32.mrf.mxu0
    %v9891 = vadd.f32 0.0, %v9890
    %9892 = vdwg.mxu0
    %v9894 = vsel %vm575, %v9574, 0
    %v9897 = vsel %vm575, %v9694, 0
    %9899 = vmatpush.xpose.msra.mxu0 0.0
    %9900 = vmatpush.xpose.msra.mxu0 0.0
    %9901 = vmatpush.xpose.msra.mxu0 0.0
    %9902 = vmatpush.xpose.msra.mxu0 0.0
    %9903 = vmatpush.xpose.msra.mxu0 0.0
    %9904 = vmatpush.xpose.msra.mxu0 0.0
    %9905 = vmatpush.xpose.msra.mxu0 0.0
    %9906 = vmatpush.xpose.msra.mxu0 0.0
    %9907 = vmatpush.xpose.msra.mxu0 0.0
    %9908 = vmatpush.xpose.msra.mxu0 0.0
    %9909 = vmatpush.xpose.msra.mxu0 0.0
    %9910 = vmatpush.xpose.msra.mxu0 0.0
    %9911 = vmatpush.xpose.msra.mxu0 0.0
    %9912 = vmatpush.xpose.msra.mxu0 0.0
    %9913 = vmatpush.xpose.msra.mxu0 0.0
    %9914 = vmatpush.xpose.msra.mxu0 %v9897
    %9915 = vmatmul.f32.gmra.mxu0 %v9894
    %v9916 = vpop.f32.mrf.mxu0
    %v9917 = vadd.f32 0.0, %v9916
    %9918 = vdwg.mxu0
    %v9919 = vmul.f32 %v9839, 0.35355338
    %v9920 = vmul.f32 %v9865, 0.35355338
    %v9921 = vmul.f32 %v9891, 0.35355338
    %v9922 = vmul.f32 %v9917, 0.35355338
    %v9923 = vsel %vm575, %v9919, -inf
    %9924 = vmax.xlane.f32.xlu0 %v9923
    %v9925 = vpop.xlane.xlu0 %9924
    %v9926 = vsel %vm575, %v9920, -inf
    %9927 = vmax.xlane.f32.xlu0 %v9926
    %v9928 = vpop.xlane.xlu0 %9927
    %v9929 = vsel %vm575, %v9921, -inf
    %9930 = vmax.xlane.f32.xlu0 %v9929
    %v9931 = vpop.xlane.xlu0 %9930
    %v9932 = vsel %vm575, %v9922, -inf
    %9933 = vmax.xlane.f32.xlu0 %v9932
    %v9934 = vpop.xlane.xlu0 %9933
    %v9935 = vsub.f32 %v9919, %v9925
    %v9936 = vsub.f32 %v9920, %v9928
    %v9937 = vsub.f32 %v9921, %v9931
    %v9938 = vsub.f32 %v9922, %v9934
    %v9939 = vmul.f32 %v9935, 1.442695
    %v9940 = vpow.pop %v9939
    %v9941 = vmul.f32 %v9936, 1.442695
    %v9942 = vpow.pop %v9941
    %v9943 = vmul.f32 %v9937, 1.442695
    %v9944 = vpow.pop %v9943
    %v9945 = vmul.f32 %v9938, 1.442695
    %v9946 = vpow.pop %v9945
    %v9947 = vsel %vm575, %v9940, 0.0
    %9948 = vadd.xlane.f32.xlu0 %v9947
    %v9949 = vpop.xlane.xlu0 %9948
    %v9950 = vsel %vm575, %v9942, 0.0
    %9951 = vadd.xlane.f32.xlu0 %v9950
    %v9952 = vpop.xlane.xlu0 %9951
    %v9953 = vsel %vm575, %v9944, 0.0
    %9954 = vadd.xlane.f32.xlu0 %v9953
    %v9955 = vpop.xlane.xlu0 %9954
    %v9956 = vsel %vm575, %v9946, 0.0
    %9957 = vadd.xlane.f32.xlu0 %v9956
    %v9958 = vpop.xlane.xlu0 %9957
    %v9959 = vrcp.pop %v9949
    %v9960 = vrcp.pop %v9952
    %v9961 = vrcp.pop %v9955
    %v9962 = vrcp.pop %v9958
    %v9963 = vmul.f32 %v9940, %v9959
    %v9964 = vmul.f32 %v9942, %v9960
    %v9965 = vmul.f32 %v9944, %v9961
    %v9966 = vmul.f32 %v9946, %v9962
    %v9968 = vsel %vm575, %v9963, 0
    %9970 = vmatpush.msra.mxu0 0.0
    %9971 = vmatpush.msra.mxu0 0.0
    %9972 = vmatpush.msra.mxu0 0.0
    %9973 = vmatpush.msra.mxu0 0.0
    %9974 = vmatpush.msra.mxu0 0.0
    %9975 = vmatpush.msra.mxu0 0.0
    %9976 = vmatpush.msra.mxu0 0.0
    %9977 = vmatpush.msra.mxu0 0.0
    %9978 = vmatpush.msra.mxu0 0.0
    %9979 = vmatpush.msra.mxu0 0.0
    %9980 = vmatpush.msra.mxu0 0.0
    %9981 = vmatpush.msra.mxu0 0.0
    %9982 = vmatpush.msra.mxu0 0.0
    %9983 = vmatpush.msra.mxu0 0.0
    %9984 = vmatpush.msra.mxu0 0.0
    %9985 = vmatpush.msra.mxu0 %v9808
    %9986 = vmatmul.f32.gmra.mxu0 %v9968
    %v9987 = vpop.f32.mrf.mxu0
    %v9988 = vadd.f32 0.0, %v9987
    %9989 = vdwg.mxu0
    %v9991 = vsel %vm575, %v9964, 0
    %9993 = vmatpush.msra.mxu0 0.0
    %9994 = vmatpush.msra.mxu0 0.0
    %9995 = vmatpush.msra.mxu0 0.0
    %9996 = vmatpush.msra.mxu0 0.0
    %9997 = vmatpush.msra.mxu0 0.0
    %9998 = vmatpush.msra.mxu0 0.0
    %9999 = vmatpush.msra.mxu0 0.0
    %10000 = vmatpush.msra.mxu0 0.0
    %10001 = vmatpush.msra.mxu0 0.0
    %10002 = vmatpush.msra.mxu0 0.0
    %10003 = vmatpush.msra.mxu0 0.0
    %10004 = vmatpush.msra.mxu0 0.0
    %10005 = vmatpush.msra.mxu0 0.0
    %10006 = vmatpush.msra.mxu0 0.0
    %10007 = vmatpush.msra.mxu0 0.0
    %10008 = vmatpush.msra.mxu0 %v9810
    %10009 = vmatmul.f32.gmra.mxu0 %v9991
    %v10010 = vpop.f32.mrf.mxu0
    %v10011 = vadd.f32 0.0, %v10010
    %10012 = vdwg.mxu0
    %v10014 = vsel %vm575, %v9965, 0
    %10016 = vmatpush.msra.mxu0 0.0
    %10017 = vmatpush.msra.mxu0 0.0
    %10018 = vmatpush.msra.mxu0 0.0
    %10019 = vmatpush.msra.mxu0 0.0
    %10020 = vmatpush.msra.mxu0 0.0
    %10021 = vmatpush.msra.mxu0 0.0
    %10022 = vmatpush.msra.mxu0 0.0
    %10023 = vmatpush.msra.mxu0 0.0
    %10024 = vmatpush.msra.mxu0 0.0
    %10025 = vmatpush.msra.mxu0 0.0
    %10026 = vmatpush.msra.mxu0 0.0
    %10027 = vmatpush.msra.mxu0 0.0
    %10028 = vmatpush.msra.mxu0 0.0
    %10029 = vmatpush.msra.mxu0 0.0
    %10030 = vmatpush.msra.mxu0 0.0
    %10031 = vmatpush.msra.mxu0 %v9812
    %10032 = vmatmul.f32.gmra.mxu0 %v10014
    %v10033 = vpop.f32.mrf.mxu0
    %v10034 = vadd.f32 0.0, %v10033
    %10035 = vdwg.mxu0
    %v10037 = vsel %vm575, %v9966, 0
    %10039 = vmatpush.msra.mxu0 0.0
    %10040 = vmatpush.msra.mxu0 0.0
    %10041 = vmatpush.msra.mxu0 0.0
    %10042 = vmatpush.msra.mxu0 0.0
    %10043 = vmatpush.msra.mxu0 0.0
    %10044 = vmatpush.msra.mxu0 0.0
    %10045 = vmatpush.msra.mxu0 0.0
    %10046 = vmatpush.msra.mxu0 0.0
    %10047 = vmatpush.msra.mxu0 0.0
    %10048 = vmatpush.msra.mxu0 0.0
    %10049 = vmatpush.msra.mxu0 0.0
    %10050 = vmatpush.msra.mxu0 0.0
    %10051 = vmatpush.msra.mxu0 0.0
    %10052 = vmatpush.msra.mxu0 0.0
    %10053 = vmatpush.msra.mxu0 0.0
    %10054 = vmatpush.msra.mxu0 %v9814
    %10055 = vmatmul.f32.gmra.mxu0 %v10037
    %v10056 = vpop.f32.mrf.mxu0
    %v10057 = vadd.f32 0.0, %v10056
    %10058 = vdwg.mxu0
    %v10059 = vrot.slane %v10034, 4
    %v10060 = vsel %vm225, %v10059, %v9988
    %v10061 = vrot.slane %v9988, 4
    %v10062 = vsel %vm225, %v10034, %v10061
    %v10064 = vunpack.c.l.s4 1983009808
    %v10065 = vunpack.c.0.s8 %v10064
    %v10066 = vperm.slane %v10060, %v10065
    %v10068 = vunpack.c.l.s4 1983009808
    %v10069 = vunpack.c.0.s8 %v10068
    %v10070 = vperm.slane %v10062, %v10069
    %v10071 = vrot.slane %v10057, 4
    %v10072 = vsel %vm225, %v10071, %v10011
    %v10073 = vrot.slane %v10011, 4
    %v10074 = vsel %vm225, %v10057, %v10073
    %v10076 = vunpack.c.l.s4 1983009808
    %v10077 = vunpack.c.0.s8 %v10076
    %v10078 = vperm.slane %v10072, %v10077
    %v10080 = vunpack.c.l.s4 1983009808
    %v10081 = vunpack.c.0.s8 %v10080
    %v10082 = vperm.slane %v10074, %v10081
    %v10083 = vrot.slane %v10078, 4
    %v10084 = vsel %vm225, %v10083, %v10066
    %v10085 = vrot.slane %v10066, 4
    %v10086 = vsel %vm225, %v10078, %v10085
    %v10088 = vunpack.c.l.s4 1934713408
    %v10089 = vunpack.c.0.s8 %v10088
    %v10090 = vperm.slane %v10084, %v10089
    %v10092 = vunpack.c.l.s4 1934713408
    %v10093 = vunpack.c.0.s8 %v10092
    %v10094 = vperm.slane %v10086, %v10093
    %v10095 = vrot.slane %v10082, 4
    %v10096 = vsel %vm225, %v10095, %v10070
    %v10097 = vrot.slane %v10070, 4
    %v10098 = vsel %vm225, %v10082, %v10097
    %v10100 = vunpack.c.l.s4 1934713408
    %v10101 = vunpack.c.0.s8 %v10100
    %v10102 = vperm.slane %v10096, %v10101
    %v10104 = vunpack.c.l.s4 1934713408
    %v10105 = vunpack.c.0.s8 %v10104
    %v10106 = vperm.slane %v10098, %v10105
    %v10107 = vrot.slane %v10090, 4
    %v10108 = vsel %vm225, 0.0, %v10107
    %v10109 = vrot.slane %v10094, 4
    %v10110 = vsel %vm225, 0.0, %v10109
    %v10111 = vrot.slane %v10102, 4
    %v10112 = vsel %vm225, 0.0, %v10111
    %v10113 = vrot.slane %v10106, 4
    %v10114 = vsel %vm225, 0.0, %v10113
    %v10115 = vsel %vm225, %v10109, %v10090
    %v10117 = vunpack.c.l.s4 1983009808
    %v10118 = vunpack.c.0.s8 %v10117
    %v10119 = vperm.slane %v10115, %v10118
    %v10120 = vrot.slane %v10110, 4
    %v10121 = vsel %vm225, %v10120, %v10108
    %v10123 = vunpack.c.l.s4 1983009808
    %v10124 = vunpack.c.0.s8 %v10123
    %v10125 = vperm.slane %v10121, %v10124
    %v10126 = vsel %vm225, %v10113, %v10102
    %v10128 = vunpack.c.l.s4 1983009808
    %v10129 = vunpack.c.0.s8 %v10128
    %v10130 = vperm.slane %v10126, %v10129
    %v10131 = vrot.slane %v10114, 4
    %v10132 = vsel %vm225, %v10131, %v10112
    %v10134 = vunpack.c.l.s4 1983009808
    %v10135 = vunpack.c.0.s8 %v10134
    %v10136 = vperm.slane %v10132, %v10135
    %v10137 = vrot.slane %v10125, 4
    %v10138 = vsel %vm225, %v10137, %v10119
    %v10139 = vrot.slane %v10119, 4
    %v10140 = vsel %vm225, %v10125, %v10139
    %v10142 = vunpack.c.l.s4 1934713408
    %v10143 = vunpack.c.0.s8 %v10142
    %v10144 = vperm.slane %v10138, %v10143
    %v10146 = vunpack.c.l.s4 1934713408
    %v10147 = vunpack.c.0.s8 %v10146
    %v10148 = vperm.slane %v10140, %v10147
    %v10149 = vrot.slane %v10136, 4
    %v10150 = vsel %vm225, %v10149, %v10130
    %v10151 = vrot.slane %v10130, 4
    %v10152 = vsel %vm225, %v10136, %v10151
    %v10154 = vunpack.c.l.s4 1934713408
    %v10155 = vunpack.c.0.s8 %v10154
    %v10156 = vperm.slane %v10150, %v10155
    %v10158 = vunpack.c.l.s4 1934713408
    %v10159 = vunpack.c.0.s8 %v10158
    %v10160 = vperm.slane %v10152, %v10159
    %v10161 = vrot.slane %v10156, 4
    %v10162 = vsel %vm225, %v10161, %v10144
    %v10163 = vrot.slane %v10144, 4
    %v10164 = vsel %vm225, %v10156, %v10163
    %v10165 = vrot.slane %v10160, 4
    %v10166 = vsel %vm225, %v10165, %v10148
    %v10167 = vrot.slane %v10148, 4
    %v10168 = vsel %vm225, %v10160, %v10167
    %10170 = vrot.lane.b32.xlu0 %v10164, 8
    %v10171 = vpop.permute.xlu0 %10170
    %10174 = vrot.lane.b32.xlu0 %v10166, 16
    %v10175 = vpop.permute.xlu0 %10174
    %10178 = vrot.lane.b32.xlu0 %v10168, 24
    %v10179 = vpop.permute.xlu0 %10178
    %v10181 = vsel %vm575, %v10162, %v10171
    %v10182 = vsel %vm949, %v10181, %v10175
    %v10183 = vsel %vm951, %v10182, %v10179
    %s10184 = scalar_lea.vmem [#allocation2], 736
    %v10185 = vld [vmem:[%s10184] sm:$0xff]
    %v10186 = vld [vmem:[%s10184 + $0x8] sm:$0xff]
    %v10187 = vld [vmem:[%s10184 + $0x10] sm:$0xff]
    %v10188 = vld [vmem:[%s10184 + $0x18] sm:$0xff]
    %v10190 = vsel %vm64, %v9454, 0
    %v10193 = vsel %vm64, %v10183, 0
    %10195 = vmatpush.msra.mxu0 0.0
    %10196 = vmatpush.msra.mxu0 0.0
    %10197 = vmatpush.msra.mxu0 0.0
    %10198 = vmatpush.msra.mxu0 0.0
    %10199 = vmatpush.msra.mxu0 0.0
    %10200 = vmatpush.msra.mxu0 0.0
    %10201 = vmatpush.msra.mxu0 0.0
    %10202 = vmatpush.msra.mxu0 0.0
    %10203 = vmatpush.msra.mxu0 0.0
    %10204 = vmatpush.msra.mxu0 0.0
    %10205 = vmatpush.msra.mxu0 0.0
    %10206 = vmatpush.msra.mxu0 0.0
    %10207 = vmatpush.msra.mxu0 %v10188
    %10208 = vmatpush.msra.mxu0 %v10187
    %10209 = vmatpush.msra.mxu0 %v10186
    %10210 = vmatpush.msra.mxu0 %v10185
    %10211 = vmatmul.f32.gmra.mxu0 %v10190
    %v10212 = vpop.f32.mrf.mxu0
    %v10213 = vadd.f32 0.0, %v10212
    %10214 = vmatmul.f32.gmra.mxu0 %v10193
    %v10215 = vpop.f32.mrf.mxu0
    %v10216 = vadd.f32 0.0, %v10215
    %10217 = vdwg.mxu0
    %v10218 = vadd.f32 %v8581, %v10213
    %v10219 = vadd.f32 %v8582, %v10216
    %v10220 = vperm.slane %v6932, 3
    %v10221 = vadd.f32 %v10218, %v10220
    %v10222 = vadd.f32 %v10219, %v10220
    %v10223 = vsel %vm64, %v10221, 0.0
    %10224 = vadd.xlane.f32.xlu0 %v10223
    %v10225 = vpop.xlane.xlu0 %10224
    %v10226 = vsel %vm64, %v10222, 0.0
    %10227 = vadd.xlane.f32.xlu0 %v10226
    %v10228 = vpop.xlane.xlu0 %10227
    %v10229 = vmul.f32 %v10225, %v77
    %v10230 = vmul.f32 %v10228, %v77
    %v10231 = vsub.f32 %v10221, %v10229
    %v10232 = vsub.f32 %v10222, %v10230
    %v10233 = vmul.f32 %v10231, %v10231
    %v10234 = vmul.f32 %v10232, %v10232
    %v10235 = vsel %vm64, %v10233, 0.0
    %10236 = vadd.xlane.f32.xlu0 %v10235
    %v10237 = vpop.xlane.xlu0 %10236
    %v10238 = vsel %vm64, %v10234, 0.0
    %10239 = vadd.xlane.f32.xlu0 %v10238
    %v10240 = vpop.xlane.xlu0 %10239
    %v10241 = vmul.f32 %v10237, %v77
    %v10242 = vmul.f32 %v10240, %v77
    %v10243 = vadd.f32 %v10241, 1e-05
    %v10244 = vadd.f32 %v10242, 1e-05
    %v10245 = vrsqrt.pop %v10243
    %v10246 = vmul.f32 %v10245, %v10243
    %v10247 = vmul.f32 %v10246, %v10245
    %v10248 = vmul.f32 0.5, %v10247
    %v10249 = vsub.f32 1.5, %v10248
    %v10250 = vmul.f32 %v10245, %v10249
    %vm10251 = vweird.f32 %v10243
    %vm10252 = vweird.f32 %v10245
    %vm10253 = vmor %vm10251, %vm10252
    %v10254 = vsel %vm10253, %v10245, %v10250
    %v10255 = vrsqrt.pop %v10244
    %v10256 = vmul.f32 %v10255, %v10244
    %v10257 = vmul.f32 %v10256, %v10255
    %v10258 = vmul.f32 0.5, %v10257
    %v10259 = vsub.f32 1.5, %v10258
    %v10260 = vmul.f32 %v10255, %v10259
    %vm10261 = vweird.f32 %v10244
    %vm10262 = vweird.f32 %v10255
    %vm10263 = vmor %vm10261, %vm10262
    %v10264 = vsel %vm10263, %v10255, %v10260
    %v10265 = vmul.f32 %v10231, %v10254
    %v10266 = vmul.f32 %v10232, %v10264
    %v10267 = vperm.slane %v6932, 4
    %v10268 = vmul.f32 %v10265, %v10267
    %v10269 = vmul.f32 %v10266, %v10267
    %v10270 = vperm.slane %v6932, 5
    %v10271 = vadd.f32 %v10268, %v10270
    %v10272 = vadd.f32 %v10269, %v10270
    %s10273 = scalar_lea.vmem %s3, 64
    %v10274 = vld [vmem:[%s10273] sm:$0xff]
    %v10275 = vld [vmem:[%s10273 + $0x8] sm:$0xff]
    %v10276 = vld [vmem:[%s10273 + $0x10] sm:$0xff]
    %v10277 = vld [vmem:[%s10273 + $0x18] sm:$0xff]
    %v10279 = vperm.slane %v6934, 0
    %v10282 = vsel %vm64, %v10271, 0
    %v10285 = vsel %vm64, %v10272, 0
    %10287 = vmatpush.msra.mxu0 0.0
    %10288 = vmatpush.msra.mxu0 0.0
    %10289 = vmatpush.msra.mxu0 0.0
    %10290 = vmatpush.msra.mxu0 0.0
    %10291 = vmatpush.msra.mxu0 0.0
    %10292 = vmatpush.msra.mxu0 0.0
    %10293 = vmatpush.msra.mxu0 0.0
    %10294 = vmatpush.msra.mxu0 0.0
    %10295 = vmatpush.msra.mxu0 0.0
    %10296 = vmatpush.msra.mxu0 0.0
    %10297 = vmatpush.msra.mxu0 0.0
    %10298 = vmatpush.msra.mxu0 0.0
    %10299 = vmatpush.msra.mxu0 %v10277
    %10300 = vmatpush.msra.mxu0 %v10276
    %10301 = vmatpush.msra.mxu0 %v10275
    %10302 = vmatpush.msra.mxu0 %v10274
    %10303 = vmatmul.f32.gmra.mxu0 %v10282
    %v10304 = vpop.f32.mrf.mxu0
    %v10305 = vadd.f32 %v10279, %v10304
    %10306 = vmatmul.f32.gmra.mxu0 %v10285
    %v10307 = vpop.f32.mrf.mxu0
    %v10308 = vadd.f32 %v10279, %v10307
    %10309 = vdwg.mxu0
    %v10310 = vmax.f32 %v10305, 0.0
    %v10311 = vmax.f32 %v10308, 0.0
    %s10312 = scalar_lea.vmem %s4, 256
    %v10313 = vld [vmem:[%s10312] sm:$0xff]
    %v10314 = vld [vmem:[%s10312 + $0x8] sm:$0xff]
    %v10315 = vld [vmem:[%s10312 + $0x10] sm:$0xff]
    %v10316 = vld [vmem:[%s10312 + $0x18] sm:$0xff]
    %v10317 = vld [vmem:[%s10312 + $0x20] sm:$0xff]
    %v10318 = vld [vmem:[%s10312 + $0x28] sm:$0xff]
    %v10319 = vld [vmem:[%s10312 + $0x30] sm:$0xff]
    %v10320 = vld [vmem:[%s10312 + $0x38] sm:$0xff]
    %v10321 = vld [vmem:[%s10312 + $0x40] sm:$0xff]
    %v10322 = vld [vmem:[%s10312 + $0x48] sm:$0xff]
    %v10323 = vld [vmem:[%s10312 + $0x50] sm:$0xff]
    %v10324 = vld [vmem:[%s10312 + $0x58] sm:$0xff]
    %v10325 = vld [vmem:[%s10312 + $0x60] sm:$0xff]
    %v10326 = vld [vmem:[%s10312 + $0x68] sm:$0xff]
    %v10327 = vld [vmem:[%s10312 + $0x70] sm:$0xff]
    %v10328 = vld [vmem:[%s10312 + $0x78] sm:$0xff]
    %10329 = vmatpush.msra.mxu0 %v10328
    %10330 = vmatpush.msra.mxu0 %v10327
    %10331 = vmatpush.msra.mxu0 %v10326
    %10332 = vmatpush.msra.mxu0 %v10325
    %10333 = vmatpush.msra.mxu0 %v10324
    %10334 = vmatpush.msra.mxu0 %v10323
    %10335 = vmatpush.msra.mxu0 %v10322
    %10336 = vmatpush.msra.mxu0 %v10321
    %10337 = vmatpush.msra.mxu0 %v10320
    %10338 = vmatpush.msra.mxu0 %v10319
    %10339 = vmatpush.msra.mxu0 %v10318
    %10340 = vmatpush.msra.mxu0 %v10317
    %10341 = vmatpush.msra.mxu0 %v10316
    %10342 = vmatpush.msra.mxu0 %v10315
    %10343 = vmatpush.msra.mxu0 %v10314
    %10344 = vmatpush.msra.mxu0 %v10313
    %10345 = vmatmul.f32.gmra.mxu0 %v10310
    %v10346 = vpop.f32.mrf.mxu0
    %v10347 = vadd.f32 0.0, %v10346
    %10348 = vmatmul.f32.gmra.mxu0 %v10311
    %v10349 = vpop.f32.mrf.mxu0
    %v10350 = vadd.f32 0.0, %v10349
    %10351 = vdwg.mxu0
    %v10352 = vadd.f32 %v10221, %v10347
    %v10353 = vadd.f32 %v10222, %v10350
    %v10354 = vperm.slane %v6932, 6
    %v10355 = vadd.f32 %v10352, %v10354
    %v10356 = vadd.f32 %v10353, %v10354
    %v10357 = vld [vmem:[%s7] sm:$0x3]
    %v10358 = vsel %vm64, %v10355, 0.0
    %10359 = vadd.xlane.f32.xlu0 %v10358
    %v10360 = vpop.xlane.xlu0 %10359
    %v10361 = vsel %vm64, %v10356, 0.0
    %10362 = vadd.xlane.f32.xlu0 %v10361
    %v10363 = vpop.xlane.xlu0 %10362
    %v10364 = vmul.f32 %v10360, %v77
    %v10365 = vmul.f32 %v10363, %v77
    %v10366 = vsub.f32 %v10355, %v10364
    %v10367 = vsub.f32 %v10356, %v10365
    %v10368 = vmul.f32 %v10366, %v10366
    %v10369 = vmul.f32 %v10367, %v10367
    %v10370 = vsel %vm64, %v10368, 0.0
    %10371 = vadd.xlane.f32.xlu0 %v10370
    %v10372 = vpop.xlane.xlu0 %10371
    %v10373 = vsel %vm64, %v10369, 0.0
    %10374 = vadd.xlane.f32.xlu0 %v10373
    %v10375 = vpop.xlane.xlu0 %10374
    %v10376 = vmul.f32 %v10372, %v77
    %v10377 = vmul.f32 %v10375, %v77
    %v10378 = vadd.f32 %v10376, 1e-05
    %v10379 = vadd.f32 %v10377, 1e-05
    %v10380 = vrsqrt.pop %v10378
    %v10381 = vmul.f32 %v10380, %v10378
    %v10382 = vmul.f32 %v10381, %v10380
    %v10383 = vmul.f32 0.5, %v10382
    %v10384 = vsub.f32 1.5, %v10383
    %v10385 = vmul.f32 %v10380, %v10384
    %vm10386 = vweird.f32 %v10378
    %vm10387 = vweird.f32 %v10380
    %vm10388 = vmor %vm10386, %vm10387
    %v10389 = vsel %vm10388, %v10380, %v10385
    %v10390 = vrsqrt.pop %v10379
    %v10391 = vmul.f32 %v10390, %v10379
    %v10392 = vmul.f32 %v10391, %v10390
    %v10393 = vmul.f32 0.5, %v10392
    %v10394 = vsub.f32 1.5, %v10393
    %v10395 = vmul.f32 %v10390, %v10394
    %vm10396 = vweird.f32 %v10379
    %vm10397 = vweird.f32 %v10390
    %vm10398 = vmor %vm10396, %vm10397
    %v10399 = vsel %vm10398, %v10390, %v10395
    %v10400 = vmul.f32 %v10366, %v10389
    %v10401 = vmul.f32 %v10367, %v10399
    %v10402 = vperm.slane %v10357, 0
    %v10403 = vmul.f32 %v10400, %v10402
    %v10404 = vmul.f32 %v10401, %v10402
    %v10405 = vperm.slane %v10357, 1
    %v10406 = vadd.f32 %v10403, %v10405
    %v10407 = vadd.f32 %v10404, %v10405
    %v10408 = vld [vmem:[%s8] sm:$0xff]
    %v10409 = vld [vmem:[%s8 + $0x8] sm:$0xff]
    %v10410 = vld [vmem:[%s8 + $0x10] sm:$0xff]
    %v10411 = vld [vmem:[%s8 + $0x18] sm:$0xff]
    %v10412 = vld [vmem:[%s9] sm:$0x1]
    %v10414 = vperm.slane %v10412, 0
    %v10417 = vsel %vm64, %v10406, 0
    %v10420 = vsel %vm64, %v10407, 0
    %10422 = vmatpush.msra.mxu0 0.0
    %10423 = vmatpush.msra.mxu0 0.0
    %10424 = vmatpush.msra.mxu0 0.0
    %10425 = vmatpush.msra.mxu0 0.0
    %10426 = vmatpush.msra.mxu0 0.0
    %10427 = vmatpush.msra.mxu0 0.0
    %10428 = vmatpush.msra.mxu0 0.0
    %10429 = vmatpush.msra.mxu0 0.0
    %10430 = vmatpush.msra.mxu0 0.0
    %10431 = vmatpush.msra.mxu0 0.0
    %10432 = vmatpush.msra.mxu0 0.0
    %10433 = vmatpush.msra.mxu0 0.0
    %10434 = vmatpush.msra.mxu0 %v10411
    %10435 = vmatpush.msra.mxu0 %v10410
    %10436 = vmatpush.msra.mxu0 %v10409
    %10437 = vmatpush.msra.mxu0 %v10408
    %10438 = vmatmul.f32.gmra.mxu0 %v10417
    %v10439 = vpop.f32.mrf.mxu0
    %v10440 = vadd.f32 %v10414, %v10439
    %10441 = vmatmul.f32.gmra.mxu0 %v10420
    %v10442 = vpop.f32.mrf.mxu0
    %v10443 = vadd.f32 %v10414, %v10442
    %10444 = vdwg.mxu0
    %10445 = vst [vmem:[#allocation5] sm:$0xff] %v10440
    %10446 = vst [vmem:[#allocation5 + $0x8] sm:$0xff] %v10443
    // Predicated region
    $region46: #{decoder_forward.1} parent=1 // pred_check
      _
    $region47: #{decoder_forward.1} parent=1 // pred_check_branch
      %10448 = sbr.rel (0) target = $region49
    $region48: #{decoder_forward.1} parent=1 // pred_region
      %10450 = vsyncadd [#allocation4], 0
      %s10451 = sshll.u32 [#allocation5], 4
      %s10452 = int_to_ptr.vmem [resolvable:$true] %s10451
      %s10453 = sshll.u32 %s10, 4
      %s10454 = int_to_ptr.hbm [resolvable:$true] %s10453
      %10459 = dma.vmem_to_hbm [thread:$0]  %s10452, 256, %s10454, [#allocation4], 128, 128, 8
    $region49: #{decoder_forward.1} parent=1 // pred_fallthru
      _
    // Predicated region
    $region50: #{decoder_forward.1} parent=1 // pred_check
      _
    $region51: #{decoder_forward.1} parent=1 // pred_check_branch
      %10461 = sbr.rel (0) target = $region53
    $region52: #{decoder_forward.1} parent=1 // pred_region
      %10463 = dma.done [#allocation4], 256
    $region53: #{decoder_forward.1} parent=1 // pred_fallthru
      _
    %10464 = vsyncpa [#allocation3], 1
    %10465 = vsyncpa [#allocation4], 1

</llo_original>
